<compile_context>
chip_gen: v7x
topology: tpu7x:2x2x1
jax: 0.10.0
libtpu: 0.0.40
codegen_flags: <defaults>
</compile_context>

<pallas_src>
import functools

import jax
import jax.numpy as jnp
import numpy as np
from jax import lax
from jax.experimental import pallas as pl
from jax.experimental.pallas import tpu as pltpu


def _round_up(x, m):
    return ((x + m - 1) // m) * m


# ---------------------------------------------------------------------------
# Fused Pallas kernel: embedding (folded) + all LSTM layers + final state
# ---------------------------------------------------------------------------
def _music_encoder_kernel(*refs, num_layers, T, B, Hp):
    """Whole MusicEncoder forward in ONE pallas_call.

    refs = [x, (w_ih, w_hh, b) * num_layers, h_final,
            gx_scratch, (seq_scratch if num_layers > 1), h_scratch, c_scratch]

    x:        (T*B, F)      time-major flattened input (row t*B + n), B padded to 8
    w_ih[l]:  (In_l, 8Hp)   [fwd | bwd] for bidirectional layers; (In_l, 4Hp) last layer
    w_hh[l]:  (Hp, 8Hp) / (Hp, 4Hp)
    b[l]:     (1, 8Hp)  / (1, 4Hp)   f32 = b_ih + b_hh (+ folded embedding bias, layer 0)
    h_final:  (B, Hp)       final forward-direction hidden state of the last layer
    gx:       (T*B, 8Hp)    hoisted input-projection scratch (2-D, lane/sublane dense)
    seq:      (T*B, 2Hp)    inter-layer bidirectional activations (VMEM-resident only)
    h, c:     (2B, Hp)      rows [0,B) = forward state, rows [B,2B) = backward state
    Gate order follows PyTorch: [i, f, g, o], each padded to Hp lanes.
    """
    x_ref = refs[0]
    w_refs = []
    idx = 1
    for _ in range(num_layers):
        w_refs.append((refs[idx], refs[idx + 1], refs[idx + 2]))
        idx += 3
    hfin_ref = refs[idx]; idx += 1
    gx_scr = refs[idx]; idx += 1
    seq_scr = None
    if num_layers > 1:
        seq_scr = refs[idx]; idx += 1
    h_scr = refs[idx]
    c_scr = refs[idx + 1]

    G = 4 * Hp
    unroll = True if T <= 32 else 8  # full unroll only for small static T

    def cell(gates, c):
        i_g = jax.nn.sigmoid(gates[:, 0 * Hp:1 * Hp])
        f_g = jax.nn.sigmoid(gates[:, 1 * Hp:2 * Hp])
        g_g = jnp.tanh(gates[:, 2 * Hp:3 * Hp])
        o_g = jax.nn.sigmoid(gates[:, 3 * Hp:4 * Hp])
        c_new = f_g * c + i_g * g_g
        return o_g * jnp.tanh(c_new), c_new

    # ---------------- Bidirectional layers 0 .. num_layers-2 ----------------
    for layer in range(num_layers - 1):
        w_ih, w_hh, b = w_refs[layer]
        src = x_ref[...] if layer == 0 else seq_scr[...]
        # Phase 1: ONE hoisted MXU GEMM for the whole sequence & both directions,
        # bias fused, written straight into the 2-D lane-dense gx scratch.
        gx_scr[...] = jnp.dot(src.astype(w_ih.dtype), w_ih[...],
                              preferred_element_type=jnp.float32) + b[...]

        h_scr[...] = jnp.zeros_like(h_scr)
        c_scr[...] = jnp.zeros_like(c_scr)

        # Phase 2: sequential recurrence. Per step: ONE (2B,Hp)x(Hp,8Hp) MXU push
        # (fwd+bwd fused; the two discarded cross-blocks are cheaper than two pushes
        # while the M dim is tiny) + VPU/EUP gate math. All slices (8,128)-aligned.
        # TODO(synk): stage W_hh in the MXU across steps (matmul_push_rhs/acc_lhs)
        # and shard fwd/bwd across v7x's 2 TensorCores.
        def step(t, carry, w_hh=w_hh):
            rf = pl.multiple_of(t * B, B)             # forward-time row offset
            rb = pl.multiple_of((T - 1 - t) * B, B)   # backward-time row offset
            hh = jnp.dot(h_scr[...].astype(w_hh.dtype), w_hh[...],
                         preferred_element_type=jnp.float32)          # (2B, 8Hp)
            gates_f = gx_scr[pl.ds(rf, B), 0:G] + hh[0:B, 0:G]
            gates_b = gx_scr[pl.ds(rb, B), G:2 * G] + hh[B:2 * B, G:2 * G]
            h_f, c_f = cell(gates_f, c_scr[0:B, :])
            h_b, c_b = cell(gates_b, c_scr[B:2 * B, :])
            h_scr[0:B, :] = h_f
            h_scr[B:2 * B, :] = h_b
            c_scr[0:B, :] = c_f
            c_scr[B:2 * B, :] = c_b
            # Both direction halves go straight into the VMEM-resident (T*B, 2Hp) slab.
            seq_scr[pl.ds(rf, B), 0:Hp] = h_f
            seq_scr[pl.ds(rb, B), Hp:2 * Hp] = h_b
            return carry

        lax.fori_loop(0, T, step, 0, unroll=unroll)

    # ---------------- Last layer: forward direction, final state only -------
    w_ih, w_hh, b = w_refs[num_layers - 1]
    src = x_ref[...] if num_layers == 1 else seq_scr[...]
    # Reuse the left 4Hp columns of the gx scratch for the last layer's projection.
    gx_scr[:, 0:G] = jnp.dot(src.astype(w_ih.dtype), w_ih[...],
                             preferred_element_type=jnp.float32) + b[...]

    h_scr[...] = jnp.zeros_like(h_scr)
    c_scr[...] = jnp.zeros_like(c_scr)

    def step_last(t, carry):
        rf = pl.multiple_of(t * B, B)
        gates = gx_scr[pl.ds(rf, B), 0:G] + jnp.dot(
            h_scr[0:B, :].astype(w_hh.dtype), w_hh[...],
            preferred_element_type=jnp.float32)
        h_f, c_f = cell(gates, c_scr[0:B, :])
        h_scr[0:B, :] = h_f
        c_scr[0:B, :] = c_f
        return carry

    lax.fori_loop(0, T, step_last, 0, unroll=unroll)
    hfin_ref[...] = h_scr[0:B, :]


# ---------------------------------------------------------------------------
# Parameters (deterministic, PyTorch-style uniform init bounds)
# ---------------------------------------------------------------------------
def init_params(key, music_feats, music_emb, hid_size, num_layers):
    def uni(k, shape, bound):
        return jax.random.uniform(k, shape, jnp.float32, -bound, bound)

    keys = iter(jax.random.split(key, 4 + 8 * num_layers))
    k_lin = 1.0 / np.sqrt(music_feats)
    params = {
        "w_emb": uni(next(keys), (music_feats, music_emb), k_lin),  # Linear.weight^T
        "b_emb": uni(next(keys), (1, music_emb), k_lin),            # Linear.bias
        "lstm": [],
    }
    k_lstm = 1.0 / np.sqrt(hid_size)
    for layer in range(num_layers):
        in_size = music_emb if layer == 0 else 2 * hid_size
        layer_p = {}
        for direction in ("fwd", "bwd"):
            w_ih_t = uni(next(keys), (in_size, 4 * hid_size), k_lstm)   # weight_ih^T
            w_hh_t = uni(next(keys), (hid_size, 4 * hid_size), k_lstm)  # weight_hh^T
            b_ih = uni(next(keys), (1, 4 * hid_size), k_lstm)
            b_hh = uni(next(keys), (1, 4 * hid_size), k_lstm)
            layer_p[direction] = {"w_ih": w_ih_t, "w_hh": w_hh_t, "b": b_ih + b_hh}
        params["lstm"].append(layer_p)
    return params


def prepare_kernel_params(params, num_layers, hid_size, mxu_dtype=jnp.float32):
    """One-time weight prep (f32):
       * fold the embedding Linear into layer 0 (W0 = W_emb @ W_ih0, b0 folded),
       * pad every gate block to Hp = round_up(H, 128) lanes (padded cols/bias = 0, so
         padded hidden lanes stay exactly 0 through the recurrence),
       * pack [fwd | bwd] weights column-wise for bidirectional layers,
       * finally cast the GEMM operands (W_ih, W_hh) to `mxu_dtype`; biases stay f32.
    Returns (weights_pytree, static_cfg)."""
    H = hid_size
    Hp = _round_up(H, 128)

    def pad_gate_cols(w):
        # (In, 4H) -> (In, 4Hp): gate block k placed at columns [k*Hp, k*Hp+H).
        out = jnp.zeros((w.shape[0], 4 * Hp), jnp.float32)
        for k in range(4):
            out = out.at[:, k * Hp:k * Hp + H].set(w[:, k * H:(k + 1) * H])
        return out

    def pad_hidden_rows(w):
        # (H, C) -> (Hp, C): padded rows zero (padded h lanes are always 0 anyway).
        return jnp.zeros((Hp, w.shape[1]), jnp.float32).at[:H, :].set(w)

    def pad_bidir_input_rows(w):
        # (2H, C) -> (2Hp, C): fwd-h rows at [0,H), bwd-h rows at [Hp, Hp+H).
        out = jnp.zeros((2 * Hp, w.shape[1]), jnp.float32)
        out = out.at[0:H, :].set(w[0:H, :])
        out = out.at[Hp:Hp + H, :].set(w[H:2 * H, :])
        return out

    w_emb, b_emb = params["w_emb"], params["b_emb"]
    layers = []
    for layer in range(num_layers):
        def prep_dir(p, layer=layer):
            w_ih, b = p["w_ih"], p["b"]
            if layer == 0:
                # Fold the embedding Linear (kept in f32 at prep time).
                b = b_emb @ w_ih + b
                w_ih = w_emb @ w_ih
            w_ih = pad_gate_cols(w_ih)
            if layer > 0:
                w_ih = pad_bidir_input_rows(w_ih)
            w_hh = pad_hidden_rows(pad_gate_cols(p["w_hh"]))
            b = pad_gate_cols(b)
            return w_ih, w_hh, b

        pf = prep_dir(params["lstm"][layer]["fwd"])
        if layer == num_layers - 1:
            # Last layer: only the forward direction is used by forward().
            w_ih, w_hh, b = pf
        else:
            pb = prep_dir(params["lstm"][layer]["bwd"])
            w_ih = jnp.concatenate([pf[0], pb[0]], axis=1)   # (In, 8Hp)
            w_hh = jnp.concatenate([pf[1], pb[1]], axis=1)   # (Hp, 8Hp)
            b = jnp.concatenate([pf[2], pb[2]], axis=1)      # (1, 8Hp)
        layers.append({
            "w_ih": w_ih.astype(mxu_dtype),
            "w_hh": w_hh.astype(mxu_dtype),
            "b": b.astype(jnp.float32),
        })
    weights = {"layers": layers}
    cfg = {"num_layers": num_layers, "H": H, "Hp": Hp}
    return weights, cfg


# ---------------------------------------------------------------------------
# Forward pass wrapper (single pallas_call)
# ---------------------------------------------------------------------------
def music_encoder_forward(weights, music, *, cfg):
    """music: (B, T, music_feats) float32 -> (B, hid_size) float32."""
    B, T, F = music.shape
    num_layers, H, Hp = cfg["num_layers"], cfg["H"], cfg["Hp"]
    layers = weights["layers"]
    mxu_dtype = layers[0]["w_ih"].dtype
    B_pad = _round_up(B, 8)   # f32 sublane tile

    # Time-major, batch padded to the sublane tile, flattened to a 2-D slab.
    # TODO(synk): fold this transpose into the kernel via a T-blocked index_map.
    x = jnp.transpose(music, (1, 0, 2))                  # (T, B, F)
    if B_pad != B:
        x = jnp.pad(x, ((0, 0), (0, B_pad - B), (0, 0)))
    x_flat = x.reshape(T * B_pad, F).astype(mxu_dtype)   # (T*B_pad, F)

    in_arrays = [x_flat]
    in_specs = [pl.BlockSpec(x_flat.shape, lambda i: (0, 0))]
    for lp in layers:
        for nm in ("w_ih", "w_hh", "b"):
            a = lp[nm]
            in_arrays.append(a)
            in_specs.append(pl.BlockSpec(a.shape, lambda i: (0, 0)))

    gx_width = 8 * Hp if num_layers > 1 else 4 * Hp
    scratch_defs = [((T * B_pad, gx_width), jnp.float32)]       # gx
    if num_layers > 1:
        scratch_defs.append(((T * B_pad, 2 * Hp), jnp.float32))  # inter-layer seq
    scratch_defs += [((2 * B_pad, Hp), jnp.float32),             # h (fwd | bwd rows)
                     ((2 * B_pad, Hp), jnp.float32)]             # c
    scratch_shapes = [pltpu.VMEM(s, d) for s, d in scratch_defs]

    # Explicit scoped-VMEM budget: inputs/weights (x2 pipeline buffers) + output +
    # scratches + headroom, capped at v7x's 64 MiB physical per-core VMEM.
    est = sum(2 * int(a.size) * a.dtype.itemsize for a in in_arrays)
    est += 2 * B_pad * Hp * 4
    est += sum(int(np.prod(s)) * jnp.dtype(d).itemsize for s, d in scratch_defs)
    vmem_limit = int(min(max(est + (4 << 20), 32 << 20), 64 << 20))

    kernel = functools.partial(
        _music_encoder_kernel, num_layers=num_layers, T=T, B=B_pad, Hp=Hp)

    out = pl.pallas_call(
        kernel,
        out_shape=jax.ShapeDtypeStruct((B_pad, Hp), jnp.float32),
        grid=(1,),
        in_specs=in_specs,
        out_specs=pl.BlockSpec((B_pad, Hp), lambda i: (0, 0)),
        scratch_shapes=scratch_shapes,
        compiler_params=pltpu.CompilerParams(
            dimension_semantics=("arbitrary",),
            vmem_limit_bytes=vmem_limit),
    )(*in_arrays)

    return out[:B, :H]


# ---------------------------------------------------------------------------
# Pure-JAX reference (unfused math, original parameterization) for verification
# ---------------------------------------------------------------------------
def _lstm_dir_ref(x_tm, w_ih_t, w_hh_t, b):
    T, B, _ = x_tm.shape
    H = w_hh_t.shape[0]
    h = jnp.zeros((B, H), jnp.float32)
    c = jnp.zeros((B, H), jnp.float32)
    outs = []
    for t in range(T):
        gates = x_tm[t] @ w_ih_t + h @ w_hh_t + b
        i_g = jax.nn.sigmoid(gates[:, :H])
        f_g = jax.nn.sigmoid(gates[:, H:2 * H])
        g_g = jnp.tanh(gates[:, 2 * H:3 * H])
        o_g = jax.nn.sigmoid(gates[:, 3 * H:])
        c = f_g * c + i_g * g_g
        h = o_g * jnp.tanh(c)
        outs.append(h)
    return jnp.stack(outs), h


def music_encoder_reference(params, music, num_layers):
    B, T, F = music.shape
    emb = music.reshape(B * T, F) @ params["w_emb"] + params["b_emb"]
    x = jnp.transpose(emb.reshape(B, T, -1), (1, 0, 2))
    for layer in range(num_layers - 1):
        pf = params["lstm"][layer]["fwd"]
        pb = params["lstm"][layer]["bwd"]
        out_f, _ = _lstm_dir_ref(x, pf["w_ih"], pf["w_hh"], pf["b"])
        out_b_rev, _ = _lstm_dir_ref(x[::-1], pb["w_ih"], pb["w_hh"], pb["b"])
        x = jnp.concatenate([out_f, out_b_rev[::-1]], axis=-1)
    plast = params["lstm"][num_layers - 1]["fwd"]
    _, h_fin = _lstm_dir_ref(x, plast["w_ih"], plast["w_hh"], plast["b"])
    return h_fin   # == hid[0][2*num_layers - 2] of nn.LSTM (last layer, fwd direction)


# ---------------------------------------------------------------------------
if __name__ == "__main__":
    B, T = 2, 8
    music_feats, music_emb, hid_size, num_layers = 16, 32, 32, 2

    key = jax.random.PRNGKey(0)
    k_params, k_x = jax.random.split(key)
    params = init_params(k_params, music_feats, music_emb, hid_size, num_layers)
    music = jax.random.normal(k_x, (B, T, music_feats), dtype=jnp.float32)

    ref = music_encoder_reference(params, music, num_layers)

    # f32 MXU operands: tight check against the pure-JAX reference.
    weights_f32, cfg = prepare_kernel_params(params, num_layers, hid_size,
                                             mxu_dtype=jnp.float32)
    fwd_f32 = jax.jit(functools.partial(music_encoder_forward, cfg=cfg))
    out_f32 = jax.block_until_ready(fwd_f32(weights_f32, music))
    assert out_f32.shape == (B, hid_size), out_f32.shape
    np.testing.assert_allclose(np.asarray(out_f32), np.asarray(ref),
                               rtol=1e-4, atol=1e-4)

    # bf16 MXU operands (f32 accumulation / gate math / biases): loose sanity check.
    weights_bf16, cfg_bf16 = prepare_kernel_params(params, num_layers, hid_size,
                                                   mxu_dtype=jnp.bfloat16)
    fwd_bf16 = jax.jit(functools.partial(music_encoder_forward, cfg=cfg_bf16))
    out_bf16 = jax.block_until_ready(fwd_bf16(weights_bf16, music))
    np.testing.assert_allclose(np.asarray(out_bf16), np.asarray(ref),
                               rtol=1e-1, atol=1e-1)

    print("KERNEL_OK")
</pallas_src>

<mosaic_0001>
module attributes {stable_mosaic.version = 11 : i64} {
  func.func @_music_encoder_kernel(%arg0: i32, %arg1: memref<64x16xf32, #tpu.memory_space<vmem>>, %arg2: memref<16x1024xf32, #tpu.memory_space<vmem>>, %arg3: memref<128x1024xf32, #tpu.memory_space<vmem>>, %arg4: memref<1x1024xf32, #tpu.memory_space<vmem>>, %arg5: memref<256x512xf32, #tpu.memory_space<vmem>>, %arg6: memref<128x512xf32, #tpu.memory_space<vmem>>, %arg7: memref<1x512xf32, #tpu.memory_space<vmem>>, %arg8: memref<8x128xf32, #tpu.memory_space<vmem>>, %arg9: memref<64x1024xf32, #tpu.memory_space<vmem>>, %arg10: memref<64x256xf32, #tpu.memory_space<vmem>>, %arg11: memref<16x128xf32, #tpu.memory_space<vmem>>, %arg12: memref<16x128xf32, #tpu.memory_space<vmem>>) attributes {dimension_semantics = [#tpu.dimension_semantics<arbitrary>], iteration_bounds = array<i64: 1>, scalar_prefetch = 0 : i64, scratch_operands = 4 : i64, tpu.core_type = #tpu.core_type<tc>, window_params = [{pipeline_mode = #tpu.pipeline_mode<synchronous>, transform_indices = @transform_0, window_bounds = array<i64: 64, 16>}, {pipeline_mode = #tpu.pipeline_mode<synchronous>, transform_indices = @transform_1, window_bounds = array<i64: 16, 1024>}, {pipeline_mode = #tpu.pipeline_mode<synchronous>, transform_indices = @transform_2, window_bounds = array<i64: 128, 1024>}, {pipeline_mode = #tpu.pipeline_mode<synchronous>, transform_indices = @transform_3, window_bounds = array<i64: 1, 1024>}, {pipeline_mode = #tpu.pipeline_mode<synchronous>, transform_indices = @transform_4, window_bounds = array<i64: 256, 512>}, {pipeline_mode = #tpu.pipeline_mode<synchronous>, transform_indices = @transform_5, window_bounds = array<i64: 128, 512>}, {pipeline_mode = #tpu.pipeline_mode<synchronous>, transform_indices = @transform_6, window_bounds = array<i64: 1, 512>}, {pipeline_mode = #tpu.pipeline_mode<synchronous>, transform_indices = @transform_7, window_bounds = array<i64: 8, 128>}]} {
    %c0 = arith.constant 0 : index
    %c0_0 = arith.constant 0 : index
    %0 = vector.load %arg1[%c0, %c0_0] : memref<64x16xf32, #tpu.memory_space<vmem>>, vector<64x16xf32>
    %c0_1 = arith.constant 0 : index
    %c0_2 = arith.constant 0 : index
    %1 = vector.load %arg2[%c0_1, %c0_2] : memref<16x1024xf32, #tpu.memory_space<vmem>>, vector<16x1024xf32>
    %cst = arith.constant dense<0.000000e+00> : vector<64x1024xf32>
    %2 = tpu.matmul %0, %1, %cst {dimension_numbers = #tpu.dot_dimension_numbers<[1], [0], [0], [1], [0, 0, 1, 1], [], []>} : vector<64x16xf32>, vector<16x1024xf32>, vector<64x1024xf32> -> vector<64x1024xf32>
    %c0_3 = arith.constant 0 : index
    %c0_4 = arith.constant 0 : index
    %3 = vector.load %arg4[%c0_3, %c0_4] : memref<1x1024xf32, #tpu.memory_space<vmem>>, vector<1x1024xf32>
    %4 = vector.broadcast %3 : vector<1x1024xf32> to vector<64x1024xf32>
    %5 = arith.addf %2, %4 : vector<64x1024xf32>
    %c0_5 = arith.constant 0 : index
    %c0_6 = arith.constant 0 : index
    %6 = vector.load %arg9[%c0_5, %c0_6] : memref<64x1024xf32, #tpu.memory_space<vmem>>, vector<64x1024xf32>
    tpu.vector_store %arg9[%c0_5, %c0_6], %5 {strides = array<i32>} : memref<64x1024xf32, #tpu.memory_space<vmem>>, vector<64x1024xf32>,
    %cst_7 = arith.constant 0.000000e+00 : f32
    %7 = vector.broadcast %cst_7 : f32 to vector<16x128xf32>
    %c0_8 = arith.constant 0 : index
    %c0_9 = arith.constant 0 : index
    %8 = vector.load %arg11[%c0_8, %c0_9] : memref<16x128xf32, #tpu.memory_space<vmem>>, vector<16x128xf32>
    tpu.vector_store %arg11[%c0_8, %c0_9], %7 {strides = array<i32>} : memref<16x128xf32, #tpu.memory_space<vmem>>, vector<16x128xf32>,
    %cst_10 = arith.constant 0.000000e+00 : f32
    %9 = vector.broadcast %cst_10 : f32 to vector<16x128xf32>
    %c0_11 = arith.constant 0 : index
    %c0_12 = arith.constant 0 : index
    %10 = vector.load %arg12[%c0_11, %c0_12] : memref<16x128xf32, #tpu.memory_space<vmem>>, vector<16x128xf32>
    tpu.vector_store %arg12[%c0_11, %c0_12], %9 {strides = array<i32>} : memref<16x128xf32, #tpu.memory_space<vmem>>, vector<16x128xf32>,
    %c0_i32 = arith.constant 0 : i32
    %c8_i32 = arith.constant 8 : i32
    %11 = arith.muli %c0_i32, %c8_i32 : i32
    %12 = tpu.assume_multiple %11, 8 : i32
    %c7_i32 = arith.constant 7 : i32
    %13 = arith.subi %c7_i32, %c0_i32 : i32
    %c8_i32_13 = arith.constant 8 : i32
    %14 = arith.muli %13, %c8_i32_13 : i32
    %15 = tpu.assume_multiple %14, 8 : i32
    %c0_14 = arith.constant 0 : index
    %c0_15 = arith.constant 0 : index
    %16 = vector.load %arg11[%c0_14, %c0_15] : memref<16x128xf32, #tpu.memory_space<vmem>>, vector<16x128xf32>
    %c0_16 = arith.constant 0 : index
    %c0_17 = arith.constant 0 : index
    %17 = vector.load %arg3[%c0_16, %c0_17] : memref<128x1024xf32, #tpu.memory_space<vmem>>, vector<128x1024xf32>
    %cst_18 = arith.constant dense<0.000000e+00> : vector<16x1024xf32>
    %18 = tpu.matmul %16, %17, %cst_18 {dimension_numbers = #tpu.dot_dimension_numbers<[1], [0], [0], [1], [0, 0, 1, 1], [], []>} : vector<16x128xf32>, vector<128x1024xf32>, vector<16x1024xf32> -> vector<16x1024xf32>
    %19 = arith.index_cast %12 : i32 to index
    %c0_19 = arith.constant 0 : index
    %20 = vector.load %arg9[%19, %c0_19] : memref<64x1024xf32, #tpu.memory_space<vmem>>, vector<8x512xf32>
    %21 = vector.extract_strided_slice %18 {offsets = [0, 0], sizes = [8, 512], strides = [1, 1]} : vector<16x1024xf32> to vector<8x512xf32>
    %22 = arith.addf %20, %21 : vector<8x512xf32>
    %23 = arith.index_cast %15 : i32 to index
    %c512 = arith.constant 512 : index
    %24 = vector.load %arg9[%23, %c512] : memref<64x1024xf32, #tpu.memory_space<vmem>>, vector<8x512xf32>
    %25 = vector.extract_strided_slice %18 {offsets = [8, 512], sizes = [8, 512], strides = [1, 1]} : vector<16x1024xf32> to vector<8x512xf32>
    %26 = arith.addf %24, %25 : vector<8x512xf32>
    %c0_20 = arith.constant 0 : index
    %c0_21 = arith.constant 0 : index
    %27 = vector.load %arg12[%c0_20, %c0_21] : memref<16x128xf32, #tpu.memory_space<vmem>>, vector<8x128xf32>
    %28 = vector.extract_strided_slice %22 {offsets = [0, 0], sizes = [8, 128], strides = [1, 1]} : vector<8x512xf32> to vector<8x128xf32>
    %29 = arith.negf %28 : vector<8x128xf32>
    %30 = math.exp %29 : vector<8x128xf32>
    %cst_22 = arith.constant 1.000000e+00 : f32
    %31 = vector.broadcast %cst_22 : f32 to vector<8x128xf32>
    %32 = arith.addf %31, %30 : vector<8x128xf32>
    %33 = arith.divf %31, %32 : vector<8x128xf32>
    %34 = vector.extract_strided_slice %22 {offsets = [0, 128], sizes = [8, 128], strides = [1, 1]} : vector<8x512xf32> to vector<8x128xf32>
    %35 = arith.negf %34 : vector<8x128xf32>
    %36 = math.exp %35 : vector<8x128xf32>
    %cst_23 = arith.constant 1.000000e+00 : f32
    %37 = vector.broadcast %cst_23 : f32 to vector<8x128xf32>
    %38 = arith.addf %37, %36 : vector<8x128xf32>
    %39 = arith.divf %37, %38 : vector<8x128xf32>
    %40 = vector.extract_strided_slice %22 {offsets = [0, 256], sizes = [8, 128], strides = [1, 1]} : vector<8x512xf32> to vector<8x128xf32>
    %41 = math.tanh %40 : vector<8x128xf32>
    %42 = vector.extract_strided_slice %22 {offsets = [0, 384], sizes = [8, 128], strides = [1, 1]} : vector<8x512xf32> to vector<8x128xf32>
    %43 = arith.negf %42 : vector<8x128xf32>
    %44 = math.exp %43 : vector<8x128xf32>
    %cst_24 = arith.constant 1.000000e+00 : f32
    %45 = vector.broadcast %cst_24 : f32 to vector<8x128xf32>
    %46 = arith.addf %45, %44 : vector<8x128xf32>
    %47 = arith.divf %45, %46 : vector<8x128xf32>
    %48 = arith.mulf %39, %27 : vector<8x128xf32>
    %49 = arith.mulf %33, %41 : vector<8x128xf32>
    %50 = arith.addf %48, %49 : vector<8x128xf32>
    %51 = math.tanh %50 : vector<8x128xf32>
    %52 = arith.mulf %47, %51 : vector<8x128xf32>
    %c8 = arith.constant 8 : index
    %c0_25 = arith.constant 0 : index
    %53 = vector.load %arg12[%c8, %c0_25] : memref<16x128xf32, #tpu.memory_space<vmem>>, vector<8x128xf32>
    %54 = vector.extract_strided_slice %26 {offsets = [0, 0], sizes = [8, 128], strides = [1, 1]} : vector<8x512xf32> to vector<8x128xf32>
    %55 = arith.negf %54 : vector<8x128xf32>
    %56 = math.exp %55 : vector<8x128xf32>
    %cst_26 = arith.constant 1.000000e+00 : f32
    %57 = vector.broadcast %cst_26 : f32 to vector<8x128xf32>
    %58 = arith.addf %57, %56 : vector<8x128xf32>
    %59 = arith.divf %57, %58 : vector<8x128xf32>
    %60 = vector.extract_strided_slice %26 {offsets = [0, 128], sizes = [8, 128], strides = [1, 1]} : vector<8x512xf32> to vector<8x128xf32>
    %61 = arith.negf %60 : vector<8x128xf32>
    %62 = math.exp %61 : vector<8x128xf32>
    %cst_27 = arith.constant 1.000000e+00 : f32
    %63 = vector.broadcast %cst_27 : f32 to vector<8x128xf32>
    %64 = arith.addf %63, %62 : vector<8x128xf32>
    %65 = arith.divf %63, %64 : vector<8x128xf32>
    %66 = vector.extract_strided_slice %26 {offsets = [0, 256], sizes = [8, 128], strides = [1, 1]} : vector<8x512xf32> to vector<8x128xf32>
    %67 = math.tanh %66 : vector<8x128xf32>
    %68 = vector.extract_strided_slice %26 {offsets = [0, 384], sizes = [8, 128], strides = [1, 1]} : vector<8x512xf32> to vector<8x128xf32>
    %69 = arith.negf %68 : vector<8x128xf32>
    %70 = math.exp %69 : vector<8x128xf32>
    %cst_28 = arith.constant 1.000000e+00 : f32
    %71 = vector.broadcast %cst_28 : f32 to vector<8x128xf32>
    %72 = arith.addf %71, %70 : vector<8x128xf32>
    %73 = arith.divf %71, %72 : vector<8x128xf32>
    %74 = arith.mulf %65, %53 : vector<8x128xf32>
    %75 = arith.mulf %59, %67 : vector<8x128xf32>
    %76 = arith.addf %74, %75 : vector<8x128xf32>
    %77 = math.tanh %76 : vector<8x128xf32>
    %78 = arith.mulf %73, %77 : vector<8x128xf32>
    %c0_29 = arith.constant 0 : index
    %c0_30 = arith.constant 0 : index
    %79 = vector.load %arg11[%c0_29, %c0_30] : memref<16x128xf32, #tpu.memory_space<vmem>>, vector<8x128xf32>
    tpu.vector_store %arg11[%c0_29, %c0_30], %52 {strides = array<i32>} : memref<16x128xf32, #tpu.memory_space<vmem>>, vector<8x128xf32>,
    %c8_31 = arith.constant 8 : index
    %c0_32 = arith.constant 0 : index
    %80 = vector.load %arg11[%c8_31, %c0_32] : memref<16x128xf32, #tpu.memory_space<vmem>>, vector<8x128xf32>
    tpu.vector_store %arg11[%c8_31, %c0_32], %78 {strides = array<i32>} : memref<16x128xf32, #tpu.memory_space<vmem>>, vector<8x128xf32>,
    %c0_33 = arith.constant 0 : index
    %c0_34 = arith.constant 0 : index
    %81 = vector.load %arg12[%c0_33, %c0_34] : memref<16x128xf32, #tpu.memory_space<vmem>>, vector<8x128xf32>
    tpu.vector_store %arg12[%c0_33, %c0_34], %50 {strides = array<i32>} : memref<16x128xf32, #tpu.memory_space<vmem>>, vector<8x128xf32>,
    %c8_35 = arith.constant 8 : index
    %c0_36 = arith.constant 0 : index
    %82 = vector.load %arg12[%c8_35, %c0_36] : memref<16x128xf32, #tpu.memory_space<vmem>>, vector<8x128xf32>
    tpu.vector_store %arg12[%c8_35, %c0_36], %76 {strides = array<i32>} : memref<16x128xf32, #tpu.memory_space<vmem>>, vector<8x128xf32>,
    %83 = arith.index_cast %12 : i32 to index
    %c0_37 = arith.constant 0 : index
    %84 = vector.load %arg10[%83, %c0_37] : memref<64x256xf32, #tpu.memory_space<vmem>>, vector<8x128xf32>
    tpu.vector_store %arg10[%83, %c0_37], %52 {strides = array<i32>} : memref<64x256xf32, #tpu.memory_space<vmem>>, vector<8x128xf32>,
    %85 = arith.index_cast %15 : i32 to index
    %c128 = arith.constant 128 : index
    %86 = vector.load %arg10[%85, %c128] : memref<64x256xf32, #tpu.memory_space<vmem>>, vector<8x128xf32>
    tpu.vector_store %arg10[%85, %c128], %78 {strides = array<i32>} : memref<64x256xf32, #tpu.memory_space<vmem>>, vector<8x128xf32>,
    %c1_i32 = arith.constant 1 : i32
    %c8_i32_38 = arith.constant 8 : i32
    %87 = arith.muli %c1_i32, %c8_i32_38 : i32
    %88 = tpu.assume_multiple %87, 8 : i32
    %c7_i32_39 = arith.constant 7 : i32
    %89 = arith.subi %c7_i32_39, %c1_i32 : i32
    %c8_i32_40 = arith.constant 8 : i32
    %90 = arith.muli %89, %c8_i32_40 : i32
    %91 = tpu.assume_multiple %90, 8 : i32
    %c0_41 = arith.constant 0 : index
    %c0_42 = arith.constant 0 : index
    %92 = vector.load %arg11[%c0_41, %c0_42] : memref<16x128xf32, #tpu.memory_space<vmem>>, vector<16x128xf32>
    %c0_43 = arith.constant 0 : index
    %c0_44 = arith.constant 0 : index
    %93 = vector.load %arg3[%c0_43, %c0_44] : memref<128x1024xf32, #tpu.memory_space<vmem>>, vector<128x1024xf32>
    %cst_45 = arith.constant dense<0.000000e+00> : vector<16x1024xf32>
    %94 = tpu.matmul %92, %93, %cst_45 {dimension_numbers = #tpu.dot_dimension_numbers<[1], [0], [0], [1], [0, 0, 1, 1], [], []>} : vector<16x128xf32>, vector<128x1024xf32>, vector<16x1024xf32> -> vector<16x1024xf32>
    %95 = arith.index_cast %88 : i32 to index
    %c0_46 = arith.constant 0 : index
    %96 = vector.load %arg9[%95, %c0_46] : memref<64x1024xf32, #tpu.memory_space<vmem>>, vector<8x512xf32>
    %97 = vector.extract_strided_slice %94 {offsets = [0, 0], sizes = [8, 512], strides = [1, 1]} : vector<16x1024xf32> to vector<8x512xf32>
    %98 = arith.addf %96, %97 : vector<8x512xf32>
    %99 = arith.index_cast %91 : i32 to index
    %c512_47 = arith.constant 512 : index
    %100 = vector.load %arg9[%99, %c512_47] : memref<64x1024xf32, #tpu.memory_space<vmem>>, vector<8x512xf32>
    %101 = vector.extract_strided_slice %94 {offsets = [8, 512], sizes = [8, 512], strides = [1, 1]} : vector<16x1024xf32> to vector<8x512xf32>
    %102 = arith.addf %100, %101 : vector<8x512xf32>
    %c0_48 = arith.constant 0 : index
    %c0_49 = arith.constant 0 : index
    %103 = vector.load %arg12[%c0_48, %c0_49] : memref<16x128xf32, #tpu.memory_space<vmem>>, vector<8x128xf32>
    %104 = vector.extract_strided_slice %98 {offsets = [0, 0], sizes = [8, 128], strides = [1, 1]} : vector<8x512xf32> to vector<8x128xf32>
    %105 = arith.negf %104 : vector<8x128xf32>
    %106 = math.exp %105 : vector<8x128xf32>
    %cst_50 = arith.constant 1.000000e+00 : f32
    %107 = vector.broadcast %cst_50 : f32 to vector<8x128xf32>
    %108 = arith.addf %107, %106 : vector<8x128xf32>
    %109 = arith.divf %107, %108 : vector<8x128xf32>
    %110 = vector.extract_strided_slice %98 {offsets = [0, 128], sizes = [8, 128], strides = [1, 1]} : vector<8x512xf32> to vector<8x128xf32>
    %111 = arith.negf %110 : vector<8x128xf32>
    %112 = math.exp %111 : vector<8x128xf32>
    %cst_51 = arith.constant 1.000000e+00 : f32
    %113 = vector.broadcast %cst_51 : f32 to vector<8x128xf32>
    %114 = arith.addf %113, %112 : vector<8x128xf32>
    %115 = arith.divf %113, %114 : vector<8x128xf32>
    %116 = vector.extract_strided_slice %98 {offsets = [0, 256], sizes = [8, 128], strides = [1, 1]} : vector<8x512xf32> to vector<8x128xf32>
    %117 = math.tanh %116 : vector<8x128xf32>
    %118 = vector.extract_strided_slice %98 {offsets = [0, 384], sizes = [8, 128], strides = [1, 1]} : vector<8x512xf32> to vector<8x128xf32>
    %119 = arith.negf %118 : vector<8x128xf32>
    %120 = math.exp %119 : vector<8x128xf32>
    %cst_52 = arith.constant 1.000000e+00 : f32
    %121 = vector.broadcast %cst_52 : f32 to vector<8x128xf32>
    %122 = arith.addf %121, %120 : vector<8x128xf32>
    %123 = arith.divf %121, %122 : vector<8x128xf32>
    %124 = arith.mulf %115, %103 : vector<8x128xf32>
    %125 = arith.mulf %109, %117 : vector<8x128xf32>
    %126 = arith.addf %124, %125 : vector<8x128xf32>
    %127 = math.tanh %126 : vector<8x128xf32>
    %128 = arith.mulf %123, %127 : vector<8x128xf32>
    %c8_53 = arith.constant 8 : index
    %c0_54 = arith.constant 0 : index
    %129 = vector.load %arg12[%c8_53, %c0_54] : memref<16x128xf32, #tpu.memory_space<vmem>>, vector<8x128xf32>
    %130 = vector.extract_strided_slice %102 {offsets = [0, 0], sizes = [8, 128], strides = [1, 1]} : vector<8x512xf32> to vector<8x128xf32>
    %131 = arith.negf %130 : vector<8x128xf32>
    %132 = math.exp %131 : vector<8x128xf32>
    %cst_55 = arith.constant 1.000000e+00 : f32
    %133 = vector.broadcast %cst_55 : f32 to vector<8x128xf32>
    %134 = arith.addf %133, %132 : vector<8x128xf32>
    %135 = arith.divf %133, %134 : vector<8x128xf32>
    %136 = vector.extract_strided_slice %102 {offsets = [0, 128], sizes = [8, 128], strides = [1, 1]} : vector<8x512xf32> to vector<8x128xf32>
    %137 = arith.negf %136 : vector<8x128xf32>
    %138 = math.exp %137 : vector<8x128xf32>
    %cst_56 = arith.constant 1.000000e+00 : f32
    %139 = vector.broadcast %cst_56 : f32 to vector<8x128xf32>
    %140 = arith.addf %139, %138 : vector<8x128xf32>
    %141 = arith.divf %139, %140 : vector<8x128xf32>
    %142 = vector.extract_strided_slice %102 {offsets = [0, 256], sizes = [8, 128], strides = [1, 1]} : vector<8x512xf32> to vector<8x128xf32>
    %143 = math.tanh %142 : vector<8x128xf32>
    %144 = vector.extract_strided_slice %102 {offsets = [0, 384], sizes = [8, 128], strides = [1, 1]} : vector<8x512xf32> to vector<8x128xf32>
    %145 = arith.negf %144 : vector<8x128xf32>
    %146 = math.exp %145 : vector<8x128xf32>
    %cst_57 = arith.constant 1.000000e+00 : f32
    %147 = vector.broadcast %cst_57 : f32 to vector<8x128xf32>
    %148 = arith.addf %147, %146 : vector<8x128xf32>
    %149 = arith.divf %147, %148 : vector<8x128xf32>
    %150 = arith.mulf %141, %129 : vector<8x128xf32>
    %151 = arith.mulf %135, %143 : vector<8x128xf32>
    %152 = arith.addf %150, %151 : vector<8x128xf32>
    %153 = math.tanh %152 : vector<8x128xf32>
    %154 = arith.mulf %149, %153 : vector<8x128xf32>
    %c0_58 = arith.constant 0 : index
    %c0_59 = arith.constant 0 : index
    %155 = vector.load %arg11[%c0_58, %c0_59] : memref<16x128xf32, #tpu.memory_space<vmem>>, vector<8x128xf32>
    tpu.vector_store %arg11[%c0_58, %c0_59], %128 {strides = array<i32>} : memref<16x128xf32, #tpu.memory_space<vmem>>, vector<8x128xf32>,
    %c8_60 = arith.constant 8 : index
    %c0_61 = arith.constant 0 : index
    %156 = vector.load %arg11[%c8_60, %c0_61] : memref<16x128xf32, #tpu.memory_space<vmem>>, vector<8x128xf32>
    tpu.vector_store %arg11[%c8_60, %c0_61], %154 {strides = array<i32>} : memref<16x128xf32, #tpu.memory_space<vmem>>, vector<8x128xf32>,
    %c0_62 = arith.constant 0 : index
    %c0_63 = arith.constant 0 : index
    %157 = vector.load %arg12[%c0_62, %c0_63] : memref<16x128xf32, #tpu.memory_space<vmem>>, vector<8x128xf32>
    tpu.vector_store %arg12[%c0_62, %c0_63], %126 {strides = array<i32>} : memref<16x128xf32, #tpu.memory_space<vmem>>, vector<8x128xf32>,
    %c8_64 = arith.constant 8 : index
    %c0_65 = arith.constant 0 : index
    %158 = vector.load %arg12[%c8_64, %c0_65] : memref<16x128xf32, #tpu.memory_space<vmem>>, vector<8x128xf32>
    tpu.vector_store %arg12[%c8_64, %c0_65], %152 {strides = array<i32>} : memref<16x128xf32, #tpu.memory_space<vmem>>, vector<8x128xf32>,
    %159 = arith.index_cast %88 : i32 to index
    %c0_66 = arith.constant 0 : index
    %160 = vector.load %arg10[%159, %c0_66] : memref<64x256xf32, #tpu.memory_space<vmem>>, vector<8x128xf32>
    tpu.vector_store %arg10[%159, %c0_66], %128 {strides = array<i32>} : memref<64x256xf32, #tpu.memory_space<vmem>>, vector<8x128xf32>,
    %161 = arith.index_cast %91 : i32 to index
    %c128_67 = arith.constant 128 : index
    %162 = vector.load %arg10[%161, %c128_67] : memref<64x256xf32, #tpu.memory_space<vmem>>, vector<8x128xf32>
    tpu.vector_store %arg10[%161, %c128_67], %154 {strides = array<i32>} : memref<64x256xf32, #tpu.memory_space<vmem>>, vector<8x128xf32>,
    %c2_i32 = arith.constant 2 : i32
    %c8_i32_68 = arith.constant 8 : i32
    %163 = arith.muli %c2_i32, %c8_i32_68 : i32
    %164 = tpu.assume_multiple %163, 8 : i32
    %c7_i32_69 = arith.constant 7 : i32
    %165 = arith.subi %c7_i32_69, %c2_i32 : i32
    %c8_i32_70 = arith.constant 8 : i32
    %166 = arith.muli %165, %c8_i32_70 : i32
    %167 = tpu.assume_multiple %166, 8 : i32
    %c0_71 = arith.constant 0 : index
    %c0_72 = arith.constant 0 : index
    %168 = vector.load %arg11[%c0_71, %c0_72] : memref<16x128xf32, #tpu.memory_space<vmem>>, vector<16x128xf32>
    %c0_73 = arith.constant 0 : index
    %c0_74 = arith.constant 0 : index
    %169 = vector.load %arg3[%c0_73, %c0_74] : memref<128x1024xf32, #tpu.memory_space<vmem>>, vector<128x1024xf32>
    %cst_75 = arith.constant dense<0.000000e+00> : vector<16x1024xf32>
    %170 = tpu.matmul %168, %169, %cst_75 {dimension_numbers = #tpu.dot_dimension_numbers<[1], [0], [0], [1], [0, 0, 1, 1], [], []>} : vector<16x128xf32>, vector<128x1024xf32>, vector<16x1024xf32> -> vector<16x1024xf32>
    %171 = arith.index_cast %164 : i32 to index
    %c0_76 = arith.constant 0 : index
    %172 = vector.load %arg9[%171, %c0_76] : memref<64x1024xf32, #tpu.memory_space<vmem>>, vector<8x512xf32>
    %173 = vector.extract_strided_slice %170 {offsets = [0, 0], sizes = [8, 512], strides = [1, 1]} : vector<16x1024xf32> to vector<8x512xf32>
    %174 = arith.addf %172, %173 : vector<8x512xf32>
    %175 = arith.index_cast %167 : i32 to index
    %c512_77 = arith.constant 512 : index
    %176 = vector.load %arg9[%175, %c512_77] : memref<64x1024xf32, #tpu.memory_space<vmem>>, vector<8x512xf32>
    %177 = vector.extract_strided_slice %170 {offsets = [8, 512], sizes = [8, 512], strides = [1, 1]} : vector<16x1024xf32> to vector<8x512xf32>
    %178 = arith.addf %176, %177 : vector<8x512xf32>
    %c0_78 = arith.constant 0 : index
    %c0_79 = arith.constant 0 : index
    %179 = vector.load %arg12[%c0_78, %c0_79] : memref<16x128xf32, #tpu.memory_space<vmem>>, vector<8x128xf32>
    %180 = vector.extract_strided_slice %174 {offsets = [0, 0], sizes = [8, 128], strides = [1, 1]} : vector<8x512xf32> to vector<8x128xf32>
    %181 = arith.negf %180 : vector<8x128xf32>
    %182 = math.exp %181 : vector<8x128xf32>
    %cst_80 = arith.constant 1.000000e+00 : f32
    %183 = vector.broadcast %cst_80 : f32 to vector<8x128xf32>
    %184 = arith.addf %183, %182 : vector<8x128xf32>
    %185 = arith.divf %183, %184 : vector<8x128xf32>
    %186 = vector.extract_strided_slice %174 {offsets = [0, 128], sizes = [8, 128], strides = [1, 1]} : vector<8x512xf32> to vector<8x128xf32>
    %187 = arith.negf %186 : vector<8x128xf32>
    %188 = math.exp %187 : vector<8x128xf32>
    %cst_81 = arith.constant 1.000000e+00 : f32
    %189 = vector.broadcast %cst_81 : f32 to vector<8x128xf32>
    %190 = arith.addf %189, %188 : vector<8x128xf32>
    %191 = arith.divf %189, %190 : vector<8x128xf32>
    %192 = vector.extract_strided_slice %174 {offsets = [0, 256], sizes = [8, 128], strides = [1, 1]} : vector<8x512xf32> to vector<8x128xf32>
    %193 = math.tanh %192 : vector<8x128xf32>
    %194 = vector.extract_strided_slice %174 {offsets = [0, 384], sizes = [8, 128], strides = [1, 1]} : vector<8x512xf32> to vector<8x128xf32>
    %195 = arith.negf %194 : vector<8x128xf32>
    %196 = math.exp %195 : vector<8x128xf32>
    %cst_82 = arith.constant 1.000000e+00 : f32
    %197 = vector.broadcast %cst_82 : f32 to vector<8x128xf32>
    %198 = arith.addf %197, %196 : vector<8x128xf32>
    %199 = arith.divf %197, %198 : vector<8x128xf32>
    %200 = arith.mulf %191, %179 : vector<8x128xf32>
    %201 = arith.mulf %185, %193 : vector<8x128xf32>
    %202 = arith.addf %200, %201 : vector<8x128xf32>
    %203 = math.tanh %202 : vector<8x128xf32>
    %204 = arith.mulf %199, %203 : vector<8x128xf32>
    %c8_83 = arith.constant 8 : index
    %c0_84 = arith.constant 0 : index
    %205 = vector.load %arg12[%c8_83, %c0_84] : memref<16x128xf32, #tpu.memory_space<vmem>>, vector<8x128xf32>
    %206 = vector.extract_strided_slice %178 {offsets = [0, 0], sizes = [8, 128], strides = [1, 1]} : vector<8x512xf32> to vector<8x128xf32>
    %207 = arith.negf %206 : vector<8x128xf32>
    %208 = math.exp %207 : vector<8x128xf32>
    %cst_85 = arith.constant 1.000000e+00 : f32
    %209 = vector.broadcast %cst_85 : f32 to vector<8x128xf32>
    %210 = arith.addf %209, %208 : vector<8x128xf32>
    %211 = arith.divf %209, %210 : vector<8x128xf32>
    %212 = vector.extract_strided_slice %178 {offsets = [0, 128], sizes = [8, 128], strides = [1, 1]} : vector<8x512xf32> to vector<8x128xf32>
    %213 = arith.negf %212 : vector<8x128xf32>
    %214 = math.exp %213 : vector<8x128xf32>
    %cst_86 = arith.constant 1.000000e+00 : f32
    %215 = vector.broadcast %cst_86 : f32 to vector<8x128xf32>
    %216 = arith.addf %215, %214 : vector<8x128xf32>
    %217 = arith.divf %215, %216 : vector<8x128xf32>
    %218 = vector.extract_strided_slice %178 {offsets = [0, 256], sizes = [8, 128], strides = [1, 1]} : vector<8x512xf32> to vector<8x128xf32>
    %219 = math.tanh %218 : vector<8x128xf32>
    %220 = vector.extract_strided_slice %178 {offsets = [0, 384], sizes = [8, 128], strides = [1, 1]} : vector<8x512xf32> to vector<8x128xf32>
    %221 = arith.negf %220 : vector<8x128xf32>
    %222 = math.exp %221 : vector<8x128xf32>
    %cst_87 = arith.constant 1.000000e+00 : f32
    %223 = vector.broadcast %cst_87 : f32 to vector<8x128xf32>
    %224 = arith.addf %223, %222 : vector<8x128xf32>
    %225 = arith.divf %223, %224 : vector<8x128xf32>
    %226 = arith.mulf %217, %205 : vector<8x128xf32>
    %227 = arith.mulf %211, %219 : vector<8x128xf32>
    %228 = arith.addf %226, %227 : vector<8x128xf32>
    %229 = math.tanh %228 : vector<8x128xf32>
    %230 = arith.mulf %225, %229 : vector<8x128xf32>
    %c0_88 = arith.constant 0 : index
    %c0_89 = arith.constant 0 : index
    %231 = vector.load %arg11[%c0_88, %c0_89] : memref<16x128xf32, #tpu.memory_space<vmem>>, vector<8x128xf32>
    tpu.vector_store %arg11[%c0_88, %c0_89], %204 {strides = array<i32>} : memref<16x128xf32, #tpu.memory_space<vmem>>, vector<8x128xf32>,
    %c8_90 = arith.constant 8 : index
    %c0_91 = arith.constant 0 : index
    %232 = vector.load %arg11[%c8_90, %c0_91] : memref<16x128xf32, #tpu.memory_space<vmem>>, vector<8x128xf32>
    tpu.vector_store %arg11[%c8_90, %c0_91], %230 {strides = array<i32>} : memref<16x128xf32, #tpu.memory_space<vmem>>, vector<8x128xf32>,
    %c0_92 = arith.constant 0 : index
    %c0_93 = arith.constant 0 : index
    %233 = vector.load %arg12[%c0_92, %c0_93] : memref<16x128xf32, #tpu.memory_space<vmem>>, vector<8x128xf32>
    tpu.vector_store %arg12[%c0_92, %c0_93], %202 {strides = array<i32>} : memref<16x128xf32, #tpu.memory_space<vmem>>, vector<8x128xf32>,
    %c8_94 = arith.constant 8 : index
    %c0_95 = arith.constant 0 : index
    %234 = vector.load %arg12[%c8_94, %c0_95] : memref<16x128xf32, #tpu.memory_space<vmem>>, vector<8x128xf32>
    tpu.vector_store %arg12[%c8_94, %c0_95], %228 {strides = array<i32>} : memref<16x128xf32, #tpu.memory_space<vmem>>, vector<8x128xf32>,
    %235 = arith.index_cast %164 : i32 to index
    %c0_96 = arith.constant 0 : index
    %236 = vector.load %arg10[%235, %c0_96] : memref<64x256xf32, #tpu.memory_space<vmem>>, vector<8x128xf32>
    tpu.vector_store %arg10[%235, %c0_96], %204 {strides = array<i32>} : memref<64x256xf32, #tpu.memory_space<vmem>>, vector<8x128xf32>,
    %237 = arith.index_cast %167 : i32 to index
    %c128_97 = arith.constant 128 : index
    %238 = vector.load %arg10[%237, %c128_97] : memref<64x256xf32, #tpu.memory_space<vmem>>, vector<8x128xf32>
    tpu.vector_store %arg10[%237, %c128_97], %230 {strides = array<i32>} : memref<64x256xf32, #tpu.memory_space<vmem>>, vector<8x128xf32>,
    %c3_i32 = arith.constant 3 : i32
    %c8_i32_98 = arith.constant 8 : i32
    %239 = arith.muli %c3_i32, %c8_i32_98 : i32
    %240 = tpu.assume_multiple %239, 8 : i32
    %c7_i32_99 = arith.constant 7 : i32
    %241 = arith.subi %c7_i32_99, %c3_i32 : i32
    %c8_i32_100 = arith.constant 8 : i32
    %242 = arith.muli %241, %c8_i32_100 : i32
    %243 = tpu.assume_multiple %242, 8 : i32
    %c0_101 = arith.constant 0 : index
    %c0_102 = arith.constant 0 : index
    %244 = vector.load %arg11[%c0_101, %c0_102] : memref<16x128xf32, #tpu.memory_space<vmem>>, vector<16x128xf32>
    %c0_103 = arith.constant 0 : index
    %c0_104 = arith.constant 0 : index
    %245 = vector.load %arg3[%c0_103, %c0_104] : memref<128x1024xf32, #tpu.memory_space<vmem>>, vector<128x1024xf32>
    %cst_105 = arith.constant dense<0.000000e+00> : vector<16x1024xf32>
    %246 = tpu.matmul %244, %245, %cst_105 {dimension_numbers = #tpu.dot_dimension_numbers<[1], [0], [0], [1], [0, 0, 1, 1], [], []>} : vector<16x128xf32>, vector<128x1024xf32>, vector<16x1024xf32> -> vector<16x1024xf32>
    %247 = arith.index_cast %240 : i32 to index
    %c0_106 = arith.constant 0 : index
    %248 = vector.load %arg9[%247, %c0_106] : memref<64x1024xf32, #tpu.memory_space<vmem>>, vector<8x512xf32>
    %249 = vector.extract_strided_slice %246 {offsets = [0, 0], sizes = [8, 512], strides = [1, 1]} : vector<16x1024xf32> to vector<8x512xf32>
    %250 = arith.addf %248, %249 : vector<8x512xf32>
    %251 = arith.index_cast %243 : i32 to index
    %c512_107 = arith.constant 512 : index
    %252 = vector.load %arg9[%251, %c512_107] : memref<64x1024xf32, #tpu.memory_space<vmem>>, vector<8x512xf32>
    %253 = vector.extract_strided_slice %246 {offsets = [8, 512], sizes = [8, 512], strides = [1, 1]} : vector<16x1024xf32> to vector<8x512xf32>
    %254 = arith.addf %252, %253 : vector<8x512xf32>
    %c0_108 = arith.constant 0 : index
    %c0_109 = arith.constant 0 : index
    %255 = vector.load %arg12[%c0_108, %c0_109] : memref<16x128xf32, #tpu.memory_space<vmem>>, vector<8x128xf32>
    %256 = vector.extract_strided_slice %250 {offsets = [0, 0], sizes = [8, 128], strides = [1, 1]} : vector<8x512xf32> to vector<8x128xf32>
    %257 = arith.negf %256 : vector<8x128xf32>
    %258 = math.exp %257 : vector<8x128xf32>
    %cst_110 = arith.constant 1.000000e+00 : f32
    %259 = vector.broadcast %cst_110 : f32 to vector<8x128xf32>
    %260 = arith.addf %259, %258 : vector<8x128xf32>
    %261 = arith.divf %259, %260 : vector<8x128xf32>
    %262 = vector.extract_strided_slice %250 {offsets = [0, 128], sizes = [8, 128], strides = [1, 1]} : vector<8x512xf32> to vector<8x128xf32>
    %263 = arith.negf %262 : vector<8x128xf32>
    %264 = math.exp %263 : vector<8x128xf32>
    %cst_111 = arith.constant 1.000000e+00 : f32
    %265 = vector.broadcast %cst_111 : f32 to vector<8x128xf32>
    %266 = arith.addf %265, %264 : vector<8x128xf32>
    %267 = arith.divf %265, %266 : vector<8x128xf32>
    %268 = vector.extract_strided_slice %250 {offsets = [0, 256], sizes = [8, 128], strides = [1, 1]} : vector<8x512xf32> to vector<8x128xf32>
    %269 = math.tanh %268 : vector<8x128xf32>
    %270 = vector.extract_strided_slice %250 {offsets = [0, 384], sizes = [8, 128], strides = [1, 1]} : vector<8x512xf32> to vector<8x128xf32>
    %271 = arith.negf %270 : vector<8x128xf32>
    %272 = math.exp %271 : vector<8x128xf32>
    %cst_112 = arith.constant 1.000000e+00 : f32
    %273 = vector.broadcast %cst_112 : f32 to vector<8x128xf32>
    %274 = arith.addf %273, %272 : vector<8x128xf32>
    %275 = arith.divf %273, %274 : vector<8x128xf32>
    %276 = arith.mulf %267, %255 : vector<8x128xf32>
    %277 = arith.mulf %261, %269 : vector<8x128xf32>
    %278 = arith.addf %276, %277 : vector<8x128xf32>
    %279 = math.tanh %278 : vector<8x128xf32>
    %280 = arith.mulf %275, %279 : vector<8x128xf32>
    %c8_113 = arith.constant 8 : index
    %c0_114 = arith.constant 0 : index
    %281 = vector.load %arg12[%c8_113, %c0_114] : memref<16x128xf32, #tpu.memory_space<vmem>>, vector<8x128xf32>
    %282 = vector.extract_strided_slice %254 {offsets = [0, 0], sizes = [8, 128], strides = [1, 1]} : vector<8x512xf32> to vector<8x128xf32>
    %283 = arith.negf %282 : vector<8x128xf32>
    %284 = math.exp %283 : vector<8x128xf32>
    %cst_115 = arith.constant 1.000000e+00 : f32
    %285 = vector.broadcast %cst_115 : f32 to vector<8x128xf32>
    %286 = arith.addf %285, %284 : vector<8x128xf32>
    %287 = arith.divf %285, %286 : vector<8x128xf32>
    %288 = vector.extract_strided_slice %254 {offsets = [0, 128], sizes = [8, 128], strides = [1, 1]} : vector<8x512xf32> to vector<8x128xf32>
    %289 = arith.negf %288 : vector<8x128xf32>
    %290 = math.exp %289 : vector<8x128xf32>
    %cst_116 = arith.constant 1.000000e+00 : f32
    %291 = vector.broadcast %cst_116 : f32 to vector<8x128xf32>
    %292 = arith.addf %291, %290 : vector<8x128xf32>
    %293 = arith.divf %291, %292 : vector<8x128xf32>
    %294 = vector.extract_strided_slice %254 {offsets = [0, 256], sizes = [8, 128], strides = [1, 1]} : vector<8x512xf32> to vector<8x128xf32>
    %295 = math.tanh %294 : vector<8x128xf32>
    %296 = vector.extract_strided_slice %254 {offsets = [0, 384], sizes = [8, 128], strides = [1, 1]} : vector<8x512xf32> to vector<8x128xf32>
    %297 = arith.negf %296 : vector<8x128xf32>
    %298 = math.exp %297 : vector<8x128xf32>
    %cst_117 = arith.constant 1.000000e+00 : f32
    %299 = vector.broadcast %cst_117 : f32 to vector<8x128xf32>
    %300 = arith.addf %299, %298 : vector<8x128xf32>
    %301 = arith.divf %299, %300 : vector<8x128xf32>
    %302 = arith.mulf %293, %281 : vector<8x128xf32>
    %303 = arith.mulf %287, %295 : vector<8x128xf32>
    %304 = arith.addf %302, %303 : vector<8x128xf32>
    %305 = math.tanh %304 : vector<8x128xf32>
    %306 = arith.mulf %301, %305 : vector<8x128xf32>
    %c0_118 = arith.constant 0 : index
    %c0_119 = arith.constant 0 : index
    %307 = vector.load %arg11[%c0_118, %c0_119] : memref<16x128xf32, #tpu.memory_space<vmem>>, vector<8x128xf32>
    tpu.vector_store %arg11[%c0_118, %c0_119], %280 {strides = array<i32>} : memref<16x128xf32, #tpu.memory_space<vmem>>, vector<8x128xf32>,
    %c8_120 = arith.constant 8 : index
    %c0_121 = arith.constant 0 : index
    %308 = vector.load %arg11[%c8_120, %c0_121] : memref<16x128xf32, #tpu.memory_space<vmem>>, vector<8x128xf32>
    tpu.vector_store %arg11[%c8_120, %c0_121], %306 {strides = array<i32>} : memref<16x128xf32, #tpu.memory_space<vmem>>, vector<8x128xf32>,
    %c0_122 = arith.constant 0 : index
    %c0_123 = arith.constant 0 : index
    %309 = vector.load %arg12[%c0_122, %c0_123] : memref<16x128xf32, #tpu.memory_space<vmem>>, vector<8x128xf32>
    tpu.vector_store %arg12[%c0_122, %c0_123], %278 {strides = array<i32>} : memref<16x128xf32, #tpu.memory_space<vmem>>, vector<8x128xf32>,
    %c8_124 = arith.constant 8 : index
    %c0_125 = arith.constant 0 : index
    %310 = vector.load %arg12[%c8_124, %c0_125] : memref<16x128xf32, #tpu.memory_space<vmem>>, vector<8x128xf32>
    tpu.vector_store %arg12[%c8_124, %c0_125], %304 {strides = array<i32>} : memref<16x128xf32, #tpu.memory_space<vmem>>, vector<8x128xf32>,
    %311 = arith.index_cast %240 : i32 to index
    %c0_126 = arith.constant 0 : index
    %312 = vector.load %arg10[%311, %c0_126] : memref<64x256xf32, #tpu.memory_space<vmem>>, vector<8x128xf32>
    tpu.vector_store %arg10[%311, %c0_126], %280 {strides = array<i32>} : memref<64x256xf32, #tpu.memory_space<vmem>>, vector<8x128xf32>,
    %313 = arith.index_cast %243 : i32 to index
    %c128_127 = arith.constant 128 : index
    %314 = vector.load %arg10[%313, %c128_127] : memref<64x256xf32, #tpu.memory_space<vmem>>, vector<8x128xf32>
    tpu.vector_store %arg10[%313, %c128_127], %306 {strides = array<i32>} : memref<64x256xf32, #tpu.memory_space<vmem>>, vector<8x128xf32>,
    %c4_i32 = arith.constant 4 : i32
    %c8_i32_128 = arith.constant 8 : i32
    %315 = arith.muli %c4_i32, %c8_i32_128 : i32
    %316 = tpu.assume_multiple %315, 8 : i32
    %c7_i32_129 = arith.constant 7 : i32
    %317 = arith.subi %c7_i32_129, %c4_i32 : i32
    %c8_i32_130 = arith.constant 8 : i32
    %318 = arith.muli %317, %c8_i32_130 : i32
    %319 = tpu.assume_multiple %318, 8 : i32
    %c0_131 = arith.constant 0 : index
    %c0_132 = arith.constant 0 : index
    %320 = vector.load %arg11[%c0_131, %c0_132] : memref<16x128xf32, #tpu.memory_space<vmem>>, vector<16x128xf32>
    %c0_133 = arith.constant 0 : index
    %c0_134 = arith.constant 0 : index
    %321 = vector.load %arg3[%c0_133, %c0_134] : memref<128x1024xf32, #tpu.memory_space<vmem>>, vector<128x1024xf32>
    %cst_135 = arith.constant dense<0.000000e+00> : vector<16x1024xf32>
    %322 = tpu.matmul %320, %321, %cst_135 {dimension_numbers = #tpu.dot_dimension_numbers<[1], [0], [0], [1], [0, 0, 1, 1], [], []>} : vector<16x128xf32>, vector<128x1024xf32>, vector<16x1024xf32> -> vector<16x1024xf32>
    %323 = arith.index_cast %316 : i32 to index
    %c0_136 = arith.constant 0 : index
    %324 = vector.load %arg9[%323, %c0_136] : memref<64x1024xf32, #tpu.memory_space<vmem>>, vector<8x512xf32>
    %325 = vector.extract_strided_slice %322 {offsets = [0, 0], sizes = [8, 512], strides = [1, 1]} : vector<16x1024xf32> to vector<8x512xf32>
    %326 = arith.addf %324, %325 : vector<8x512xf32>
    %327 = arith.index_cast %319 : i32 to index
    %c512_137 = arith.constant 512 : index
    %328 = vector.load %arg9[%327, %c512_137] : memref<64x1024xf32, #tpu.memory_space<vmem>>, vector<8x512xf32>
    %329 = vector.extract_strided_slice %322 {offsets = [8, 512], sizes = [8, 512], strides = [1, 1]} : vector<16x1024xf32> to vector<8x512xf32>
    %330 = arith.addf %328, %329 : vector<8x512xf32>
    %c0_138 = arith.constant 0 : index
    %c0_139 = arith.constant 0 : index
    %331 = vector.load %arg12[%c0_138, %c0_139] : memref<16x128xf32, #tpu.memory_space<vmem>>, vector<8x128xf32>
    %332 = vector.extract_strided_slice %326 {offsets = [0, 0], sizes = [8, 128], strides = [1, 1]} : vector<8x512xf32> to vector<8x128xf32>
    %333 = arith.negf %332 : vector<8x128xf32>
    %334 = math.exp %333 : vector<8x128xf32>
    %cst_140 = arith.constant 1.000000e+00 : f32
    %335 = vector.broadcast %cst_140 : f32 to vector<8x128xf32>
    %336 = arith.addf %335, %334 : vector<8x128xf32>
    %337 = arith.divf %335, %336 : vector<8x128xf32>
    %338 = vector.extract_strided_slice %326 {offsets = [0, 128], sizes = [8, 128], strides = [1, 1]} : vector<8x512xf32> to vector<8x128xf32>
    %339 = arith.negf %338 : vector<8x128xf32>
    %340 = math.exp %339 : vector<8x128xf32>
    %cst_141 = arith.constant 1.000000e+00 : f32
    %341 = vector.broadcast %cst_141 : f32 to vector<8x128xf32>
    %342 = arith.addf %341, %340 : vector<8x128xf32>
    %343 = arith.divf %341, %342 : vector<8x128xf32>
    %344 = vector.extract_strided_slice %326 {offsets = [0, 256], sizes = [8, 128], strides = [1, 1]} : vector<8x512xf32> to vector<8x128xf32>
    %345 = math.tanh %344 : vector<8x128xf32>
    %346 = vector.extract_strided_slice %326 {offsets = [0, 384], sizes = [8, 128], strides = [1, 1]} : vector<8x512xf32> to vector<8x128xf32>
    %347 = arith.negf %346 : vector<8x128xf32>
    %348 = math.exp %347 : vector<8x128xf32>
    %cst_142 = arith.constant 1.000000e+00 : f32
    %349 = vector.broadcast %cst_142 : f32 to vector<8x128xf32>
    %350 = arith.addf %349, %348 : vector<8x128xf32>
    %351 = arith.divf %349, %350 : vector<8x128xf32>
    %352 = arith.mulf %343, %331 : vector<8x128xf32>
    %353 = arith.mulf %337, %345 : vector<8x128xf32>
    %354 = arith.addf %352, %353 : vector<8x128xf32>
    %355 = math.tanh %354 : vector<8x128xf32>
    %356 = arith.mulf %351, %355 : vector<8x128xf32>
    %c8_143 = arith.constant 8 : index
    %c0_144 = arith.constant 0 : index
    %357 = vector.load %arg12[%c8_143, %c0_144] : memref<16x128xf32, #tpu.memory_space<vmem>>, vector<8x128xf32>
    %358 = vector.extract_strided_slice %330 {offsets = [0, 0], sizes = [8, 128], strides = [1, 1]} : vector<8x512xf32> to vector<8x128xf32>
    %359 = arith.negf %358 : vector<8x128xf32>
    %360 = math.exp %359 : vector<8x128xf32>
    %cst_145 = arith.constant 1.000000e+00 : f32
    %361 = vector.broadcast %cst_145 : f32 to vector<8x128xf32>
    %362 = arith.addf %361, %360 : vector<8x128xf32>
    %363 = arith.divf %361, %362 : vector<8x128xf32>
    %364 = vector.extract_strided_slice %330 {offsets = [0, 128], sizes = [8, 128], strides = [1, 1]} : vector<8x512xf32> to vector<8x128xf32>
    %365 = arith.negf %364 : vector<8x128xf32>
    %366 = math.exp %365 : vector<8x128xf32>
    %cst_146 = arith.constant 1.000000e+00 : f32
    %367 = vector.broadcast %cst_146 : f32 to vector<8x128xf32>
    %368 = arith.addf %367, %366 : vector<8x128xf32>
    %369 = arith.divf %367, %368 : vector<8x128xf32>
    %370 = vector.extract_strided_slice %330 {offsets = [0, 256], sizes = [8, 128], strides = [1, 1]} : vector<8x512xf32> to vector<8x128xf32>
    %371 = math.tanh %370 : vector<8x128xf32>
    %372 = vector.extract_strided_slice %330 {offsets = [0, 384], sizes = [8, 128], strides = [1, 1]} : vector<8x512xf32> to vector<8x128xf32>
    %373 = arith.negf %372 : vector<8x128xf32>
    %374 = math.exp %373 : vector<8x128xf32>
    %cst_147 = arith.constant 1.000000e+00 : f32
    %375 = vector.broadcast %cst_147 : f32 to vector<8x128xf32>
    %376 = arith.addf %375, %374 : vector<8x128xf32>
    %377 = arith.divf %375, %376 : vector<8x128xf32>
    %378 = arith.mulf %369, %357 : vector<8x128xf32>
    %379 = arith.mulf %363, %371 : vector<8x128xf32>
    %380 = arith.addf %378, %379 : vector<8x128xf32>
    %381 = math.tanh %380 : vector<8x128xf32>
    %382 = arith.mulf %377, %381 : vector<8x128xf32>
    %c0_148 = arith.constant 0 : index
    %c0_149 = arith.constant 0 : index
    %383 = vector.load %arg11[%c0_148, %c0_149] : memref<16x128xf32, #tpu.memory_space<vmem>>, vector<8x128xf32>
    tpu.vector_store %arg11[%c0_148, %c0_149], %356 {strides = array<i32>} : memref<16x128xf32, #tpu.memory_space<vmem>>, vector<8x128xf32>,
    %c8_150 = arith.constant 8 : index
    %c0_151 = arith.constant 0 : index
    %384 = vector.load %arg11[%c8_150, %c0_151] : memref<16x128xf32, #tpu.memory_space<vmem>>, vector<8x128xf32>
    tpu.vector_store %arg11[%c8_150, %c0_151], %382 {strides = array<i32>} : memref<16x128xf32, #tpu.memory_space<vmem>>, vector<8x128xf32>,
    %c0_152 = arith.constant 0 : index
    %c0_153 = arith.constant 0 : index
    %385 = vector.load %arg12[%c0_152, %c0_153] : memref<16x128xf32, #tpu.memory_space<vmem>>, vector<8x128xf32>
    tpu.vector_store %arg12[%c0_152, %c0_153], %354 {strides = array<i32>} : memref<16x128xf32, #tpu.memory_space<vmem>>, vector<8x128xf32>,
    %c8_154 = arith.constant 8 : index
    %c0_155 = arith.constant 0 : index
    %386 = vector.load %arg12[%c8_154, %c0_155] : memref<16x128xf32, #tpu.memory_space<vmem>>, vector<8x128xf32>
    tpu.vector_store %arg12[%c8_154, %c0_155], %380 {strides = array<i32>} : memref<16x128xf32, #tpu.memory_space<vmem>>, vector<8x128xf32>,
    %387 = arith.index_cast %316 : i32 to index
    %c0_156 = arith.constant 0 : index
    %388 = vector.load %arg10[%387, %c0_156] : memref<64x256xf32, #tpu.memory_space<vmem>>, vector<8x128xf32>
    tpu.vector_store %arg10[%387, %c0_156], %356 {strides = array<i32>} : memref<64x256xf32, #tpu.memory_space<vmem>>, vector<8x128xf32>,
    %389 = arith.index_cast %319 : i32 to index
    %c128_157 = arith.constant 128 : index
    %390 = vector.load %arg10[%389, %c128_157] : memref<64x256xf32, #tpu.memory_space<vmem>>, vector<8x128xf32>
    tpu.vector_store %arg10[%389, %c128_157], %382 {strides = array<i32>} : memref<64x256xf32, #tpu.memory_space<vmem>>, vector<8x128xf32>,
    %c5_i32 = arith.constant 5 : i32
    %c8_i32_158 = arith.constant 8 : i32
    %391 = arith.muli %c5_i32, %c8_i32_158 : i32
    %392 = tpu.assume_multiple %391, 8 : i32
    %c7_i32_159 = arith.constant 7 : i32
    %393 = arith.subi %c7_i32_159, %c5_i32 : i32
    %c8_i32_160 = arith.constant 8 : i32
    %394 = arith.muli %393, %c8_i32_160 : i32
    %395 = tpu.assume_multiple %394, 8 : i32
    %c0_161 = arith.constant 0 : index
    %c0_162 = arith.constant 0 : index
    %396 = vector.load %arg11[%c0_161, %c0_162] : memref<16x128xf32, #tpu.memory_space<vmem>>, vector<16x128xf32>
    %c0_163 = arith.constant 0 : index
    %c0_164 = arith.constant 0 : index
    %397 = vector.load %arg3[%c0_163, %c0_164] : memref<128x1024xf32, #tpu.memory_space<vmem>>, vector<128x1024xf32>
    %cst_165 = arith.constant dense<0.000000e+00> : vector<16x1024xf32>
    %398 = tpu.matmul %396, %397, %cst_165 {dimension_numbers = #tpu.dot_dimension_numbers<[1], [0], [0], [1], [0, 0, 1, 1], [], []>} : vector<16x128xf32>, vector<128x1024xf32>, vector<16x1024xf32> -> vector<16x1024xf32>
    %399 = arith.index_cast %392 : i32 to index
    %c0_166 = arith.constant 0 : index
    %400 = vector.load %arg9[%399, %c0_166] : memref<64x1024xf32, #tpu.memory_space<vmem>>, vector<8x512xf32>
    %401 = vector.extract_strided_slice %398 {offsets = [0, 0], sizes = [8, 512], strides = [1, 1]} : vector<16x1024xf32> to vector<8x512xf32>
    %402 = arith.addf %400, %401 : vector<8x512xf32>
    %403 = arith.index_cast %395 : i32 to index
    %c512_167 = arith.constant 512 : index
    %404 = vector.load %arg9[%403, %c512_167] : memref<64x1024xf32, #tpu.memory_space<vmem>>, vector<8x512xf32>
    %405 = vector.extract_strided_slice %398 {offsets = [8, 512], sizes = [8, 512], strides = [1, 1]} : vector<16x1024xf32> to vector<8x512xf32>
    %406 = arith.addf %404, %405 : vector<8x512xf32>
    %c0_168 = arith.constant 0 : index
    %c0_169 = arith.constant 0 : index
    %407 = vector.load %arg12[%c0_168, %c0_169] : memref<16x128xf32, #tpu.memory_space<vmem>>, vector<8x128xf32>
    %408 = vector.extract_strided_slice %402 {offsets = [0, 0], sizes = [8, 128], strides = [1, 1]} : vector<8x512xf32> to vector<8x128xf32>
    %409 = arith.negf %408 : vector<8x128xf32>
    %410 = math.exp %409 : vector<8x128xf32>
    %cst_170 = arith.constant 1.000000e+00 : f32
    %411 = vector.broadcast %cst_170 : f32 to vector<8x128xf32>
    %412 = arith.addf %411, %410 : vector<8x128xf32>
    %413 = arith.divf %411, %412 : vector<8x128xf32>
    %414 = vector.extract_strided_slice %402 {offsets = [0, 128], sizes = [8, 128], strides = [1, 1]} : vector<8x512xf32> to vector<8x128xf32>
    %415 = arith.negf %414 : vector<8x128xf32>
    %416 = math.exp %415 : vector<8x128xf32>
    %cst_171 = arith.constant 1.000000e+00 : f32
    %417 = vector.broadcast %cst_171 : f32 to vector<8x128xf32>
    %418 = arith.addf %417, %416 : vector<8x128xf32>
    %419 = arith.divf %417, %418 : vector<8x128xf32>
    %420 = vector.extract_strided_slice %402 {offsets = [0, 256], sizes = [8, 128], strides = [1, 1]} : vector<8x512xf32> to vector<8x128xf32>
    %421 = math.tanh %420 : vector<8x128xf32>
    %422 = vector.extract_strided_slice %402 {offsets = [0, 384], sizes = [8, 128], strides = [1, 1]} : vector<8x512xf32> to vector<8x128xf32>
    %423 = arith.negf %422 : vector<8x128xf32>
    %424 = math.exp %423 : vector<8x128xf32>
    %cst_172 = arith.constant 1.000000e+00 : f32
    %425 = vector.broadcast %cst_172 : f32 to vector<8x128xf32>
    %426 = arith.addf %425, %424 : vector<8x128xf32>
    %427 = arith.divf %425, %426 : vector<8x128xf32>
    %428 = arith.mulf %419, %407 : vector<8x128xf32>
    %429 = arith.mulf %413, %421 : vector<8x128xf32>
    %430 = arith.addf %428, %429 : vector<8x128xf32>
    %431 = math.tanh %430 : vector<8x128xf32>
    %432 = arith.mulf %427, %431 : vector<8x128xf32>
    %c8_173 = arith.constant 8 : index
    %c0_174 = arith.constant 0 : index
    %433 = vector.load %arg12[%c8_173, %c0_174] : memref<16x128xf32, #tpu.memory_space<vmem>>, vector<8x128xf32>
    %434 = vector.extract_strided_slice %406 {offsets = [0, 0], sizes = [8, 128], strides = [1, 1]} : vector<8x512xf32> to vector<8x128xf32>
    %435 = arith.negf %434 : vector<8x128xf32>
    %436 = math.exp %435 : vector<8x128xf32>
    %cst_175 = arith.constant 1.000000e+00 : f32
    %437 = vector.broadcast %cst_175 : f32 to vector<8x128xf32>
    %438 = arith.addf %437, %436 : vector<8x128xf32>
    %439 = arith.divf %437, %438 : vector<8x128xf32>
    %440 = vector.extract_strided_slice %406 {offsets = [0, 128], sizes = [8, 128], strides = [1, 1]} : vector<8x512xf32> to vector<8x128xf32>
    %441 = arith.negf %440 : vector<8x128xf32>
    %442 = math.exp %441 : vector<8x128xf32>
    %cst_176 = arith.constant 1.000000e+00 : f32
    %443 = vector.broadcast %cst_176 : f32 to vector<8x128xf32>
    %444 = arith.addf %443, %442 : vector<8x128xf32>
    %445 = arith.divf %443, %444 : vector<8x128xf32>
    %446 = vector.extract_strided_slice %406 {offsets = [0, 256], sizes = [8, 128], strides = [1, 1]} : vector<8x512xf32> to vector<8x128xf32>
    %447 = math.tanh %446 : vector<8x128xf32>
    %448 = vector.extract_strided_slice %406 {offsets = [0, 384], sizes = [8, 128], strides = [1, 1]} : vector<8x512xf32> to vector<8x128xf32>
    %449 = arith.negf %448 : vector<8x128xf32>
    %450 = math.exp %449 : vector<8x128xf32>
    %cst_177 = arith.constant 1.000000e+00 : f32
    %451 = vector.broadcast %cst_177 : f32 to vector<8x128xf32>
    %452 = arith.addf %451, %450 : vector<8x128xf32>
    %453 = arith.divf %451, %452 : vector<8x128xf32>
    %454 = arith.mulf %445, %433 : vector<8x128xf32>
    %455 = arith.mulf %439, %447 : vector<8x128xf32>
    %456 = arith.addf %454, %455 : vector<8x128xf32>
    %457 = math.tanh %456 : vector<8x128xf32>
    %458 = arith.mulf %453, %457 : vector<8x128xf32>
    %c0_178 = arith.constant 0 : index
    %c0_179 = arith.constant 0 : index
    %459 = vector.load %arg11[%c0_178, %c0_179] : memref<16x128xf32, #tpu.memory_space<vmem>>, vector<8x128xf32>
    tpu.vector_store %arg11[%c0_178, %c0_179], %432 {strides = array<i32>} : memref<16x128xf32, #tpu.memory_space<vmem>>, vector<8x128xf32>,
    %c8_180 = arith.constant 8 : index
    %c0_181 = arith.constant 0 : index
    %460 = vector.load %arg11[%c8_180, %c0_181] : memref<16x128xf32, #tpu.memory_space<vmem>>, vector<8x128xf32>
    tpu.vector_store %arg11[%c8_180, %c0_181], %458 {strides = array<i32>} : memref<16x128xf32, #tpu.memory_space<vmem>>, vector<8x128xf32>,
    %c0_182 = arith.constant 0 : index
    %c0_183 = arith.constant 0 : index
    %461 = vector.load %arg12[%c0_182, %c0_183] : memref<16x128xf32, #tpu.memory_space<vmem>>, vector<8x128xf32>
    tpu.vector_store %arg12[%c0_182, %c0_183], %430 {strides = array<i32>} : memref<16x128xf32, #tpu.memory_space<vmem>>, vector<8x128xf32>,
    %c8_184 = arith.constant 8 : index
    %c0_185 = arith.constant 0 : index
    %462 = vector.load %arg12[%c8_184, %c0_185] : memref<16x128xf32, #tpu.memory_space<vmem>>, vector<8x128xf32>
    tpu.vector_store %arg12[%c8_184, %c0_185], %456 {strides = array<i32>} : memref<16x128xf32, #tpu.memory_space<vmem>>, vector<8x128xf32>,
    %463 = arith.index_cast %392 : i32 to index
    %c0_186 = arith.constant 0 : index
    %464 = vector.load %arg10[%463, %c0_186] : memref<64x256xf32, #tpu.memory_space<vmem>>, vector<8x128xf32>
    tpu.vector_store %arg10[%463, %c0_186], %432 {strides = array<i32>} : memref<64x256xf32, #tpu.memory_space<vmem>>, vector<8x128xf32>,
    %465 = arith.index_cast %395 : i32 to index
    %c128_187 = arith.constant 128 : index
    %466 = vector.load %arg10[%465, %c128_187] : memref<64x256xf32, #tpu.memory_space<vmem>>, vector<8x128xf32>
    tpu.vector_store %arg10[%465, %c128_187], %458 {strides = array<i32>} : memref<64x256xf32, #tpu.memory_space<vmem>>, vector<8x128xf32>,
    %c6_i32 = arith.constant 6 : i32
    %c8_i32_188 = arith.constant 8 : i32
    %467 = arith.muli %c6_i32, %c8_i32_188 : i32
    %468 = tpu.assume_multiple %467, 8 : i32
    %c7_i32_189 = arith.constant 7 : i32
    %469 = arith.subi %c7_i32_189, %c6_i32 : i32
    %c8_i32_190 = arith.constant 8 : i32
    %470 = arith.muli %469, %c8_i32_190 : i32
    %471 = tpu.assume_multiple %470, 8 : i32
    %c0_191 = arith.constant 0 : index
    %c0_192 = arith.constant 0 : index
    %472 = vector.load %arg11[%c0_191, %c0_192] : memref<16x128xf32, #tpu.memory_space<vmem>>, vector<16x128xf32>
    %c0_193 = arith.constant 0 : index
    %c0_194 = arith.constant 0 : index
    %473 = vector.load %arg3[%c0_193, %c0_194] : memref<128x1024xf32, #tpu.memory_space<vmem>>, vector<128x1024xf32>
    %cst_195 = arith.constant dense<0.000000e+00> : vector<16x1024xf32>
    %474 = tpu.matmul %472, %473, %cst_195 {dimension_numbers = #tpu.dot_dimension_numbers<[1], [0], [0], [1], [0, 0, 1, 1], [], []>} : vector<16x128xf32>, vector<128x1024xf32>, vector<16x1024xf32> -> vector<16x1024xf32>
    %475 = arith.index_cast %468 : i32 to index
    %c0_196 = arith.constant 0 : index
    %476 = vector.load %arg9[%475, %c0_196] : memref<64x1024xf32, #tpu.memory_space<vmem>>, vector<8x512xf32>
    %477 = vector.extract_strided_slice %474 {offsets = [0, 0], sizes = [8, 512], strides = [1, 1]} : vector<16x1024xf32> to vector<8x512xf32>
    %478 = arith.addf %476, %477 : vector<8x512xf32>
    %479 = arith.index_cast %471 : i32 to index
    %c512_197 = arith.constant 512 : index
    %480 = vector.load %arg9[%479, %c512_197] : memref<64x1024xf32, #tpu.memory_space<vmem>>, vector<8x512xf32>
    %481 = vector.extract_strided_slice %474 {offsets = [8, 512], sizes = [8, 512], strides = [1, 1]} : vector<16x1024xf32> to vector<8x512xf32>
    %482 = arith.addf %480, %481 : vector<8x512xf32>
    %c0_198 = arith.constant 0 : index
    %c0_199 = arith.constant 0 : index
    %483 = vector.load %arg12[%c0_198, %c0_199] : memref<16x128xf32, #tpu.memory_space<vmem>>, vector<8x128xf32>
    %484 = vector.extract_strided_slice %478 {offsets = [0, 0], sizes = [8, 128], strides = [1, 1]} : vector<8x512xf32> to vector<8x128xf32>
    %485 = arith.negf %484 : vector<8x128xf32>
    %486 = math.exp %485 : vector<8x128xf32>
    %cst_200 = arith.constant 1.000000e+00 : f32
    %487 = vector.broadcast %cst_200 : f32 to vector<8x128xf32>
    %488 = arith.addf %487, %486 : vector<8x128xf32>
    %489 = arith.divf %487, %488 : vector<8x128xf32>
    %490 = vector.extract_strided_slice %478 {offsets = [0, 128], sizes = [8, 128], strides = [1, 1]} : vector<8x512xf32> to vector<8x128xf32>
    %491 = arith.negf %490 : vector<8x128xf32>
    %492 = math.exp %491 : vector<8x128xf32>
    %cst_201 = arith.constant 1.000000e+00 : f32
    %493 = vector.broadcast %cst_201 : f32 to vector<8x128xf32>
    %494 = arith.addf %493, %492 : vector<8x128xf32>
    %495 = arith.divf %493, %494 : vector<8x128xf32>
    %496 = vector.extract_strided_slice %478 {offsets = [0, 256], sizes = [8, 128], strides = [1, 1]} : vector<8x512xf32> to vector<8x128xf32>
    %497 = math.tanh %496 : vector<8x128xf32>
    %498 = vector.extract_strided_slice %478 {offsets = [0, 384], sizes = [8, 128], strides = [1, 1]} : vector<8x512xf32> to vector<8x128xf32>
    %499 = arith.negf %498 : vector<8x128xf32>
    %500 = math.exp %499 : vector<8x128xf32>
    %cst_202 = arith.constant 1.000000e+00 : f32
    %501 = vector.broadcast %cst_202 : f32 to vector<8x128xf32>
    %502 = arith.addf %501, %500 : vector<8x128xf32>
    %503 = arith.divf %501, %502 : vector<8x128xf32>
    %504 = arith.mulf %495, %483 : vector<8x128xf32>
    %505 = arith.mulf %489, %497 : vector<8x128xf32>
    %506 = arith.addf %504, %505 : vector<8x128xf32>
    %507 = math.tanh %506 : vector<8x128xf32>
    %508 = arith.mulf %503, %507 : vector<8x128xf32>
    %c8_203 = arith.constant 8 : index
    %c0_204 = arith.constant 0 : index
    %509 = vector.load %arg12[%c8_203, %c0_204] : memref<16x128xf32, #tpu.memory_space<vmem>>, vector<8x128xf32>
    %510 = vector.extract_strided_slice %482 {offsets = [0, 0], sizes = [8, 128], strides = [1, 1]} : vector<8x512xf32> to vector<8x128xf32>
    %511 = arith.negf %510 : vector<8x128xf32>
    %512 = math.exp %511 : vector<8x128xf32>
    %cst_205 = arith.constant 1.000000e+00 : f32
    %513 = vector.broadcast %cst_205 : f32 to vector<8x128xf32>
    %514 = arith.addf %513, %512 : vector<8x128xf32>
    %515 = arith.divf %513, %514 : vector<8x128xf32>
    %516 = vector.extract_strided_slice %482 {offsets = [0, 128], sizes = [8, 128], strides = [1, 1]} : vector<8x512xf32> to vector<8x128xf32>
    %517 = arith.negf %516 : vector<8x128xf32>
    %518 = math.exp %517 : vector<8x128xf32>
    %cst_206 = arith.constant 1.000000e+00 : f32
    %519 = vector.broadcast %cst_206 : f32 to vector<8x128xf32>
    %520 = arith.addf %519, %518 : vector<8x128xf32>
    %521 = arith.divf %519, %520 : vector<8x128xf32>
    %522 = vector.extract_strided_slice %482 {offsets = [0, 256], sizes = [8, 128], strides = [1, 1]} : vector<8x512xf32> to vector<8x128xf32>
    %523 = math.tanh %522 : vector<8x128xf32>
    %524 = vector.extract_strided_slice %482 {offsets = [0, 384], sizes = [8, 128], strides = [1, 1]} : vector<8x512xf32> to vector<8x128xf32>
    %525 = arith.negf %524 : vector<8x128xf32>
    %526 = math.exp %525 : vector<8x128xf32>
    %cst_207 = arith.constant 1.000000e+00 : f32
    %527 = vector.broadcast %cst_207 : f32 to vector<8x128xf32>
    %528 = arith.addf %527, %526 : vector<8x128xf32>
    %529 = arith.divf %527, %528 : vector<8x128xf32>
    %530 = arith.mulf %521, %509 : vector<8x128xf32>
    %531 = arith.mulf %515, %523 : vector<8x128xf32>
    %532 = arith.addf %530, %531 : vector<8x128xf32>
    %533 = math.tanh %532 : vector<8x128xf32>
    %534 = arith.mulf %529, %533 : vector<8x128xf32>
    %c0_208 = arith.constant 0 : index
    %c0_209 = arith.constant 0 : index
    %535 = vector.load %arg11[%c0_208, %c0_209] : memref<16x128xf32, #tpu.memory_space<vmem>>, vector<8x128xf32>
    tpu.vector_store %arg11[%c0_208, %c0_209], %508 {strides = array<i32>} : memref<16x128xf32, #tpu.memory_space<vmem>>, vector<8x128xf32>,
    %c8_210 = arith.constant 8 : index
    %c0_211 = arith.constant 0 : index
    %536 = vector.load %arg11[%c8_210, %c0_211] : memref<16x128xf32, #tpu.memory_space<vmem>>, vector<8x128xf32>
    tpu.vector_store %arg11[%c8_210, %c0_211], %534 {strides = array<i32>} : memref<16x128xf32, #tpu.memory_space<vmem>>, vector<8x128xf32>,
    %c0_212 = arith.constant 0 : index
    %c0_213 = arith.constant 0 : index
    %537 = vector.load %arg12[%c0_212, %c0_213] : memref<16x128xf32, #tpu.memory_space<vmem>>, vector<8x128xf32>
    tpu.vector_store %arg12[%c0_212, %c0_213], %506 {strides = array<i32>} : memref<16x128xf32, #tpu.memory_space<vmem>>, vector<8x128xf32>,
    %c8_214 = arith.constant 8 : index
    %c0_215 = arith.constant 0 : index
    %538 = vector.load %arg12[%c8_214, %c0_215] : memref<16x128xf32, #tpu.memory_space<vmem>>, vector<8x128xf32>
    tpu.vector_store %arg12[%c8_214, %c0_215], %532 {strides = array<i32>} : memref<16x128xf32, #tpu.memory_space<vmem>>, vector<8x128xf32>,
    %539 = arith.index_cast %468 : i32 to index
    %c0_216 = arith.constant 0 : index
    %540 = vector.load %arg10[%539, %c0_216] : memref<64x256xf32, #tpu.memory_space<vmem>>, vector<8x128xf32>
    tpu.vector_store %arg10[%539, %c0_216], %508 {strides = array<i32>} : memref<64x256xf32, #tpu.memory_space<vmem>>, vector<8x128xf32>,
    %541 = arith.index_cast %471 : i32 to index
    %c128_217 = arith.constant 128 : index
    %542 = vector.load %arg10[%541, %c128_217] : memref<64x256xf32, #tpu.memory_space<vmem>>, vector<8x128xf32>
    tpu.vector_store %arg10[%541, %c128_217], %534 {strides = array<i32>} : memref<64x256xf32, #tpu.memory_space<vmem>>, vector<8x128xf32>,
    %c7_i32_218 = arith.constant 7 : i32
    %c8_i32_219 = arith.constant 8 : i32
    %543 = arith.muli %c7_i32_218, %c8_i32_219 : i32
    %544 = tpu.assume_multiple %543, 8 : i32
    %c7_i32_220 = arith.constant 7 : i32
    %545 = arith.subi %c7_i32_220, %c7_i32_218 : i32
    %c8_i32_221 = arith.constant 8 : i32
    %546 = arith.muli %545, %c8_i32_221 : i32
    %547 = tpu.assume_multiple %546, 8 : i32
    %c0_222 = arith.constant 0 : index
    %c0_223 = arith.constant 0 : index
    %548 = vector.load %arg11[%c0_222, %c0_223] : memref<16x128xf32, #tpu.memory_space<vmem>>, vector<16x128xf32>
    %c0_224 = arith.constant 0 : index
    %c0_225 = arith.constant 0 : index
    %549 = vector.load %arg3[%c0_224, %c0_225] : memref<128x1024xf32, #tpu.memory_space<vmem>>, vector<128x1024xf32>
    %cst_226 = arith.constant dense<0.000000e+00> : vector<16x1024xf32>
    %550 = tpu.matmul %548, %549, %cst_226 {dimension_numbers = #tpu.dot_dimension_numbers<[1], [0], [0], [1], [0, 0, 1, 1], [], []>} : vector<16x128xf32>, vector<128x1024xf32>, vector<16x1024xf32> -> vector<16x1024xf32>
    %551 = arith.index_cast %544 : i32 to index
    %c0_227 = arith.constant 0 : index
    %552 = vector.load %arg9[%551, %c0_227] : memref<64x1024xf32, #tpu.memory_space<vmem>>, vector<8x512xf32>
    %553 = vector.extract_strided_slice %550 {offsets = [0, 0], sizes = [8, 512], strides = [1, 1]} : vector<16x1024xf32> to vector<8x512xf32>
    %554 = arith.addf %552, %553 : vector<8x512xf32>
    %555 = arith.index_cast %547 : i32 to index
    %c512_228 = arith.constant 512 : index
    %556 = vector.load %arg9[%555, %c512_228] : memref<64x1024xf32, #tpu.memory_space<vmem>>, vector<8x512xf32>
    %557 = vector.extract_strided_slice %550 {offsets = [8, 512], sizes = [8, 512], strides = [1, 1]} : vector<16x1024xf32> to vector<8x512xf32>
    %558 = arith.addf %556, %557 : vector<8x512xf32>
    %c0_229 = arith.constant 0 : index
    %c0_230 = arith.constant 0 : index
    %559 = vector.load %arg12[%c0_229, %c0_230] : memref<16x128xf32, #tpu.memory_space<vmem>>, vector<8x128xf32>
    %560 = vector.extract_strided_slice %554 {offsets = [0, 0], sizes = [8, 128], strides = [1, 1]} : vector<8x512xf32> to vector<8x128xf32>
    %561 = arith.negf %560 : vector<8x128xf32>
    %562 = math.exp %561 : vector<8x128xf32>
    %cst_231 = arith.constant 1.000000e+00 : f32
    %563 = vector.broadcast %cst_231 : f32 to vector<8x128xf32>
    %564 = arith.addf %563, %562 : vector<8x128xf32>
    %565 = arith.divf %563, %564 : vector<8x128xf32>
    %566 = vector.extract_strided_slice %554 {offsets = [0, 128], sizes = [8, 128], strides = [1, 1]} : vector<8x512xf32> to vector<8x128xf32>
    %567 = arith.negf %566 : vector<8x128xf32>
    %568 = math.exp %567 : vector<8x128xf32>
    %cst_232 = arith.constant 1.000000e+00 : f32
    %569 = vector.broadcast %cst_232 : f32 to vector<8x128xf32>
    %570 = arith.addf %569, %568 : vector<8x128xf32>
    %571 = arith.divf %569, %570 : vector<8x128xf32>
    %572 = vector.extract_strided_slice %554 {offsets = [0, 256], sizes = [8, 128], strides = [1, 1]} : vector<8x512xf32> to vector<8x128xf32>
    %573 = math.tanh %572 : vector<8x128xf32>
    %574 = vector.extract_strided_slice %554 {offsets = [0, 384], sizes = [8, 128], strides = [1, 1]} : vector<8x512xf32> to vector<8x128xf32>
    %575 = arith.negf %574 : vector<8x128xf32>
    %576 = math.exp %575 : vector<8x128xf32>
    %cst_233 = arith.constant 1.000000e+00 : f32
    %577 = vector.broadcast %cst_233 : f32 to vector<8x128xf32>
    %578 = arith.addf %577, %576 : vector<8x128xf32>
    %579 = arith.divf %577, %578 : vector<8x128xf32>
    %580 = arith.mulf %571, %559 : vector<8x128xf32>
    %581 = arith.mulf %565, %573 : vector<8x128xf32>
    %582 = arith.addf %580, %581 : vector<8x128xf32>
    %583 = math.tanh %582 : vector<8x128xf32>
    %584 = arith.mulf %579, %583 : vector<8x128xf32>
    %c8_234 = arith.constant 8 : index
    %c0_235 = arith.constant 0 : index
    %585 = vector.load %arg12[%c8_234, %c0_235] : memref<16x128xf32, #tpu.memory_space<vmem>>, vector<8x128xf32>
    %586 = vector.extract_strided_slice %558 {offsets = [0, 0], sizes = [8, 128], strides = [1, 1]} : vector<8x512xf32> to vector<8x128xf32>
    %587 = arith.negf %586 : vector<8x128xf32>
    %588 = math.exp %587 : vector<8x128xf32>
    %cst_236 = arith.constant 1.000000e+00 : f32
    %589 = vector.broadcast %cst_236 : f32 to vector<8x128xf32>
    %590 = arith.addf %589, %588 : vector<8x128xf32>
    %591 = arith.divf %589, %590 : vector<8x128xf32>
    %592 = vector.extract_strided_slice %558 {offsets = [0, 128], sizes = [8, 128], strides = [1, 1]} : vector<8x512xf32> to vector<8x128xf32>
    %593 = arith.negf %592 : vector<8x128xf32>
    %594 = math.exp %593 : vector<8x128xf32>
    %cst_237 = arith.constant 1.000000e+00 : f32
    %595 = vector.broadcast %cst_237 : f32 to vector<8x128xf32>
    %596 = arith.addf %595, %594 : vector<8x128xf32>
    %597 = arith.divf %595, %596 : vector<8x128xf32>
    %598 = vector.extract_strided_slice %558 {offsets = [0, 256], sizes = [8, 128], strides = [1, 1]} : vector<8x512xf32> to vector<8x128xf32>
    %599 = math.tanh %598 : vector<8x128xf32>
    %600 = vector.extract_strided_slice %558 {offsets = [0, 384], sizes = [8, 128], strides = [1, 1]} : vector<8x512xf32> to vector<8x128xf32>
    %601 = arith.negf %600 : vector<8x128xf32>
    %602 = math.exp %601 : vector<8x128xf32>
    %cst_238 = arith.constant 1.000000e+00 : f32
    %603 = vector.broadcast %cst_238 : f32 to vector<8x128xf32>
    %604 = arith.addf %603, %602 : vector<8x128xf32>
    %605 = arith.divf %603, %604 : vector<8x128xf32>
    %606 = arith.mulf %597, %585 : vector<8x128xf32>
    %607 = arith.mulf %591, %599 : vector<8x128xf32>
    %608 = arith.addf %606, %607 : vector<8x128xf32>
    %609 = math.tanh %608 : vector<8x128xf32>
    %610 = arith.mulf %605, %609 : vector<8x128xf32>
    %c0_239 = arith.constant 0 : index
    %c0_240 = arith.constant 0 : index
    %611 = vector.load %arg11[%c0_239, %c0_240] : memref<16x128xf32, #tpu.memory_space<vmem>>, vector<8x128xf32>
    tpu.vector_store %arg11[%c0_239, %c0_240], %584 {strides = array<i32>} : memref<16x128xf32, #tpu.memory_space<vmem>>, vector<8x128xf32>,
    %c8_241 = arith.constant 8 : index
    %c0_242 = arith.constant 0 : index
    %612 = vector.load %arg11[%c8_241, %c0_242] : memref<16x128xf32, #tpu.memory_space<vmem>>, vector<8x128xf32>
    tpu.vector_store %arg11[%c8_241, %c0_242], %610 {strides = array<i32>} : memref<16x128xf32, #tpu.memory_space<vmem>>, vector<8x128xf32>,
    %c0_243 = arith.constant 0 : index
    %c0_244 = arith.constant 0 : index
    %613 = vector.load %arg12[%c0_243, %c0_244] : memref<16x128xf32, #tpu.memory_space<vmem>>, vector<8x128xf32>
    tpu.vector_store %arg12[%c0_243, %c0_244], %582 {strides = array<i32>} : memref<16x128xf32, #tpu.memory_space<vmem>>, vector<8x128xf32>,
    %c8_245 = arith.constant 8 : index
    %c0_246 = arith.constant 0 : index
    %614 = vector.load %arg12[%c8_245, %c0_246] : memref<16x128xf32, #tpu.memory_space<vmem>>, vector<8x128xf32>
    tpu.vector_store %arg12[%c8_245, %c0_246], %608 {strides = array<i32>} : memref<16x128xf32, #tpu.memory_space<vmem>>, vector<8x128xf32>,
    %615 = arith.index_cast %544 : i32 to index
    %c0_247 = arith.constant 0 : index
    %616 = vector.load %arg10[%615, %c0_247] : memref<64x256xf32, #tpu.memory_space<vmem>>, vector<8x128xf32>
    tpu.vector_store %arg10[%615, %c0_247], %584 {strides = array<i32>} : memref<64x256xf32, #tpu.memory_space<vmem>>, vector<8x128xf32>,
    %617 = arith.index_cast %547 : i32 to index
    %c128_248 = arith.constant 128 : index
    %618 = vector.load %arg10[%617, %c128_248] : memref<64x256xf32, #tpu.memory_space<vmem>>, vector<8x128xf32>
    tpu.vector_store %arg10[%617, %c128_248], %610 {strides = array<i32>} : memref<64x256xf32, #tpu.memory_space<vmem>>, vector<8x128xf32>,
    %c8_i32_249 = arith.constant 8 : i32
    %c0_250 = arith.constant 0 : index
    %c0_251 = arith.constant 0 : index
    %619 = vector.load %arg10[%c0_250, %c0_251] : memref<64x256xf32, #tpu.memory_space<vmem>>, vector<64x256xf32>
    %c0_252 = arith.constant 0 : index
    %c0_253 = arith.constant 0 : index
    %620 = vector.load %arg5[%c0_252, %c0_253] : memref<256x512xf32, #tpu.memory_space<vmem>>, vector<256x512xf32>
    %cst_254 = arith.constant dense<0.000000e+00> : vector<64x512xf32>
    %621 = tpu.matmul %619, %620, %cst_254 {dimension_numbers = #tpu.dot_dimension_numbers<[1], [0], [0], [1], [0, 0, 1, 1], [], []>} : vector<64x256xf32>, vector<256x512xf32>, vector<64x512xf32> -> vector<64x512xf32>
    %c0_255 = arith.constant 0 : index
    %c0_256 = arith.constant 0 : index
    %622 = vector.load %arg7[%c0_255, %c0_256] : memref<1x512xf32, #tpu.memory_space<vmem>>, vector<1x512xf32>
    %623 = vector.broadcast %622 : vector<1x512xf32> to vector<64x512xf32>
    %624 = arith.addf %621, %623 : vector<64x512xf32>
    %c0_257 = arith.constant 0 : index
    %c0_258 = arith.constant 0 : index
    %625 = vector.load %arg9[%c0_257, %c0_258] : memref<64x1024xf32, #tpu.memory_space<vmem>>, vector<64x512xf32>
    tpu.vector_store %arg9[%c0_257, %c0_258], %624 {strides = array<i32>} : memref<64x1024xf32, #tpu.memory_space<vmem>>, vector<64x512xf32>,
    %cst_259 = arith.constant 0.000000e+00 : f32
    %626 = vector.broadcast %cst_259 : f32 to vector<16x128xf32>
    %c0_260 = arith.constant 0 : index
    %c0_261 = arith.constant 0 : index
    %627 = vector.load %arg11[%c0_260, %c0_261] : memref<16x128xf32, #tpu.memory_space<vmem>>, vector<16x128xf32>
    tpu.vector_store %arg11[%c0_260, %c0_261], %626 {strides = array<i32>} : memref<16x128xf32, #tpu.memory_space<vmem>>, vector<16x128xf32>,
    %cst_262 = arith.constant 0.000000e+00 : f32
    %628 = vector.broadcast %cst_262 : f32 to vector<16x128xf32>
    %c0_263 = arith.constant 0 : index
    %c0_264 = arith.constant 0 : index
    %629 = vector.load %arg12[%c0_263, %c0_264] : memref<16x128xf32, #tpu.memory_space<vmem>>, vector<16x128xf32>
    tpu.vector_store %arg12[%c0_263, %c0_264], %628 {strides = array<i32>} : memref<16x128xf32, #tpu.memory_space<vmem>>, vector<16x128xf32>,
    %c0_i32_265 = arith.constant 0 : i32
    %c8_i32_266 = arith.constant 8 : i32
    %630 = arith.muli %c0_i32_265, %c8_i32_266 : i32
    %631 = tpu.assume_multiple %630, 8 : i32
    %632 = arith.index_cast %631 : i32 to index
    %c0_267 = arith.constant 0 : index
    %633 = vector.load %arg9[%632, %c0_267] : memref<64x1024xf32, #tpu.memory_space<vmem>>, vector<8x512xf32>
    %c0_268 = arith.constant 0 : index
    %c0_269 = arith.constant 0 : index
    %634 = vector.load %arg11[%c0_268, %c0_269] : memref<16x128xf32, #tpu.memory_space<vmem>>, vector<8x128xf32>
    %c0_270 = arith.constant 0 : index
    %c0_271 = arith.constant 0 : index
    %635 = vector.load %arg6[%c0_270, %c0_271] : memref<128x512xf32, #tpu.memory_space<vmem>>, vector<128x512xf32>
    %cst_272 = arith.constant dense<0.000000e+00> : vector<8x512xf32>
    %636 = tpu.matmul %634, %635, %cst_272 {dimension_numbers = #tpu.dot_dimension_numbers<[1], [0], [0], [1], [0, 0, 1, 1], [], []>} : vector<8x128xf32>, vector<128x512xf32>, vector<8x512xf32> -> vector<8x512xf32>
    %637 = arith.addf %633, %636 : vector<8x512xf32>
    %c0_273 = arith.constant 0 : index
    %c0_274 = arith.constant 0 : index
    %638 = vector.load %arg12[%c0_273, %c0_274] : memref<16x128xf32, #tpu.memory_space<vmem>>, vector<8x128xf32>
    %639 = vector.extract_strided_slice %637 {offsets = [0, 0], sizes = [8, 128], strides = [1, 1]} : vector<8x512xf32> to vector<8x128xf32>
    %640 = arith.negf %639 : vector<8x128xf32>
    %641 = math.exp %640 : vector<8x128xf32>
    %cst_275 = arith.constant 1.000000e+00 : f32
    %642 = vector.broadcast %cst_275 : f32 to vector<8x128xf32>
    %643 = arith.addf %642, %641 : vector<8x128xf32>
    %644 = arith.divf %642, %643 : vector<8x128xf32>
    %645 = vector.extract_strided_slice %637 {offsets = [0, 128], sizes = [8, 128], strides = [1, 1]} : vector<8x512xf32> to vector<8x128xf32>
    %646 = arith.negf %645 : vector<8x128xf32>
    %647 = math.exp %646 : vector<8x128xf32>
    %cst_276 = arith.constant 1.000000e+00 : f32
    %648 = vector.broadcast %cst_276 : f32 to vector<8x128xf32>
    %649 = arith.addf %648, %647 : vector<8x128xf32>
    %650 = arith.divf %648, %649 : vector<8x128xf32>
    %651 = vector.extract_strided_slice %637 {offsets = [0, 256], sizes = [8, 128], strides = [1, 1]} : vector<8x512xf32> to vector<8x128xf32>
    %652 = math.tanh %651 : vector<8x128xf32>
    %653 = vector.extract_strided_slice %637 {offsets = [0, 384], sizes = [8, 128], strides = [1, 1]} : vector<8x512xf32> to vector<8x128xf32>
    %654 = arith.negf %653 : vector<8x128xf32>
    %655 = math.exp %654 : vector<8x128xf32>
    %cst_277 = arith.constant 1.000000e+00 : f32
    %656 = vector.broadcast %cst_277 : f32 to vector<8x128xf32>
    %657 = arith.addf %656, %655 : vector<8x128xf32>
    %658 = arith.divf %656, %657 : vector<8x128xf32>
    %659 = arith.mulf %650, %638 : vector<8x128xf32>
    %660 = arith.mulf %644, %652 : vector<8x128xf32>
    %661 = arith.addf %659, %660 : vector<8x128xf32>
    %662 = math.tanh %661 : vector<8x128xf32>
    %663 = arith.mulf %658, %662 : vector<8x128xf32>
    %c0_278 = arith.constant 0 : index
    %c0_279 = arith.constant 0 : index
    %664 = vector.load %arg11[%c0_278, %c0_279] : memref<16x128xf32, #tpu.memory_space<vmem>>, vector<8x128xf32>
    tpu.vector_store %arg11[%c0_278, %c0_279], %663 {strides = array<i32>} : memref<16x128xf32, #tpu.memory_space<vmem>>, vector<8x128xf32>,
    %c0_280 = arith.constant 0 : index
    %c0_281 = arith.constant 0 : index
    %665 = vector.load %arg12[%c0_280, %c0_281] : memref<16x128xf32, #tpu.memory_space<vmem>>, vector<8x128xf32>
    tpu.vector_store %arg12[%c0_280, %c0_281], %661 {strides = array<i32>} : memref<16x128xf32, #tpu.memory_space<vmem>>, vector<8x128xf32>,
    %c1_i32_282 = arith.constant 1 : i32
    %c8_i32_283 = arith.constant 8 : i32
    %666 = arith.muli %c1_i32_282, %c8_i32_283 : i32
    %667 = tpu.assume_multiple %666, 8 : i32
    %668 = arith.index_cast %667 : i32 to index
    %c0_284 = arith.constant 0 : index
    %669 = vector.load %arg9[%668, %c0_284] : memref<64x1024xf32, #tpu.memory_space<vmem>>, vector<8x512xf32>
    %c0_285 = arith.constant 0 : index
    %c0_286 = arith.constant 0 : index
    %670 = vector.load %arg11[%c0_285, %c0_286] : memref<16x128xf32, #tpu.memory_space<vmem>>, vector<8x128xf32>
    %c0_287 = arith.constant 0 : index
    %c0_288 = arith.constant 0 : index
    %671 = vector.load %arg6[%c0_287, %c0_288] : memref<128x512xf32, #tpu.memory_space<vmem>>, vector<128x512xf32>
    %cst_289 = arith.constant dense<0.000000e+00> : vector<8x512xf32>
    %672 = tpu.matmul %670, %671, %cst_289 {dimension_numbers = #tpu.dot_dimension_numbers<[1], [0], [0], [1], [0, 0, 1, 1], [], []>} : vector<8x128xf32>, vector<128x512xf32>, vector<8x512xf32> -> vector<8x512xf32>
    %673 = arith.addf %669, %672 : vector<8x512xf32>
    %c0_290 = arith.constant 0 : index
    %c0_291 = arith.constant 0 : index
    %674 = vector.load %arg12[%c0_290, %c0_291] : memref<16x128xf32, #tpu.memory_space<vmem>>, vector<8x128xf32>
    %675 = vector.extract_strided_slice %673 {offsets = [0, 0], sizes = [8, 128], strides = [1, 1]} : vector<8x512xf32> to vector<8x128xf32>
    %676 = arith.negf %675 : vector<8x128xf32>
    %677 = math.exp %676 : vector<8x128xf32>
    %cst_292 = arith.constant 1.000000e+00 : f32
    %678 = vector.broadcast %cst_292 : f32 to vector<8x128xf32>
    %679 = arith.addf %678, %677 : vector<8x128xf32>
    %680 = arith.divf %678, %679 : vector<8x128xf32>
    %681 = vector.extract_strided_slice %673 {offsets = [0, 128], sizes = [8, 128], strides = [1, 1]} : vector<8x512xf32> to vector<8x128xf32>
    %682 = arith.negf %681 : vector<8x128xf32>
    %683 = math.exp %682 : vector<8x128xf32>
    %cst_293 = arith.constant 1.000000e+00 : f32
    %684 = vector.broadcast %cst_293 : f32 to vector<8x128xf32>
    %685 = arith.addf %684, %683 : vector<8x128xf32>
    %686 = arith.divf %684, %685 : vector<8x128xf32>
    %687 = vector.extract_strided_slice %673 {offsets = [0, 256], sizes = [8, 128], strides = [1, 1]} : vector<8x512xf32> to vector<8x128xf32>
    %688 = math.tanh %687 : vector<8x128xf32>
    %689 = vector.extract_strided_slice %673 {offsets = [0, 384], sizes = [8, 128], strides = [1, 1]} : vector<8x512xf32> to vector<8x128xf32>
    %690 = arith.negf %689 : vector<8x128xf32>
    %691 = math.exp %690 : vector<8x128xf32>
    %cst_294 = arith.constant 1.000000e+00 : f32
    %692 = vector.broadcast %cst_294 : f32 to vector<8x128xf32>
    %693 = arith.addf %692, %691 : vector<8x128xf32>
    %694 = arith.divf %692, %693 : vector<8x128xf32>
    %695 = arith.mulf %686, %674 : vector<8x128xf32>
    %696 = arith.mulf %680, %688 : vector<8x128xf32>
    %697 = arith.addf %695, %696 : vector<8x128xf32>
    %698 = math.tanh %697 : vector<8x128xf32>
    %699 = arith.mulf %694, %698 : vector<8x128xf32>
    %c0_295 = arith.constant 0 : index
    %c0_296 = arith.constant 0 : index
    %700 = vector.load %arg11[%c0_295, %c0_296] : memref<16x128xf32, #tpu.memory_space<vmem>>, vector<8x128xf32>
    tpu.vector_store %arg11[%c0_295, %c0_296], %699 {strides = array<i32>} : memref<16x128xf32, #tpu.memory_space<vmem>>, vector<8x128xf32>,
    %c0_297 = arith.constant 0 : index
    %c0_298 = arith.constant 0 : index
    %701 = vector.load %arg12[%c0_297, %c0_298] : memref<16x128xf32, #tpu.memory_space<vmem>>, vector<8x128xf32>
    tpu.vector_store %arg12[%c0_297, %c0_298], %697 {strides = array<i32>} : memref<16x128xf32, #tpu.memory_space<vmem>>, vector<8x128xf32>,
    %c2_i32_299 = arith.constant 2 : i32
    %c8_i32_300 = arith.constant 8 : i32
    %702 = arith.muli %c2_i32_299, %c8_i32_300 : i32
    %703 = tpu.assume_multiple %702, 8 : i32
    %704 = arith.index_cast %703 : i32 to index
    %c0_301 = arith.constant 0 : index
    %705 = vector.load %arg9[%704, %c0_301] : memref<64x1024xf32, #tpu.memory_space<vmem>>, vector<8x512xf32>
    %c0_302 = arith.constant 0 : index
    %c0_303 = arith.constant 0 : index
    %706 = vector.load %arg11[%c0_302, %c0_303] : memref<16x128xf32, #tpu.memory_space<vmem>>, vector<8x128xf32>
    %c0_304 = arith.constant 0 : index
    %c0_305 = arith.constant 0 : index
    %707 = vector.load %arg6[%c0_304, %c0_305] : memref<128x512xf32, #tpu.memory_space<vmem>>, vector<128x512xf32>
    %cst_306 = arith.constant dense<0.000000e+00> : vector<8x512xf32>
    %708 = tpu.matmul %706, %707, %cst_306 {dimension_numbers = #tpu.dot_dimension_numbers<[1], [0], [0], [1], [0, 0, 1, 1], [], []>} : vector<8x128xf32>, vector<128x512xf32>, vector<8x512xf32> -> vector<8x512xf32>
    %709 = arith.addf %705, %708 : vector<8x512xf32>
    %c0_307 = arith.constant 0 : index
    %c0_308 = arith.constant 0 : index
    %710 = vector.load %arg12[%c0_307, %c0_308] : memref<16x128xf32, #tpu.memory_space<vmem>>, vector<8x128xf32>
    %711 = vector.extract_strided_slice %709 {offsets = [0, 0], sizes = [8, 128], strides = [1, 1]} : vector<8x512xf32> to vector<8x128xf32>
    %712 = arith.negf %711 : vector<8x128xf32>
    %713 = math.exp %712 : vector<8x128xf32>
    %cst_309 = arith.constant 1.000000e+00 : f32
    %714 = vector.broadcast %cst_309 : f32 to vector<8x128xf32>
    %715 = arith.addf %714, %713 : vector<8x128xf32>
    %716 = arith.divf %714, %715 : vector<8x128xf32>
    %717 = vector.extract_strided_slice %709 {offsets = [0, 128], sizes = [8, 128], strides = [1, 1]} : vector<8x512xf32> to vector<8x128xf32>
    %718 = arith.negf %717 : vector<8x128xf32>
    %719 = math.exp %718 : vector<8x128xf32>
    %cst_310 = arith.constant 1.000000e+00 : f32
    %720 = vector.broadcast %cst_310 : f32 to vector<8x128xf32>
    %721 = arith.addf %720, %719 : vector<8x128xf32>
    %722 = arith.divf %720, %721 : vector<8x128xf32>
    %723 = vector.extract_strided_slice %709 {offsets = [0, 256], sizes = [8, 128], strides = [1, 1]} : vector<8x512xf32> to vector<8x128xf32>
    %724 = math.tanh %723 : vector<8x128xf32>
    %725 = vector.extract_strided_slice %709 {offsets = [0, 384], sizes = [8, 128], strides = [1, 1]} : vector<8x512xf32> to vector<8x128xf32>
    %726 = arith.negf %725 : vector<8x128xf32>
    %727 = math.exp %726 : vector<8x128xf32>
    %cst_311 = arith.constant 1.000000e+00 : f32
    %728 = vector.broadcast %cst_311 : f32 to vector<8x128xf32>
    %729 = arith.addf %728, %727 : vector<8x128xf32>
    %730 = arith.divf %728, %729 : vector<8x128xf32>
    %731 = arith.mulf %722, %710 : vector<8x128xf32>
    %732 = arith.mulf %716, %724 : vector<8x128xf32>
    %733 = arith.addf %731, %732 : vector<8x128xf32>
    %734 = math.tanh %733 : vector<8x128xf32>
    %735 = arith.mulf %730, %734 : vector<8x128xf32>
    %c0_312 = arith.constant 0 : index
    %c0_313 = arith.constant 0 : index
    %736 = vector.load %arg11[%c0_312, %c0_313] : memref<16x128xf32, #tpu.memory_space<vmem>>, vector<8x128xf32>
    tpu.vector_store %arg11[%c0_312, %c0_313], %735 {strides = array<i32>} : memref<16x128xf32, #tpu.memory_space<vmem>>, vector<8x128xf32>,
    %c0_314 = arith.constant 0 : index
    %c0_315 = arith.constant 0 : index
    %737 = vector.load %arg12[%c0_314, %c0_315] : memref<16x128xf32, #tpu.memory_space<vmem>>, vector<8x128xf32>
    tpu.vector_store %arg12[%c0_314, %c0_315], %733 {strides = array<i32>} : memref<16x128xf32, #tpu.memory_space<vmem>>, vector<8x128xf32>,
    %c3_i32_316 = arith.constant 3 : i32
    %c8_i32_317 = arith.constant 8 : i32
    %738 = arith.muli %c3_i32_316, %c8_i32_317 : i32
    %739 = tpu.assume_multiple %738, 8 : i32
    %740 = arith.index_cast %739 : i32 to index
    %c0_318 = arith.constant 0 : index
    %741 = vector.load %arg9[%740, %c0_318] : memref<64x1024xf32, #tpu.memory_space<vmem>>, vector<8x512xf32>
    %c0_319 = arith.constant 0 : index
    %c0_320 = arith.constant 0 : index
    %742 = vector.load %arg11[%c0_319, %c0_320] : memref<16x128xf32, #tpu.memory_space<vmem>>, vector<8x128xf32>
    %c0_321 = arith.constant 0 : index
    %c0_322 = arith.constant 0 : index
    %743 = vector.load %arg6[%c0_321, %c0_322] : memref<128x512xf32, #tpu.memory_space<vmem>>, vector<128x512xf32>
    %cst_323 = arith.constant dense<0.000000e+00> : vector<8x512xf32>
    %744 = tpu.matmul %742, %743, %cst_323 {dimension_numbers = #tpu.dot_dimension_numbers<[1], [0], [0], [1], [0, 0, 1, 1], [], []>} : vector<8x128xf32>, vector<128x512xf32>, vector<8x512xf32> -> vector<8x512xf32>
    %745 = arith.addf %741, %744 : vector<8x512xf32>
    %c0_324 = arith.constant 0 : index
    %c0_325 = arith.constant 0 : index
    %746 = vector.load %arg12[%c0_324, %c0_325] : memref<16x128xf32, #tpu.memory_space<vmem>>, vector<8x128xf32>
    %747 = vector.extract_strided_slice %745 {offsets = [0, 0], sizes = [8, 128], strides = [1, 1]} : vector<8x512xf32> to vector<8x128xf32>
    %748 = arith.negf %747 : vector<8x128xf32>
    %749 = math.exp %748 : vector<8x128xf32>
    %cst_326 = arith.constant 1.000000e+00 : f32
    %750 = vector.broadcast %cst_326 : f32 to vector<8x128xf32>
    %751 = arith.addf %750, %749 : vector<8x128xf32>
    %752 = arith.divf %750, %751 : vector<8x128xf32>
    %753 = vector.extract_strided_slice %745 {offsets = [0, 128], sizes = [8, 128], strides = [1, 1]} : vector<8x512xf32> to vector<8x128xf32>
    %754 = arith.negf %753 : vector<8x128xf32>
    %755 = math.exp %754 : vector<8x128xf32>
    %cst_327 = arith.constant 1.000000e+00 : f32
    %756 = vector.broadcast %cst_327 : f32 to vector<8x128xf32>
    %757 = arith.addf %756, %755 : vector<8x128xf32>
    %758 = arith.divf %756, %757 : vector<8x128xf32>
    %759 = vector.extract_strided_slice %745 {offsets = [0, 256], sizes = [8, 128], strides = [1, 1]} : vector<8x512xf32> to vector<8x128xf32>
    %760 = math.tanh %759 : vector<8x128xf32>
    %761 = vector.extract_strided_slice %745 {offsets = [0, 384], sizes = [8, 128], strides = [1, 1]} : vector<8x512xf32> to vector<8x128xf32>
    %762 = arith.negf %761 : vector<8x128xf32>
    %763 = math.exp %762 : vector<8x128xf32>
    %cst_328 = arith.constant 1.000000e+00 : f32
    %764 = vector.broadcast %cst_328 : f32 to vector<8x128xf32>
    %765 = arith.addf %764, %763 : vector<8x128xf32>
    %766 = arith.divf %764, %765 : vector<8x128xf32>
    %767 = arith.mulf %758, %746 : vector<8x128xf32>
    %768 = arith.mulf %752, %760 : vector<8x128xf32>
    %769 = arith.addf %767, %768 : vector<8x128xf32>
    %770 = math.tanh %769 : vector<8x128xf32>
    %771 = arith.mulf %766, %770 : vector<8x128xf32>
    %c0_329 = arith.constant 0 : index
    %c0_330 = arith.constant 0 : index
    %772 = vector.load %arg11[%c0_329, %c0_330] : memref<16x128xf32, #tpu.memory_space<vmem>>, vector<8x128xf32>
    tpu.vector_store %arg11[%c0_329, %c0_330], %771 {strides = array<i32>} : memref<16x128xf32, #tpu.memory_space<vmem>>, vector<8x128xf32>,
    %c0_331 = arith.constant 0 : index
    %c0_332 = arith.constant 0 : index
    %773 = vector.load %arg12[%c0_331, %c0_332] : memref<16x128xf32, #tpu.memory_space<vmem>>, vector<8x128xf32>
    tpu.vector_store %arg12[%c0_331, %c0_332], %769 {strides = array<i32>} : memref<16x128xf32, #tpu.memory_space<vmem>>, vector<8x128xf32>,
    %c4_i32_333 = arith.constant 4 : i32
    %c8_i32_334 = arith.constant 8 : i32
    %774 = arith.muli %c4_i32_333, %c8_i32_334 : i32
    %775 = tpu.assume_multiple %774, 8 : i32
    %776 = arith.index_cast %775 : i32 to index
    %c0_335 = arith.constant 0 : index
    %777 = vector.load %arg9[%776, %c0_335] : memref<64x1024xf32, #tpu.memory_space<vmem>>, vector<8x512xf32>
    %c0_336 = arith.constant 0 : index
    %c0_337 = arith.constant 0 : index
    %778 = vector.load %arg11[%c0_336, %c0_337] : memref<16x128xf32, #tpu.memory_space<vmem>>, vector<8x128xf32>
    %c0_338 = arith.constant 0 : index
    %c0_339 = arith.constant 0 : index
    %779 = vector.load %arg6[%c0_338, %c0_339] : memref<128x512xf32, #tpu.memory_space<vmem>>, vector<128x512xf32>
    %cst_340 = arith.constant dense<0.000000e+00> : vector<8x512xf32>
    %780 = tpu.matmul %778, %779, %cst_340 {dimension_numbers = #tpu.dot_dimension_numbers<[1], [0], [0], [1], [0, 0, 1, 1], [], []>} : vector<8x128xf32>, vector<128x512xf32>, vector<8x512xf32> -> vector<8x512xf32>
    %781 = arith.addf %777, %780 : vector<8x512xf32>
    %c0_341 = arith.constant 0 : index
    %c0_342 = arith.constant 0 : index
    %782 = vector.load %arg12[%c0_341, %c0_342] : memref<16x128xf32, #tpu.memory_space<vmem>>, vector<8x128xf32>
    %783 = vector.extract_strided_slice %781 {offsets = [0, 0], sizes = [8, 128], strides = [1, 1]} : vector<8x512xf32> to vector<8x128xf32>
    %784 = arith.negf %783 : vector<8x128xf32>
    %785 = math.exp %784 : vector<8x128xf32>
    %cst_343 = arith.constant 1.000000e+00 : f32
    %786 = vector.broadcast %cst_343 : f32 to vector<8x128xf32>
    %787 = arith.addf %786, %785 : vector<8x128xf32>
    %788 = arith.divf %786, %787 : vector<8x128xf32>
    %789 = vector.extract_strided_slice %781 {offsets = [0, 128], sizes = [8, 128], strides = [1, 1]} : vector<8x512xf32> to vector<8x128xf32>
    %790 = arith.negf %789 : vector<8x128xf32>
    %791 = math.exp %790 : vector<8x128xf32>
    %cst_344 = arith.constant 1.000000e+00 : f32
    %792 = vector.broadcast %cst_344 : f32 to vector<8x128xf32>
    %793 = arith.addf %792, %791 : vector<8x128xf32>
    %794 = arith.divf %792, %793 : vector<8x128xf32>
    %795 = vector.extract_strided_slice %781 {offsets = [0, 256], sizes = [8, 128], strides = [1, 1]} : vector<8x512xf32> to vector<8x128xf32>
    %796 = math.tanh %795 : vector<8x128xf32>
    %797 = vector.extract_strided_slice %781 {offsets = [0, 384], sizes = [8, 128], strides = [1, 1]} : vector<8x512xf32> to vector<8x128xf32>
    %798 = arith.negf %797 : vector<8x128xf32>
    %799 = math.exp %798 : vector<8x128xf32>
    %cst_345 = arith.constant 1.000000e+00 : f32
    %800 = vector.broadcast %cst_345 : f32 to vector<8x128xf32>
    %801 = arith.addf %800, %799 : vector<8x128xf32>
    %802 = arith.divf %800, %801 : vector<8x128xf32>
    %803 = arith.mulf %794, %782 : vector<8x128xf32>
    %804 = arith.mulf %788, %796 : vector<8x128xf32>
    %805 = arith.addf %803, %804 : vector<8x128xf32>
    %806 = math.tanh %805 : vector<8x128xf32>
    %807 = arith.mulf %802, %806 : vector<8x128xf32>
    %c0_346 = arith.constant 0 : index
    %c0_347 = arith.constant 0 : index
    %808 = vector.load %arg11[%c0_346, %c0_347] : memref<16x128xf32, #tpu.memory_space<vmem>>, vector<8x128xf32>
    tpu.vector_store %arg11[%c0_346, %c0_347], %807 {strides = array<i32>} : memref<16x128xf32, #tpu.memory_space<vmem>>, vector<8x128xf32>,
    %c0_348 = arith.constant 0 : index
    %c0_349 = arith.constant 0 : index
    %809 = vector.load %arg12[%c0_348, %c0_349] : memref<16x128xf32, #tpu.memory_space<vmem>>, vector<8x128xf32>
    tpu.vector_store %arg12[%c0_348, %c0_349], %805 {strides = array<i32>} : memref<16x128xf32, #tpu.memory_space<vmem>>, vector<8x128xf32>,
    %c5_i32_350 = arith.constant 5 : i32
    %c8_i32_351 = arith.constant 8 : i32
    %810 = arith.muli %c5_i32_350, %c8_i32_351 : i32
    %811 = tpu.assume_multiple %810, 8 : i32
    %812 = arith.index_cast %811 : i32 to index
    %c0_352 = arith.constant 0 : index
    %813 = vector.load %arg9[%812, %c0_352] : memref<64x1024xf32, #tpu.memory_space<vmem>>, vector<8x512xf32>
    %c0_353 = arith.constant 0 : index
    %c0_354 = arith.constant 0 : index
    %814 = vector.load %arg11[%c0_353, %c0_354] : memref<16x128xf32, #tpu.memory_space<vmem>>, vector<8x128xf32>
    %c0_355 = arith.constant 0 : index
    %c0_356 = arith.constant 0 : index
    %815 = vector.load %arg6[%c0_355, %c0_356] : memref<128x512xf32, #tpu.memory_space<vmem>>, vector<128x512xf32>
    %cst_357 = arith.constant dense<0.000000e+00> : vector<8x512xf32>
    %816 = tpu.matmul %814, %815, %cst_357 {dimension_numbers = #tpu.dot_dimension_numbers<[1], [0], [0], [1], [0, 0, 1, 1], [], []>} : vector<8x128xf32>, vector<128x512xf32>, vector<8x512xf32> -> vector<8x512xf32>
    %817 = arith.addf %813, %816 : vector<8x512xf32>
    %c0_358 = arith.constant 0 : index
    %c0_359 = arith.constant 0 : index
    %818 = vector.load %arg12[%c0_358, %c0_359] : memref<16x128xf32, #tpu.memory_space<vmem>>, vector<8x128xf32>
    %819 = vector.extract_strided_slice %817 {offsets = [0, 0], sizes = [8, 128], strides = [1, 1]} : vector<8x512xf32> to vector<8x128xf32>
    %820 = arith.negf %819 : vector<8x128xf32>
    %821 = math.exp %820 : vector<8x128xf32>
    %cst_360 = arith.constant 1.000000e+00 : f32
    %822 = vector.broadcast %cst_360 : f32 to vector<8x128xf32>
    %823 = arith.addf %822, %821 : vector<8x128xf32>
    %824 = arith.divf %822, %823 : vector<8x128xf32>
    %825 = vector.extract_strided_slice %817 {offsets = [0, 128], sizes = [8, 128], strides = [1, 1]} : vector<8x512xf32> to vector<8x128xf32>
    %826 = arith.negf %825 : vector<8x128xf32>
    %827 = math.exp %826 : vector<8x128xf32>
    %cst_361 = arith.constant 1.000000e+00 : f32
    %828 = vector.broadcast %cst_361 : f32 to vector<8x128xf32>
    %829 = arith.addf %828, %827 : vector<8x128xf32>
    %830 = arith.divf %828, %829 : vector<8x128xf32>
    %831 = vector.extract_strided_slice %817 {offsets = [0, 256], sizes = [8, 128], strides = [1, 1]} : vector<8x512xf32> to vector<8x128xf32>
    %832 = math.tanh %831 : vector<8x128xf32>
    %833 = vector.extract_strided_slice %817 {offsets = [0, 384], sizes = [8, 128], strides = [1, 1]} : vector<8x512xf32> to vector<8x128xf32>
    %834 = arith.negf %833 : vector<8x128xf32>
    %835 = math.exp %834 : vector<8x128xf32>
    %cst_362 = arith.constant 1.000000e+00 : f32
    %836 = vector.broadcast %cst_362 : f32 to vector<8x128xf32>
    %837 = arith.addf %836, %835 : vector<8x128xf32>
    %838 = arith.divf %836, %837 : vector<8x128xf32>
    %839 = arith.mulf %830, %818 : vector<8x128xf32>
    %840 = arith.mulf %824, %832 : vector<8x128xf32>
    %841 = arith.addf %839, %840 : vector<8x128xf32>
    %842 = math.tanh %841 : vector<8x128xf32>
    %843 = arith.mulf %838, %842 : vector<8x128xf32>
    %c0_363 = arith.constant 0 : index
    %c0_364 = arith.constant 0 : index
    %844 = vector.load %arg11[%c0_363, %c0_364] : memref<16x128xf32, #tpu.memory_space<vmem>>, vector<8x128xf32>
    tpu.vector_store %arg11[%c0_363, %c0_364], %843 {strides = array<i32>} : memref<16x128xf32, #tpu.memory_space<vmem>>, vector<8x128xf32>,
    %c0_365 = arith.constant 0 : index
    %c0_366 = arith.constant 0 : index
    %845 = vector.load %arg12[%c0_365, %c0_366] : memref<16x128xf32, #tpu.memory_space<vmem>>, vector<8x128xf32>
    tpu.vector_store %arg12[%c0_365, %c0_366], %841 {strides = array<i32>} : memref<16x128xf32, #tpu.memory_space<vmem>>, vector<8x128xf32>,
    %c6_i32_367 = arith.constant 6 : i32
    %c8_i32_368 = arith.constant 8 : i32
    %846 = arith.muli %c6_i32_367, %c8_i32_368 : i32
    %847 = tpu.assume_multiple %846, 8 : i32
    %848 = arith.index_cast %847 : i32 to index
    %c0_369 = arith.constant 0 : index
    %849 = vector.load %arg9[%848, %c0_369] : memref<64x1024xf32, #tpu.memory_space<vmem>>, vector<8x512xf32>
    %c0_370 = arith.constant 0 : index
    %c0_371 = arith.constant 0 : index
    %850 = vector.load %arg11[%c0_370, %c0_371] : memref<16x128xf32, #tpu.memory_space<vmem>>, vector<8x128xf32>
    %c0_372 = arith.constant 0 : index
    %c0_373 = arith.constant 0 : index
    %851 = vector.load %arg6[%c0_372, %c0_373] : memref<128x512xf32, #tpu.memory_space<vmem>>, vector<128x512xf32>
    %cst_374 = arith.constant dense<0.000000e+00> : vector<8x512xf32>
    %852 = tpu.matmul %850, %851, %cst_374 {dimension_numbers = #tpu.dot_dimension_numbers<[1], [0], [0], [1], [0, 0, 1, 1], [], []>} : vector<8x128xf32>, vector<128x512xf32>, vector<8x512xf32> -> vector<8x512xf32>
    %853 = arith.addf %849, %852 : vector<8x512xf32>
    %c0_375 = arith.constant 0 : index
    %c0_376 = arith.constant 0 : index
    %854 = vector.load %arg12[%c0_375, %c0_376] : memref<16x128xf32, #tpu.memory_space<vmem>>, vector<8x128xf32>
    %855 = vector.extract_strided_slice %853 {offsets = [0, 0], sizes = [8, 128], strides = [1, 1]} : vector<8x512xf32> to vector<8x128xf32>
    %856 = arith.negf %855 : vector<8x128xf32>
    %857 = math.exp %856 : vector<8x128xf32>
    %cst_377 = arith.constant 1.000000e+00 : f32
    %858 = vector.broadcast %cst_377 : f32 to vector<8x128xf32>
    %859 = arith.addf %858, %857 : vector<8x128xf32>
    %860 = arith.divf %858, %859 : vector<8x128xf32>
    %861 = vector.extract_strided_slice %853 {offsets = [0, 128], sizes = [8, 128], strides = [1, 1]} : vector<8x512xf32> to vector<8x128xf32>
    %862 = arith.negf %861 : vector<8x128xf32>
    %863 = math.exp %862 : vector<8x128xf32>
    %cst_378 = arith.constant 1.000000e+00 : f32
    %864 = vector.broadcast %cst_378 : f32 to vector<8x128xf32>
    %865 = arith.addf %864, %863 : vector<8x128xf32>
    %866 = arith.divf %864, %865 : vector<8x128xf32>
    %867 = vector.extract_strided_slice %853 {offsets = [0, 256], sizes = [8, 128], strides = [1, 1]} : vector<8x512xf32> to vector<8x128xf32>
    %868 = math.tanh %867 : vector<8x128xf32>
    %869 = vector.extract_strided_slice %853 {offsets = [0, 384], sizes = [8, 128], strides = [1, 1]} : vector<8x512xf32> to vector<8x128xf32>
    %870 = arith.negf %869 : vector<8x128xf32>
    %871 = math.exp %870 : vector<8x128xf32>
    %cst_379 = arith.constant 1.000000e+00 : f32
    %872 = vector.broadcast %cst_379 : f32 to vector<8x128xf32>
    %873 = arith.addf %872, %871 : vector<8x128xf32>
    %874 = arith.divf %872, %873 : vector<8x128xf32>
    %875 = arith.mulf %866, %854 : vector<8x128xf32>
    %876 = arith.mulf %860, %868 : vector<8x128xf32>
    %877 = arith.addf %875, %876 : vector<8x128xf32>
    %878 = math.tanh %877 : vector<8x128xf32>
    %879 = arith.mulf %874, %878 : vector<8x128xf32>
    %c0_380 = arith.constant 0 : index
    %c0_381 = arith.constant 0 : index
    %880 = vector.load %arg11[%c0_380, %c0_381] : memref<16x128xf32, #tpu.memory_space<vmem>>, vector<8x128xf32>
    tpu.vector_store %arg11[%c0_380, %c0_381], %879 {strides = array<i32>} : memref<16x128xf32, #tpu.memory_space<vmem>>, vector<8x128xf32>,
    %c0_382 = arith.constant 0 : index
    %c0_383 = arith.constant 0 : index
    %881 = vector.load %arg12[%c0_382, %c0_383] : memref<16x128xf32, #tpu.memory_space<vmem>>, vector<8x128xf32>
    tpu.vector_store %arg12[%c0_382, %c0_383], %877 {strides = array<i32>} : memref<16x128xf32, #tpu.memory_space<vmem>>, vector<8x128xf32>,
    %c7_i32_384 = arith.constant 7 : i32
    %c8_i32_385 = arith.constant 8 : i32
    %882 = arith.muli %c7_i32_384, %c8_i32_385 : i32
    %883 = tpu.assume_multiple %882, 8 : i32
    %884 = arith.index_cast %883 : i32 to index
    %c0_386 = arith.constant 0 : index
    %885 = vector.load %arg9[%884, %c0_386] : memref<64x1024xf32, #tpu.memory_space<vmem>>, vector<8x512xf32>
    %c0_387 = arith.constant 0 : index
    %c0_388 = arith.constant 0 : index
    %886 = vector.load %arg11[%c0_387, %c0_388] : memref<16x128xf32, #tpu.memory_space<vmem>>, vector<8x128xf32>
    %c0_389 = arith.constant 0 : index
    %c0_390 = arith.constant 0 : index
    %887 = vector.load %arg6[%c0_389, %c0_390] : memref<128x512xf32, #tpu.memory_space<vmem>>, vector<128x512xf32>
    %cst_391 = arith.constant dense<0.000000e+00> : vector<8x512xf32>
    %888 = tpu.matmul %886, %887, %cst_391 {dimension_numbers = #tpu.dot_dimension_numbers<[1], [0], [0], [1], [0, 0, 1, 1], [], []>} : vector<8x128xf32>, vector<128x512xf32>, vector<8x512xf32> -> vector<8x512xf32>
    %889 = arith.addf %885, %888 : vector<8x512xf32>
    %c0_392 = arith.constant 0 : index
    %c0_393 = arith.constant 0 : index
    %890 = vector.load %arg12[%c0_392, %c0_393] : memref<16x128xf32, #tpu.memory_space<vmem>>, vector<8x128xf32>
    %891 = vector.extract_strided_slice %889 {offsets = [0, 0], sizes = [8, 128], strides = [1, 1]} : vector<8x512xf32> to vector<8x128xf32>
    %892 = arith.negf %891 : vector<8x128xf32>
    %893 = math.exp %892 : vector<8x128xf32>
    %cst_394 = arith.constant 1.000000e+00 : f32
    %894 = vector.broadcast %cst_394 : f32 to vector<8x128xf32>
    %895 = arith.addf %894, %893 : vector<8x128xf32>
    %896 = arith.divf %894, %895 : vector<8x128xf32>
    %897 = vector.extract_strided_slice %889 {offsets = [0, 128], sizes = [8, 128], strides = [1, 1]} : vector<8x512xf32> to vector<8x128xf32>
    %898 = arith.negf %897 : vector<8x128xf32>
    %899 = math.exp %898 : vector<8x128xf32>
    %cst_395 = arith.constant 1.000000e+00 : f32
    %900 = vector.broadcast %cst_395 : f32 to vector<8x128xf32>
    %901 = arith.addf %900, %899 : vector<8x128xf32>
    %902 = arith.divf %900, %901 : vector<8x128xf32>
    %903 = vector.extract_strided_slice %889 {offsets = [0, 256], sizes = [8, 128], strides = [1, 1]} : vector<8x512xf32> to vector<8x128xf32>
    %904 = math.tanh %903 : vector<8x128xf32>
    %905 = vector.extract_strided_slice %889 {offsets = [0, 384], sizes = [8, 128], strides = [1, 1]} : vector<8x512xf32> to vector<8x128xf32>
    %906 = arith.negf %905 : vector<8x128xf32>
    %907 = math.exp %906 : vector<8x128xf32>
    %cst_396 = arith.constant 1.000000e+00 : f32
    %908 = vector.broadcast %cst_396 : f32 to vector<8x128xf32>
    %909 = arith.addf %908, %907 : vector<8x128xf32>
    %910 = arith.divf %908, %909 : vector<8x128xf32>
    %911 = arith.mulf %902, %890 : vector<8x128xf32>
    %912 = arith.mulf %896, %904 : vector<8x128xf32>
    %913 = arith.addf %911, %912 : vector<8x128xf32>
    %914 = math.tanh %913 : vector<8x128xf32>
    %915 = arith.mulf %910, %914 : vector<8x128xf32>
    %c0_397 = arith.constant 0 : index
    %c0_398 = arith.constant 0 : index
    %916 = vector.load %arg11[%c0_397, %c0_398] : memref<16x128xf32, #tpu.memory_space<vmem>>, vector<8x128xf32>
    tpu.vector_store %arg11[%c0_397, %c0_398], %915 {strides = array<i32>} : memref<16x128xf32, #tpu.memory_space<vmem>>, vector<8x128xf32>,
    %c0_399 = arith.constant 0 : index
    %c0_400 = arith.constant 0 : index
    %917 = vector.load %arg12[%c0_399, %c0_400] : memref<16x128xf32, #tpu.memory_space<vmem>>, vector<8x128xf32>
    tpu.vector_store %arg12[%c0_399, %c0_400], %913 {strides = array<i32>} : memref<16x128xf32, #tpu.memory_space<vmem>>, vector<8x128xf32>,
    %c8_i32_401 = arith.constant 8 : i32
    %c0_402 = arith.constant 0 : index
    %c0_403 = arith.constant 0 : index
    %918 = vector.load %arg11[%c0_402, %c0_403] : memref<16x128xf32, #tpu.memory_space<vmem>>, vector<8x128xf32>
    %c0_404 = arith.constant 0 : index
    %c0_405 = arith.constant 0 : index
    %919 = vector.load %arg8[%c0_404, %c0_405] : memref<8x128xf32, #tpu.memory_space<vmem>>, vector<8x128xf32>
    tpu.vector_store %arg8[%c0_404, %c0_405], %918 {strides = array<i32>} : memref<8x128xf32, #tpu.memory_space<vmem>>, vector<8x128xf32>,
    return
  }
  func.func @transform_0(%arg0: i32) -> (i32, i32) {
    %c0_i32 = arith.constant 0 : i32
    %c0_i32_0 = arith.constant 0 : i32
    %c0_i32_1 = arith.constant 0 : i32
    return %c0_i32, %c0_i32_0 : i32, i32
  }
  func.func @transform_1(%arg0: i32) -> (i32, i32) {
    %c0_i32 = arith.constant 0 : i32
    %c0_i32_0 = arith.constant 0 : i32
    %c0_i32_1 = arith.constant 0 : i32
    return %c0_i32, %c0_i32_0 : i32, i32
  }
  func.func @transform_2(%arg0: i32) -> (i32, i32) {
    %c0_i32 = arith.constant 0 : i32
    %c0_i32_0 = arith.constant 0 : i32
    %c0_i32_1 = arith.constant 0 : i32
    return %c0_i32, %c0_i32_0 : i32, i32
  }
  func.func @transform_3(%arg0: i32) -> (i32, i32) {
    %c0_i32 = arith.constant 0 : i32
    %c0_i32_0 = arith.constant 0 : i32
    %c0_i32_1 = arith.constant 0 : i32
    return %c0_i32, %c0_i32_0 : i32, i32
  }
  func.func @transform_4(%arg0: i32) -> (i32, i32) {
    %c0_i32 = arith.constant 0 : i32
    %c0_i32_0 = arith.constant 0 : i32
    %c0_i32_1 = arith.constant 0 : i32
    return %c0_i32, %c0_i32_0 : i32, i32
  }
  func.func @transform_5(%arg0: i32) -> (i32, i32) {
    %c0_i32 = arith.constant 0 : i32
    %c0_i32_0 = arith.constant 0 : i32
    %c0_i32_1 = arith.constant 0 : i32
    return %c0_i32, %c0_i32_0 : i32, i32
  }
  func.func @transform_6(%arg0: i32) -> (i32, i32) {
    %c0_i32 = arith.constant 0 : i32
    %c0_i32_0 = arith.constant 0 : i32
    %c0_i32_1 = arith.constant 0 : i32
    return %c0_i32, %c0_i32_0 : i32, i32
  }
  func.func @transform_7(%arg0: i32) -> (i32, i32) {
    %c0_i32 = arith.constant 0 : i32
    %c0_i32_0 = arith.constant 0 : i32
    %c0_i32_1 = arith.constant 0 : i32
    return %c0_i32, %c0_i32_0 : i32, i32
  }
}

</mosaic_0001>

<llo_original>
// kernel: music_encoder_forward.1
$region0: #{music_encoder_forward.1}
  #allocation0 [shape = 'u32[]', space=smem, size = 0x4, offset = 0x4, fixed_abs, tag = 'smem constant byte address 0x4 - core index']
  #allocation1 [shape = 'u32[144,128]{1,0:T(1,128)}', space=vmem, size = 0x12000, scoped, tag = 'internal scratch']
  #allocation2 [shape = 'f32[64,1024]{1,0:T(8,128)}', space=vmem, size = 0x40000, scoped, tag = 'scratch operand']
  #allocation3 [shape = 'f32[64,256]{1,0:T(8,128)}', space=vmem, size = 0x10000, scoped, tag = 'scratch operand']
  #allocation4 [shape = 'f32[16,128]{1,0:T(8,128)}', space=vmem, size = 0x2000, scoped, tag = 'scratch operand']
  #allocation5 [shape = 'f32[16,128]{1,0:T(8,128)}', space=vmem, size = 0x2000, scoped, tag = 'scratch operand']
  %s0 = inlined_call_operand.vmem [shape: f32[64,16], index: 0, kind: input, shape index: {}]
  %s1 = inlined_call_operand.hbm [shape: f32[16,1024], index: 1, kind: input, shape index: {}]
  %s2 = inlined_call_operand.hbm [shape: f32[128,1024], index: 2, kind: input, shape index: {}]
  %s3 = inlined_call_operand.vmem [shape: f32[1,1024], index: 3, kind: input, shape index: {}]
  %s4 = inlined_call_operand.hbm [shape: f32[256,512], index: 4, kind: input, shape index: {}]
  %s5 = inlined_call_operand.hbm [shape: f32[128,512], index: 5, kind: input, shape index: {}]
  %s6 = inlined_call_operand.vmem [shape: f32[1,512], index: 6, kind: input, shape index: {}]
  %s7 = inlined_call_operand.vmem [shape: f32[8,128], index: 7, kind: output, shape index: {}]
  %s8 = sld [smem:[#allocation0]]
  $region54: #{music_encoder_forward.1} parent=0
    _
  %s10 = ssub.s32 1, %s8
  %s11 = scalar_select 0, %s10, %s8
  $region1: #{music_encoder_forward.1} parent=0
    #allocation6 [shape = 'u8[65536]{0}', space=vmem, size = 0x10000, scoped, tag = 'input window, operand 1, single buffered']
    #allocation7 [shape = 's32[1]{0}', space=sflag, size = 0x4, scoped, tag = 'scoped memory for music_encoder_forward.1']
    #allocation8 [shape = 'u8[524288]{0}', space=vmem, size = 0x80000, scoped, tag = 'input window, operand 2, single buffered']
    #allocation9 [shape = 's32[1]{0}', space=sflag, size = 0x4, scoped, tag = 'scoped memory for music_encoder_forward.1']
    #allocation10 [shape = 'u8[524288]{0}', space=vmem, size = 0x80000, scoped, tag = 'input window, operand 4, single buffered']
    #allocation11 [shape = 'u8[262144]{0}', space=vmem, size = 0x40000, scoped, tag = 'input window, operand 5, single buffered']
    #allocation12 [shape = 's32[1]{0}', space=sflag, size = 0x4, scoped, tag = 'scoped memory for music_encoder_forward.1']
    %12 = vsyncpa [#allocation7], 0
    %13 = vsyncpa [#allocation9], 0
    %14 = vsyncpa [#allocation12], 0
    // Predicated region
    $region2: #{music_encoder_forward.1} parent=1 // pred_check
      _
    $region3: #{music_encoder_forward.1} parent=1 // pred_check_branch
      %16 = sbr.rel (0) target = $region5
    $region4: #{music_encoder_forward.1} parent=1 // pred_region
      _
    $region5: #{music_encoder_forward.1} parent=1 // pred_fallthru
      _
    // Predicated region
    $region6: #{music_encoder_forward.1} parent=1 // pred_check
      _
    $region7: #{music_encoder_forward.1} parent=1 // pred_check_branch
      %18 = sbr.rel (0) target = $region9
    $region8: #{music_encoder_forward.1} parent=1 // pred_region
      %s20 = ssub.s32 2048, 2048
      %21 = vsyncadd [#allocation7], %s20
      %s22 = sshll.u32 [#allocation6], 4
      %s23 = int_to_ptr.vmem [resolvable:$true] %s22
      %28 = dma.hbm_to_vmem [thread:$0]  %s1, 2048, %s23, [#allocation7], 1024, 1024, 64
    $region9: #{music_encoder_forward.1} parent=1 // pred_fallthru
      _
    // Predicated region
    $region10: #{music_encoder_forward.1} parent=1 // pred_check
      _
    $region11: #{music_encoder_forward.1} parent=1 // pred_check_branch
      %30 = sbr.rel (0) target = $region13
    $region12: #{music_encoder_forward.1} parent=1 // pred_region
      %s32 = ssub.s32 16384, 16384
      %33 = vsyncadd [#allocation9], %s32
      %s34 = sshll.u32 [#allocation8], 4
      %s35 = int_to_ptr.vmem [resolvable:$true] %s34
      %40 = dma.hbm_to_vmem [thread:$0]  %s2, 16384, %s35, [#allocation9], 1024, 1024, 64
    $region13: #{music_encoder_forward.1} parent=1 // pred_fallthru
      _
    // Predicated region
    $region14: #{music_encoder_forward.1} parent=1 // pred_check
      _
    $region15: #{music_encoder_forward.1} parent=1 // pred_check_branch
      %42 = sbr.rel (0) target = $region17
    $region16: #{music_encoder_forward.1} parent=1 // pred_region
      _
    $region17: #{music_encoder_forward.1} parent=1 // pred_fallthru
      _
    // Predicated region
    $region18: #{music_encoder_forward.1} parent=1 // pred_check
      _
    $region19: #{music_encoder_forward.1} parent=1 // pred_check_branch
      %44 = sbr.rel (0) target = $region21
    $region20: #{music_encoder_forward.1} parent=1 // pred_region
      %s46 = ssub.s32 16384, 16384
      %47 = vsyncadd [#allocation9], %s46
      %s48 = sshll.u32 [#allocation10], 4
      %s49 = int_to_ptr.vmem [resolvable:$true] %s48
      %54 = dma.hbm_to_vmem [thread:$0]  %s4, 16384, %s49, [#allocation9], 512, 512, 32
    $region21: #{music_encoder_forward.1} parent=1 // pred_fallthru
      _
    // Predicated region
    $region22: #{music_encoder_forward.1} parent=1 // pred_check
      _
    $region23: #{music_encoder_forward.1} parent=1 // pred_check_branch
      %56 = sbr.rel (0) target = $region25
    $region24: #{music_encoder_forward.1} parent=1 // pred_region
      %s58 = ssub.s32 8192, 8192
      %59 = vsyncadd [#allocation12], %s58
      %s60 = sshll.u32 [#allocation11], 4
      %s61 = int_to_ptr.vmem [resolvable:$true] %s60
      %66 = dma.hbm_to_vmem [thread:$0]  %s5, 8192, %s61, [#allocation12], 512, 512, 32
    $region25: #{music_encoder_forward.1} parent=1 // pred_fallthru
      _
    // Predicated region
    $region26: #{music_encoder_forward.1} parent=1 // pred_check
      _
    $region27: #{music_encoder_forward.1} parent=1 // pred_check_branch
      %68 = sbr.rel (0) target = $region29
    $region28: #{music_encoder_forward.1} parent=1 // pred_region
      _
    $region29: #{music_encoder_forward.1} parent=1 // pred_fallthru
      _
    // Predicated region
    $region30: #{music_encoder_forward.1} parent=1 // pred_check
      _
    $region31: #{music_encoder_forward.1} parent=1 // pred_check_branch
      %70 = sbr.rel (0) target = $region33
    $region32: #{music_encoder_forward.1} parent=1 // pred_region
      %71 = dma.done [#allocation7], 2048
    $region33: #{music_encoder_forward.1} parent=1 // pred_fallthru
      _
    // Predicated region
    $region34: #{music_encoder_forward.1} parent=1 // pred_check
      _
    $region35: #{music_encoder_forward.1} parent=1 // pred_check_branch
      %73 = sbr.rel (0) target = $region37
    $region36: #{music_encoder_forward.1} parent=1 // pred_region
      %74 = dma.done [#allocation9], 16384
    $region37: #{music_encoder_forward.1} parent=1 // pred_fallthru
      _
    // Predicated region
    $region38: #{music_encoder_forward.1} parent=1 // pred_check
      _
    $region39: #{music_encoder_forward.1} parent=1 // pred_check_branch
      %76 = sbr.rel (0) target = $region41
    $region40: #{music_encoder_forward.1} parent=1 // pred_region
      %77 = dma.done [#allocation9], 16384
    $region41: #{music_encoder_forward.1} parent=1 // pred_fallthru
      _
    // Predicated region
    $region42: #{music_encoder_forward.1} parent=1 // pred_check
      _
    $region43: #{music_encoder_forward.1} parent=1 // pred_check_branch
      %79 = sbr.rel (0) target = $region45
    $region44: #{music_encoder_forward.1} parent=1 // pred_region
      %80 = dma.done [#allocation12], 8192
    $region45: #{music_encoder_forward.1} parent=1 // pred_fallthru
      _
    %v81 = vld [vmem:[%s0] sm:$0xff]
    %v82 = vld [vmem:[%s0 + $0x8] sm:$0xff]
    %v83 = vld [vmem:[%s0 + $0x10] sm:$0xff]
    %v84 = vld [vmem:[%s0 + $0x18] sm:$0xff]
    %v85 = vld [vmem:[%s0 + $0x20] sm:$0xff]
    %v86 = vld [vmem:[%s0 + $0x28] sm:$0xff]
    %v87 = vld [vmem:[%s0 + $0x30] sm:$0xff]
    %v88 = vld [vmem:[%s0 + $0x38] sm:$0xff]
    %v89 = vld [vmem:[#allocation6] sm:$0xff]
    %v90 = vld [vmem:[#allocation6 + $0x8] sm:$0xff]
    %v91 = vld [vmem:[#allocation6 + $0x10] sm:$0xff]
    %v92 = vld [vmem:[#allocation6 + $0x18] sm:$0xff]
    %v93 = vld [vmem:[#allocation6 + $0x20] sm:$0xff]
    %v94 = vld [vmem:[#allocation6 + $0x28] sm:$0xff]
    %v95 = vld [vmem:[#allocation6 + $0x30] sm:$0xff]
    %v96 = vld [vmem:[#allocation6 + $0x38] sm:$0xff]
    %v97 = vld [vmem:[#allocation6 + $0x40] sm:$0xff]
    %v98 = vld [vmem:[#allocation6 + $0x48] sm:$0xff]
    %v99 = vld [vmem:[#allocation6 + $0x50] sm:$0xff]
    %v100 = vld [vmem:[#allocation6 + $0x58] sm:$0xff]
    %v101 = vld [vmem:[#allocation6 + $0x60] sm:$0xff]
    %v102 = vld [vmem:[#allocation6 + $0x68] sm:$0xff]
    %v103 = vld [vmem:[#allocation6 + $0x70] sm:$0xff]
    %v104 = vld [vmem:[#allocation6 + $0x78] sm:$0xff]
    %v105 = vld [vmem:[%s3] sm:$0xff]
    %v107 = vlaneseq
    %v108 = vshrl.u32 %v107, 7
    %v109 = vsub.s32 0, %v108
    %v110 = vrot.slane %v105, %v109
    %v111 = vlaneseq
    %v112 = vshrl.u32 %v111, 7
    %v113 = vsub.s32 1, %v112
    %v114 = vrot.slane %v105, %v113
    %v115 = vlaneseq
    %v116 = vshrl.u32 %v115, 7
    %v117 = vsub.s32 2, %v116
    %v118 = vrot.slane %v105, %v117
    %v119 = vlaneseq
    %v120 = vshrl.u32 %v119, 7
    %v121 = vsub.s32 3, %v120
    %v122 = vrot.slane %v105, %v121
    %v123 = vlaneseq
    %v124 = vshrl.u32 %v123, 7
    %v125 = vsub.s32 4, %v124
    %v126 = vrot.slane %v105, %v125
    %v127 = vlaneseq
    %v128 = vshrl.u32 %v127, 7
    %v129 = vsub.s32 5, %v128
    %v130 = vrot.slane %v105, %v129
    %v131 = vlaneseq
    %v132 = vshrl.u32 %v131, 7
    %v133 = vsub.s32 6, %v132
    %v134 = vrot.slane %v105, %v133
    %v135 = vlaneseq
    %v136 = vshrl.u32 %v135, 7
    %v137 = vsub.s32 7, %v136
    %v138 = vrot.slane %v105, %v137
    %vm147 = vcmask 130048
    %v149 = vsel %vm147, %v81, 0
    %v152 = vsel %vm147, %v82, 0
    %v155 = vsel %vm147, %v83, 0
    %v158 = vsel %vm147, %v84, 0
    %v161 = vsel %vm147, %v85, 0
    %v164 = vsel %vm147, %v86, 0
    %v167 = vsel %vm147, %v87, 0
    %v170 = vsel %vm147, %v88, 0
    %172 = vmatprep.subr.mxu0 %v90
    %173 = vmatpush1.msra.mxu0 %v89
    %174 = vmatprep.subr.mxu0 %v98
    %175 = vmatpush1.msra.mxu0 %v97
    %176 = vmatprep.subr.mxu0 0.0
    %177 = vmatpush1.msra.mxu0 0.0
    %178 = vmatprep.subr.mxu0 0.0
    %179 = vmatpush1.msra.mxu0 0.0
    %180 = vmatprep.subr.mxu0 0.0
    %181 = vmatpush1.msra.mxu0 0.0
    %182 = vmatprep.subr.mxu0 0.0
    %183 = vmatpush1.msra.mxu0 0.0
    %184 = vmatprep.subr.mxu0 0.0
    %185 = vmatpush1.msra.mxu0 0.0
    %186 = vmatprep.subr.mxu0 0.0
    %187 = vmatpush1.msra.mxu0 0.0
    %188 = vmatprep.subr.mxu0 0.0
    %189 = vmatpush1.msra.mxu0 0.0
    %190 = vmatprep.subr.mxu0 0.0
    %191 = vmatpush1.msra.mxu0 0.0
    %192 = vmatprep.subr.mxu0 0.0
    %193 = vmatpush1.msra.mxu0 0.0
    %194 = vmatprep.subr.mxu0 0.0
    %195 = vmatpush1.msra.mxu0 0.0
    %196 = vmatprep.subr.mxu0 0.0
    %197 = vmatpush1.msra.mxu0 0.0
    %198 = vmatprep.subr.mxu0 0.0
    %199 = vmatpush1.msra.mxu0 0.0
    %200 = vmatprep.subr.mxu0 0.0
    %201 = vmatpush1.msra.mxu0 0.0
    %202 = vmatprep.subr.mxu0 0.0
    %203 = vmatpush1.msra.mxu0 0.0
    %204 = vmatprep.subr.mxu0 0.0
    %205 = vmatpush1.msra.mxu0 0.0
    %206 = vmatprep.subr.mxu0 0.0
    %207 = vmatpush1.msra.mxu0 0.0
    %208 = vmatprep.subr.mxu0 0.0
    %209 = vmatpush1.msra.mxu0 0.0
    %210 = vmatprep.subr.mxu0 0.0
    %211 = vmatpush1.msra.mxu0 0.0
    %212 = vmatprep.subr.mxu0 0.0
    %213 = vmatpush1.msra.mxu0 0.0
    %214 = vmatprep.subr.mxu0 0.0
    %215 = vmatpush1.msra.mxu0 0.0
    %216 = vmatprep.subr.mxu0 0.0
    %217 = vmatpush1.msra.mxu0 0.0
    %218 = vmatprep.subr.mxu0 0.0
    %219 = vmatpush1.msra.mxu0 0.0
    %220 = vmatprep.subr.mxu0 0.0
    %221 = vmatpush1.msra.mxu0 0.0
    %222 = vmatprep.subr.mxu0 0.0
    %223 = vmatpush1.msra.mxu0 0.0
    %224 = vmatprep.subr.mxu0 0.0
    %225 = vmatpush1.msra.mxu0 0.0
    %226 = vmatprep.subr.mxu0 0.0
    %227 = vmatpush1.msra.mxu0 0.0
    %228 = vmatprep.subr.mxu0 0.0
    %229 = vmatpush1.msra.mxu0 0.0
    %230 = vmatprep.subr.mxu0 0.0
    %231 = vmatpush1.msra.mxu0 0.0
    %232 = vmatprep.subr.mxu0 0.0
    %233 = vmatpush1.msra.mxu0 0.0
    %234 = vmatprep.subr.mxu0 0.0
    %235 = vmatpush1.msra.mxu0 0.0
    %236 = vmatprep.mubr.f32.mxu0 0.0
    %237 = vmatmul.mubr.f32.gmra.mrb[0].mxu0 %v149
    %v238 = vpop.f32.mrb[0].mxu0
    %v239 = vadd.f32 %v110, %v238
    %v240 = vpop.f32.mrb[0].mxu0
    %v241 = vadd.f32 %v114, %v240
    %242 = vmatprep.mubr.f32.mxu0 0.0
    %243 = vmatmul.mubr.f32.gmra.mrb[0].mxu0 %v152
    %v244 = vpop.f32.mrb[0].mxu0
    %v245 = vadd.f32 %v110, %v244
    %v246 = vpop.f32.mrb[0].mxu0
    %v247 = vadd.f32 %v114, %v246
    %248 = vmatprep.mubr.f32.mxu0 0.0
    %249 = vmatmul.mubr.f32.gmra.mrb[0].mxu0 %v155
    %v250 = vpop.f32.mrb[0].mxu0
    %v251 = vadd.f32 %v110, %v250
    %v252 = vpop.f32.mrb[0].mxu0
    %v253 = vadd.f32 %v114, %v252
    %254 = vmatprep.mubr.f32.mxu0 0.0
    %255 = vmatmul.mubr.f32.gmra.mrb[0].mxu0 %v158
    %v256 = vpop.f32.mrb[0].mxu0
    %v257 = vadd.f32 %v110, %v256
    %v258 = vpop.f32.mrb[0].mxu0
    %v259 = vadd.f32 %v114, %v258
    %260 = vmatprep.mubr.f32.mxu0 0.0
    %261 = vmatmul.mubr.f32.gmra.mrb[0].mxu0 %v161
    %v262 = vpop.f32.mrb[0].mxu0
    %v263 = vadd.f32 %v110, %v262
    %v264 = vpop.f32.mrb[0].mxu0
    %v265 = vadd.f32 %v114, %v264
    %266 = vmatprep.mubr.f32.mxu0 0.0
    %267 = vmatmul.mubr.f32.gmra.mrb[0].mxu0 %v164
    %v268 = vpop.f32.mrb[0].mxu0
    %v269 = vadd.f32 %v110, %v268
    %v270 = vpop.f32.mrb[0].mxu0
    %v271 = vadd.f32 %v114, %v270
    %272 = vmatprep.mubr.f32.mxu0 0.0
    %273 = vmatmul.mubr.f32.gmra.mrb[0].mxu0 %v167
    %v274 = vpop.f32.mrb[0].mxu0
    %v275 = vadd.f32 %v110, %v274
    %v276 = vpop.f32.mrb[0].mxu0
    %v277 = vadd.f32 %v114, %v276
    %278 = vmatprep.mubr.f32.mxu0 0.0
    %279 = vmatmul.mubr.f32.gmra.mrb[0].mxu0 %v170
    %v280 = vpop.f32.mrb[0].mxu0
    %v281 = vadd.f32 %v110, %v280
    %v282 = vpop.f32.mrb[0].mxu0
    %v283 = vadd.f32 %v114, %v282
    %284 = vdwg.mxu0
    %285 = vmatprep.subr.mxu0 %v92
    %286 = vmatpush1.msra.mxu0 %v91
    %287 = vmatprep.subr.mxu0 %v100
    %288 = vmatpush1.msra.mxu0 %v99
    %289 = vmatprep.subr.mxu0 0.0
    %290 = vmatpush1.msra.mxu0 0.0
    %291 = vmatprep.subr.mxu0 0.0
    %292 = vmatpush1.msra.mxu0 0.0
    %293 = vmatprep.subr.mxu0 0.0
    %294 = vmatpush1.msra.mxu0 0.0
    %295 = vmatprep.subr.mxu0 0.0
    %296 = vmatpush1.msra.mxu0 0.0
    %297 = vmatprep.subr.mxu0 0.0
    %298 = vmatpush1.msra.mxu0 0.0
    %299 = vmatprep.subr.mxu0 0.0
    %300 = vmatpush1.msra.mxu0 0.0
    %301 = vmatprep.subr.mxu0 0.0
    %302 = vmatpush1.msra.mxu0 0.0
    %303 = vmatprep.subr.mxu0 0.0
    %304 = vmatpush1.msra.mxu0 0.0
    %305 = vmatprep.subr.mxu0 0.0
    %306 = vmatpush1.msra.mxu0 0.0
    %307 = vmatprep.subr.mxu0 0.0
    %308 = vmatpush1.msra.mxu0 0.0
    %309 = vmatprep.subr.mxu0 0.0
    %310 = vmatpush1.msra.mxu0 0.0
    %311 = vmatprep.subr.mxu0 0.0
    %312 = vmatpush1.msra.mxu0 0.0
    %313 = vmatprep.subr.mxu0 0.0
    %314 = vmatpush1.msra.mxu0 0.0
    %315 = vmatprep.subr.mxu0 0.0
    %316 = vmatpush1.msra.mxu0 0.0
    %317 = vmatprep.subr.mxu0 0.0
    %318 = vmatpush1.msra.mxu0 0.0
    %319 = vmatprep.subr.mxu0 0.0
    %320 = vmatpush1.msra.mxu0 0.0
    %321 = vmatprep.subr.mxu0 0.0
    %322 = vmatpush1.msra.mxu0 0.0
    %323 = vmatprep.subr.mxu0 0.0
    %324 = vmatpush1.msra.mxu0 0.0
    %325 = vmatprep.subr.mxu0 0.0
    %326 = vmatpush1.msra.mxu0 0.0
    %327 = vmatprep.subr.mxu0 0.0
    %328 = vmatpush1.msra.mxu0 0.0
    %329 = vmatprep.subr.mxu0 0.0
    %330 = vmatpush1.msra.mxu0 0.0
    %331 = vmatprep.subr.mxu0 0.0
    %332 = vmatpush1.msra.mxu0 0.0
    %333 = vmatprep.subr.mxu0 0.0
    %334 = vmatpush1.msra.mxu0 0.0
    %335 = vmatprep.subr.mxu0 0.0
    %336 = vmatpush1.msra.mxu0 0.0
    %337 = vmatprep.subr.mxu0 0.0
    %338 = vmatpush1.msra.mxu0 0.0
    %339 = vmatprep.subr.mxu0 0.0
    %340 = vmatpush1.msra.mxu0 0.0
    %341 = vmatprep.subr.mxu0 0.0
    %342 = vmatpush1.msra.mxu0 0.0
    %343 = vmatprep.subr.mxu0 0.0
    %344 = vmatpush1.msra.mxu0 0.0
    %345 = vmatprep.subr.mxu0 0.0
    %346 = vmatpush1.msra.mxu0 0.0
    %347 = vmatprep.subr.mxu0 0.0
    %348 = vmatpush1.msra.mxu0 0.0
    %349 = vmatprep.mubr.f32.mxu0 0.0
    %350 = vmatmul.mubr.f32.gmra.mrb[0].mxu0 %v149
    %v351 = vpop.f32.mrb[0].mxu0
    %v352 = vadd.f32 %v118, %v351
    %v353 = vpop.f32.mrb[0].mxu0
    %v354 = vadd.f32 %v122, %v353
    %355 = vmatprep.mubr.f32.mxu0 0.0
    %356 = vmatmul.mubr.f32.gmra.mrb[0].mxu0 %v152
    %v357 = vpop.f32.mrb[0].mxu0
    %v358 = vadd.f32 %v118, %v357
    %v359 = vpop.f32.mrb[0].mxu0
    %v360 = vadd.f32 %v122, %v359
    %361 = vmatprep.mubr.f32.mxu0 0.0
    %362 = vmatmul.mubr.f32.gmra.mrb[0].mxu0 %v155
    %v363 = vpop.f32.mrb[0].mxu0
    %v364 = vadd.f32 %v118, %v363
    %v365 = vpop.f32.mrb[0].mxu0
    %v366 = vadd.f32 %v122, %v365
    %367 = vmatprep.mubr.f32.mxu0 0.0
    %368 = vmatmul.mubr.f32.gmra.mrb[0].mxu0 %v158
    %v369 = vpop.f32.mrb[0].mxu0
    %v370 = vadd.f32 %v118, %v369
    %v371 = vpop.f32.mrb[0].mxu0
    %v372 = vadd.f32 %v122, %v371
    %373 = vmatprep.mubr.f32.mxu0 0.0
    %374 = vmatmul.mubr.f32.gmra.mrb[0].mxu0 %v161
    %v375 = vpop.f32.mrb[0].mxu0
    %v376 = vadd.f32 %v118, %v375
    %v377 = vpop.f32.mrb[0].mxu0
    %v378 = vadd.f32 %v122, %v377
    %379 = vmatprep.mubr.f32.mxu0 0.0
    %380 = vmatmul.mubr.f32.gmra.mrb[0].mxu0 %v164
    %v381 = vpop.f32.mrb[0].mxu0
    %v382 = vadd.f32 %v118, %v381
    %v383 = vpop.f32.mrb[0].mxu0
    %v384 = vadd.f32 %v122, %v383
    %385 = vmatprep.mubr.f32.mxu0 0.0
    %386 = vmatmul.mubr.f32.gmra.mrb[0].mxu0 %v167
    %v387 = vpop.f32.mrb[0].mxu0
    %v388 = vadd.f32 %v118, %v387
    %v389 = vpop.f32.mrb[0].mxu0
    %v390 = vadd.f32 %v122, %v389
    %391 = vmatprep.mubr.f32.mxu0 0.0
    %392 = vmatmul.mubr.f32.gmra.mrb[0].mxu0 %v170
    %v393 = vpop.f32.mrb[0].mxu0
    %v394 = vadd.f32 %v118, %v393
    %v395 = vpop.f32.mrb[0].mxu0
    %v396 = vadd.f32 %v122, %v395
    %397 = vdwg.mxu0
    %398 = vmatprep.subr.mxu0 %v94
    %399 = vmatpush1.msra.mxu0 %v93
    %400 = vmatprep.subr.mxu0 %v102
    %401 = vmatpush1.msra.mxu0 %v101
    %402 = vmatprep.subr.mxu0 0.0
    %403 = vmatpush1.msra.mxu0 0.0
    %404 = vmatprep.subr.mxu0 0.0
    %405 = vmatpush1.msra.mxu0 0.0
    %406 = vmatprep.subr.mxu0 0.0
    %407 = vmatpush1.msra.mxu0 0.0
    %408 = vmatprep.subr.mxu0 0.0
    %409 = vmatpush1.msra.mxu0 0.0
    %410 = vmatprep.subr.mxu0 0.0
    %411 = vmatpush1.msra.mxu0 0.0
    %412 = vmatprep.subr.mxu0 0.0
    %413 = vmatpush1.msra.mxu0 0.0
    %414 = vmatprep.subr.mxu0 0.0
    %415 = vmatpush1.msra.mxu0 0.0
    %416 = vmatprep.subr.mxu0 0.0
    %417 = vmatpush1.msra.mxu0 0.0
    %418 = vmatprep.subr.mxu0 0.0
    %419 = vmatpush1.msra.mxu0 0.0
    %420 = vmatprep.subr.mxu0 0.0
    %421 = vmatpush1.msra.mxu0 0.0
    %422 = vmatprep.subr.mxu0 0.0
    %423 = vmatpush1.msra.mxu0 0.0
    %424 = vmatprep.subr.mxu0 0.0
    %425 = vmatpush1.msra.mxu0 0.0
    %426 = vmatprep.subr.mxu0 0.0
    %427 = vmatpush1.msra.mxu0 0.0
    %428 = vmatprep.subr.mxu0 0.0
    %429 = vmatpush1.msra.mxu0 0.0
    %430 = vmatprep.subr.mxu0 0.0
    %431 = vmatpush1.msra.mxu0 0.0
    %432 = vmatprep.subr.mxu0 0.0
    %433 = vmatpush1.msra.mxu0 0.0
    %434 = vmatprep.subr.mxu0 0.0
    %435 = vmatpush1.msra.mxu0 0.0
    %436 = vmatprep.subr.mxu0 0.0
    %437 = vmatpush1.msra.mxu0 0.0
    %438 = vmatprep.subr.mxu0 0.0
    %439 = vmatpush1.msra.mxu0 0.0
    %440 = vmatprep.subr.mxu0 0.0
    %441 = vmatpush1.msra.mxu0 0.0
    %442 = vmatprep.subr.mxu0 0.0
    %443 = vmatpush1.msra.mxu0 0.0
    %444 = vmatprep.subr.mxu0 0.0
    %445 = vmatpush1.msra.mxu0 0.0
    %446 = vmatprep.subr.mxu0 0.0
    %447 = vmatpush1.msra.mxu0 0.0
    %448 = vmatprep.subr.mxu0 0.0
    %449 = vmatpush1.msra.mxu0 0.0
    %450 = vmatprep.subr.mxu0 0.0
    %451 = vmatpush1.msra.mxu0 0.0
    %452 = vmatprep.subr.mxu0 0.0
    %453 = vmatpush1.msra.mxu0 0.0
    %454 = vmatprep.subr.mxu0 0.0
    %455 = vmatpush1.msra.mxu0 0.0
    %456 = vmatprep.subr.mxu0 0.0
    %457 = vmatpush1.msra.mxu0 0.0
    %458 = vmatprep.subr.mxu0 0.0
    %459 = vmatpush1.msra.mxu0 0.0
    %460 = vmatprep.subr.mxu0 0.0
    %461 = vmatpush1.msra.mxu0 0.0
    %462 = vmatprep.mubr.f32.mxu0 0.0
    %463 = vmatmul.mubr.f32.gmra.mrb[0].mxu0 %v149
    %v464 = vpop.f32.mrb[0].mxu0
    %v465 = vadd.f32 %v126, %v464
    %v466 = vpop.f32.mrb[0].mxu0
    %v467 = vadd.f32 %v130, %v466
    %468 = vmatprep.mubr.f32.mxu0 0.0
    %469 = vmatmul.mubr.f32.gmra.mrb[0].mxu0 %v152
    %v470 = vpop.f32.mrb[0].mxu0
    %v471 = vadd.f32 %v126, %v470
    %v472 = vpop.f32.mrb[0].mxu0
    %v473 = vadd.f32 %v130, %v472
    %474 = vmatprep.mubr.f32.mxu0 0.0
    %475 = vmatmul.mubr.f32.gmra.mrb[0].mxu0 %v155
    %v476 = vpop.f32.mrb[0].mxu0
    %v477 = vadd.f32 %v126, %v476
    %v478 = vpop.f32.mrb[0].mxu0
    %v479 = vadd.f32 %v130, %v478
    %480 = vmatprep.mubr.f32.mxu0 0.0
    %481 = vmatmul.mubr.f32.gmra.mrb[0].mxu0 %v158
    %v482 = vpop.f32.mrb[0].mxu0
    %v483 = vadd.f32 %v126, %v482
    %v484 = vpop.f32.mrb[0].mxu0
    %v485 = vadd.f32 %v130, %v484
    %486 = vmatprep.mubr.f32.mxu0 0.0
    %487 = vmatmul.mubr.f32.gmra.mrb[0].mxu0 %v161
    %v488 = vpop.f32.mrb[0].mxu0
    %v489 = vadd.f32 %v126, %v488
    %v490 = vpop.f32.mrb[0].mxu0
    %v491 = vadd.f32 %v130, %v490
    %492 = vmatprep.mubr.f32.mxu0 0.0
    %493 = vmatmul.mubr.f32.gmra.mrb[0].mxu0 %v164
    %v494 = vpop.f32.mrb[0].mxu0
    %v495 = vadd.f32 %v126, %v494
    %v496 = vpop.f32.mrb[0].mxu0
    %v497 = vadd.f32 %v130, %v496
    %498 = vmatprep.mubr.f32.mxu0 0.0
    %499 = vmatmul.mubr.f32.gmra.mrb[0].mxu0 %v167
    %v500 = vpop.f32.mrb[0].mxu0
    %v501 = vadd.f32 %v126, %v500
    %v502 = vpop.f32.mrb[0].mxu0
    %v503 = vadd.f32 %v130, %v502
    %504 = vmatprep.mubr.f32.mxu0 0.0
    %505 = vmatmul.mubr.f32.gmra.mrb[0].mxu0 %v170
    %v506 = vpop.f32.mrb[0].mxu0
    %v507 = vadd.f32 %v126, %v506
    %v508 = vpop.f32.mrb[0].mxu0
    %v509 = vadd.f32 %v130, %v508
    %510 = vdwg.mxu0
    %511 = vmatprep.subr.mxu0 %v96
    %512 = vmatpush1.msra.mxu0 %v95
    %513 = vmatprep.subr.mxu0 %v104
    %514 = vmatpush1.msra.mxu0 %v103
    %515 = vmatprep.subr.mxu0 0.0
    %516 = vmatpush1.msra.mxu0 0.0
    %517 = vmatprep.subr.mxu0 0.0
    %518 = vmatpush1.msra.mxu0 0.0
    %519 = vmatprep.subr.mxu0 0.0
    %520 = vmatpush1.msra.mxu0 0.0
    %521 = vmatprep.subr.mxu0 0.0
    %522 = vmatpush1.msra.mxu0 0.0
    %523 = vmatprep.subr.mxu0 0.0
    %524 = vmatpush1.msra.mxu0 0.0
    %525 = vmatprep.subr.mxu0 0.0
    %526 = vmatpush1.msra.mxu0 0.0
    %527 = vmatprep.subr.mxu0 0.0
    %528 = vmatpush1.msra.mxu0 0.0
    %529 = vmatprep.subr.mxu0 0.0
    %530 = vmatpush1.msra.mxu0 0.0
    %531 = vmatprep.subr.mxu0 0.0
    %532 = vmatpush1.msra.mxu0 0.0
    %533 = vmatprep.subr.mxu0 0.0
    %534 = vmatpush1.msra.mxu0 0.0
    %535 = vmatprep.subr.mxu0 0.0
    %536 = vmatpush1.msra.mxu0 0.0
    %537 = vmatprep.subr.mxu0 0.0
    %538 = vmatpush1.msra.mxu0 0.0
    %539 = vmatprep.subr.mxu0 0.0
    %540 = vmatpush1.msra.mxu0 0.0
    %541 = vmatprep.subr.mxu0 0.0
    %542 = vmatpush1.msra.mxu0 0.0
    %543 = vmatprep.subr.mxu0 0.0
    %544 = vmatpush1.msra.mxu0 0.0
    %545 = vmatprep.subr.mxu0 0.0
    %546 = vmatpush1.msra.mxu0 0.0
    %547 = vmatprep.subr.mxu0 0.0
    %548 = vmatpush1.msra.mxu0 0.0
    %549 = vmatprep.subr.mxu0 0.0
    %550 = vmatpush1.msra.mxu0 0.0
    %551 = vmatprep.subr.mxu0 0.0
    %552 = vmatpush1.msra.mxu0 0.0
    %553 = vmatprep.subr.mxu0 0.0
    %554 = vmatpush1.msra.mxu0 0.0
    %555 = vmatprep.subr.mxu0 0.0
    %556 = vmatpush1.msra.mxu0 0.0
    %557 = vmatprep.subr.mxu0 0.0
    %558 = vmatpush1.msra.mxu0 0.0
    %559 = vmatprep.subr.mxu0 0.0
    %560 = vmatpush1.msra.mxu0 0.0
    %561 = vmatprep.subr.mxu0 0.0
    %562 = vmatpush1.msra.mxu0 0.0
    %563 = vmatprep.subr.mxu0 0.0
    %564 = vmatpush1.msra.mxu0 0.0
    %565 = vmatprep.subr.mxu0 0.0
    %566 = vmatpush1.msra.mxu0 0.0
    %567 = vmatprep.subr.mxu0 0.0
    %568 = vmatpush1.msra.mxu0 0.0
    %569 = vmatprep.subr.mxu0 0.0
    %570 = vmatpush1.msra.mxu0 0.0
    %571 = vmatprep.subr.mxu0 0.0
    %572 = vmatpush1.msra.mxu0 0.0
    %573 = vmatprep.subr.mxu0 0.0
    %574 = vmatpush1.msra.mxu0 0.0
    %575 = vmatprep.mubr.f32.mxu0 0.0
    %576 = vmatmul.mubr.f32.gmra.mrb[0].mxu0 %v149
    %v577 = vpop.f32.mrb[0].mxu0
    %v578 = vadd.f32 %v134, %v577
    %v579 = vpop.f32.mrb[0].mxu0
    %v580 = vadd.f32 %v138, %v579
    %581 = vmatprep.mubr.f32.mxu0 0.0
    %582 = vmatmul.mubr.f32.gmra.mrb[0].mxu0 %v152
    %v583 = vpop.f32.mrb[0].mxu0
    %v584 = vadd.f32 %v134, %v583
    %v585 = vpop.f32.mrb[0].mxu0
    %v586 = vadd.f32 %v138, %v585
    %587 = vmatprep.mubr.f32.mxu0 0.0
    %588 = vmatmul.mubr.f32.gmra.mrb[0].mxu0 %v155
    %v589 = vpop.f32.mrb[0].mxu0
    %v590 = vadd.f32 %v134, %v589
    %v591 = vpop.f32.mrb[0].mxu0
    %v592 = vadd.f32 %v138, %v591
    %593 = vmatprep.mubr.f32.mxu0 0.0
    %594 = vmatmul.mubr.f32.gmra.mrb[0].mxu0 %v158
    %v595 = vpop.f32.mrb[0].mxu0
    %v596 = vadd.f32 %v134, %v595
    %v597 = vpop.f32.mrb[0].mxu0
    %v598 = vadd.f32 %v138, %v597
    %599 = vmatprep.mubr.f32.mxu0 0.0
    %600 = vmatmul.mubr.f32.gmra.mrb[0].mxu0 %v161
    %v601 = vpop.f32.mrb[0].mxu0
    %v602 = vadd.f32 %v134, %v601
    %v603 = vpop.f32.mrb[0].mxu0
    %v604 = vadd.f32 %v138, %v603
    %605 = vmatprep.mubr.f32.mxu0 0.0
    %606 = vmatmul.mubr.f32.gmra.mrb[0].mxu0 %v164
    %v607 = vpop.f32.mrb[0].mxu0
    %v608 = vadd.f32 %v134, %v607
    %v609 = vpop.f32.mrb[0].mxu0
    %v610 = vadd.f32 %v138, %v609
    %611 = vmatprep.mubr.f32.mxu0 0.0
    %612 = vmatmul.mubr.f32.gmra.mrb[0].mxu0 %v167
    %v613 = vpop.f32.mrb[0].mxu0
    %v614 = vadd.f32 %v134, %v613
    %v615 = vpop.f32.mrb[0].mxu0
    %v616 = vadd.f32 %v138, %v615
    %617 = vmatprep.mubr.f32.mxu0 0.0
    %618 = vmatmul.mubr.f32.gmra.mrb[0].mxu0 %v170
    %v619 = vpop.f32.mrb[0].mxu0
    %v620 = vadd.f32 %v134, %v619
    %v621 = vpop.f32.mrb[0].mxu0
    %v622 = vadd.f32 %v138, %v621
    %623 = vdwg.mxu0
    %624 = vst [vmem:[#allocation2] sm:$0xff] %v239
    %625 = vst [vmem:[#allocation2 + $0x8] sm:$0xff] %v241
    %626 = vst [vmem:[#allocation2 + $0x10] sm:$0xff] %v352
    %627 = vst [vmem:[#allocation2 + $0x18] sm:$0xff] %v354
    %628 = vst [vmem:[#allocation2 + $0x20] sm:$0xff] %v465
    %629 = vst [vmem:[#allocation2 + $0x28] sm:$0xff] %v467
    %630 = vst [vmem:[#allocation2 + $0x30] sm:$0xff] %v578
    %631 = vst [vmem:[#allocation2 + $0x38] sm:$0xff] %v580
    %632 = vst [vmem:[#allocation2 + $0x40] sm:$0xff] %v245
    %633 = vst [vmem:[#allocation2 + $0x48] sm:$0xff] %v247
    %634 = vst [vmem:[#allocation2 + $0x50] sm:$0xff] %v358
    %635 = vst [vmem:[#allocation2 + $0x58] sm:$0xff] %v360
    %636 = vst [vmem:[#allocation2 + $0x60] sm:$0xff] %v471
    %637 = vst [vmem:[#allocation2 + $0x68] sm:$0xff] %v473
    %638 = vst [vmem:[#allocation2 + $0x70] sm:$0xff] %v584
    %639 = vst [vmem:[#allocation2 + $0x78] sm:$0xff] %v586
    %640 = vst [vmem:[#allocation2 + $0x80] sm:$0xff] %v251
    %641 = vst [vmem:[#allocation2 + $0x88] sm:$0xff] %v253
    %642 = vst [vmem:[#allocation2 + $0x90] sm:$0xff] %v364
    %643 = vst [vmem:[#allocation2 + $0x98] sm:$0xff] %v366
    %644 = vst [vmem:[#allocation2 + $0xa0] sm:$0xff] %v477
    %645 = vst [vmem:[#allocation2 + $0xa8] sm:$0xff] %v479
    %646 = vst [vmem:[#allocation2 + $0xb0] sm:$0xff] %v590
    %647 = vst [vmem:[#allocation2 + $0xb8] sm:$0xff] %v592
    %648 = vst [vmem:[#allocation2 + $0xc0] sm:$0xff] %v257
    %649 = vst [vmem:[#allocation2 + $0xc8] sm:$0xff] %v259
    %650 = vst [vmem:[#allocation2 + $0xd0] sm:$0xff] %v370
    %651 = vst [vmem:[#allocation2 + $0xd8] sm:$0xff] %v372
    %652 = vst [vmem:[#allocation2 + $0xe0] sm:$0xff] %v483
    %653 = vst [vmem:[#allocation2 + $0xe8] sm:$0xff] %v485
    %654 = vst [vmem:[#allocation2 + $0xf0] sm:$0xff] %v596
    %655 = vst [vmem:[#allocation2 + $0xf8] sm:$0xff] %v598
    %656 = vst [vmem:[#allocation2 + $0x100] sm:$0xff] %v263
    %657 = vst [vmem:[#allocation2 + $0x108] sm:$0xff] %v265
    %658 = vst [vmem:[#allocation2 + $0x110] sm:$0xff] %v376
    %659 = vst [vmem:[#allocation2 + $0x118] sm:$0xff] %v378
    %660 = vst [vmem:[#allocation2 + $0x120] sm:$0xff] %v489
    %661 = vst [vmem:[#allocation2 + $0x128] sm:$0xff] %v491
    %662 = vst [vmem:[#allocation2 + $0x130] sm:$0xff] %v602
    %663 = vst [vmem:[#allocation2 + $0x138] sm:$0xff] %v604
    %664 = vst [vmem:[#allocation2 + $0x140] sm:$0xff] %v269
    %665 = vst [vmem:[#allocation2 + $0x148] sm:$0xff] %v271
    %666 = vst [vmem:[#allocation2 + $0x150] sm:$0xff] %v382
    %667 = vst [vmem:[#allocation2 + $0x158] sm:$0xff] %v384
    %668 = vst [vmem:[#allocation2 + $0x160] sm:$0xff] %v495
    %669 = vst [vmem:[#allocation2 + $0x168] sm:$0xff] %v497
    %670 = vst [vmem:[#allocation2 + $0x170] sm:$0xff] %v608
    %671 = vst [vmem:[#allocation2 + $0x178] sm:$0xff] %v610
    %672 = vst [vmem:[#allocation2 + $0x180] sm:$0xff] %v275
    %673 = vst [vmem:[#allocation2 + $0x188] sm:$0xff] %v277
    %674 = vst [vmem:[#allocation2 + $0x190] sm:$0xff] %v388
    %675 = vst [vmem:[#allocation2 + $0x198] sm:$0xff] %v390
    %676 = vst [vmem:[#allocation2 + $0x1a0] sm:$0xff] %v501
    %677 = vst [vmem:[#allocation2 + $0x1a8] sm:$0xff] %v503
    %678 = vst [vmem:[#allocation2 + $0x1b0] sm:$0xff] %v614
    %679 = vst [vmem:[#allocation2 + $0x1b8] sm:$0xff] %v616
    %680 = vst [vmem:[#allocation2 + $0x1c0] sm:$0xff] %v281
    %681 = vst [vmem:[#allocation2 + $0x1c8] sm:$0xff] %v283
    %682 = vst [vmem:[#allocation2 + $0x1d0] sm:$0xff] %v394
    %683 = vst [vmem:[#allocation2 + $0x1d8] sm:$0xff] %v396
    %684 = vst [vmem:[#allocation2 + $0x1e0] sm:$0xff] %v507
    %685 = vst [vmem:[#allocation2 + $0x1e8] sm:$0xff] %v509
    %686 = vst [vmem:[#allocation2 + $0x1f0] sm:$0xff] %v620
    %687 = vst [vmem:[#allocation2 + $0x1f8] sm:$0xff] %v622
    %688 = vst [vmem:[#allocation4] sm:$0xff] 0.0
    %689 = vst [vmem:[#allocation4 + $0x8] sm:$0xff] 0.0
    %690 = vst [vmem:[#allocation5] sm:$0xff] 0.0
    %691 = vst [vmem:[#allocation5 + $0x8] sm:$0xff] 0.0
    %v692 = vld [vmem:[#allocation4] sm:$0xff]
    %v693 = vld [vmem:[#allocation4 + $0x8] sm:$0xff]
    %v694 = vld [vmem:[#allocation8] sm:$0xff]
    %v695 = vld [vmem:[#allocation8 + $0x8] sm:$0xff]
    %v696 = vld [vmem:[#allocation8 + $0x10] sm:$0xff]
    %v697 = vld [vmem:[#allocation8 + $0x18] sm:$0xff]
    %v698 = vld [vmem:[#allocation8 + $0x20] sm:$0xff]
    %v699 = vld [vmem:[#allocation8 + $0x28] sm:$0xff]
    %v700 = vld [vmem:[#allocation8 + $0x30] sm:$0xff]
    %v701 = vld [vmem:[#allocation8 + $0x38] sm:$0xff]
    %v702 = vld [vmem:[#allocation8 + $0x40] sm:$0xff]
    %v703 = vld [vmem:[#allocation8 + $0x48] sm:$0xff]
    %v704 = vld [vmem:[#allocation8 + $0x50] sm:$0xff]
    %v705 = vld [vmem:[#allocation8 + $0x58] sm:$0xff]
    %v706 = vld [vmem:[#allocation8 + $0x60] sm:$0xff]
    %v707 = vld [vmem:[#allocation8 + $0x68] sm:$0xff]
    %v708 = vld [vmem:[#allocation8 + $0x70] sm:$0xff]
    %v709 = vld [vmem:[#allocation8 + $0x78] sm:$0xff]
    %v710 = vld [vmem:[#allocation8 + $0x80] sm:$0xff]
    %v711 = vld [vmem:[#allocation8 + $0x88] sm:$0xff]
    %v712 = vld [vmem:[#allocation8 + $0x90] sm:$0xff]
    %v713 = vld [vmem:[#allocation8 + $0x98] sm:$0xff]
    %v714 = vld [vmem:[#allocation8 + $0xa0] sm:$0xff]
    %v715 = vld [vmem:[#allocation8 + $0xa8] sm:$0xff]
    %v716 = vld [vmem:[#allocation8 + $0xb0] sm:$0xff]
    %v717 = vld [vmem:[#allocation8 + $0xb8] sm:$0xff]
    %v718 = vld [vmem:[#allocation8 + $0xc0] sm:$0xff]
    %v719 = vld [vmem:[#allocation8 + $0xc8] sm:$0xff]
    %v720 = vld [vmem:[#allocation8 + $0xd0] sm:$0xff]
    %v721 = vld [vmem:[#allocation8 + $0xd8] sm:$0xff]
    %v722 = vld [vmem:[#allocation8 + $0xe0] sm:$0xff]
    %v723 = vld [vmem:[#allocation8 + $0xe8] sm:$0xff]
    %v724 = vld [vmem:[#allocation8 + $0xf0] sm:$0xff]
    %v725 = vld [vmem:[#allocation8 + $0xf8] sm:$0xff]
    %v726 = vld [vmem:[#allocation8 + $0x100] sm:$0xff]
    %v727 = vld [vmem:[#allocation8 + $0x108] sm:$0xff]
    %v728 = vld [vmem:[#allocation8 + $0x110] sm:$0xff]
    %v729 = vld [vmem:[#allocation8 + $0x118] sm:$0xff]
    %v730 = vld [vmem:[#allocation8 + $0x120] sm:$0xff]
    %v731 = vld [vmem:[#allocation8 + $0x128] sm:$0xff]
    %v732 = vld [vmem:[#allocation8 + $0x130] sm:$0xff]
    %v733 = vld [vmem:[#allocation8 + $0x138] sm:$0xff]
    %v734 = vld [vmem:[#allocation8 + $0x140] sm:$0xff]
    %v735 = vld [vmem:[#allocation8 + $0x148] sm:$0xff]
    %v736 = vld [vmem:[#allocation8 + $0x150] sm:$0xff]
    %v737 = vld [vmem:[#allocation8 + $0x158] sm:$0xff]
    %v738 = vld [vmem:[#allocation8 + $0x160] sm:$0xff]
    %v739 = vld [vmem:[#allocation8 + $0x168] sm:$0xff]
    %v740 = vld [vmem:[#allocation8 + $0x170] sm:$0xff]
    %v741 = vld [vmem:[#allocation8 + $0x178] sm:$0xff]
    %v742 = vld [vmem:[#allocation8 + $0x180] sm:$0xff]
    %v743 = vld [vmem:[#allocation8 + $0x188] sm:$0xff]
    %v744 = vld [vmem:[#allocation8 + $0x190] sm:$0xff]
    %v745 = vld [vmem:[#allocation8 + $0x198] sm:$0xff]
    %v746 = vld [vmem:[#allocation8 + $0x1a0] sm:$0xff]
    %v747 = vld [vmem:[#allocation8 + $0x1a8] sm:$0xff]
    %v748 = vld [vmem:[#allocation8 + $0x1b0] sm:$0xff]
    %v749 = vld [vmem:[#allocation8 + $0x1b8] sm:$0xff]
    %v750 = vld [vmem:[#allocation8 + $0x1c0] sm:$0xff]
    %v751 = vld [vmem:[#allocation8 + $0x1c8] sm:$0xff]
    %v752 = vld [vmem:[#allocation8 + $0x1d0] sm:$0xff]
    %v753 = vld [vmem:[#allocation8 + $0x1d8] sm:$0xff]
    %v754 = vld [vmem:[#allocation8 + $0x1e0] sm:$0xff]
    %v755 = vld [vmem:[#allocation8 + $0x1e8] sm:$0xff]
    %v756 = vld [vmem:[#allocation8 + $0x1f0] sm:$0xff]
    %v757 = vld [vmem:[#allocation8 + $0x1f8] sm:$0xff]
    %v758 = vld [vmem:[#allocation8 + $0x200] sm:$0xff]
    %v759 = vld [vmem:[#allocation8 + $0x208] sm:$0xff]
    %v760 = vld [vmem:[#allocation8 + $0x210] sm:$0xff]
    %v761 = vld [vmem:[#allocation8 + $0x218] sm:$0xff]
    %v762 = vld [vmem:[#allocation8 + $0x220] sm:$0xff]
    %v763 = vld [vmem:[#allocation8 + $0x228] sm:$0xff]
    %v764 = vld [vmem:[#allocation8 + $0x230] sm:$0xff]
    %v765 = vld [vmem:[#allocation8 + $0x238] sm:$0xff]
    %v766 = vld [vmem:[#allocation8 + $0x240] sm:$0xff]
    %v767 = vld [vmem:[#allocation8 + $0x248] sm:$0xff]
    %v768 = vld [vmem:[#allocation8 + $0x250] sm:$0xff]
    %v769 = vld [vmem:[#allocation8 + $0x258] sm:$0xff]
    %v770 = vld [vmem:[#allocation8 + $0x260] sm:$0xff]
    %v771 = vld [vmem:[#allocation8 + $0x268] sm:$0xff]
    %v772 = vld [vmem:[#allocation8 + $0x270] sm:$0xff]
    %v773 = vld [vmem:[#allocation8 + $0x278] sm:$0xff]
    %v774 = vld [vmem:[#allocation8 + $0x280] sm:$0xff]
    %v775 = vld [vmem:[#allocation8 + $0x288] sm:$0xff]
    %v776 = vld [vmem:[#allocation8 + $0x290] sm:$0xff]
    %v777 = vld [vmem:[#allocation8 + $0x298] sm:$0xff]
    %v778 = vld [vmem:[#allocation8 + $0x2a0] sm:$0xff]
    %v779 = vld [vmem:[#allocation8 + $0x2a8] sm:$0xff]
    %v780 = vld [vmem:[#allocation8 + $0x2b0] sm:$0xff]
    %v781 = vld [vmem:[#allocation8 + $0x2b8] sm:$0xff]
    %v782 = vld [vmem:[#allocation8 + $0x2c0] sm:$0xff]
    %v783 = vld [vmem:[#allocation8 + $0x2c8] sm:$0xff]
    %v784 = vld [vmem:[#allocation8 + $0x2d0] sm:$0xff]
    %v785 = vld [vmem:[#allocation8 + $0x2d8] sm:$0xff]
    %v786 = vld [vmem:[#allocation8 + $0x2e0] sm:$0xff]
    %v787 = vld [vmem:[#allocation8 + $0x2e8] sm:$0xff]
    %v788 = vld [vmem:[#allocation8 + $0x2f0] sm:$0xff]
    %v789 = vld [vmem:[#allocation8 + $0x2f8] sm:$0xff]
    %v790 = vld [vmem:[#allocation8 + $0x300] sm:$0xff]
    %v791 = vld [vmem:[#allocation8 + $0x308] sm:$0xff]
    %v792 = vld [vmem:[#allocation8 + $0x310] sm:$0xff]
    %v793 = vld [vmem:[#allocation8 + $0x318] sm:$0xff]
    %v794 = vld [vmem:[#allocation8 + $0x320] sm:$0xff]
    %v795 = vld [vmem:[#allocation8 + $0x328] sm:$0xff]
    %v796 = vld [vmem:[#allocation8 + $0x330] sm:$0xff]
    %v797 = vld [vmem:[#allocation8 + $0x338] sm:$0xff]
    %v798 = vld [vmem:[#allocation8 + $0x340] sm:$0xff]
    %v799 = vld [vmem:[#allocation8 + $0x348] sm:$0xff]
    %v800 = vld [vmem:[#allocation8 + $0x350] sm:$0xff]
    %v801 = vld [vmem:[#allocation8 + $0x358] sm:$0xff]
    %v802 = vld [vmem:[#allocation8 + $0x360] sm:$0xff]
    %v803 = vld [vmem:[#allocation8 + $0x368] sm:$0xff]
    %v804 = vld [vmem:[#allocation8 + $0x370] sm:$0xff]
    %v805 = vld [vmem:[#allocation8 + $0x378] sm:$0xff]
    %v806 = vld [vmem:[#allocation8 + $0x380] sm:$0xff]
    %v807 = vld [vmem:[#allocation8 + $0x388] sm:$0xff]
    %v808 = vld [vmem:[#allocation8 + $0x390] sm:$0xff]
    %v809 = vld [vmem:[#allocation8 + $0x398] sm:$0xff]
    %v810 = vld [vmem:[#allocation8 + $0x3a0] sm:$0xff]
    %v811 = vld [vmem:[#allocation8 + $0x3a8] sm:$0xff]
    %v812 = vld [vmem:[#allocation8 + $0x3b0] sm:$0xff]
    %v813 = vld [vmem:[#allocation8 + $0x3b8] sm:$0xff]
    %v814 = vld [vmem:[#allocation8 + $0x3c0] sm:$0xff]
    %v815 = vld [vmem:[#allocation8 + $0x3c8] sm:$0xff]
    %v816 = vld [vmem:[#allocation8 + $0x3d0] sm:$0xff]
    %v817 = vld [vmem:[#allocation8 + $0x3d8] sm:$0xff]
    %v818 = vld [vmem:[#allocation8 + $0x3e0] sm:$0xff]
    %v819 = vld [vmem:[#allocation8 + $0x3e8] sm:$0xff]
    %v820 = vld [vmem:[#allocation8 + $0x3f0] sm:$0xff]
    %v821 = vld [vmem:[#allocation8 + $0x3f8] sm:$0xff]
    %822 = vmatprep.subr.mxu0 %v695
    %823 = vmatpush1.msra.mxu0 %v694
    %824 = vmatprep.subr.mxu0 %v703
    %825 = vmatpush1.msra.mxu0 %v702
    %826 = vmatprep.subr.mxu0 %v711
    %827 = vmatpush1.msra.mxu0 %v710
    %828 = vmatprep.subr.mxu0 %v719
    %829 = vmatpush1.msra.mxu0 %v718
    %830 = vmatprep.subr.mxu0 %v727
    %831 = vmatpush1.msra.mxu0 %v726
    %832 = vmatprep.subr.mxu0 %v735
    %833 = vmatpush1.msra.mxu0 %v734
    %834 = vmatprep.subr.mxu0 %v743
    %835 = vmatpush1.msra.mxu0 %v742
    %836 = vmatprep.subr.mxu0 %v751
    %837 = vmatpush1.msra.mxu0 %v750
    %838 = vmatprep.subr.mxu0 %v759
    %839 = vmatpush1.msra.mxu0 %v758
    %840 = vmatprep.subr.mxu0 %v767
    %841 = vmatpush1.msra.mxu0 %v766
    %842 = vmatprep.subr.mxu0 %v775
    %843 = vmatpush1.msra.mxu0 %v774
    %844 = vmatprep.subr.mxu0 %v783
    %845 = vmatpush1.msra.mxu0 %v782
    %846 = vmatprep.subr.mxu0 %v791
    %847 = vmatpush1.msra.mxu0 %v790
    %848 = vmatprep.subr.mxu0 %v799
    %849 = vmatpush1.msra.mxu0 %v798
    %850 = vmatprep.subr.mxu0 %v807
    %851 = vmatpush1.msra.mxu0 %v806
    %852 = vmatprep.subr.mxu0 %v815
    %853 = vmatpush1.msra.mxu0 %v814
    %854 = vmatprep.subr.mxu0 0.0
    %855 = vmatpush1.msra.mxu0 0.0
    %856 = vmatprep.subr.mxu0 0.0
    %857 = vmatpush1.msra.mxu0 0.0
    %858 = vmatprep.subr.mxu0 0.0
    %859 = vmatpush1.msra.mxu0 0.0
    %860 = vmatprep.subr.mxu0 0.0
    %861 = vmatpush1.msra.mxu0 0.0
    %862 = vmatprep.subr.mxu0 0.0
    %863 = vmatpush1.msra.mxu0 0.0
    %864 = vmatprep.subr.mxu0 0.0
    %865 = vmatpush1.msra.mxu0 0.0
    %866 = vmatprep.subr.mxu0 0.0
    %867 = vmatpush1.msra.mxu0 0.0
    %868 = vmatprep.subr.mxu0 0.0
    %869 = vmatpush1.msra.mxu0 0.0
    %870 = vmatprep.subr.mxu0 0.0
    %871 = vmatpush1.msra.mxu0 0.0
    %872 = vmatprep.subr.mxu0 0.0
    %873 = vmatpush1.msra.mxu0 0.0
    %874 = vmatprep.subr.mxu0 0.0
    %875 = vmatpush1.msra.mxu0 0.0
    %876 = vmatprep.subr.mxu0 0.0
    %877 = vmatpush1.msra.mxu0 0.0
    %878 = vmatprep.subr.mxu0 0.0
    %879 = vmatpush1.msra.mxu0 0.0
    %880 = vmatprep.subr.mxu0 0.0
    %881 = vmatpush1.msra.mxu0 0.0
    %882 = vmatprep.subr.mxu0 0.0
    %883 = vmatpush1.msra.mxu0 0.0
    %884 = vmatprep.subr.mxu0 0.0
    %885 = vmatpush1.msra.mxu0 0.0
    %886 = vmatprep.mubr.f32.mxu0 0.0
    %887 = vmatmul.mubr.f32.gmra.mrb[0].mxu0 %v692
    %v888 = vpop.f32.mrb[0].mxu0
    %v889 = vadd.f32 0.0, %v888
    %v890 = vpop.f32.mrb[0].mxu0
    %v891 = vadd.f32 0.0, %v890
    %892 = vmatprep.mubr.f32.mxu0 0.0
    %893 = vmatmul.mubr.f32.gmra.mrb[0].mxu0 %v693
    %v894 = vpop.f32.mrb[0].mxu0
    %v895 = vpop.f32.mrb[0].mxu0
    %896 = vdwg.mxu0
    %897 = vmatprep.subr.mxu0 %v697
    %898 = vmatpush1.msra.mxu0 %v696
    %899 = vmatprep.subr.mxu0 %v705
    %900 = vmatpush1.msra.mxu0 %v704
    %901 = vmatprep.subr.mxu0 %v713
    %902 = vmatpush1.msra.mxu0 %v712
    %903 = vmatprep.subr.mxu0 %v721
    %904 = vmatpush1.msra.mxu0 %v720
    %905 = vmatprep.subr.mxu0 %v729
    %906 = vmatpush1.msra.mxu0 %v728
    %907 = vmatprep.subr.mxu0 %v737
    %908 = vmatpush1.msra.mxu0 %v736
    %909 = vmatprep.subr.mxu0 %v745
    %910 = vmatpush1.msra.mxu0 %v744
    %911 = vmatprep.subr.mxu0 %v753
    %912 = vmatpush1.msra.mxu0 %v752
    %913 = vmatprep.subr.mxu0 %v761
    %914 = vmatpush1.msra.mxu0 %v760
    %915 = vmatprep.subr.mxu0 %v769
    %916 = vmatpush1.msra.mxu0 %v768
    %917 = vmatprep.subr.mxu0 %v777
    %918 = vmatpush1.msra.mxu0 %v776
    %919 = vmatprep.subr.mxu0 %v785
    %920 = vmatpush1.msra.mxu0 %v784
    %921 = vmatprep.subr.mxu0 %v793
    %922 = vmatpush1.msra.mxu0 %v792
    %923 = vmatprep.subr.mxu0 %v801
    %924 = vmatpush1.msra.mxu0 %v800
    %925 = vmatprep.subr.mxu0 %v809
    %926 = vmatpush1.msra.mxu0 %v808
    %927 = vmatprep.subr.mxu0 %v817
    %928 = vmatpush1.msra.mxu0 %v816
    %929 = vmatprep.subr.mxu0 0.0
    %930 = vmatpush1.msra.mxu0 0.0
    %931 = vmatprep.subr.mxu0 0.0
    %932 = vmatpush1.msra.mxu0 0.0
    %933 = vmatprep.subr.mxu0 0.0
    %934 = vmatpush1.msra.mxu0 0.0
    %935 = vmatprep.subr.mxu0 0.0
    %936 = vmatpush1.msra.mxu0 0.0
    %937 = vmatprep.subr.mxu0 0.0
    %938 = vmatpush1.msra.mxu0 0.0
    %939 = vmatprep.subr.mxu0 0.0
    %940 = vmatpush1.msra.mxu0 0.0
    %941 = vmatprep.subr.mxu0 0.0
    %942 = vmatpush1.msra.mxu0 0.0
    %943 = vmatprep.subr.mxu0 0.0
    %944 = vmatpush1.msra.mxu0 0.0
    %945 = vmatprep.subr.mxu0 0.0
    %946 = vmatpush1.msra.mxu0 0.0
    %947 = vmatprep.subr.mxu0 0.0
    %948 = vmatpush1.msra.mxu0 0.0
    %949 = vmatprep.subr.mxu0 0.0
    %950 = vmatpush1.msra.mxu0 0.0
    %951 = vmatprep.subr.mxu0 0.0
    %952 = vmatpush1.msra.mxu0 0.0
    %953 = vmatprep.subr.mxu0 0.0
    %954 = vmatpush1.msra.mxu0 0.0
    %955 = vmatprep.subr.mxu0 0.0
    %956 = vmatpush1.msra.mxu0 0.0
    %957 = vmatprep.subr.mxu0 0.0
    %958 = vmatpush1.msra.mxu0 0.0
    %959 = vmatprep.subr.mxu0 0.0
    %960 = vmatpush1.msra.mxu0 0.0
    %961 = vmatprep.mubr.f32.mxu0 0.0
    %962 = vmatmul.mubr.f32.gmra.mrb[0].mxu0 %v692
    %v963 = vpop.f32.mrb[0].mxu0
    %v964 = vadd.f32 0.0, %v963
    %v965 = vpop.f32.mrb[0].mxu0
    %v966 = vadd.f32 0.0, %v965
    %967 = vmatprep.mubr.f32.mxu0 0.0
    %968 = vmatmul.mubr.f32.gmra.mrb[0].mxu0 %v693
    %v969 = vpop.f32.mrb[0].mxu0
    %v970 = vpop.f32.mrb[0].mxu0
    %971 = vdwg.mxu0
    %972 = vmatprep.subr.mxu0 %v699
    %973 = vmatpush1.msra.mxu0 %v698
    %974 = vmatprep.subr.mxu0 %v707
    %975 = vmatpush1.msra.mxu0 %v706
    %976 = vmatprep.subr.mxu0 %v715
    %977 = vmatpush1.msra.mxu0 %v714
    %978 = vmatprep.subr.mxu0 %v723
    %979 = vmatpush1.msra.mxu0 %v722
    %980 = vmatprep.subr.mxu0 %v731
    %981 = vmatpush1.msra.mxu0 %v730
    %982 = vmatprep.subr.mxu0 %v739
    %983 = vmatpush1.msra.mxu0 %v738
    %984 = vmatprep.subr.mxu0 %v747
    %985 = vmatpush1.msra.mxu0 %v746
    %986 = vmatprep.subr.mxu0 %v755
    %987 = vmatpush1.msra.mxu0 %v754
    %988 = vmatprep.subr.mxu0 %v763
    %989 = vmatpush1.msra.mxu0 %v762
    %990 = vmatprep.subr.mxu0 %v771
    %991 = vmatpush1.msra.mxu0 %v770
    %992 = vmatprep.subr.mxu0 %v779
    %993 = vmatpush1.msra.mxu0 %v778
    %994 = vmatprep.subr.mxu0 %v787
    %995 = vmatpush1.msra.mxu0 %v786
    %996 = vmatprep.subr.mxu0 %v795
    %997 = vmatpush1.msra.mxu0 %v794
    %998 = vmatprep.subr.mxu0 %v803
    %999 = vmatpush1.msra.mxu0 %v802
    %1000 = vmatprep.subr.mxu0 %v811
    %1001 = vmatpush1.msra.mxu0 %v810
    %1002 = vmatprep.subr.mxu0 %v819
    %1003 = vmatpush1.msra.mxu0 %v818
    %1004 = vmatprep.subr.mxu0 0.0
    %1005 = vmatpush1.msra.mxu0 0.0
    %1006 = vmatprep.subr.mxu0 0.0
    %1007 = vmatpush1.msra.mxu0 0.0
    %1008 = vmatprep.subr.mxu0 0.0
    %1009 = vmatpush1.msra.mxu0 0.0
    %1010 = vmatprep.subr.mxu0 0.0
    %1011 = vmatpush1.msra.mxu0 0.0
    %1012 = vmatprep.subr.mxu0 0.0
    %1013 = vmatpush1.msra.mxu0 0.0
    %1014 = vmatprep.subr.mxu0 0.0
    %1015 = vmatpush1.msra.mxu0 0.0
    %1016 = vmatprep.subr.mxu0 0.0
    %1017 = vmatpush1.msra.mxu0 0.0
    %1018 = vmatprep.subr.mxu0 0.0
    %1019 = vmatpush1.msra.mxu0 0.0
    %1020 = vmatprep.subr.mxu0 0.0
    %1021 = vmatpush1.msra.mxu0 0.0
    %1022 = vmatprep.subr.mxu0 0.0
    %1023 = vmatpush1.msra.mxu0 0.0
    %1024 = vmatprep.subr.mxu0 0.0
    %1025 = vmatpush1.msra.mxu0 0.0
    %1026 = vmatprep.subr.mxu0 0.0
    %1027 = vmatpush1.msra.mxu0 0.0
    %1028 = vmatprep.subr.mxu0 0.0
    %1029 = vmatpush1.msra.mxu0 0.0
    %1030 = vmatprep.subr.mxu0 0.0
    %1031 = vmatpush1.msra.mxu0 0.0
    %1032 = vmatprep.subr.mxu0 0.0
    %1033 = vmatpush1.msra.mxu0 0.0
    %1034 = vmatprep.subr.mxu0 0.0
    %1035 = vmatpush1.msra.mxu0 0.0
    %1036 = vmatprep.mubr.f32.mxu0 0.0
    %1037 = vmatmul.mubr.f32.gmra.mrb[0].mxu0 %v692
    %v1038 = vpop.f32.mrb[0].mxu0
    %v1039 = vpop.f32.mrb[0].mxu0
    %1040 = vmatprep.mubr.f32.mxu0 0.0
    %1041 = vmatmul.mubr.f32.gmra.mrb[0].mxu0 %v693
    %v1042 = vpop.f32.mrb[0].mxu0
    %v1043 = vadd.f32 0.0, %v1042
    %v1044 = vpop.f32.mrb[0].mxu0
    %v1045 = vadd.f32 0.0, %v1044
    %1046 = vdwg.mxu0
    %1047 = vmatprep.subr.mxu0 %v701
    %1048 = vmatpush1.msra.mxu0 %v700
    %1049 = vmatprep.subr.mxu0 %v709
    %1050 = vmatpush1.msra.mxu0 %v708
    %1051 = vmatprep.subr.mxu0 %v717
    %1052 = vmatpush1.msra.mxu0 %v716
    %1053 = vmatprep.subr.mxu0 %v725
    %1054 = vmatpush1.msra.mxu0 %v724
    %1055 = vmatprep.subr.mxu0 %v733
    %1056 = vmatpush1.msra.mxu0 %v732
    %1057 = vmatprep.subr.mxu0 %v741
    %1058 = vmatpush1.msra.mxu0 %v740
    %1059 = vmatprep.subr.mxu0 %v749
    %1060 = vmatpush1.msra.mxu0 %v748
    %1061 = vmatprep.subr.mxu0 %v757
    %1062 = vmatpush1.msra.mxu0 %v756
    %1063 = vmatprep.subr.mxu0 %v765
    %1064 = vmatpush1.msra.mxu0 %v764
    %1065 = vmatprep.subr.mxu0 %v773
    %1066 = vmatpush1.msra.mxu0 %v772
    %1067 = vmatprep.subr.mxu0 %v781
    %1068 = vmatpush1.msra.mxu0 %v780
    %1069 = vmatprep.subr.mxu0 %v789
    %1070 = vmatpush1.msra.mxu0 %v788
    %1071 = vmatprep.subr.mxu0 %v797
    %1072 = vmatpush1.msra.mxu0 %v796
    %1073 = vmatprep.subr.mxu0 %v805
    %1074 = vmatpush1.msra.mxu0 %v804
    %1075 = vmatprep.subr.mxu0 %v813
    %1076 = vmatpush1.msra.mxu0 %v812
    %1077 = vmatprep.subr.mxu0 %v821
    %1078 = vmatpush1.msra.mxu0 %v820
    %1079 = vmatprep.subr.mxu0 0.0
    %1080 = vmatpush1.msra.mxu0 0.0
    %1081 = vmatprep.subr.mxu0 0.0
    %1082 = vmatpush1.msra.mxu0 0.0
    %1083 = vmatprep.subr.mxu0 0.0
    %1084 = vmatpush1.msra.mxu0 0.0
    %1085 = vmatprep.subr.mxu0 0.0
    %1086 = vmatpush1.msra.mxu0 0.0
    %1087 = vmatprep.subr.mxu0 0.0
    %1088 = vmatpush1.msra.mxu0 0.0
    %1089 = vmatprep.subr.mxu0 0.0
    %1090 = vmatpush1.msra.mxu0 0.0
    %1091 = vmatprep.subr.mxu0 0.0
    %1092 = vmatpush1.msra.mxu0 0.0
    %1093 = vmatprep.subr.mxu0 0.0
    %1094 = vmatpush1.msra.mxu0 0.0
    %1095 = vmatprep.subr.mxu0 0.0
    %1096 = vmatpush1.msra.mxu0 0.0
    %1097 = vmatprep.subr.mxu0 0.0
    %1098 = vmatpush1.msra.mxu0 0.0
    %1099 = vmatprep.subr.mxu0 0.0
    %1100 = vmatpush1.msra.mxu0 0.0
    %1101 = vmatprep.subr.mxu0 0.0
    %1102 = vmatpush1.msra.mxu0 0.0
    %1103 = vmatprep.subr.mxu0 0.0
    %1104 = vmatpush1.msra.mxu0 0.0
    %1105 = vmatprep.subr.mxu0 0.0
    %1106 = vmatpush1.msra.mxu0 0.0
    %1107 = vmatprep.subr.mxu0 0.0
    %1108 = vmatpush1.msra.mxu0 0.0
    %1109 = vmatprep.subr.mxu0 0.0
    %1110 = vmatpush1.msra.mxu0 0.0
    %1111 = vmatprep.mubr.f32.mxu0 0.0
    %1112 = vmatmul.mubr.f32.gmra.mrb[0].mxu0 %v692
    %v1113 = vpop.f32.mrb[0].mxu0
    %v1114 = vpop.f32.mrb[0].mxu0
    %1115 = vmatprep.mubr.f32.mxu0 0.0
    %1116 = vmatmul.mubr.f32.gmra.mrb[0].mxu0 %v693
    %v1117 = vpop.f32.mrb[0].mxu0
    %v1118 = vadd.f32 0.0, %v1117
    %v1119 = vpop.f32.mrb[0].mxu0
    %v1120 = vadd.f32 0.0, %v1119
    %1121 = vdwg.mxu0
    %s1122 = smul.u32 0, 8
    %s1123 = smul.addr %s1122, 8
    %s1124 = scalar_lea.vmem [#allocation2], %s1123
    %v1125 = vld [vmem:[%s1124] sm:$0xff]
    %v1126 = vld [vmem:[%s1124 + $0x8] sm:$0xff]
    %v1127 = vld [vmem:[%s1124 + $0x10] sm:$0xff]
    %v1128 = vld [vmem:[%s1124 + $0x18] sm:$0xff]
    %v1129 = vadd.f32 %v1125, %v889
    %v1130 = vadd.f32 %v1126, %v891
    %v1131 = vadd.f32 %v1127, %v964
    %v1132 = vadd.f32 %v1128, %v966
    %s1133 = smul.u32 7, 8
    %s1134 = smul.addr %s1133, 8
    %s1135 = scalar_lea.vmem [#allocation2], %s1134
    %v1136 = vld [vmem:[%s1135 + $0x20] sm:$0xff]
    %v1137 = vld [vmem:[%s1135 + $0x28] sm:$0xff]
    %v1138 = vld [vmem:[%s1135 + $0x30] sm:$0xff]
    %v1139 = vld [vmem:[%s1135 + $0x38] sm:$0xff]
    %v1140 = vadd.f32 %v1136, %v1043
    %v1141 = vadd.f32 %v1137, %v1045
    %v1142 = vadd.f32 %v1138, %v1118
    %v1143 = vadd.f32 %v1139, %v1120
    %v1144 = vld [vmem:[#allocation5] sm:$0xff]
    %v1145 = vxor.u32 %v1129, 2147483648
    %v1146 = vmul.f32 %v1145, 1.442695
    %v1147 = vpow.pop %v1146
    %v1148 = vadd.f32 %v1147, 1.0
    %v1149 = vrcp.pop %v1148
    %v1150 = vmul.f32 1.0, %v1149
    %v1151 = vxor.u32 %v1130, 2147483648
    %v1152 = vmul.f32 %v1151, 1.442695
    %v1153 = vpow.pop %v1152
    %v1154 = vadd.f32 %v1153, 1.0
    %v1155 = vrcp.pop %v1154
    %v1156 = vmul.f32 1.0, %v1155
    %v1157 = vtanh.pop %v1131
    %v1158 = vxor.u32 %v1132, 2147483648
    %v1159 = vmul.f32 %v1158, 1.442695
    %v1160 = vpow.pop %v1159
    %v1161 = vadd.f32 %v1160, 1.0
    %v1162 = vrcp.pop %v1161
    %v1163 = vmul.f32 1.0, %v1162
    %v1164 = vmul.f32 %v1156, %v1144
    %v1165 = vmul.f32 %v1150, %v1157
    %v1166 = vadd.f32 %v1164, %v1165
    %v1167 = vtanh.pop %v1166
    %v1168 = vmul.f32 %v1163, %v1167
    %v1169 = vld [vmem:[#allocation5 + $0x8] sm:$0xff]
    %v1170 = vxor.u32 %v1140, 2147483648
    %v1171 = vmul.f32 %v1170, 1.442695
    %v1172 = vpow.pop %v1171
    %v1173 = vadd.f32 %v1172, 1.0
    %v1174 = vrcp.pop %v1173
    %v1175 = vmul.f32 1.0, %v1174
    %v1176 = vxor.u32 %v1141, 2147483648
    %v1177 = vmul.f32 %v1176, 1.442695
    %v1178 = vpow.pop %v1177
    %v1179 = vadd.f32 %v1178, 1.0
    %v1180 = vrcp.pop %v1179
    %v1181 = vmul.f32 1.0, %v1180
    %v1182 = vtanh.pop %v1142
    %v1183 = vxor.u32 %v1143, 2147483648
    %v1184 = vmul.f32 %v1183, 1.442695
    %v1185 = vpow.pop %v1184
    %v1186 = vadd.f32 %v1185, 1.0
    %v1187 = vrcp.pop %v1186
    %v1188 = vmul.f32 1.0, %v1187
    %v1189 = vmul.f32 %v1181, %v1169
    %v1190 = vmul.f32 %v1175, %v1182
    %v1191 = vadd.f32 %v1189, %v1190
    %v1192 = vtanh.pop %v1191
    %v1193 = vmul.f32 %v1188, %v1192
    %1194 = vst [vmem:[#allocation4] sm:$0xff] %v1168
    %1195 = vst [vmem:[#allocation4 + $0x8] sm:$0xff] %v1193
    %1196 = vst [vmem:[#allocation5] sm:$0xff] %v1166
    %1197 = vst [vmem:[#allocation5 + $0x8] sm:$0xff] %v1191
    %s1198 = smul.u32 0, 2
    %s1199 = smul.addr %s1198, 8
    %s1200 = scalar_lea.vmem [#allocation3], %s1199
    %1201 = vst [vmem:[%s1200] sm:$0xff] %v1168
    %s1202 = smul.u32 7, 2
    %s1203 = smul.addr %s1202, 8
    %s1204 = scalar_lea.vmem [#allocation3], %s1203
    %1205 = vst [vmem:[%s1204 + $0x8] sm:$0xff] %v1193
    %v1206 = vld [vmem:[#allocation4] sm:$0xff]
    %v1207 = vld [vmem:[#allocation4 + $0x8] sm:$0xff]
    %v1208 = vld [vmem:[#allocation8] sm:$0xff]
    %v1209 = vld [vmem:[#allocation8 + $0x8] sm:$0xff]
    %v1210 = vld [vmem:[#allocation8 + $0x10] sm:$0xff]
    %v1211 = vld [vmem:[#allocation8 + $0x18] sm:$0xff]
    %v1212 = vld [vmem:[#allocation8 + $0x20] sm:$0xff]
    %v1213 = vld [vmem:[#allocation8 + $0x28] sm:$0xff]
    %v1214 = vld [vmem:[#allocation8 + $0x30] sm:$0xff]
    %v1215 = vld [vmem:[#allocation8 + $0x38] sm:$0xff]
    %v1216 = vld [vmem:[#allocation8 + $0x40] sm:$0xff]
    %v1217 = vld [vmem:[#allocation8 + $0x48] sm:$0xff]
    %v1218 = vld [vmem:[#allocation8 + $0x50] sm:$0xff]
    %v1219 = vld [vmem:[#allocation8 + $0x58] sm:$0xff]
    %v1220 = vld [vmem:[#allocation8 + $0x60] sm:$0xff]
    %v1221 = vld [vmem:[#allocation8 + $0x68] sm:$0xff]
    %v1222 = vld [vmem:[#allocation8 + $0x70] sm:$0xff]
    %v1223 = vld [vmem:[#allocation8 + $0x78] sm:$0xff]
    %v1224 = vld [vmem:[#allocation8 + $0x80] sm:$0xff]
    %v1225 = vld [vmem:[#allocation8 + $0x88] sm:$0xff]
    %v1226 = vld [vmem:[#allocation8 + $0x90] sm:$0xff]
    %v1227 = vld [vmem:[#allocation8 + $0x98] sm:$0xff]
    %v1228 = vld [vmem:[#allocation8 + $0xa0] sm:$0xff]
    %v1229 = vld [vmem:[#allocation8 + $0xa8] sm:$0xff]
    %v1230 = vld [vmem:[#allocation8 + $0xb0] sm:$0xff]
    %v1231 = vld [vmem:[#allocation8 + $0xb8] sm:$0xff]
    %v1232 = vld [vmem:[#allocation8 + $0xc0] sm:$0xff]
    %v1233 = vld [vmem:[#allocation8 + $0xc8] sm:$0xff]
    %v1234 = vld [vmem:[#allocation8 + $0xd0] sm:$0xff]
    %v1235 = vld [vmem:[#allocation8 + $0xd8] sm:$0xff]
    %v1236 = vld [vmem:[#allocation8 + $0xe0] sm:$0xff]
    %v1237 = vld [vmem:[#allocation8 + $0xe8] sm:$0xff]
    %v1238 = vld [vmem:[#allocation8 + $0xf0] sm:$0xff]
    %v1239 = vld [vmem:[#allocation8 + $0xf8] sm:$0xff]
    %v1240 = vld [vmem:[#allocation8 + $0x100] sm:$0xff]
    %v1241 = vld [vmem:[#allocation8 + $0x108] sm:$0xff]
    %v1242 = vld [vmem:[#allocation8 + $0x110] sm:$0xff]
    %v1243 = vld [vmem:[#allocation8 + $0x118] sm:$0xff]
    %v1244 = vld [vmem:[#allocation8 + $0x120] sm:$0xff]
    %v1245 = vld [vmem:[#allocation8 + $0x128] sm:$0xff]
    %v1246 = vld [vmem:[#allocation8 + $0x130] sm:$0xff]
    %v1247 = vld [vmem:[#allocation8 + $0x138] sm:$0xff]
    %v1248 = vld [vmem:[#allocation8 + $0x140] sm:$0xff]
    %v1249 = vld [vmem:[#allocation8 + $0x148] sm:$0xff]
    %v1250 = vld [vmem:[#allocation8 + $0x150] sm:$0xff]
    %v1251 = vld [vmem:[#allocation8 + $0x158] sm:$0xff]
    %v1252 = vld [vmem:[#allocation8 + $0x160] sm:$0xff]
    %v1253 = vld [vmem:[#allocation8 + $0x168] sm:$0xff]
    %v1254 = vld [vmem:[#allocation8 + $0x170] sm:$0xff]
    %v1255 = vld [vmem:[#allocation8 + $0x178] sm:$0xff]
    %v1256 = vld [vmem:[#allocation8 + $0x180] sm:$0xff]
    %v1257 = vld [vmem:[#allocation8 + $0x188] sm:$0xff]
    %v1258 = vld [vmem:[#allocation8 + $0x190] sm:$0xff]
    %v1259 = vld [vmem:[#allocation8 + $0x198] sm:$0xff]
    %v1260 = vld [vmem:[#allocation8 + $0x1a0] sm:$0xff]
    %v1261 = vld [vmem:[#allocation8 + $0x1a8] sm:$0xff]
    %v1262 = vld [vmem:[#allocation8 + $0x1b0] sm:$0xff]
    %v1263 = vld [vmem:[#allocation8 + $0x1b8] sm:$0xff]
    %v1264 = vld [vmem:[#allocation8 + $0x1c0] sm:$0xff]
    %v1265 = vld [vmem:[#allocation8 + $0x1c8] sm:$0xff]
    %v1266 = vld [vmem:[#allocation8 + $0x1d0] sm:$0xff]
    %v1267 = vld [vmem:[#allocation8 + $0x1d8] sm:$0xff]
    %v1268 = vld [vmem:[#allocation8 + $0x1e0] sm:$0xff]
    %v1269 = vld [vmem:[#allocation8 + $0x1e8] sm:$0xff]
    %v1270 = vld [vmem:[#allocation8 + $0x1f0] sm:$0xff]
    %v1271 = vld [vmem:[#allocation8 + $0x1f8] sm:$0xff]
    %v1272 = vld [vmem:[#allocation8 + $0x200] sm:$0xff]
    %v1273 = vld [vmem:[#allocation8 + $0x208] sm:$0xff]
    %v1274 = vld [vmem:[#allocation8 + $0x210] sm:$0xff]
    %v1275 = vld [vmem:[#allocation8 + $0x218] sm:$0xff]
    %v1276 = vld [vmem:[#allocation8 + $0x220] sm:$0xff]
    %v1277 = vld [vmem:[#allocation8 + $0x228] sm:$0xff]
    %v1278 = vld [vmem:[#allocation8 + $0x230] sm:$0xff]
    %v1279 = vld [vmem:[#allocation8 + $0x238] sm:$0xff]
    %v1280 = vld [vmem:[#allocation8 + $0x240] sm:$0xff]
    %v1281 = vld [vmem:[#allocation8 + $0x248] sm:$0xff]
    %v1282 = vld [vmem:[#allocation8 + $0x250] sm:$0xff]
    %v1283 = vld [vmem:[#allocation8 + $0x258] sm:$0xff]
    %v1284 = vld [vmem:[#allocation8 + $0x260] sm:$0xff]
    %v1285 = vld [vmem:[#allocation8 + $0x268] sm:$0xff]
    %v1286 = vld [vmem:[#allocation8 + $0x270] sm:$0xff]
    %v1287 = vld [vmem:[#allocation8 + $0x278] sm:$0xff]
    %v1288 = vld [vmem:[#allocation8 + $0x280] sm:$0xff]
    %v1289 = vld [vmem:[#allocation8 + $0x288] sm:$0xff]
    %v1290 = vld [vmem:[#allocation8 + $0x290] sm:$0xff]
    %v1291 = vld [vmem:[#allocation8 + $0x298] sm:$0xff]
    %v1292 = vld [vmem:[#allocation8 + $0x2a0] sm:$0xff]
    %v1293 = vld [vmem:[#allocation8 + $0x2a8] sm:$0xff]
    %v1294 = vld [vmem:[#allocation8 + $0x2b0] sm:$0xff]
    %v1295 = vld [vmem:[#allocation8 + $0x2b8] sm:$0xff]
    %v1296 = vld [vmem:[#allocation8 + $0x2c0] sm:$0xff]
    %v1297 = vld [vmem:[#allocation8 + $0x2c8] sm:$0xff]
    %v1298 = vld [vmem:[#allocation8 + $0x2d0] sm:$0xff]
    %v1299 = vld [vmem:[#allocation8 + $0x2d8] sm:$0xff]
    %v1300 = vld [vmem:[#allocation8 + $0x2e0] sm:$0xff]
    %v1301 = vld [vmem:[#allocation8 + $0x2e8] sm:$0xff]
    %v1302 = vld [vmem:[#allocation8 + $0x2f0] sm:$0xff]
    %v1303 = vld [vmem:[#allocation8 + $0x2f8] sm:$0xff]
    %v1304 = vld [vmem:[#allocation8 + $0x300] sm:$0xff]
    %v1305 = vld [vmem:[#allocation8 + $0x308] sm:$0xff]
    %v1306 = vld [vmem:[#allocation8 + $0x310] sm:$0xff]
    %v1307 = vld [vmem:[#allocation8 + $0x318] sm:$0xff]
    %v1308 = vld [vmem:[#allocation8 + $0x320] sm:$0xff]
    %v1309 = vld [vmem:[#allocation8 + $0x328] sm:$0xff]
    %v1310 = vld [vmem:[#allocation8 + $0x330] sm:$0xff]
    %v1311 = vld [vmem:[#allocation8 + $0x338] sm:$0xff]
    %v1312 = vld [vmem:[#allocation8 + $0x340] sm:$0xff]
    %v1313 = vld [vmem:[#allocation8 + $0x348] sm:$0xff]
    %v1314 = vld [vmem:[#allocation8 + $0x350] sm:$0xff]
    %v1315 = vld [vmem:[#allocation8 + $0x358] sm:$0xff]
    %v1316 = vld [vmem:[#allocation8 + $0x360] sm:$0xff]
    %v1317 = vld [vmem:[#allocation8 + $0x368] sm:$0xff]
    %v1318 = vld [vmem:[#allocation8 + $0x370] sm:$0xff]
    %v1319 = vld [vmem:[#allocation8 + $0x378] sm:$0xff]
    %v1320 = vld [vmem:[#allocation8 + $0x380] sm:$0xff]
    %v1321 = vld [vmem:[#allocation8 + $0x388] sm:$0xff]
    %v1322 = vld [vmem:[#allocation8 + $0x390] sm:$0xff]
    %v1323 = vld [vmem:[#allocation8 + $0x398] sm:$0xff]
    %v1324 = vld [vmem:[#allocation8 + $0x3a0] sm:$0xff]
    %v1325 = vld [vmem:[#allocation8 + $0x3a8] sm:$0xff]
    %v1326 = vld [vmem:[#allocation8 + $0x3b0] sm:$0xff]
    %v1327 = vld [vmem:[#allocation8 + $0x3b8] sm:$0xff]
    %v1328 = vld [vmem:[#allocation8 + $0x3c0] sm:$0xff]
    %v1329 = vld [vmem:[#allocation8 + $0x3c8] sm:$0xff]
    %v1330 = vld [vmem:[#allocation8 + $0x3d0] sm:$0xff]
    %v1331 = vld [vmem:[#allocation8 + $0x3d8] sm:$0xff]
    %v1332 = vld [vmem:[#allocation8 + $0x3e0] sm:$0xff]
    %v1333 = vld [vmem:[#allocation8 + $0x3e8] sm:$0xff]
    %v1334 = vld [vmem:[#allocation8 + $0x3f0] sm:$0xff]
    %v1335 = vld [vmem:[#allocation8 + $0x3f8] sm:$0xff]
    %1336 = vmatprep.subr.mxu0 %v1209
    %1337 = vmatpush1.msra.mxu0 %v1208
    %1338 = vmatprep.subr.mxu0 %v1217
    %1339 = vmatpush1.msra.mxu0 %v1216
    %1340 = vmatprep.subr.mxu0 %v1225
    %1341 = vmatpush1.msra.mxu0 %v1224
    %1342 = vmatprep.subr.mxu0 %v1233
    %1343 = vmatpush1.msra.mxu0 %v1232
    %1344 = vmatprep.subr.mxu0 %v1241
    %1345 = vmatpush1.msra.mxu0 %v1240
    %1346 = vmatprep.subr.mxu0 %v1249
    %1347 = vmatpush1.msra.mxu0 %v1248
    %1348 = vmatprep.subr.mxu0 %v1257
    %1349 = vmatpush1.msra.mxu0 %v1256
    %1350 = vmatprep.subr.mxu0 %v1265
    %1351 = vmatpush1.msra.mxu0 %v1264
    %1352 = vmatprep.subr.mxu0 %v1273
    %1353 = vmatpush1.msra.mxu0 %v1272
    %1354 = vmatprep.subr.mxu0 %v1281
    %1355 = vmatpush1.msra.mxu0 %v1280
    %1356 = vmatprep.subr.mxu0 %v1289
    %1357 = vmatpush1.msra.mxu0 %v1288
    %1358 = vmatprep.subr.mxu0 %v1297
    %1359 = vmatpush1.msra.mxu0 %v1296
    %1360 = vmatprep.subr.mxu0 %v1305
    %1361 = vmatpush1.msra.mxu0 %v1304
    %1362 = vmatprep.subr.mxu0 %v1313
    %1363 = vmatpush1.msra.mxu0 %v1312
    %1364 = vmatprep.subr.mxu0 %v1321
    %1365 = vmatpush1.msra.mxu0 %v1320
    %1366 = vmatprep.subr.mxu0 %v1329
    %1367 = vmatpush1.msra.mxu0 %v1328
    %1368 = vmatprep.subr.mxu0 0.0
    %1369 = vmatpush1.msra.mxu0 0.0
    %1370 = vmatprep.subr.mxu0 0.0
    %1371 = vmatpush1.msra.mxu0 0.0
    %1372 = vmatprep.subr.mxu0 0.0
    %1373 = vmatpush1.msra.mxu0 0.0
    %1374 = vmatprep.subr.mxu0 0.0
    %1375 = vmatpush1.msra.mxu0 0.0
    %1376 = vmatprep.subr.mxu0 0.0
    %1377 = vmatpush1.msra.mxu0 0.0
    %1378 = vmatprep.subr.mxu0 0.0
    %1379 = vmatpush1.msra.mxu0 0.0
    %1380 = vmatprep.subr.mxu0 0.0
    %1381 = vmatpush1.msra.mxu0 0.0
    %1382 = vmatprep.subr.mxu0 0.0
    %1383 = vmatpush1.msra.mxu0 0.0
    %1384 = vmatprep.subr.mxu0 0.0
    %1385 = vmatpush1.msra.mxu0 0.0
    %1386 = vmatprep.subr.mxu0 0.0
    %1387 = vmatpush1.msra.mxu0 0.0
    %1388 = vmatprep.subr.mxu0 0.0
    %1389 = vmatpush1.msra.mxu0 0.0
    %1390 = vmatprep.subr.mxu0 0.0
    %1391 = vmatpush1.msra.mxu0 0.0
    %1392 = vmatprep.subr.mxu0 0.0
    %1393 = vmatpush1.msra.mxu0 0.0
    %1394 = vmatprep.subr.mxu0 0.0
    %1395 = vmatpush1.msra.mxu0 0.0
    %1396 = vmatprep.subr.mxu0 0.0
    %1397 = vmatpush1.msra.mxu0 0.0
    %1398 = vmatprep.subr.mxu0 0.0
    %1399 = vmatpush1.msra.mxu0 0.0
    %1400 = vmatprep.mubr.f32.mxu0 0.0
    %1401 = vmatmul.mubr.f32.gmra.mrb[0].mxu0 %v1206
    %v1402 = vpop.f32.mrb[0].mxu0
    %v1403 = vadd.f32 0.0, %v1402
    %v1404 = vpop.f32.mrb[0].mxu0
    %v1405 = vadd.f32 0.0, %v1404
    %1406 = vmatprep.mubr.f32.mxu0 0.0
    %1407 = vmatmul.mubr.f32.gmra.mrb[0].mxu0 %v1207
    %v1408 = vpop.f32.mrb[0].mxu0
    %v1409 = vpop.f32.mrb[0].mxu0
    %1410 = vdwg.mxu0
    %1411 = vmatprep.subr.mxu0 %v1211
    %1412 = vmatpush1.msra.mxu0 %v1210
    %1413 = vmatprep.subr.mxu0 %v1219
    %1414 = vmatpush1.msra.mxu0 %v1218
    %1415 = vmatprep.subr.mxu0 %v1227
    %1416 = vmatpush1.msra.mxu0 %v1226
    %1417 = vmatprep.subr.mxu0 %v1235
    %1418 = vmatpush1.msra.mxu0 %v1234
    %1419 = vmatprep.subr.mxu0 %v1243
    %1420 = vmatpush1.msra.mxu0 %v1242
    %1421 = vmatprep.subr.mxu0 %v1251
    %1422 = vmatpush1.msra.mxu0 %v1250
    %1423 = vmatprep.subr.mxu0 %v1259
    %1424 = vmatpush1.msra.mxu0 %v1258
    %1425 = vmatprep.subr.mxu0 %v1267
    %1426 = vmatpush1.msra.mxu0 %v1266
    %1427 = vmatprep.subr.mxu0 %v1275
    %1428 = vmatpush1.msra.mxu0 %v1274
    %1429 = vmatprep.subr.mxu0 %v1283
    %1430 = vmatpush1.msra.mxu0 %v1282
    %1431 = vmatprep.subr.mxu0 %v1291
    %1432 = vmatpush1.msra.mxu0 %v1290
    %1433 = vmatprep.subr.mxu0 %v1299
    %1434 = vmatpush1.msra.mxu0 %v1298
    %1435 = vmatprep.subr.mxu0 %v1307
    %1436 = vmatpush1.msra.mxu0 %v1306
    %1437 = vmatprep.subr.mxu0 %v1315
    %1438 = vmatpush1.msra.mxu0 %v1314
    %1439 = vmatprep.subr.mxu0 %v1323
    %1440 = vmatpush1.msra.mxu0 %v1322
    %1441 = vmatprep.subr.mxu0 %v1331
    %1442 = vmatpush1.msra.mxu0 %v1330
    %1443 = vmatprep.subr.mxu0 0.0
    %1444 = vmatpush1.msra.mxu0 0.0
    %1445 = vmatprep.subr.mxu0 0.0
    %1446 = vmatpush1.msra.mxu0 0.0
    %1447 = vmatprep.subr.mxu0 0.0
    %1448 = vmatpush1.msra.mxu0 0.0
    %1449 = vmatprep.subr.mxu0 0.0
    %1450 = vmatpush1.msra.mxu0 0.0
    %1451 = vmatprep.subr.mxu0 0.0
    %1452 = vmatpush1.msra.mxu0 0.0
    %1453 = vmatprep.subr.mxu0 0.0
    %1454 = vmatpush1.msra.mxu0 0.0
    %1455 = vmatprep.subr.mxu0 0.0
    %1456 = vmatpush1.msra.mxu0 0.0
    %1457 = vmatprep.subr.mxu0 0.0
    %1458 = vmatpush1.msra.mxu0 0.0
    %1459 = vmatprep.subr.mxu0 0.0
    %1460 = vmatpush1.msra.mxu0 0.0
    %1461 = vmatprep.subr.mxu0 0.0
    %1462 = vmatpush1.msra.mxu0 0.0
    %1463 = vmatprep.subr.mxu0 0.0
    %1464 = vmatpush1.msra.mxu0 0.0
    %1465 = vmatprep.subr.mxu0 0.0
    %1466 = vmatpush1.msra.mxu0 0.0
    %1467 = vmatprep.subr.mxu0 0.0
    %1468 = vmatpush1.msra.mxu0 0.0
    %1469 = vmatprep.subr.mxu0 0.0
    %1470 = vmatpush1.msra.mxu0 0.0
    %1471 = vmatprep.subr.mxu0 0.0
    %1472 = vmatpush1.msra.mxu0 0.0
    %1473 = vmatprep.subr.mxu0 0.0
    %1474 = vmatpush1.msra.mxu0 0.0
    %1475 = vmatprep.mubr.f32.mxu0 0.0
    %1476 = vmatmul.mubr.f32.gmra.mrb[0].mxu0 %v1206
    %v1477 = vpop.f32.mrb[0].mxu0
    %v1478 = vadd.f32 0.0, %v1477
    %v1479 = vpop.f32.mrb[0].mxu0
    %v1480 = vadd.f32 0.0, %v1479
    %1481 = vmatprep.mubr.f32.mxu0 0.0
    %1482 = vmatmul.mubr.f32.gmra.mrb[0].mxu0 %v1207
    %v1483 = vpop.f32.mrb[0].mxu0
    %v1484 = vpop.f32.mrb[0].mxu0
    %1485 = vdwg.mxu0
    %1486 = vmatprep.subr.mxu0 %v1213
    %1487 = vmatpush1.msra.mxu0 %v1212
    %1488 = vmatprep.subr.mxu0 %v1221
    %1489 = vmatpush1.msra.mxu0 %v1220
    %1490 = vmatprep.subr.mxu0 %v1229
    %1491 = vmatpush1.msra.mxu0 %v1228
    %1492 = vmatprep.subr.mxu0 %v1237
    %1493 = vmatpush1.msra.mxu0 %v1236
    %1494 = vmatprep.subr.mxu0 %v1245
    %1495 = vmatpush1.msra.mxu0 %v1244
    %1496 = vmatprep.subr.mxu0 %v1253
    %1497 = vmatpush1.msra.mxu0 %v1252
    %1498 = vmatprep.subr.mxu0 %v1261
    %1499 = vmatpush1.msra.mxu0 %v1260
    %1500 = vmatprep.subr.mxu0 %v1269
    %1501 = vmatpush1.msra.mxu0 %v1268
    %1502 = vmatprep.subr.mxu0 %v1277
    %1503 = vmatpush1.msra.mxu0 %v1276
    %1504 = vmatprep.subr.mxu0 %v1285
    %1505 = vmatpush1.msra.mxu0 %v1284
    %1506 = vmatprep.subr.mxu0 %v1293
    %1507 = vmatpush1.msra.mxu0 %v1292
    %1508 = vmatprep.subr.mxu0 %v1301
    %1509 = vmatpush1.msra.mxu0 %v1300
    %1510 = vmatprep.subr.mxu0 %v1309
    %1511 = vmatpush1.msra.mxu0 %v1308
    %1512 = vmatprep.subr.mxu0 %v1317
    %1513 = vmatpush1.msra.mxu0 %v1316
    %1514 = vmatprep.subr.mxu0 %v1325
    %1515 = vmatpush1.msra.mxu0 %v1324
    %1516 = vmatprep.subr.mxu0 %v1333
    %1517 = vmatpush1.msra.mxu0 %v1332
    %1518 = vmatprep.subr.mxu0 0.0
    %1519 = vmatpush1.msra.mxu0 0.0
    %1520 = vmatprep.subr.mxu0 0.0
    %1521 = vmatpush1.msra.mxu0 0.0
    %1522 = vmatprep.subr.mxu0 0.0
    %1523 = vmatpush1.msra.mxu0 0.0
    %1524 = vmatprep.subr.mxu0 0.0
    %1525 = vmatpush1.msra.mxu0 0.0
    %1526 = vmatprep.subr.mxu0 0.0
    %1527 = vmatpush1.msra.mxu0 0.0
    %1528 = vmatprep.subr.mxu0 0.0
    %1529 = vmatpush1.msra.mxu0 0.0
    %1530 = vmatprep.subr.mxu0 0.0
    %1531 = vmatpush1.msra.mxu0 0.0
    %1532 = vmatprep.subr.mxu0 0.0
    %1533 = vmatpush1.msra.mxu0 0.0
    %1534 = vmatprep.subr.mxu0 0.0
    %1535 = vmatpush1.msra.mxu0 0.0
    %1536 = vmatprep.subr.mxu0 0.0
    %1537 = vmatpush1.msra.mxu0 0.0
    %1538 = vmatprep.subr.mxu0 0.0
    %1539 = vmatpush1.msra.mxu0 0.0
    %1540 = vmatprep.subr.mxu0 0.0
    %1541 = vmatpush1.msra.mxu0 0.0
    %1542 = vmatprep.subr.mxu0 0.0
    %1543 = vmatpush1.msra.mxu0 0.0
    %1544 = vmatprep.subr.mxu0 0.0
    %1545 = vmatpush1.msra.mxu0 0.0
    %1546 = vmatprep.subr.mxu0 0.0
    %1547 = vmatpush1.msra.mxu0 0.0
    %1548 = vmatprep.subr.mxu0 0.0
    %1549 = vmatpush1.msra.mxu0 0.0
    %1550 = vmatprep.mubr.f32.mxu0 0.0
    %1551 = vmatmul.mubr.f32.gmra.mrb[0].mxu0 %v1206
    %v1552 = vpop.f32.mrb[0].mxu0
    %v1553 = vpop.f32.mrb[0].mxu0
    %1554 = vmatprep.mubr.f32.mxu0 0.0
    %1555 = vmatmul.mubr.f32.gmra.mrb[0].mxu0 %v1207
    %v1556 = vpop.f32.mrb[0].mxu0
    %v1557 = vadd.f32 0.0, %v1556
    %v1558 = vpop.f32.mrb[0].mxu0
    %v1559 = vadd.f32 0.0, %v1558
    %1560 = vdwg.mxu0
    %1561 = vmatprep.subr.mxu0 %v1215
    %1562 = vmatpush1.msra.mxu0 %v1214
    %1563 = vmatprep.subr.mxu0 %v1223
    %1564 = vmatpush1.msra.mxu0 %v1222
    %1565 = vmatprep.subr.mxu0 %v1231
    %1566 = vmatpush1.msra.mxu0 %v1230
    %1567 = vmatprep.subr.mxu0 %v1239
    %1568 = vmatpush1.msra.mxu0 %v1238
    %1569 = vmatprep.subr.mxu0 %v1247
    %1570 = vmatpush1.msra.mxu0 %v1246
    %1571 = vmatprep.subr.mxu0 %v1255
    %1572 = vmatpush1.msra.mxu0 %v1254
    %1573 = vmatprep.subr.mxu0 %v1263
    %1574 = vmatpush1.msra.mxu0 %v1262
    %1575 = vmatprep.subr.mxu0 %v1271
    %1576 = vmatpush1.msra.mxu0 %v1270
    %1577 = vmatprep.subr.mxu0 %v1279
    %1578 = vmatpush1.msra.mxu0 %v1278
    %1579 = vmatprep.subr.mxu0 %v1287
    %1580 = vmatpush1.msra.mxu0 %v1286
    %1581 = vmatprep.subr.mxu0 %v1295
    %1582 = vmatpush1.msra.mxu0 %v1294
    %1583 = vmatprep.subr.mxu0 %v1303
    %1584 = vmatpush1.msra.mxu0 %v1302
    %1585 = vmatprep.subr.mxu0 %v1311
    %1586 = vmatpush1.msra.mxu0 %v1310
    %1587 = vmatprep.subr.mxu0 %v1319
    %1588 = vmatpush1.msra.mxu0 %v1318
    %1589 = vmatprep.subr.mxu0 %v1327
    %1590 = vmatpush1.msra.mxu0 %v1326
    %1591 = vmatprep.subr.mxu0 %v1335
    %1592 = vmatpush1.msra.mxu0 %v1334
    %1593 = vmatprep.subr.mxu0 0.0
    %1594 = vmatpush1.msra.mxu0 0.0
    %1595 = vmatprep.subr.mxu0 0.0
    %1596 = vmatpush1.msra.mxu0 0.0
    %1597 = vmatprep.subr.mxu0 0.0
    %1598 = vmatpush1.msra.mxu0 0.0
    %1599 = vmatprep.subr.mxu0 0.0
    %1600 = vmatpush1.msra.mxu0 0.0
    %1601 = vmatprep.subr.mxu0 0.0
    %1602 = vmatpush1.msra.mxu0 0.0
    %1603 = vmatprep.subr.mxu0 0.0
    %1604 = vmatpush1.msra.mxu0 0.0
    %1605 = vmatprep.subr.mxu0 0.0
    %1606 = vmatpush1.msra.mxu0 0.0
    %1607 = vmatprep.subr.mxu0 0.0
    %1608 = vmatpush1.msra.mxu0 0.0
    %1609 = vmatprep.subr.mxu0 0.0
    %1610 = vmatpush1.msra.mxu0 0.0
    %1611 = vmatprep.subr.mxu0 0.0
    %1612 = vmatpush1.msra.mxu0 0.0
    %1613 = vmatprep.subr.mxu0 0.0
    %1614 = vmatpush1.msra.mxu0 0.0
    %1615 = vmatprep.subr.mxu0 0.0
    %1616 = vmatpush1.msra.mxu0 0.0
    %1617 = vmatprep.subr.mxu0 0.0
    %1618 = vmatpush1.msra.mxu0 0.0
    %1619 = vmatprep.subr.mxu0 0.0
    %1620 = vmatpush1.msra.mxu0 0.0
    %1621 = vmatprep.subr.mxu0 0.0
    %1622 = vmatpush1.msra.mxu0 0.0
    %1623 = vmatprep.subr.mxu0 0.0
    %1624 = vmatpush1.msra.mxu0 0.0
    %1625 = vmatprep.mubr.f32.mxu0 0.0
    %1626 = vmatmul.mubr.f32.gmra.mrb[0].mxu0 %v1206
    %v1627 = vpop.f32.mrb[0].mxu0
    %v1628 = vpop.f32.mrb[0].mxu0
    %1629 = vmatprep.mubr.f32.mxu0 0.0
    %1630 = vmatmul.mubr.f32.gmra.mrb[0].mxu0 %v1207
    %v1631 = vpop.f32.mrb[0].mxu0
    %v1632 = vadd.f32 0.0, %v1631
    %v1633 = vpop.f32.mrb[0].mxu0
    %v1634 = vadd.f32 0.0, %v1633
    %1635 = vdwg.mxu0
    %s1636 = smul.u32 1, 8
    %s1637 = smul.addr %s1636, 8
    %s1638 = scalar_lea.vmem [#allocation2], %s1637
    %v1639 = vld [vmem:[%s1638] sm:$0xff]
    %v1640 = vld [vmem:[%s1638 + $0x8] sm:$0xff]
    %v1641 = vld [vmem:[%s1638 + $0x10] sm:$0xff]
    %v1642 = vld [vmem:[%s1638 + $0x18] sm:$0xff]
    %v1643 = vadd.f32 %v1639, %v1403
    %v1644 = vadd.f32 %v1640, %v1405
    %v1645 = vadd.f32 %v1641, %v1478
    %v1646 = vadd.f32 %v1642, %v1480
    %s1647 = smul.u32 6, 8
    %s1648 = smul.addr %s1647, 8
    %s1649 = scalar_lea.vmem [#allocation2], %s1648
    %v1650 = vld [vmem:[%s1649 + $0x20] sm:$0xff]
    %v1651 = vld [vmem:[%s1649 + $0x28] sm:$0xff]
    %v1652 = vld [vmem:[%s1649 + $0x30] sm:$0xff]
    %v1653 = vld [vmem:[%s1649 + $0x38] sm:$0xff]
    %v1654 = vadd.f32 %v1650, %v1557
    %v1655 = vadd.f32 %v1651, %v1559
    %v1656 = vadd.f32 %v1652, %v1632
    %v1657 = vadd.f32 %v1653, %v1634
    %v1658 = vld [vmem:[#allocation5] sm:$0xff]
    %v1659 = vxor.u32 %v1643, 2147483648
    %v1660 = vmul.f32 %v1659, 1.442695
    %v1661 = vpow.pop %v1660
    %v1662 = vadd.f32 %v1661, 1.0
    %v1663 = vrcp.pop %v1662
    %v1664 = vmul.f32 1.0, %v1663
    %v1665 = vxor.u32 %v1644, 2147483648
    %v1666 = vmul.f32 %v1665, 1.442695
    %v1667 = vpow.pop %v1666
    %v1668 = vadd.f32 %v1667, 1.0
    %v1669 = vrcp.pop %v1668
    %v1670 = vmul.f32 1.0, %v1669
    %v1671 = vtanh.pop %v1645
    %v1672 = vxor.u32 %v1646, 2147483648
    %v1673 = vmul.f32 %v1672, 1.442695
    %v1674 = vpow.pop %v1673
    %v1675 = vadd.f32 %v1674, 1.0
    %v1676 = vrcp.pop %v1675
    %v1677 = vmul.f32 1.0, %v1676
    %v1678 = vmul.f32 %v1670, %v1658
    %v1679 = vmul.f32 %v1664, %v1671
    %v1680 = vadd.f32 %v1678, %v1679
    %v1681 = vtanh.pop %v1680
    %v1682 = vmul.f32 %v1677, %v1681
    %v1683 = vld [vmem:[#allocation5 + $0x8] sm:$0xff]
    %v1684 = vxor.u32 %v1654, 2147483648
    %v1685 = vmul.f32 %v1684, 1.442695
    %v1686 = vpow.pop %v1685
    %v1687 = vadd.f32 %v1686, 1.0
    %v1688 = vrcp.pop %v1687
    %v1689 = vmul.f32 1.0, %v1688
    %v1690 = vxor.u32 %v1655, 2147483648
    %v1691 = vmul.f32 %v1690, 1.442695
    %v1692 = vpow.pop %v1691
    %v1693 = vadd.f32 %v1692, 1.0
    %v1694 = vrcp.pop %v1693
    %v1695 = vmul.f32 1.0, %v1694
    %v1696 = vtanh.pop %v1656
    %v1697 = vxor.u32 %v1657, 2147483648
    %v1698 = vmul.f32 %v1697, 1.442695
    %v1699 = vpow.pop %v1698
    %v1700 = vadd.f32 %v1699, 1.0
    %v1701 = vrcp.pop %v1700
    %v1702 = vmul.f32 1.0, %v1701
    %v1703 = vmul.f32 %v1695, %v1683
    %v1704 = vmul.f32 %v1689, %v1696
    %v1705 = vadd.f32 %v1703, %v1704
    %v1706 = vtanh.pop %v1705
    %v1707 = vmul.f32 %v1702, %v1706
    %1708 = vst [vmem:[#allocation4] sm:$0xff] %v1682
    %1709 = vst [vmem:[#allocation4 + $0x8] sm:$0xff] %v1707
    %1710 = vst [vmem:[#allocation5] sm:$0xff] %v1680
    %1711 = vst [vmem:[#allocation5 + $0x8] sm:$0xff] %v1705
    %s1712 = smul.u32 1, 2
    %s1713 = smul.addr %s1712, 8
    %s1714 = scalar_lea.vmem [#allocation3], %s1713
    %1715 = vst [vmem:[%s1714] sm:$0xff] %v1682
    %s1716 = smul.u32 6, 2
    %s1717 = smul.addr %s1716, 8
    %s1718 = scalar_lea.vmem [#allocation3], %s1717
    %1719 = vst [vmem:[%s1718 + $0x8] sm:$0xff] %v1707
    %v1720 = vld [vmem:[#allocation4] sm:$0xff]
    %v1721 = vld [vmem:[#allocation4 + $0x8] sm:$0xff]
    %v1722 = vld [vmem:[#allocation8] sm:$0xff]
    %v1723 = vld [vmem:[#allocation8 + $0x8] sm:$0xff]
    %v1724 = vld [vmem:[#allocation8 + $0x10] sm:$0xff]
    %v1725 = vld [vmem:[#allocation8 + $0x18] sm:$0xff]
    %v1726 = vld [vmem:[#allocation8 + $0x20] sm:$0xff]
    %v1727 = vld [vmem:[#allocation8 + $0x28] sm:$0xff]
    %v1728 = vld [vmem:[#allocation8 + $0x30] sm:$0xff]
    %v1729 = vld [vmem:[#allocation8 + $0x38] sm:$0xff]
    %v1730 = vld [vmem:[#allocation8 + $0x40] sm:$0xff]
    %v1731 = vld [vmem:[#allocation8 + $0x48] sm:$0xff]
    %v1732 = vld [vmem:[#allocation8 + $0x50] sm:$0xff]
    %v1733 = vld [vmem:[#allocation8 + $0x58] sm:$0xff]
    %v1734 = vld [vmem:[#allocation8 + $0x60] sm:$0xff]
    %v1735 = vld [vmem:[#allocation8 + $0x68] sm:$0xff]
    %v1736 = vld [vmem:[#allocation8 + $0x70] sm:$0xff]
    %v1737 = vld [vmem:[#allocation8 + $0x78] sm:$0xff]
    %v1738 = vld [vmem:[#allocation8 + $0x80] sm:$0xff]
    %v1739 = vld [vmem:[#allocation8 + $0x88] sm:$0xff]
    %v1740 = vld [vmem:[#allocation8 + $0x90] sm:$0xff]
    %v1741 = vld [vmem:[#allocation8 + $0x98] sm:$0xff]
    %v1742 = vld [vmem:[#allocation8 + $0xa0] sm:$0xff]
    %v1743 = vld [vmem:[#allocation8 + $0xa8] sm:$0xff]
    %v1744 = vld [vmem:[#allocation8 + $0xb0] sm:$0xff]
    %v1745 = vld [vmem:[#allocation8 + $0xb8] sm:$0xff]
    %v1746 = vld [vmem:[#allocation8 + $0xc0] sm:$0xff]
    %v1747 = vld [vmem:[#allocation8 + $0xc8] sm:$0xff]
    %v1748 = vld [vmem:[#allocation8 + $0xd0] sm:$0xff]
    %v1749 = vld [vmem:[#allocation8 + $0xd8] sm:$0xff]
    %v1750 = vld [vmem:[#allocation8 + $0xe0] sm:$0xff]
    %v1751 = vld [vmem:[#allocation8 + $0xe8] sm:$0xff]
    %v1752 = vld [vmem:[#allocation8 + $0xf0] sm:$0xff]
    %v1753 = vld [vmem:[#allocation8 + $0xf8] sm:$0xff]
    %v1754 = vld [vmem:[#allocation8 + $0x100] sm:$0xff]
    %v1755 = vld [vmem:[#allocation8 + $0x108] sm:$0xff]
    %v1756 = vld [vmem:[#allocation8 + $0x110] sm:$0xff]
    %v1757 = vld [vmem:[#allocation8 + $0x118] sm:$0xff]
    %v1758 = vld [vmem:[#allocation8 + $0x120] sm:$0xff]
    %v1759 = vld [vmem:[#allocation8 + $0x128] sm:$0xff]
    %v1760 = vld [vmem:[#allocation8 + $0x130] sm:$0xff]
    %v1761 = vld [vmem:[#allocation8 + $0x138] sm:$0xff]
    %v1762 = vld [vmem:[#allocation8 + $0x140] sm:$0xff]
    %v1763 = vld [vmem:[#allocation8 + $0x148] sm:$0xff]
    %v1764 = vld [vmem:[#allocation8 + $0x150] sm:$0xff]
    %v1765 = vld [vmem:[#allocation8 + $0x158] sm:$0xff]
    %v1766 = vld [vmem:[#allocation8 + $0x160] sm:$0xff]
    %v1767 = vld [vmem:[#allocation8 + $0x168] sm:$0xff]
    %v1768 = vld [vmem:[#allocation8 + $0x170] sm:$0xff]
    %v1769 = vld [vmem:[#allocation8 + $0x178] sm:$0xff]
    %v1770 = vld [vmem:[#allocation8 + $0x180] sm:$0xff]
    %v1771 = vld [vmem:[#allocation8 + $0x188] sm:$0xff]
    %v1772 = vld [vmem:[#allocation8 + $0x190] sm:$0xff]
    %v1773 = vld [vmem:[#allocation8 + $0x198] sm:$0xff]
    %v1774 = vld [vmem:[#allocation8 + $0x1a0] sm:$0xff]
    %v1775 = vld [vmem:[#allocation8 + $0x1a8] sm:$0xff]
    %v1776 = vld [vmem:[#allocation8 + $0x1b0] sm:$0xff]
    %v1777 = vld [vmem:[#allocation8 + $0x1b8] sm:$0xff]
    %v1778 = vld [vmem:[#allocation8 + $0x1c0] sm:$0xff]
    %v1779 = vld [vmem:[#allocation8 + $0x1c8] sm:$0xff]
    %v1780 = vld [vmem:[#allocation8 + $0x1d0] sm:$0xff]
    %v1781 = vld [vmem:[#allocation8 + $0x1d8] sm:$0xff]
    %v1782 = vld [vmem:[#allocation8 + $0x1e0] sm:$0xff]
    %v1783 = vld [vmem:[#allocation8 + $0x1e8] sm:$0xff]
    %v1784 = vld [vmem:[#allocation8 + $0x1f0] sm:$0xff]
    %v1785 = vld [vmem:[#allocation8 + $0x1f8] sm:$0xff]
    %v1786 = vld [vmem:[#allocation8 + $0x200] sm:$0xff]
    %v1787 = vld [vmem:[#allocation8 + $0x208] sm:$0xff]
    %v1788 = vld [vmem:[#allocation8 + $0x210] sm:$0xff]
    %v1789 = vld [vmem:[#allocation8 + $0x218] sm:$0xff]
    %v1790 = vld [vmem:[#allocation8 + $0x220] sm:$0xff]
    %v1791 = vld [vmem:[#allocation8 + $0x228] sm:$0xff]
    %v1792 = vld [vmem:[#allocation8 + $0x230] sm:$0xff]
    %v1793 = vld [vmem:[#allocation8 + $0x238] sm:$0xff]
    %v1794 = vld [vmem:[#allocation8 + $0x240] sm:$0xff]
    %v1795 = vld [vmem:[#allocation8 + $0x248] sm:$0xff]
    %v1796 = vld [vmem:[#allocation8 + $0x250] sm:$0xff]
    %v1797 = vld [vmem:[#allocation8 + $0x258] sm:$0xff]
    %v1798 = vld [vmem:[#allocation8 + $0x260] sm:$0xff]
    %v1799 = vld [vmem:[#allocation8 + $0x268] sm:$0xff]
    %v1800 = vld [vmem:[#allocation8 + $0x270] sm:$0xff]
    %v1801 = vld [vmem:[#allocation8 + $0x278] sm:$0xff]
    %v1802 = vld [vmem:[#allocation8 + $0x280] sm:$0xff]
    %v1803 = vld [vmem:[#allocation8 + $0x288] sm:$0xff]
    %v1804 = vld [vmem:[#allocation8 + $0x290] sm:$0xff]
    %v1805 = vld [vmem:[#allocation8 + $0x298] sm:$0xff]
    %v1806 = vld [vmem:[#allocation8 + $0x2a0] sm:$0xff]
    %v1807 = vld [vmem:[#allocation8 + $0x2a8] sm:$0xff]
    %v1808 = vld [vmem:[#allocation8 + $0x2b0] sm:$0xff]
    %v1809 = vld [vmem:[#allocation8 + $0x2b8] sm:$0xff]
    %v1810 = vld [vmem:[#allocation8 + $0x2c0] sm:$0xff]
    %v1811 = vld [vmem:[#allocation8 + $0x2c8] sm:$0xff]
    %v1812 = vld [vmem:[#allocation8 + $0x2d0] sm:$0xff]
    %v1813 = vld [vmem:[#allocation8 + $0x2d8] sm:$0xff]
    %v1814 = vld [vmem:[#allocation8 + $0x2e0] sm:$0xff]
    %v1815 = vld [vmem:[#allocation8 + $0x2e8] sm:$0xff]
    %v1816 = vld [vmem:[#allocation8 + $0x2f0] sm:$0xff]
    %v1817 = vld [vmem:[#allocation8 + $0x2f8] sm:$0xff]
    %v1818 = vld [vmem:[#allocation8 + $0x300] sm:$0xff]
    %v1819 = vld [vmem:[#allocation8 + $0x308] sm:$0xff]
    %v1820 = vld [vmem:[#allocation8 + $0x310] sm:$0xff]
    %v1821 = vld [vmem:[#allocation8 + $0x318] sm:$0xff]
    %v1822 = vld [vmem:[#allocation8 + $0x320] sm:$0xff]
    %v1823 = vld [vmem:[#allocation8 + $0x328] sm:$0xff]
    %v1824 = vld [vmem:[#allocation8 + $0x330] sm:$0xff]
    %v1825 = vld [vmem:[#allocation8 + $0x338] sm:$0xff]
    %v1826 = vld [vmem:[#allocation8 + $0x340] sm:$0xff]
    %v1827 = vld [vmem:[#allocation8 + $0x348] sm:$0xff]
    %v1828 = vld [vmem:[#allocation8 + $0x350] sm:$0xff]
    %v1829 = vld [vmem:[#allocation8 + $0x358] sm:$0xff]
    %v1830 = vld [vmem:[#allocation8 + $0x360] sm:$0xff]
    %v1831 = vld [vmem:[#allocation8 + $0x368] sm:$0xff]
    %v1832 = vld [vmem:[#allocation8 + $0x370] sm:$0xff]
    %v1833 = vld [vmem:[#allocation8 + $0x378] sm:$0xff]
    %v1834 = vld [vmem:[#allocation8 + $0x380] sm:$0xff]
    %v1835 = vld [vmem:[#allocation8 + $0x388] sm:$0xff]
    %v1836 = vld [vmem:[#allocation8 + $0x390] sm:$0xff]
    %v1837 = vld [vmem:[#allocation8 + $0x398] sm:$0xff]
    %v1838 = vld [vmem:[#allocation8 + $0x3a0] sm:$0xff]
    %v1839 = vld [vmem:[#allocation8 + $0x3a8] sm:$0xff]
    %v1840 = vld [vmem:[#allocation8 + $0x3b0] sm:$0xff]
    %v1841 = vld [vmem:[#allocation8 + $0x3b8] sm:$0xff]
    %v1842 = vld [vmem:[#allocation8 + $0x3c0] sm:$0xff]
    %v1843 = vld [vmem:[#allocation8 + $0x3c8] sm:$0xff]
    %v1844 = vld [vmem:[#allocation8 + $0x3d0] sm:$0xff]
    %v1845 = vld [vmem:[#allocation8 + $0x3d8] sm:$0xff]
    %v1846 = vld [vmem:[#allocation8 + $0x3e0] sm:$0xff]
    %v1847 = vld [vmem:[#allocation8 + $0x3e8] sm:$0xff]
    %v1848 = vld [vmem:[#allocation8 + $0x3f0] sm:$0xff]
    %v1849 = vld [vmem:[#allocation8 + $0x3f8] sm:$0xff]
    %1850 = vmatprep.subr.mxu0 %v1723
    %1851 = vmatpush1.msra.mxu0 %v1722
    %1852 = vmatprep.subr.mxu0 %v1731
    %1853 = vmatpush1.msra.mxu0 %v1730
    %1854 = vmatprep.subr.mxu0 %v1739
    %1855 = vmatpush1.msra.mxu0 %v1738
    %1856 = vmatprep.subr.mxu0 %v1747
    %1857 = vmatpush1.msra.mxu0 %v1746
    %1858 = vmatprep.subr.mxu0 %v1755
    %1859 = vmatpush1.msra.mxu0 %v1754
    %1860 = vmatprep.subr.mxu0 %v1763
    %1861 = vmatpush1.msra.mxu0 %v1762
    %1862 = vmatprep.subr.mxu0 %v1771
    %1863 = vmatpush1.msra.mxu0 %v1770
    %1864 = vmatprep.subr.mxu0 %v1779
    %1865 = vmatpush1.msra.mxu0 %v1778
    %1866 = vmatprep.subr.mxu0 %v1787
    %1867 = vmatpush1.msra.mxu0 %v1786
    %1868 = vmatprep.subr.mxu0 %v1795
    %1869 = vmatpush1.msra.mxu0 %v1794
    %1870 = vmatprep.subr.mxu0 %v1803
    %1871 = vmatpush1.msra.mxu0 %v1802
    %1872 = vmatprep.subr.mxu0 %v1811
    %1873 = vmatpush1.msra.mxu0 %v1810
    %1874 = vmatprep.subr.mxu0 %v1819
    %1875 = vmatpush1.msra.mxu0 %v1818
    %1876 = vmatprep.subr.mxu0 %v1827
    %1877 = vmatpush1.msra.mxu0 %v1826
    %1878 = vmatprep.subr.mxu0 %v1835
    %1879 = vmatpush1.msra.mxu0 %v1834
    %1880 = vmatprep.subr.mxu0 %v1843
    %1881 = vmatpush1.msra.mxu0 %v1842
    %1882 = vmatprep.subr.mxu0 0.0
    %1883 = vmatpush1.msra.mxu0 0.0
    %1884 = vmatprep.subr.mxu0 0.0
    %1885 = vmatpush1.msra.mxu0 0.0
    %1886 = vmatprep.subr.mxu0 0.0
    %1887 = vmatpush1.msra.mxu0 0.0
    %1888 = vmatprep.subr.mxu0 0.0
    %1889 = vmatpush1.msra.mxu0 0.0
    %1890 = vmatprep.subr.mxu0 0.0
    %1891 = vmatpush1.msra.mxu0 0.0
    %1892 = vmatprep.subr.mxu0 0.0
    %1893 = vmatpush1.msra.mxu0 0.0
    %1894 = vmatprep.subr.mxu0 0.0
    %1895 = vmatpush1.msra.mxu0 0.0
    %1896 = vmatprep.subr.mxu0 0.0
    %1897 = vmatpush1.msra.mxu0 0.0
    %1898 = vmatprep.subr.mxu0 0.0
    %1899 = vmatpush1.msra.mxu0 0.0
    %1900 = vmatprep.subr.mxu0 0.0
    %1901 = vmatpush1.msra.mxu0 0.0
    %1902 = vmatprep.subr.mxu0 0.0
    %1903 = vmatpush1.msra.mxu0 0.0
    %1904 = vmatprep.subr.mxu0 0.0
    %1905 = vmatpush1.msra.mxu0 0.0
    %1906 = vmatprep.subr.mxu0 0.0
    %1907 = vmatpush1.msra.mxu0 0.0
    %1908 = vmatprep.subr.mxu0 0.0
    %1909 = vmatpush1.msra.mxu0 0.0
    %1910 = vmatprep.subr.mxu0 0.0
    %1911 = vmatpush1.msra.mxu0 0.0
    %1912 = vmatprep.subr.mxu0 0.0
    %1913 = vmatpush1.msra.mxu0 0.0
    %1914 = vmatprep.mubr.f32.mxu0 0.0
    %1915 = vmatmul.mubr.f32.gmra.mrb[0].mxu0 %v1720
    %v1916 = vpop.f32.mrb[0].mxu0
    %v1917 = vadd.f32 0.0, %v1916
    %v1918 = vpop.f32.mrb[0].mxu0
    %v1919 = vadd.f32 0.0, %v1918
    %1920 = vmatprep.mubr.f32.mxu0 0.0
    %1921 = vmatmul.mubr.f32.gmra.mrb[0].mxu0 %v1721
    %v1922 = vpop.f32.mrb[0].mxu0
    %v1923 = vpop.f32.mrb[0].mxu0
    %1924 = vdwg.mxu0
    %1925 = vmatprep.subr.mxu0 %v1725
    %1926 = vmatpush1.msra.mxu0 %v1724
    %1927 = vmatprep.subr.mxu0 %v1733
    %1928 = vmatpush1.msra.mxu0 %v1732
    %1929 = vmatprep.subr.mxu0 %v1741
    %1930 = vmatpush1.msra.mxu0 %v1740
    %1931 = vmatprep.subr.mxu0 %v1749
    %1932 = vmatpush1.msra.mxu0 %v1748
    %1933 = vmatprep.subr.mxu0 %v1757
    %1934 = vmatpush1.msra.mxu0 %v1756
    %1935 = vmatprep.subr.mxu0 %v1765
    %1936 = vmatpush1.msra.mxu0 %v1764
    %1937 = vmatprep.subr.mxu0 %v1773
    %1938 = vmatpush1.msra.mxu0 %v1772
    %1939 = vmatprep.subr.mxu0 %v1781
    %1940 = vmatpush1.msra.mxu0 %v1780
    %1941 = vmatprep.subr.mxu0 %v1789
    %1942 = vmatpush1.msra.mxu0 %v1788
    %1943 = vmatprep.subr.mxu0 %v1797
    %1944 = vmatpush1.msra.mxu0 %v1796
    %1945 = vmatprep.subr.mxu0 %v1805
    %1946 = vmatpush1.msra.mxu0 %v1804
    %1947 = vmatprep.subr.mxu0 %v1813
    %1948 = vmatpush1.msra.mxu0 %v1812
    %1949 = vmatprep.subr.mxu0 %v1821
    %1950 = vmatpush1.msra.mxu0 %v1820
    %1951 = vmatprep.subr.mxu0 %v1829
    %1952 = vmatpush1.msra.mxu0 %v1828
    %1953 = vmatprep.subr.mxu0 %v1837
    %1954 = vmatpush1.msra.mxu0 %v1836
    %1955 = vmatprep.subr.mxu0 %v1845
    %1956 = vmatpush1.msra.mxu0 %v1844
    %1957 = vmatprep.subr.mxu0 0.0
    %1958 = vmatpush1.msra.mxu0 0.0
    %1959 = vmatprep.subr.mxu0 0.0
    %1960 = vmatpush1.msra.mxu0 0.0
    %1961 = vmatprep.subr.mxu0 0.0
    %1962 = vmatpush1.msra.mxu0 0.0
    %1963 = vmatprep.subr.mxu0 0.0
    %1964 = vmatpush1.msra.mxu0 0.0
    %1965 = vmatprep.subr.mxu0 0.0
    %1966 = vmatpush1.msra.mxu0 0.0
    %1967 = vmatprep.subr.mxu0 0.0
    %1968 = vmatpush1.msra.mxu0 0.0
    %1969 = vmatprep.subr.mxu0 0.0
    %1970 = vmatpush1.msra.mxu0 0.0
    %1971 = vmatprep.subr.mxu0 0.0
    %1972 = vmatpush1.msra.mxu0 0.0
    %1973 = vmatprep.subr.mxu0 0.0
    %1974 = vmatpush1.msra.mxu0 0.0
    %1975 = vmatprep.subr.mxu0 0.0
    %1976 = vmatpush1.msra.mxu0 0.0
    %1977 = vmatprep.subr.mxu0 0.0
    %1978 = vmatpush1.msra.mxu0 0.0
    %1979 = vmatprep.subr.mxu0 0.0
    %1980 = vmatpush1.msra.mxu0 0.0
    %1981 = vmatprep.subr.mxu0 0.0
    %1982 = vmatpush1.msra.mxu0 0.0
    %1983 = vmatprep.subr.mxu0 0.0
    %1984 = vmatpush1.msra.mxu0 0.0
    %1985 = vmatprep.subr.mxu0 0.0
    %1986 = vmatpush1.msra.mxu0 0.0
    %1987 = vmatprep.subr.mxu0 0.0
    %1988 = vmatpush1.msra.mxu0 0.0
    %1989 = vmatprep.mubr.f32.mxu0 0.0
    %1990 = vmatmul.mubr.f32.gmra.mrb[0].mxu0 %v1720
    %v1991 = vpop.f32.mrb[0].mxu0
    %v1992 = vadd.f32 0.0, %v1991
    %v1993 = vpop.f32.mrb[0].mxu0
    %v1994 = vadd.f32 0.0, %v1993
    %1995 = vmatprep.mubr.f32.mxu0 0.0
    %1996 = vmatmul.mubr.f32.gmra.mrb[0].mxu0 %v1721
    %v1997 = vpop.f32.mrb[0].mxu0
    %v1998 = vpop.f32.mrb[0].mxu0
    %1999 = vdwg.mxu0
    %2000 = vmatprep.subr.mxu0 %v1727
    %2001 = vmatpush1.msra.mxu0 %v1726
    %2002 = vmatprep.subr.mxu0 %v1735
    %2003 = vmatpush1.msra.mxu0 %v1734
    %2004 = vmatprep.subr.mxu0 %v1743
    %2005 = vmatpush1.msra.mxu0 %v1742
    %2006 = vmatprep.subr.mxu0 %v1751
    %2007 = vmatpush1.msra.mxu0 %v1750
    %2008 = vmatprep.subr.mxu0 %v1759
    %2009 = vmatpush1.msra.mxu0 %v1758
    %2010 = vmatprep.subr.mxu0 %v1767
    %2011 = vmatpush1.msra.mxu0 %v1766
    %2012 = vmatprep.subr.mxu0 %v1775
    %2013 = vmatpush1.msra.mxu0 %v1774
    %2014 = vmatprep.subr.mxu0 %v1783
    %2015 = vmatpush1.msra.mxu0 %v1782
    %2016 = vmatprep.subr.mxu0 %v1791
    %2017 = vmatpush1.msra.mxu0 %v1790
    %2018 = vmatprep.subr.mxu0 %v1799
    %2019 = vmatpush1.msra.mxu0 %v1798
    %2020 = vmatprep.subr.mxu0 %v1807
    %2021 = vmatpush1.msra.mxu0 %v1806
    %2022 = vmatprep.subr.mxu0 %v1815
    %2023 = vmatpush1.msra.mxu0 %v1814
    %2024 = vmatprep.subr.mxu0 %v1823
    %2025 = vmatpush1.msra.mxu0 %v1822
    %2026 = vmatprep.subr.mxu0 %v1831
    %2027 = vmatpush1.msra.mxu0 %v1830
    %2028 = vmatprep.subr.mxu0 %v1839
    %2029 = vmatpush1.msra.mxu0 %v1838
    %2030 = vmatprep.subr.mxu0 %v1847
    %2031 = vmatpush1.msra.mxu0 %v1846
    %2032 = vmatprep.subr.mxu0 0.0
    %2033 = vmatpush1.msra.mxu0 0.0
    %2034 = vmatprep.subr.mxu0 0.0
    %2035 = vmatpush1.msra.mxu0 0.0
    %2036 = vmatprep.subr.mxu0 0.0
    %2037 = vmatpush1.msra.mxu0 0.0
    %2038 = vmatprep.subr.mxu0 0.0
    %2039 = vmatpush1.msra.mxu0 0.0
    %2040 = vmatprep.subr.mxu0 0.0
    %2041 = vmatpush1.msra.mxu0 0.0
    %2042 = vmatprep.subr.mxu0 0.0
    %2043 = vmatpush1.msra.mxu0 0.0
    %2044 = vmatprep.subr.mxu0 0.0
    %2045 = vmatpush1.msra.mxu0 0.0
    %2046 = vmatprep.subr.mxu0 0.0
    %2047 = vmatpush1.msra.mxu0 0.0
    %2048 = vmatprep.subr.mxu0 0.0
    %2049 = vmatpush1.msra.mxu0 0.0
    %2050 = vmatprep.subr.mxu0 0.0
    %2051 = vmatpush1.msra.mxu0 0.0
    %2052 = vmatprep.subr.mxu0 0.0
    %2053 = vmatpush1.msra.mxu0 0.0
    %2054 = vmatprep.subr.mxu0 0.0
    %2055 = vmatpush1.msra.mxu0 0.0
    %2056 = vmatprep.subr.mxu0 0.0
    %2057 = vmatpush1.msra.mxu0 0.0
    %2058 = vmatprep.subr.mxu0 0.0
    %2059 = vmatpush1.msra.mxu0 0.0
    %2060 = vmatprep.subr.mxu0 0.0
    %2061 = vmatpush1.msra.mxu0 0.0
    %2062 = vmatprep.subr.mxu0 0.0
    %2063 = vmatpush1.msra.mxu0 0.0
    %2064 = vmatprep.mubr.f32.mxu0 0.0
    %2065 = vmatmul.mubr.f32.gmra.mrb[0].mxu0 %v1720
    %v2066 = vpop.f32.mrb[0].mxu0
    %v2067 = vpop.f32.mrb[0].mxu0
    %2068 = vmatprep.mubr.f32.mxu0 0.0
    %2069 = vmatmul.mubr.f32.gmra.mrb[0].mxu0 %v1721
    %v2070 = vpop.f32.mrb[0].mxu0
    %v2071 = vadd.f32 0.0, %v2070
    %v2072 = vpop.f32.mrb[0].mxu0
    %v2073 = vadd.f32 0.0, %v2072
    %2074 = vdwg.mxu0
    %2075 = vmatprep.subr.mxu0 %v1729
    %2076 = vmatpush1.msra.mxu0 %v1728
    %2077 = vmatprep.subr.mxu0 %v1737
    %2078 = vmatpush1.msra.mxu0 %v1736
    %2079 = vmatprep.subr.mxu0 %v1745
    %2080 = vmatpush1.msra.mxu0 %v1744
    %2081 = vmatprep.subr.mxu0 %v1753
    %2082 = vmatpush1.msra.mxu0 %v1752
    %2083 = vmatprep.subr.mxu0 %v1761
    %2084 = vmatpush1.msra.mxu0 %v1760
    %2085 = vmatprep.subr.mxu0 %v1769
    %2086 = vmatpush1.msra.mxu0 %v1768
    %2087 = vmatprep.subr.mxu0 %v1777
    %2088 = vmatpush1.msra.mxu0 %v1776
    %2089 = vmatprep.subr.mxu0 %v1785
    %2090 = vmatpush1.msra.mxu0 %v1784
    %2091 = vmatprep.subr.mxu0 %v1793
    %2092 = vmatpush1.msra.mxu0 %v1792
    %2093 = vmatprep.subr.mxu0 %v1801
    %2094 = vmatpush1.msra.mxu0 %v1800
    %2095 = vmatprep.subr.mxu0 %v1809
    %2096 = vmatpush1.msra.mxu0 %v1808
    %2097 = vmatprep.subr.mxu0 %v1817
    %2098 = vmatpush1.msra.mxu0 %v1816
    %2099 = vmatprep.subr.mxu0 %v1825
    %2100 = vmatpush1.msra.mxu0 %v1824
    %2101 = vmatprep.subr.mxu0 %v1833
    %2102 = vmatpush1.msra.mxu0 %v1832
    %2103 = vmatprep.subr.mxu0 %v1841
    %2104 = vmatpush1.msra.mxu0 %v1840
    %2105 = vmatprep.subr.mxu0 %v1849
    %2106 = vmatpush1.msra.mxu0 %v1848
    %2107 = vmatprep.subr.mxu0 0.0
    %2108 = vmatpush1.msra.mxu0 0.0
    %2109 = vmatprep.subr.mxu0 0.0
    %2110 = vmatpush1.msra.mxu0 0.0
    %2111 = vmatprep.subr.mxu0 0.0
    %2112 = vmatpush1.msra.mxu0 0.0
    %2113 = vmatprep.subr.mxu0 0.0
    %2114 = vmatpush1.msra.mxu0 0.0
    %2115 = vmatprep.subr.mxu0 0.0
    %2116 = vmatpush1.msra.mxu0 0.0
    %2117 = vmatprep.subr.mxu0 0.0
    %2118 = vmatpush1.msra.mxu0 0.0
    %2119 = vmatprep.subr.mxu0 0.0
    %2120 = vmatpush1.msra.mxu0 0.0
    %2121 = vmatprep.subr.mxu0 0.0
    %2122 = vmatpush1.msra.mxu0 0.0
    %2123 = vmatprep.subr.mxu0 0.0
    %2124 = vmatpush1.msra.mxu0 0.0
    %2125 = vmatprep.subr.mxu0 0.0
    %2126 = vmatpush1.msra.mxu0 0.0
    %2127 = vmatprep.subr.mxu0 0.0
    %2128 = vmatpush1.msra.mxu0 0.0
    %2129 = vmatprep.subr.mxu0 0.0
    %2130 = vmatpush1.msra.mxu0 0.0
    %2131 = vmatprep.subr.mxu0 0.0
    %2132 = vmatpush1.msra.mxu0 0.0
    %2133 = vmatprep.subr.mxu0 0.0
    %2134 = vmatpush1.msra.mxu0 0.0
    %2135 = vmatprep.subr.mxu0 0.0
    %2136 = vmatpush1.msra.mxu0 0.0
    %2137 = vmatprep.subr.mxu0 0.0
    %2138 = vmatpush1.msra.mxu0 0.0
    %2139 = vmatprep.mubr.f32.mxu0 0.0
    %2140 = vmatmul.mubr.f32.gmra.mrb[0].mxu0 %v1720
    %v2141 = vpop.f32.mrb[0].mxu0
    %v2142 = vpop.f32.mrb[0].mxu0
    %2143 = vmatprep.mubr.f32.mxu0 0.0
    %2144 = vmatmul.mubr.f32.gmra.mrb[0].mxu0 %v1721
    %v2145 = vpop.f32.mrb[0].mxu0
    %v2146 = vadd.f32 0.0, %v2145
    %v2147 = vpop.f32.mrb[0].mxu0
    %v2148 = vadd.f32 0.0, %v2147
    %2149 = vdwg.mxu0
    %s2150 = smul.u32 2, 8
    %s2151 = smul.addr %s2150, 8
    %s2152 = scalar_lea.vmem [#allocation2], %s2151
    %v2153 = vld [vmem:[%s2152] sm:$0xff]
    %v2154 = vld [vmem:[%s2152 + $0x8] sm:$0xff]
    %v2155 = vld [vmem:[%s2152 + $0x10] sm:$0xff]
    %v2156 = vld [vmem:[%s2152 + $0x18] sm:$0xff]
    %v2157 = vadd.f32 %v2153, %v1917
    %v2158 = vadd.f32 %v2154, %v1919
    %v2159 = vadd.f32 %v2155, %v1992
    %v2160 = vadd.f32 %v2156, %v1994
    %s2161 = smul.u32 5, 8
    %s2162 = smul.addr %s2161, 8
    %s2163 = scalar_lea.vmem [#allocation2], %s2162
    %v2164 = vld [vmem:[%s2163 + $0x20] sm:$0xff]
    %v2165 = vld [vmem:[%s2163 + $0x28] sm:$0xff]
    %v2166 = vld [vmem:[%s2163 + $0x30] sm:$0xff]
    %v2167 = vld [vmem:[%s2163 + $0x38] sm:$0xff]
    %v2168 = vadd.f32 %v2164, %v2071
    %v2169 = vadd.f32 %v2165, %v2073
    %v2170 = vadd.f32 %v2166, %v2146
    %v2171 = vadd.f32 %v2167, %v2148
    %v2172 = vld [vmem:[#allocation5] sm:$0xff]
    %v2173 = vxor.u32 %v2157, 2147483648
    %v2174 = vmul.f32 %v2173, 1.442695
    %v2175 = vpow.pop %v2174
    %v2176 = vadd.f32 %v2175, 1.0
    %v2177 = vrcp.pop %v2176
    %v2178 = vmul.f32 1.0, %v2177
    %v2179 = vxor.u32 %v2158, 2147483648
    %v2180 = vmul.f32 %v2179, 1.442695
    %v2181 = vpow.pop %v2180
    %v2182 = vadd.f32 %v2181, 1.0
    %v2183 = vrcp.pop %v2182
    %v2184 = vmul.f32 1.0, %v2183
    %v2185 = vtanh.pop %v2159
    %v2186 = vxor.u32 %v2160, 2147483648
    %v2187 = vmul.f32 %v2186, 1.442695
    %v2188 = vpow.pop %v2187
    %v2189 = vadd.f32 %v2188, 1.0
    %v2190 = vrcp.pop %v2189
    %v2191 = vmul.f32 1.0, %v2190
    %v2192 = vmul.f32 %v2184, %v2172
    %v2193 = vmul.f32 %v2178, %v2185
    %v2194 = vadd.f32 %v2192, %v2193
    %v2195 = vtanh.pop %v2194
    %v2196 = vmul.f32 %v2191, %v2195
    %v2197 = vld [vmem:[#allocation5 + $0x8] sm:$0xff]
    %v2198 = vxor.u32 %v2168, 2147483648
    %v2199 = vmul.f32 %v2198, 1.442695
    %v2200 = vpow.pop %v2199
    %v2201 = vadd.f32 %v2200, 1.0
    %v2202 = vrcp.pop %v2201
    %v2203 = vmul.f32 1.0, %v2202
    %v2204 = vxor.u32 %v2169, 2147483648
    %v2205 = vmul.f32 %v2204, 1.442695
    %v2206 = vpow.pop %v2205
    %v2207 = vadd.f32 %v2206, 1.0
    %v2208 = vrcp.pop %v2207
    %v2209 = vmul.f32 1.0, %v2208
    %v2210 = vtanh.pop %v2170
    %v2211 = vxor.u32 %v2171, 2147483648
    %v2212 = vmul.f32 %v2211, 1.442695
    %v2213 = vpow.pop %v2212
    %v2214 = vadd.f32 %v2213, 1.0
    %v2215 = vrcp.pop %v2214
    %v2216 = vmul.f32 1.0, %v2215
    %v2217 = vmul.f32 %v2209, %v2197
    %v2218 = vmul.f32 %v2203, %v2210
    %v2219 = vadd.f32 %v2217, %v2218
    %v2220 = vtanh.pop %v2219
    %v2221 = vmul.f32 %v2216, %v2220
    %2222 = vst [vmem:[#allocation4] sm:$0xff] %v2196
    %2223 = vst [vmem:[#allocation4 + $0x8] sm:$0xff] %v2221
    %2224 = vst [vmem:[#allocation5] sm:$0xff] %v2194
    %2225 = vst [vmem:[#allocation5 + $0x8] sm:$0xff] %v2219
    %s2226 = smul.u32 2, 2
    %s2227 = smul.addr %s2226, 8
    %s2228 = scalar_lea.vmem [#allocation3], %s2227
    %2229 = vst [vmem:[%s2228] sm:$0xff] %v2196
    %s2230 = smul.u32 5, 2
    %s2231 = smul.addr %s2230, 8
    %s2232 = scalar_lea.vmem [#allocation3], %s2231
    %2233 = vst [vmem:[%s2232 + $0x8] sm:$0xff] %v2221
    %v2234 = vld [vmem:[#allocation4] sm:$0xff]
    %v2235 = vld [vmem:[#allocation4 + $0x8] sm:$0xff]
    %v2236 = vld [vmem:[#allocation8] sm:$0xff]
    %v2237 = vld [vmem:[#allocation8 + $0x8] sm:$0xff]
    %v2238 = vld [vmem:[#allocation8 + $0x10] sm:$0xff]
    %v2239 = vld [vmem:[#allocation8 + $0x18] sm:$0xff]
    %v2240 = vld [vmem:[#allocation8 + $0x20] sm:$0xff]
    %v2241 = vld [vmem:[#allocation8 + $0x28] sm:$0xff]
    %v2242 = vld [vmem:[#allocation8 + $0x30] sm:$0xff]
    %v2243 = vld [vmem:[#allocation8 + $0x38] sm:$0xff]
    %v2244 = vld [vmem:[#allocation8 + $0x40] sm:$0xff]
    %v2245 = vld [vmem:[#allocation8 + $0x48] sm:$0xff]
    %v2246 = vld [vmem:[#allocation8 + $0x50] sm:$0xff]
    %v2247 = vld [vmem:[#allocation8 + $0x58] sm:$0xff]
    %v2248 = vld [vmem:[#allocation8 + $0x60] sm:$0xff]
    %v2249 = vld [vmem:[#allocation8 + $0x68] sm:$0xff]
    %v2250 = vld [vmem:[#allocation8 + $0x70] sm:$0xff]
    %v2251 = vld [vmem:[#allocation8 + $0x78] sm:$0xff]
    %v2252 = vld [vmem:[#allocation8 + $0x80] sm:$0xff]
    %v2253 = vld [vmem:[#allocation8 + $0x88] sm:$0xff]
    %v2254 = vld [vmem:[#allocation8 + $0x90] sm:$0xff]
    %v2255 = vld [vmem:[#allocation8 + $0x98] sm:$0xff]
    %v2256 = vld [vmem:[#allocation8 + $0xa0] sm:$0xff]
    %v2257 = vld [vmem:[#allocation8 + $0xa8] sm:$0xff]
    %v2258 = vld [vmem:[#allocation8 + $0xb0] sm:$0xff]
    %v2259 = vld [vmem:[#allocation8 + $0xb8] sm:$0xff]
    %v2260 = vld [vmem:[#allocation8 + $0xc0] sm:$0xff]
    %v2261 = vld [vmem:[#allocation8 + $0xc8] sm:$0xff]
    %v2262 = vld [vmem:[#allocation8 + $0xd0] sm:$0xff]
    %v2263 = vld [vmem:[#allocation8 + $0xd8] sm:$0xff]
    %v2264 = vld [vmem:[#allocation8 + $0xe0] sm:$0xff]
    %v2265 = vld [vmem:[#allocation8 + $0xe8] sm:$0xff]
    %v2266 = vld [vmem:[#allocation8 + $0xf0] sm:$0xff]
    %v2267 = vld [vmem:[#allocation8 + $0xf8] sm:$0xff]
    %v2268 = vld [vmem:[#allocation8 + $0x100] sm:$0xff]
    %v2269 = vld [vmem:[#allocation8 + $0x108] sm:$0xff]
    %v2270 = vld [vmem:[#allocation8 + $0x110] sm:$0xff]
    %v2271 = vld [vmem:[#allocation8 + $0x118] sm:$0xff]
    %v2272 = vld [vmem:[#allocation8 + $0x120] sm:$0xff]
    %v2273 = vld [vmem:[#allocation8 + $0x128] sm:$0xff]
    %v2274 = vld [vmem:[#allocation8 + $0x130] sm:$0xff]
    %v2275 = vld [vmem:[#allocation8 + $0x138] sm:$0xff]
    %v2276 = vld [vmem:[#allocation8 + $0x140] sm:$0xff]
    %v2277 = vld [vmem:[#allocation8 + $0x148] sm:$0xff]
    %v2278 = vld [vmem:[#allocation8 + $0x150] sm:$0xff]
    %v2279 = vld [vmem:[#allocation8 + $0x158] sm:$0xff]
    %v2280 = vld [vmem:[#allocation8 + $0x160] sm:$0xff]
    %v2281 = vld [vmem:[#allocation8 + $0x168] sm:$0xff]
    %v2282 = vld [vmem:[#allocation8 + $0x170] sm:$0xff]
    %v2283 = vld [vmem:[#allocation8 + $0x178] sm:$0xff]
    %v2284 = vld [vmem:[#allocation8 + $0x180] sm:$0xff]
    %v2285 = vld [vmem:[#allocation8 + $0x188] sm:$0xff]
    %v2286 = vld [vmem:[#allocation8 + $0x190] sm:$0xff]
    %v2287 = vld [vmem:[#allocation8 + $0x198] sm:$0xff]
    %v2288 = vld [vmem:[#allocation8 + $0x1a0] sm:$0xff]
    %v2289 = vld [vmem:[#allocation8 + $0x1a8] sm:$0xff]
    %v2290 = vld [vmem:[#allocation8 + $0x1b0] sm:$0xff]
    %v2291 = vld [vmem:[#allocation8 + $0x1b8] sm:$0xff]
    %v2292 = vld [vmem:[#allocation8 + $0x1c0] sm:$0xff]
    %v2293 = vld [vmem:[#allocation8 + $0x1c8] sm:$0xff]
    %v2294 = vld [vmem:[#allocation8 + $0x1d0] sm:$0xff]
    %v2295 = vld [vmem:[#allocation8 + $0x1d8] sm:$0xff]
    %v2296 = vld [vmem:[#allocation8 + $0x1e0] sm:$0xff]
    %v2297 = vld [vmem:[#allocation8 + $0x1e8] sm:$0xff]
    %v2298 = vld [vmem:[#allocation8 + $0x1f0] sm:$0xff]
    %v2299 = vld [vmem:[#allocation8 + $0x1f8] sm:$0xff]
    %v2300 = vld [vmem:[#allocation8 + $0x200] sm:$0xff]
    %v2301 = vld [vmem:[#allocation8 + $0x208] sm:$0xff]
    %v2302 = vld [vmem:[#allocation8 + $0x210] sm:$0xff]
    %v2303 = vld [vmem:[#allocation8 + $0x218] sm:$0xff]
    %v2304 = vld [vmem:[#allocation8 + $0x220] sm:$0xff]
    %v2305 = vld [vmem:[#allocation8 + $0x228] sm:$0xff]
    %v2306 = vld [vmem:[#allocation8 + $0x230] sm:$0xff]
    %v2307 = vld [vmem:[#allocation8 + $0x238] sm:$0xff]
    %v2308 = vld [vmem:[#allocation8 + $0x240] sm:$0xff]
    %v2309 = vld [vmem:[#allocation8 + $0x248] sm:$0xff]
    %v2310 = vld [vmem:[#allocation8 + $0x250] sm:$0xff]
    %v2311 = vld [vmem:[#allocation8 + $0x258] sm:$0xff]
    %v2312 = vld [vmem:[#allocation8 + $0x260] sm:$0xff]
    %v2313 = vld [vmem:[#allocation8 + $0x268] sm:$0xff]
    %v2314 = vld [vmem:[#allocation8 + $0x270] sm:$0xff]
    %v2315 = vld [vmem:[#allocation8 + $0x278] sm:$0xff]
    %v2316 = vld [vmem:[#allocation8 + $0x280] sm:$0xff]
    %v2317 = vld [vmem:[#allocation8 + $0x288] sm:$0xff]
    %v2318 = vld [vmem:[#allocation8 + $0x290] sm:$0xff]
    %v2319 = vld [vmem:[#allocation8 + $0x298] sm:$0xff]
    %v2320 = vld [vmem:[#allocation8 + $0x2a0] sm:$0xff]
    %v2321 = vld [vmem:[#allocation8 + $0x2a8] sm:$0xff]
    %v2322 = vld [vmem:[#allocation8 + $0x2b0] sm:$0xff]
    %v2323 = vld [vmem:[#allocation8 + $0x2b8] sm:$0xff]
    %v2324 = vld [vmem:[#allocation8 + $0x2c0] sm:$0xff]
    %v2325 = vld [vmem:[#allocation8 + $0x2c8] sm:$0xff]
    %v2326 = vld [vmem:[#allocation8 + $0x2d0] sm:$0xff]
    %v2327 = vld [vmem:[#allocation8 + $0x2d8] sm:$0xff]
    %v2328 = vld [vmem:[#allocation8 + $0x2e0] sm:$0xff]
    %v2329 = vld [vmem:[#allocation8 + $0x2e8] sm:$0xff]
    %v2330 = vld [vmem:[#allocation8 + $0x2f0] sm:$0xff]
    %v2331 = vld [vmem:[#allocation8 + $0x2f8] sm:$0xff]
    %v2332 = vld [vmem:[#allocation8 + $0x300] sm:$0xff]
    %v2333 = vld [vmem:[#allocation8 + $0x308] sm:$0xff]
    %v2334 = vld [vmem:[#allocation8 + $0x310] sm:$0xff]
    %v2335 = vld [vmem:[#allocation8 + $0x318] sm:$0xff]
    %v2336 = vld [vmem:[#allocation8 + $0x320] sm:$0xff]
    %v2337 = vld [vmem:[#allocation8 + $0x328] sm:$0xff]
    %v2338 = vld [vmem:[#allocation8 + $0x330] sm:$0xff]
    %v2339 = vld [vmem:[#allocation8 + $0x338] sm:$0xff]
    %v2340 = vld [vmem:[#allocation8 + $0x340] sm:$0xff]
    %v2341 = vld [vmem:[#allocation8 + $0x348] sm:$0xff]
    %v2342 = vld [vmem:[#allocation8 + $0x350] sm:$0xff]
    %v2343 = vld [vmem:[#allocation8 + $0x358] sm:$0xff]
    %v2344 = vld [vmem:[#allocation8 + $0x360] sm:$0xff]
    %v2345 = vld [vmem:[#allocation8 + $0x368] sm:$0xff]
    %v2346 = vld [vmem:[#allocation8 + $0x370] sm:$0xff]
    %v2347 = vld [vmem:[#allocation8 + $0x378] sm:$0xff]
    %v2348 = vld [vmem:[#allocation8 + $0x380] sm:$0xff]
    %v2349 = vld [vmem:[#allocation8 + $0x388] sm:$0xff]
    %v2350 = vld [vmem:[#allocation8 + $0x390] sm:$0xff]
    %v2351 = vld [vmem:[#allocation8 + $0x398] sm:$0xff]
    %v2352 = vld [vmem:[#allocation8 + $0x3a0] sm:$0xff]
    %v2353 = vld [vmem:[#allocation8 + $0x3a8] sm:$0xff]
    %v2354 = vld [vmem:[#allocation8 + $0x3b0] sm:$0xff]
    %v2355 = vld [vmem:[#allocation8 + $0x3b8] sm:$0xff]
    %v2356 = vld [vmem:[#allocation8 + $0x3c0] sm:$0xff]
    %v2357 = vld [vmem:[#allocation8 + $0x3c8] sm:$0xff]
    %v2358 = vld [vmem:[#allocation8 + $0x3d0] sm:$0xff]
    %v2359 = vld [vmem:[#allocation8 + $0x3d8] sm:$0xff]
    %v2360 = vld [vmem:[#allocation8 + $0x3e0] sm:$0xff]
    %v2361 = vld [vmem:[#allocation8 + $0x3e8] sm:$0xff]
    %v2362 = vld [vmem:[#allocation8 + $0x3f0] sm:$0xff]
    %v2363 = vld [vmem:[#allocation8 + $0x3f8] sm:$0xff]
    %2364 = vmatprep.subr.mxu0 %v2237
    %2365 = vmatpush1.msra.mxu0 %v2236
    %2366 = vmatprep.subr.mxu0 %v2245
    %2367 = vmatpush1.msra.mxu0 %v2244
    %2368 = vmatprep.subr.mxu0 %v2253
    %2369 = vmatpush1.msra.mxu0 %v2252
    %2370 = vmatprep.subr.mxu0 %v2261
    %2371 = vmatpush1.msra.mxu0 %v2260
    %2372 = vmatprep.subr.mxu0 %v2269
    %2373 = vmatpush1.msra.mxu0 %v2268
    %2374 = vmatprep.subr.mxu0 %v2277
    %2375 = vmatpush1.msra.mxu0 %v2276
    %2376 = vmatprep.subr.mxu0 %v2285
    %2377 = vmatpush1.msra.mxu0 %v2284
    %2378 = vmatprep.subr.mxu0 %v2293
    %2379 = vmatpush1.msra.mxu0 %v2292
    %2380 = vmatprep.subr.mxu0 %v2301
    %2381 = vmatpush1.msra.mxu0 %v2300
    %2382 = vmatprep.subr.mxu0 %v2309
    %2383 = vmatpush1.msra.mxu0 %v2308
    %2384 = vmatprep.subr.mxu0 %v2317
    %2385 = vmatpush1.msra.mxu0 %v2316
    %2386 = vmatprep.subr.mxu0 %v2325
    %2387 = vmatpush1.msra.mxu0 %v2324
    %2388 = vmatprep.subr.mxu0 %v2333
    %2389 = vmatpush1.msra.mxu0 %v2332
    %2390 = vmatprep.subr.mxu0 %v2341
    %2391 = vmatpush1.msra.mxu0 %v2340
    %2392 = vmatprep.subr.mxu0 %v2349
    %2393 = vmatpush1.msra.mxu0 %v2348
    %2394 = vmatprep.subr.mxu0 %v2357
    %2395 = vmatpush1.msra.mxu0 %v2356
    %2396 = vmatprep.subr.mxu0 0.0
    %2397 = vmatpush1.msra.mxu0 0.0
    %2398 = vmatprep.subr.mxu0 0.0
    %2399 = vmatpush1.msra.mxu0 0.0
    %2400 = vmatprep.subr.mxu0 0.0
    %2401 = vmatpush1.msra.mxu0 0.0
    %2402 = vmatprep.subr.mxu0 0.0
    %2403 = vmatpush1.msra.mxu0 0.0
    %2404 = vmatprep.subr.mxu0 0.0
    %2405 = vmatpush1.msra.mxu0 0.0
    %2406 = vmatprep.subr.mxu0 0.0
    %2407 = vmatpush1.msra.mxu0 0.0
    %2408 = vmatprep.subr.mxu0 0.0
    %2409 = vmatpush1.msra.mxu0 0.0
    %2410 = vmatprep.subr.mxu0 0.0
    %2411 = vmatpush1.msra.mxu0 0.0
    %2412 = vmatprep.subr.mxu0 0.0
    %2413 = vmatpush1.msra.mxu0 0.0
    %2414 = vmatprep.subr.mxu0 0.0
    %2415 = vmatpush1.msra.mxu0 0.0
    %2416 = vmatprep.subr.mxu0 0.0
    %2417 = vmatpush1.msra.mxu0 0.0
    %2418 = vmatprep.subr.mxu0 0.0
    %2419 = vmatpush1.msra.mxu0 0.0
    %2420 = vmatprep.subr.mxu0 0.0
    %2421 = vmatpush1.msra.mxu0 0.0
    %2422 = vmatprep.subr.mxu0 0.0
    %2423 = vmatpush1.msra.mxu0 0.0
    %2424 = vmatprep.subr.mxu0 0.0
    %2425 = vmatpush1.msra.mxu0 0.0
    %2426 = vmatprep.subr.mxu0 0.0
    %2427 = vmatpush1.msra.mxu0 0.0
    %2428 = vmatprep.mubr.f32.mxu0 0.0
    %2429 = vmatmul.mubr.f32.gmra.mrb[0].mxu0 %v2234
    %v2430 = vpop.f32.mrb[0].mxu0
    %v2431 = vadd.f32 0.0, %v2430
    %v2432 = vpop.f32.mrb[0].mxu0
    %v2433 = vadd.f32 0.0, %v2432
    %2434 = vmatprep.mubr.f32.mxu0 0.0
    %2435 = vmatmul.mubr.f32.gmra.mrb[0].mxu0 %v2235
    %v2436 = vpop.f32.mrb[0].mxu0
    %v2437 = vpop.f32.mrb[0].mxu0
    %2438 = vdwg.mxu0
    %2439 = vmatprep.subr.mxu0 %v2239
    %2440 = vmatpush1.msra.mxu0 %v2238
    %2441 = vmatprep.subr.mxu0 %v2247
    %2442 = vmatpush1.msra.mxu0 %v2246
    %2443 = vmatprep.subr.mxu0 %v2255
    %2444 = vmatpush1.msra.mxu0 %v2254
    %2445 = vmatprep.subr.mxu0 %v2263
    %2446 = vmatpush1.msra.mxu0 %v2262
    %2447 = vmatprep.subr.mxu0 %v2271
    %2448 = vmatpush1.msra.mxu0 %v2270
    %2449 = vmatprep.subr.mxu0 %v2279
    %2450 = vmatpush1.msra.mxu0 %v2278
    %2451 = vmatprep.subr.mxu0 %v2287
    %2452 = vmatpush1.msra.mxu0 %v2286
    %2453 = vmatprep.subr.mxu0 %v2295
    %2454 = vmatpush1.msra.mxu0 %v2294
    %2455 = vmatprep.subr.mxu0 %v2303
    %2456 = vmatpush1.msra.mxu0 %v2302
    %2457 = vmatprep.subr.mxu0 %v2311
    %2458 = vmatpush1.msra.mxu0 %v2310
    %2459 = vmatprep.subr.mxu0 %v2319
    %2460 = vmatpush1.msra.mxu0 %v2318
    %2461 = vmatprep.subr.mxu0 %v2327
    %2462 = vmatpush1.msra.mxu0 %v2326
    %2463 = vmatprep.subr.mxu0 %v2335
    %2464 = vmatpush1.msra.mxu0 %v2334
    %2465 = vmatprep.subr.mxu0 %v2343
    %2466 = vmatpush1.msra.mxu0 %v2342
    %2467 = vmatprep.subr.mxu0 %v2351
    %2468 = vmatpush1.msra.mxu0 %v2350
    %2469 = vmatprep.subr.mxu0 %v2359
    %2470 = vmatpush1.msra.mxu0 %v2358
    %2471 = vmatprep.subr.mxu0 0.0
    %2472 = vmatpush1.msra.mxu0 0.0
    %2473 = vmatprep.subr.mxu0 0.0
    %2474 = vmatpush1.msra.mxu0 0.0
    %2475 = vmatprep.subr.mxu0 0.0
    %2476 = vmatpush1.msra.mxu0 0.0
    %2477 = vmatprep.subr.mxu0 0.0
    %2478 = vmatpush1.msra.mxu0 0.0
    %2479 = vmatprep.subr.mxu0 0.0
    %2480 = vmatpush1.msra.mxu0 0.0
    %2481 = vmatprep.subr.mxu0 0.0
    %2482 = vmatpush1.msra.mxu0 0.0
    %2483 = vmatprep.subr.mxu0 0.0
    %2484 = vmatpush1.msra.mxu0 0.0
    %2485 = vmatprep.subr.mxu0 0.0
    %2486 = vmatpush1.msra.mxu0 0.0
    %2487 = vmatprep.subr.mxu0 0.0
    %2488 = vmatpush1.msra.mxu0 0.0
    %2489 = vmatprep.subr.mxu0 0.0
    %2490 = vmatpush1.msra.mxu0 0.0
    %2491 = vmatprep.subr.mxu0 0.0
    %2492 = vmatpush1.msra.mxu0 0.0
    %2493 = vmatprep.subr.mxu0 0.0
    %2494 = vmatpush1.msra.mxu0 0.0
    %2495 = vmatprep.subr.mxu0 0.0
    %2496 = vmatpush1.msra.mxu0 0.0
    %2497 = vmatprep.subr.mxu0 0.0
    %2498 = vmatpush1.msra.mxu0 0.0
    %2499 = vmatprep.subr.mxu0 0.0
    %2500 = vmatpush1.msra.mxu0 0.0
    %2501 = vmatprep.subr.mxu0 0.0
    %2502 = vmatpush1.msra.mxu0 0.0
    %2503 = vmatprep.mubr.f32.mxu0 0.0
    %2504 = vmatmul.mubr.f32.gmra.mrb[0].mxu0 %v2234
    %v2505 = vpop.f32.mrb[0].mxu0
    %v2506 = vadd.f32 0.0, %v2505
    %v2507 = vpop.f32.mrb[0].mxu0
    %v2508 = vadd.f32 0.0, %v2507
    %2509 = vmatprep.mubr.f32.mxu0 0.0
    %2510 = vmatmul.mubr.f32.gmra.mrb[0].mxu0 %v2235
    %v2511 = vpop.f32.mrb[0].mxu0
    %v2512 = vpop.f32.mrb[0].mxu0
    %2513 = vdwg.mxu0
    %2514 = vmatprep.subr.mxu0 %v2241
    %2515 = vmatpush1.msra.mxu0 %v2240
    %2516 = vmatprep.subr.mxu0 %v2249
    %2517 = vmatpush1.msra.mxu0 %v2248
    %2518 = vmatprep.subr.mxu0 %v2257
    %2519 = vmatpush1.msra.mxu0 %v2256
    %2520 = vmatprep.subr.mxu0 %v2265
    %2521 = vmatpush1.msra.mxu0 %v2264
    %2522 = vmatprep.subr.mxu0 %v2273
    %2523 = vmatpush1.msra.mxu0 %v2272
    %2524 = vmatprep.subr.mxu0 %v2281
    %2525 = vmatpush1.msra.mxu0 %v2280
    %2526 = vmatprep.subr.mxu0 %v2289
    %2527 = vmatpush1.msra.mxu0 %v2288
    %2528 = vmatprep.subr.mxu0 %v2297
    %2529 = vmatpush1.msra.mxu0 %v2296
    %2530 = vmatprep.subr.mxu0 %v2305
    %2531 = vmatpush1.msra.mxu0 %v2304
    %2532 = vmatprep.subr.mxu0 %v2313
    %2533 = vmatpush1.msra.mxu0 %v2312
    %2534 = vmatprep.subr.mxu0 %v2321
    %2535 = vmatpush1.msra.mxu0 %v2320
    %2536 = vmatprep.subr.mxu0 %v2329
    %2537 = vmatpush1.msra.mxu0 %v2328
    %2538 = vmatprep.subr.mxu0 %v2337
    %2539 = vmatpush1.msra.mxu0 %v2336
    %2540 = vmatprep.subr.mxu0 %v2345
    %2541 = vmatpush1.msra.mxu0 %v2344
    %2542 = vmatprep.subr.mxu0 %v2353
    %2543 = vmatpush1.msra.mxu0 %v2352
    %2544 = vmatprep.subr.mxu0 %v2361
    %2545 = vmatpush1.msra.mxu0 %v2360
    %2546 = vmatprep.subr.mxu0 0.0
    %2547 = vmatpush1.msra.mxu0 0.0
    %2548 = vmatprep.subr.mxu0 0.0
    %2549 = vmatpush1.msra.mxu0 0.0
    %2550 = vmatprep.subr.mxu0 0.0
    %2551 = vmatpush1.msra.mxu0 0.0
    %2552 = vmatprep.subr.mxu0 0.0
    %2553 = vmatpush1.msra.mxu0 0.0
    %2554 = vmatprep.subr.mxu0 0.0
    %2555 = vmatpush1.msra.mxu0 0.0
    %2556 = vmatprep.subr.mxu0 0.0
    %2557 = vmatpush1.msra.mxu0 0.0
    %2558 = vmatprep.subr.mxu0 0.0
    %2559 = vmatpush1.msra.mxu0 0.0
    %2560 = vmatprep.subr.mxu0 0.0
    %2561 = vmatpush1.msra.mxu0 0.0
    %2562 = vmatprep.subr.mxu0 0.0
    %2563 = vmatpush1.msra.mxu0 0.0
    %2564 = vmatprep.subr.mxu0 0.0
    %2565 = vmatpush1.msra.mxu0 0.0
    %2566 = vmatprep.subr.mxu0 0.0
    %2567 = vmatpush1.msra.mxu0 0.0
    %2568 = vmatprep.subr.mxu0 0.0
    %2569 = vmatpush1.msra.mxu0 0.0
    %2570 = vmatprep.subr.mxu0 0.0
    %2571 = vmatpush1.msra.mxu0 0.0
    %2572 = vmatprep.subr.mxu0 0.0
    %2573 = vmatpush1.msra.mxu0 0.0
    %2574 = vmatprep.subr.mxu0 0.0
    %2575 = vmatpush1.msra.mxu0 0.0
    %2576 = vmatprep.subr.mxu0 0.0
    %2577 = vmatpush1.msra.mxu0 0.0
    %2578 = vmatprep.mubr.f32.mxu0 0.0
    %2579 = vmatmul.mubr.f32.gmra.mrb[0].mxu0 %v2234
    %v2580 = vpop.f32.mrb[0].mxu0
    %v2581 = vpop.f32.mrb[0].mxu0
    %2582 = vmatprep.mubr.f32.mxu0 0.0
    %2583 = vmatmul.mubr.f32.gmra.mrb[0].mxu0 %v2235
    %v2584 = vpop.f32.mrb[0].mxu0
    %v2585 = vadd.f32 0.0, %v2584
    %v2586 = vpop.f32.mrb[0].mxu0
    %v2587 = vadd.f32 0.0, %v2586
    %2588 = vdwg.mxu0
    %2589 = vmatprep.subr.mxu0 %v2243
    %2590 = vmatpush1.msra.mxu0 %v2242
    %2591 = vmatprep.subr.mxu0 %v2251
    %2592 = vmatpush1.msra.mxu0 %v2250
    %2593 = vmatprep.subr.mxu0 %v2259
    %2594 = vmatpush1.msra.mxu0 %v2258
    %2595 = vmatprep.subr.mxu0 %v2267
    %2596 = vmatpush1.msra.mxu0 %v2266
    %2597 = vmatprep.subr.mxu0 %v2275
    %2598 = vmatpush1.msra.mxu0 %v2274
    %2599 = vmatprep.subr.mxu0 %v2283
    %2600 = vmatpush1.msra.mxu0 %v2282
    %2601 = vmatprep.subr.mxu0 %v2291
    %2602 = vmatpush1.msra.mxu0 %v2290
    %2603 = vmatprep.subr.mxu0 %v2299
    %2604 = vmatpush1.msra.mxu0 %v2298
    %2605 = vmatprep.subr.mxu0 %v2307
    %2606 = vmatpush1.msra.mxu0 %v2306
    %2607 = vmatprep.subr.mxu0 %v2315
    %2608 = vmatpush1.msra.mxu0 %v2314
    %2609 = vmatprep.subr.mxu0 %v2323
    %2610 = vmatpush1.msra.mxu0 %v2322
    %2611 = vmatprep.subr.mxu0 %v2331
    %2612 = vmatpush1.msra.mxu0 %v2330
    %2613 = vmatprep.subr.mxu0 %v2339
    %2614 = vmatpush1.msra.mxu0 %v2338
    %2615 = vmatprep.subr.mxu0 %v2347
    %2616 = vmatpush1.msra.mxu0 %v2346
    %2617 = vmatprep.subr.mxu0 %v2355
    %2618 = vmatpush1.msra.mxu0 %v2354
    %2619 = vmatprep.subr.mxu0 %v2363
    %2620 = vmatpush1.msra.mxu0 %v2362
    %2621 = vmatprep.subr.mxu0 0.0
    %2622 = vmatpush1.msra.mxu0 0.0
    %2623 = vmatprep.subr.mxu0 0.0
    %2624 = vmatpush1.msra.mxu0 0.0
    %2625 = vmatprep.subr.mxu0 0.0
    %2626 = vmatpush1.msra.mxu0 0.0
    %2627 = vmatprep.subr.mxu0 0.0
    %2628 = vmatpush1.msra.mxu0 0.0
    %2629 = vmatprep.subr.mxu0 0.0
    %2630 = vmatpush1.msra.mxu0 0.0
    %2631 = vmatprep.subr.mxu0 0.0
    %2632 = vmatpush1.msra.mxu0 0.0
    %2633 = vmatprep.subr.mxu0 0.0
    %2634 = vmatpush1.msra.mxu0 0.0
    %2635 = vmatprep.subr.mxu0 0.0
    %2636 = vmatpush1.msra.mxu0 0.0
    %2637 = vmatprep.subr.mxu0 0.0
    %2638 = vmatpush1.msra.mxu0 0.0
    %2639 = vmatprep.subr.mxu0 0.0
    %2640 = vmatpush1.msra.mxu0 0.0
    %2641 = vmatprep.subr.mxu0 0.0
    %2642 = vmatpush1.msra.mxu0 0.0
    %2643 = vmatprep.subr.mxu0 0.0
    %2644 = vmatpush1.msra.mxu0 0.0
    %2645 = vmatprep.subr.mxu0 0.0
    %2646 = vmatpush1.msra.mxu0 0.0
    %2647 = vmatprep.subr.mxu0 0.0
    %2648 = vmatpush1.msra.mxu0 0.0
    %2649 = vmatprep.subr.mxu0 0.0
    %2650 = vmatpush1.msra.mxu0 0.0
    %2651 = vmatprep.subr.mxu0 0.0
    %2652 = vmatpush1.msra.mxu0 0.0
    %2653 = vmatprep.mubr.f32.mxu0 0.0
    %2654 = vmatmul.mubr.f32.gmra.mrb[0].mxu0 %v2234
    %v2655 = vpop.f32.mrb[0].mxu0
    %v2656 = vpop.f32.mrb[0].mxu0
    %2657 = vmatprep.mubr.f32.mxu0 0.0
    %2658 = vmatmul.mubr.f32.gmra.mrb[0].mxu0 %v2235
    %v2659 = vpop.f32.mrb[0].mxu0
    %v2660 = vadd.f32 0.0, %v2659
    %v2661 = vpop.f32.mrb[0].mxu0
    %v2662 = vadd.f32 0.0, %v2661
    %2663 = vdwg.mxu0
    %s2664 = smul.u32 3, 8
    %s2665 = smul.addr %s2664, 8
    %s2666 = scalar_lea.vmem [#allocation2], %s2665
    %v2667 = vld [vmem:[%s2666] sm:$0xff]
    %v2668 = vld [vmem:[%s2666 + $0x8] sm:$0xff]
    %v2669 = vld [vmem:[%s2666 + $0x10] sm:$0xff]
    %v2670 = vld [vmem:[%s2666 + $0x18] sm:$0xff]
    %v2671 = vadd.f32 %v2667, %v2431
    %v2672 = vadd.f32 %v2668, %v2433
    %v2673 = vadd.f32 %v2669, %v2506
    %v2674 = vadd.f32 %v2670, %v2508
    %s2675 = smul.u32 4, 8
    %s2676 = smul.addr %s2675, 8
    %s2677 = scalar_lea.vmem [#allocation2], %s2676
    %v2678 = vld [vmem:[%s2677 + $0x20] sm:$0xff]
    %v2679 = vld [vmem:[%s2677 + $0x28] sm:$0xff]
    %v2680 = vld [vmem:[%s2677 + $0x30] sm:$0xff]
    %v2681 = vld [vmem:[%s2677 + $0x38] sm:$0xff]
    %v2682 = vadd.f32 %v2678, %v2585
    %v2683 = vadd.f32 %v2679, %v2587
    %v2684 = vadd.f32 %v2680, %v2660
    %v2685 = vadd.f32 %v2681, %v2662
    %v2686 = vld [vmem:[#allocation5] sm:$0xff]
    %v2687 = vxor.u32 %v2671, 2147483648
    %v2688 = vmul.f32 %v2687, 1.442695
    %v2689 = vpow.pop %v2688
    %v2690 = vadd.f32 %v2689, 1.0
    %v2691 = vrcp.pop %v2690
    %v2692 = vmul.f32 1.0, %v2691
    %v2693 = vxor.u32 %v2672, 2147483648
    %v2694 = vmul.f32 %v2693, 1.442695
    %v2695 = vpow.pop %v2694
    %v2696 = vadd.f32 %v2695, 1.0
    %v2697 = vrcp.pop %v2696
    %v2698 = vmul.f32 1.0, %v2697
    %v2699 = vtanh.pop %v2673
    %v2700 = vxor.u32 %v2674, 2147483648
    %v2701 = vmul.f32 %v2700, 1.442695
    %v2702 = vpow.pop %v2701
    %v2703 = vadd.f32 %v2702, 1.0
    %v2704 = vrcp.pop %v2703
    %v2705 = vmul.f32 1.0, %v2704
    %v2706 = vmul.f32 %v2698, %v2686
    %v2707 = vmul.f32 %v2692, %v2699
    %v2708 = vadd.f32 %v2706, %v2707
    %v2709 = vtanh.pop %v2708
    %v2710 = vmul.f32 %v2705, %v2709
    %v2711 = vld [vmem:[#allocation5 + $0x8] sm:$0xff]
    %v2712 = vxor.u32 %v2682, 2147483648
    %v2713 = vmul.f32 %v2712, 1.442695
    %v2714 = vpow.pop %v2713
    %v2715 = vadd.f32 %v2714, 1.0
    %v2716 = vrcp.pop %v2715
    %v2717 = vmul.f32 1.0, %v2716
    %v2718 = vxor.u32 %v2683, 2147483648
    %v2719 = vmul.f32 %v2718, 1.442695
    %v2720 = vpow.pop %v2719
    %v2721 = vadd.f32 %v2720, 1.0
    %v2722 = vrcp.pop %v2721
    %v2723 = vmul.f32 1.0, %v2722
    %v2724 = vtanh.pop %v2684
    %v2725 = vxor.u32 %v2685, 2147483648
    %v2726 = vmul.f32 %v2725, 1.442695
    %v2727 = vpow.pop %v2726
    %v2728 = vadd.f32 %v2727, 1.0
    %v2729 = vrcp.pop %v2728
    %v2730 = vmul.f32 1.0, %v2729
    %v2731 = vmul.f32 %v2723, %v2711
    %v2732 = vmul.f32 %v2717, %v2724
    %v2733 = vadd.f32 %v2731, %v2732
    %v2734 = vtanh.pop %v2733
    %v2735 = vmul.f32 %v2730, %v2734
    %2736 = vst [vmem:[#allocation4] sm:$0xff] %v2710
    %2737 = vst [vmem:[#allocation4 + $0x8] sm:$0xff] %v2735
    %2738 = vst [vmem:[#allocation5] sm:$0xff] %v2708
    %2739 = vst [vmem:[#allocation5 + $0x8] sm:$0xff] %v2733
    %s2740 = smul.u32 3, 2
    %s2741 = smul.addr %s2740, 8
    %s2742 = scalar_lea.vmem [#allocation3], %s2741
    %2743 = vst [vmem:[%s2742] sm:$0xff] %v2710
    %s2744 = smul.u32 4, 2
    %s2745 = smul.addr %s2744, 8
    %s2746 = scalar_lea.vmem [#allocation3], %s2745
    %2747 = vst [vmem:[%s2746 + $0x8] sm:$0xff] %v2735
    %v2748 = vld [vmem:[#allocation4] sm:$0xff]
    %v2749 = vld [vmem:[#allocation4 + $0x8] sm:$0xff]
    %v2750 = vld [vmem:[#allocation8] sm:$0xff]
    %v2751 = vld [vmem:[#allocation8 + $0x8] sm:$0xff]
    %v2752 = vld [vmem:[#allocation8 + $0x10] sm:$0xff]
    %v2753 = vld [vmem:[#allocation8 + $0x18] sm:$0xff]
    %v2754 = vld [vmem:[#allocation8 + $0x20] sm:$0xff]
    %v2755 = vld [vmem:[#allocation8 + $0x28] sm:$0xff]
    %v2756 = vld [vmem:[#allocation8 + $0x30] sm:$0xff]
    %v2757 = vld [vmem:[#allocation8 + $0x38] sm:$0xff]
    %v2758 = vld [vmem:[#allocation8 + $0x40] sm:$0xff]
    %v2759 = vld [vmem:[#allocation8 + $0x48] sm:$0xff]
    %v2760 = vld [vmem:[#allocation8 + $0x50] sm:$0xff]
    %v2761 = vld [vmem:[#allocation8 + $0x58] sm:$0xff]
    %v2762 = vld [vmem:[#allocation8 + $0x60] sm:$0xff]
    %v2763 = vld [vmem:[#allocation8 + $0x68] sm:$0xff]
    %v2764 = vld [vmem:[#allocation8 + $0x70] sm:$0xff]
    %v2765 = vld [vmem:[#allocation8 + $0x78] sm:$0xff]
    %v2766 = vld [vmem:[#allocation8 + $0x80] sm:$0xff]
    %v2767 = vld [vmem:[#allocation8 + $0x88] sm:$0xff]
    %v2768 = vld [vmem:[#allocation8 + $0x90] sm:$0xff]
    %v2769 = vld [vmem:[#allocation8 + $0x98] sm:$0xff]
    %v2770 = vld [vmem:[#allocation8 + $0xa0] sm:$0xff]
    %v2771 = vld [vmem:[#allocation8 + $0xa8] sm:$0xff]
    %v2772 = vld [vmem:[#allocation8 + $0xb0] sm:$0xff]
    %v2773 = vld [vmem:[#allocation8 + $0xb8] sm:$0xff]
    %v2774 = vld [vmem:[#allocation8 + $0xc0] sm:$0xff]
    %v2775 = vld [vmem:[#allocation8 + $0xc8] sm:$0xff]
    %v2776 = vld [vmem:[#allocation8 + $0xd0] sm:$0xff]
    %v2777 = vld [vmem:[#allocation8 + $0xd8] sm:$0xff]
    %v2778 = vld [vmem:[#allocation8 + $0xe0] sm:$0xff]
    %v2779 = vld [vmem:[#allocation8 + $0xe8] sm:$0xff]
    %v2780 = vld [vmem:[#allocation8 + $0xf0] sm:$0xff]
    %v2781 = vld [vmem:[#allocation8 + $0xf8] sm:$0xff]
    %v2782 = vld [vmem:[#allocation8 + $0x100] sm:$0xff]
    %v2783 = vld [vmem:[#allocation8 + $0x108] sm:$0xff]
    %v2784 = vld [vmem:[#allocation8 + $0x110] sm:$0xff]
    %v2785 = vld [vmem:[#allocation8 + $0x118] sm:$0xff]
    %v2786 = vld [vmem:[#allocation8 + $0x120] sm:$0xff]
    %v2787 = vld [vmem:[#allocation8 + $0x128] sm:$0xff]
    %v2788 = vld [vmem:[#allocation8 + $0x130] sm:$0xff]
    %v2789 = vld [vmem:[#allocation8 + $0x138] sm:$0xff]
    %v2790 = vld [vmem:[#allocation8 + $0x140] sm:$0xff]
    %v2791 = vld [vmem:[#allocation8 + $0x148] sm:$0xff]
    %v2792 = vld [vmem:[#allocation8 + $0x150] sm:$0xff]
    %v2793 = vld [vmem:[#allocation8 + $0x158] sm:$0xff]
    %v2794 = vld [vmem:[#allocation8 + $0x160] sm:$0xff]
    %v2795 = vld [vmem:[#allocation8 + $0x168] sm:$0xff]
    %v2796 = vld [vmem:[#allocation8 + $0x170] sm:$0xff]
    %v2797 = vld [vmem:[#allocation8 + $0x178] sm:$0xff]
    %v2798 = vld [vmem:[#allocation8 + $0x180] sm:$0xff]
    %v2799 = vld [vmem:[#allocation8 + $0x188] sm:$0xff]
    %v2800 = vld [vmem:[#allocation8 + $0x190] sm:$0xff]
    %v2801 = vld [vmem:[#allocation8 + $0x198] sm:$0xff]
    %v2802 = vld [vmem:[#allocation8 + $0x1a0] sm:$0xff]
    %v2803 = vld [vmem:[#allocation8 + $0x1a8] sm:$0xff]
    %v2804 = vld [vmem:[#allocation8 + $0x1b0] sm:$0xff]
    %v2805 = vld [vmem:[#allocation8 + $0x1b8] sm:$0xff]
    %v2806 = vld [vmem:[#allocation8 + $0x1c0] sm:$0xff]
    %v2807 = vld [vmem:[#allocation8 + $0x1c8] sm:$0xff]
    %v2808 = vld [vmem:[#allocation8 + $0x1d0] sm:$0xff]
    %v2809 = vld [vmem:[#allocation8 + $0x1d8] sm:$0xff]
    %v2810 = vld [vmem:[#allocation8 + $0x1e0] sm:$0xff]
    %v2811 = vld [vmem:[#allocation8 + $0x1e8] sm:$0xff]
    %v2812 = vld [vmem:[#allocation8 + $0x1f0] sm:$0xff]
    %v2813 = vld [vmem:[#allocation8 + $0x1f8] sm:$0xff]
    %v2814 = vld [vmem:[#allocation8 + $0x200] sm:$0xff]
    %v2815 = vld [vmem:[#allocation8 + $0x208] sm:$0xff]
    %v2816 = vld [vmem:[#allocation8 + $0x210] sm:$0xff]
    %v2817 = vld [vmem:[#allocation8 + $0x218] sm:$0xff]
    %v2818 = vld [vmem:[#allocation8 + $0x220] sm:$0xff]
    %v2819 = vld [vmem:[#allocation8 + $0x228] sm:$0xff]
    %v2820 = vld [vmem:[#allocation8 + $0x230] sm:$0xff]
    %v2821 = vld [vmem:[#allocation8 + $0x238] sm:$0xff]
    %v2822 = vld [vmem:[#allocation8 + $0x240] sm:$0xff]
    %v2823 = vld [vmem:[#allocation8 + $0x248] sm:$0xff]
    %v2824 = vld [vmem:[#allocation8 + $0x250] sm:$0xff]
    %v2825 = vld [vmem:[#allocation8 + $0x258] sm:$0xff]
    %v2826 = vld [vmem:[#allocation8 + $0x260] sm:$0xff]
    %v2827 = vld [vmem:[#allocation8 + $0x268] sm:$0xff]
    %v2828 = vld [vmem:[#allocation8 + $0x270] sm:$0xff]
    %v2829 = vld [vmem:[#allocation8 + $0x278] sm:$0xff]
    %v2830 = vld [vmem:[#allocation8 + $0x280] sm:$0xff]
    %v2831 = vld [vmem:[#allocation8 + $0x288] sm:$0xff]
    %v2832 = vld [vmem:[#allocation8 + $0x290] sm:$0xff]
    %v2833 = vld [vmem:[#allocation8 + $0x298] sm:$0xff]
    %v2834 = vld [vmem:[#allocation8 + $0x2a0] sm:$0xff]
    %v2835 = vld [vmem:[#allocation8 + $0x2a8] sm:$0xff]
    %v2836 = vld [vmem:[#allocation8 + $0x2b0] sm:$0xff]
    %v2837 = vld [vmem:[#allocation8 + $0x2b8] sm:$0xff]
    %v2838 = vld [vmem:[#allocation8 + $0x2c0] sm:$0xff]
    %v2839 = vld [vmem:[#allocation8 + $0x2c8] sm:$0xff]
    %v2840 = vld [vmem:[#allocation8 + $0x2d0] sm:$0xff]
    %v2841 = vld [vmem:[#allocation8 + $0x2d8] sm:$0xff]
    %v2842 = vld [vmem:[#allocation8 + $0x2e0] sm:$0xff]
    %v2843 = vld [vmem:[#allocation8 + $0x2e8] sm:$0xff]
    %v2844 = vld [vmem:[#allocation8 + $0x2f0] sm:$0xff]
    %v2845 = vld [vmem:[#allocation8 + $0x2f8] sm:$0xff]
    %v2846 = vld [vmem:[#allocation8 + $0x300] sm:$0xff]
    %v2847 = vld [vmem:[#allocation8 + $0x308] sm:$0xff]
    %v2848 = vld [vmem:[#allocation8 + $0x310] sm:$0xff]
    %v2849 = vld [vmem:[#allocation8 + $0x318] sm:$0xff]
    %v2850 = vld [vmem:[#allocation8 + $0x320] sm:$0xff]
    %v2851 = vld [vmem:[#allocation8 + $0x328] sm:$0xff]
    %v2852 = vld [vmem:[#allocation8 + $0x330] sm:$0xff]
    %v2853 = vld [vmem:[#allocation8 + $0x338] sm:$0xff]
    %v2854 = vld [vmem:[#allocation8 + $0x340] sm:$0xff]
    %v2855 = vld [vmem:[#allocation8 + $0x348] sm:$0xff]
    %v2856 = vld [vmem:[#allocation8 + $0x350] sm:$0xff]
    %v2857 = vld [vmem:[#allocation8 + $0x358] sm:$0xff]
    %v2858 = vld [vmem:[#allocation8 + $0x360] sm:$0xff]
    %v2859 = vld [vmem:[#allocation8 + $0x368] sm:$0xff]
    %v2860 = vld [vmem:[#allocation8 + $0x370] sm:$0xff]
    %v2861 = vld [vmem:[#allocation8 + $0x378] sm:$0xff]
    %v2862 = vld [vmem:[#allocation8 + $0x380] sm:$0xff]
    %v2863 = vld [vmem:[#allocation8 + $0x388] sm:$0xff]
    %v2864 = vld [vmem:[#allocation8 + $0x390] sm:$0xff]
    %v2865 = vld [vmem:[#allocation8 + $0x398] sm:$0xff]
    %v2866 = vld [vmem:[#allocation8 + $0x3a0] sm:$0xff]
    %v2867 = vld [vmem:[#allocation8 + $0x3a8] sm:$0xff]
    %v2868 = vld [vmem:[#allocation8 + $0x3b0] sm:$0xff]
    %v2869 = vld [vmem:[#allocation8 + $0x3b8] sm:$0xff]
    %v2870 = vld [vmem:[#allocation8 + $0x3c0] sm:$0xff]
    %v2871 = vld [vmem:[#allocation8 + $0x3c8] sm:$0xff]
    %v2872 = vld [vmem:[#allocation8 + $0x3d0] sm:$0xff]
    %v2873 = vld [vmem:[#allocation8 + $0x3d8] sm:$0xff]
    %v2874 = vld [vmem:[#allocation8 + $0x3e0] sm:$0xff]
    %v2875 = vld [vmem:[#allocation8 + $0x3e8] sm:$0xff]
    %v2876 = vld [vmem:[#allocation8 + $0x3f0] sm:$0xff]
    %v2877 = vld [vmem:[#allocation8 + $0x3f8] sm:$0xff]
    %2878 = vmatprep.subr.mxu0 %v2751
    %2879 = vmatpush1.msra.mxu0 %v2750
    %2880 = vmatprep.subr.mxu0 %v2759
    %2881 = vmatpush1.msra.mxu0 %v2758
    %2882 = vmatprep.subr.mxu0 %v2767
    %2883 = vmatpush1.msra.mxu0 %v2766
    %2884 = vmatprep.subr.mxu0 %v2775
    %2885 = vmatpush1.msra.mxu0 %v2774
    %2886 = vmatprep.subr.mxu0 %v2783
    %2887 = vmatpush1.msra.mxu0 %v2782
    %2888 = vmatprep.subr.mxu0 %v2791
    %2889 = vmatpush1.msra.mxu0 %v2790
    %2890 = vmatprep.subr.mxu0 %v2799
    %2891 = vmatpush1.msra.mxu0 %v2798
    %2892 = vmatprep.subr.mxu0 %v2807
    %2893 = vmatpush1.msra.mxu0 %v2806
    %2894 = vmatprep.subr.mxu0 %v2815
    %2895 = vmatpush1.msra.mxu0 %v2814
    %2896 = vmatprep.subr.mxu0 %v2823
    %2897 = vmatpush1.msra.mxu0 %v2822
    %2898 = vmatprep.subr.mxu0 %v2831
    %2899 = vmatpush1.msra.mxu0 %v2830
    %2900 = vmatprep.subr.mxu0 %v2839
    %2901 = vmatpush1.msra.mxu0 %v2838
    %2902 = vmatprep.subr.mxu0 %v2847
    %2903 = vmatpush1.msra.mxu0 %v2846
    %2904 = vmatprep.subr.mxu0 %v2855
    %2905 = vmatpush1.msra.mxu0 %v2854
    %2906 = vmatprep.subr.mxu0 %v2863
    %2907 = vmatpush1.msra.mxu0 %v2862
    %2908 = vmatprep.subr.mxu0 %v2871
    %2909 = vmatpush1.msra.mxu0 %v2870
    %2910 = vmatprep.subr.mxu0 0.0
    %2911 = vmatpush1.msra.mxu0 0.0
    %2912 = vmatprep.subr.mxu0 0.0
    %2913 = vmatpush1.msra.mxu0 0.0
    %2914 = vmatprep.subr.mxu0 0.0
    %2915 = vmatpush1.msra.mxu0 0.0
    %2916 = vmatprep.subr.mxu0 0.0
    %2917 = vmatpush1.msra.mxu0 0.0
    %2918 = vmatprep.subr.mxu0 0.0
    %2919 = vmatpush1.msra.mxu0 0.0
    %2920 = vmatprep.subr.mxu0 0.0
    %2921 = vmatpush1.msra.mxu0 0.0
    %2922 = vmatprep.subr.mxu0 0.0
    %2923 = vmatpush1.msra.mxu0 0.0
    %2924 = vmatprep.subr.mxu0 0.0
    %2925 = vmatpush1.msra.mxu0 0.0
    %2926 = vmatprep.subr.mxu0 0.0
    %2927 = vmatpush1.msra.mxu0 0.0
    %2928 = vmatprep.subr.mxu0 0.0
    %2929 = vmatpush1.msra.mxu0 0.0
    %2930 = vmatprep.subr.mxu0 0.0
    %2931 = vmatpush1.msra.mxu0 0.0
    %2932 = vmatprep.subr.mxu0 0.0
    %2933 = vmatpush1.msra.mxu0 0.0
    %2934 = vmatprep.subr.mxu0 0.0
    %2935 = vmatpush1.msra.mxu0 0.0
    %2936 = vmatprep.subr.mxu0 0.0
    %2937 = vmatpush1.msra.mxu0 0.0
    %2938 = vmatprep.subr.mxu0 0.0
    %2939 = vmatpush1.msra.mxu0 0.0
    %2940 = vmatprep.subr.mxu0 0.0
    %2941 = vmatpush1.msra.mxu0 0.0
    %2942 = vmatprep.mubr.f32.mxu0 0.0
    %2943 = vmatmul.mubr.f32.gmra.mrb[0].mxu0 %v2748
    %v2944 = vpop.f32.mrb[0].mxu0
    %v2945 = vadd.f32 0.0, %v2944
    %v2946 = vpop.f32.mrb[0].mxu0
    %v2947 = vadd.f32 0.0, %v2946
    %2948 = vmatprep.mubr.f32.mxu0 0.0
    %2949 = vmatmul.mubr.f32.gmra.mrb[0].mxu0 %v2749
    %v2950 = vpop.f32.mrb[0].mxu0
    %v2951 = vpop.f32.mrb[0].mxu0
    %2952 = vdwg.mxu0
    %2953 = vmatprep.subr.mxu0 %v2753
    %2954 = vmatpush1.msra.mxu0 %v2752
    %2955 = vmatprep.subr.mxu0 %v2761
    %2956 = vmatpush1.msra.mxu0 %v2760
    %2957 = vmatprep.subr.mxu0 %v2769
    %2958 = vmatpush1.msra.mxu0 %v2768
    %2959 = vmatprep.subr.mxu0 %v2777
    %2960 = vmatpush1.msra.mxu0 %v2776
    %2961 = vmatprep.subr.mxu0 %v2785
    %2962 = vmatpush1.msra.mxu0 %v2784
    %2963 = vmatprep.subr.mxu0 %v2793
    %2964 = vmatpush1.msra.mxu0 %v2792
    %2965 = vmatprep.subr.mxu0 %v2801
    %2966 = vmatpush1.msra.mxu0 %v2800
    %2967 = vmatprep.subr.mxu0 %v2809
    %2968 = vmatpush1.msra.mxu0 %v2808
    %2969 = vmatprep.subr.mxu0 %v2817
    %2970 = vmatpush1.msra.mxu0 %v2816
    %2971 = vmatprep.subr.mxu0 %v2825
    %2972 = vmatpush1.msra.mxu0 %v2824
    %2973 = vmatprep.subr.mxu0 %v2833
    %2974 = vmatpush1.msra.mxu0 %v2832
    %2975 = vmatprep.subr.mxu0 %v2841
    %2976 = vmatpush1.msra.mxu0 %v2840
    %2977 = vmatprep.subr.mxu0 %v2849
    %2978 = vmatpush1.msra.mxu0 %v2848
    %2979 = vmatprep.subr.mxu0 %v2857
    %2980 = vmatpush1.msra.mxu0 %v2856
    %2981 = vmatprep.subr.mxu0 %v2865
    %2982 = vmatpush1.msra.mxu0 %v2864
    %2983 = vmatprep.subr.mxu0 %v2873
    %2984 = vmatpush1.msra.mxu0 %v2872
    %2985 = vmatprep.subr.mxu0 0.0
    %2986 = vmatpush1.msra.mxu0 0.0
    %2987 = vmatprep.subr.mxu0 0.0
    %2988 = vmatpush1.msra.mxu0 0.0
    %2989 = vmatprep.subr.mxu0 0.0
    %2990 = vmatpush1.msra.mxu0 0.0
    %2991 = vmatprep.subr.mxu0 0.0
    %2992 = vmatpush1.msra.mxu0 0.0
    %2993 = vmatprep.subr.mxu0 0.0
    %2994 = vmatpush1.msra.mxu0 0.0
    %2995 = vmatprep.subr.mxu0 0.0
    %2996 = vmatpush1.msra.mxu0 0.0
    %2997 = vmatprep.subr.mxu0 0.0
    %2998 = vmatpush1.msra.mxu0 0.0
    %2999 = vmatprep.subr.mxu0 0.0
    %3000 = vmatpush1.msra.mxu0 0.0
    %3001 = vmatprep.subr.mxu0 0.0
    %3002 = vmatpush1.msra.mxu0 0.0
    %3003 = vmatprep.subr.mxu0 0.0
    %3004 = vmatpush1.msra.mxu0 0.0
    %3005 = vmatprep.subr.mxu0 0.0
    %3006 = vmatpush1.msra.mxu0 0.0
    %3007 = vmatprep.subr.mxu0 0.0
    %3008 = vmatpush1.msra.mxu0 0.0
    %3009 = vmatprep.subr.mxu0 0.0
    %3010 = vmatpush1.msra.mxu0 0.0
    %3011 = vmatprep.subr.mxu0 0.0
    %3012 = vmatpush1.msra.mxu0 0.0
    %3013 = vmatprep.subr.mxu0 0.0
    %3014 = vmatpush1.msra.mxu0 0.0
    %3015 = vmatprep.subr.mxu0 0.0
    %3016 = vmatpush1.msra.mxu0 0.0
    %3017 = vmatprep.mubr.f32.mxu0 0.0
    %3018 = vmatmul.mubr.f32.gmra.mrb[0].mxu0 %v2748
    %v3019 = vpop.f32.mrb[0].mxu0
    %v3020 = vadd.f32 0.0, %v3019
    %v3021 = vpop.f32.mrb[0].mxu0
    %v3022 = vadd.f32 0.0, %v3021
    %3023 = vmatprep.mubr.f32.mxu0 0.0
    %3024 = vmatmul.mubr.f32.gmra.mrb[0].mxu0 %v2749
    %v3025 = vpop.f32.mrb[0].mxu0
    %v3026 = vpop.f32.mrb[0].mxu0
    %3027 = vdwg.mxu0
    %3028 = vmatprep.subr.mxu0 %v2755
    %3029 = vmatpush1.msra.mxu0 %v2754
    %3030 = vmatprep.subr.mxu0 %v2763
    %3031 = vmatpush1.msra.mxu0 %v2762
    %3032 = vmatprep.subr.mxu0 %v2771
    %3033 = vmatpush1.msra.mxu0 %v2770
    %3034 = vmatprep.subr.mxu0 %v2779
    %3035 = vmatpush1.msra.mxu0 %v2778
    %3036 = vmatprep.subr.mxu0 %v2787
    %3037 = vmatpush1.msra.mxu0 %v2786
    %3038 = vmatprep.subr.mxu0 %v2795
    %3039 = vmatpush1.msra.mxu0 %v2794
    %3040 = vmatprep.subr.mxu0 %v2803
    %3041 = vmatpush1.msra.mxu0 %v2802
    %3042 = vmatprep.subr.mxu0 %v2811
    %3043 = vmatpush1.msra.mxu0 %v2810
    %3044 = vmatprep.subr.mxu0 %v2819
    %3045 = vmatpush1.msra.mxu0 %v2818
    %3046 = vmatprep.subr.mxu0 %v2827
    %3047 = vmatpush1.msra.mxu0 %v2826
    %3048 = vmatprep.subr.mxu0 %v2835
    %3049 = vmatpush1.msra.mxu0 %v2834
    %3050 = vmatprep.subr.mxu0 %v2843
    %3051 = vmatpush1.msra.mxu0 %v2842
    %3052 = vmatprep.subr.mxu0 %v2851
    %3053 = vmatpush1.msra.mxu0 %v2850
    %3054 = vmatprep.subr.mxu0 %v2859
    %3055 = vmatpush1.msra.mxu0 %v2858
    %3056 = vmatprep.subr.mxu0 %v2867
    %3057 = vmatpush1.msra.mxu0 %v2866
    %3058 = vmatprep.subr.mxu0 %v2875
    %3059 = vmatpush1.msra.mxu0 %v2874
    %3060 = vmatprep.subr.mxu0 0.0
    %3061 = vmatpush1.msra.mxu0 0.0
    %3062 = vmatprep.subr.mxu0 0.0
    %3063 = vmatpush1.msra.mxu0 0.0
    %3064 = vmatprep.subr.mxu0 0.0
    %3065 = vmatpush1.msra.mxu0 0.0
    %3066 = vmatprep.subr.mxu0 0.0
    %3067 = vmatpush1.msra.mxu0 0.0
    %3068 = vmatprep.subr.mxu0 0.0
    %3069 = vmatpush1.msra.mxu0 0.0
    %3070 = vmatprep.subr.mxu0 0.0
    %3071 = vmatpush1.msra.mxu0 0.0
    %3072 = vmatprep.subr.mxu0 0.0
    %3073 = vmatpush1.msra.mxu0 0.0
    %3074 = vmatprep.subr.mxu0 0.0
    %3075 = vmatpush1.msra.mxu0 0.0
    %3076 = vmatprep.subr.mxu0 0.0
    %3077 = vmatpush1.msra.mxu0 0.0
    %3078 = vmatprep.subr.mxu0 0.0
    %3079 = vmatpush1.msra.mxu0 0.0
    %3080 = vmatprep.subr.mxu0 0.0
    %3081 = vmatpush1.msra.mxu0 0.0
    %3082 = vmatprep.subr.mxu0 0.0
    %3083 = vmatpush1.msra.mxu0 0.0
    %3084 = vmatprep.subr.mxu0 0.0
    %3085 = vmatpush1.msra.mxu0 0.0
    %3086 = vmatprep.subr.mxu0 0.0
    %3087 = vmatpush1.msra.mxu0 0.0
    %3088 = vmatprep.subr.mxu0 0.0
    %3089 = vmatpush1.msra.mxu0 0.0
    %3090 = vmatprep.subr.mxu0 0.0
    %3091 = vmatpush1.msra.mxu0 0.0
    %3092 = vmatprep.mubr.f32.mxu0 0.0
    %3093 = vmatmul.mubr.f32.gmra.mrb[0].mxu0 %v2748
    %v3094 = vpop.f32.mrb[0].mxu0
    %v3095 = vpop.f32.mrb[0].mxu0
    %3096 = vmatprep.mubr.f32.mxu0 0.0
    %3097 = vmatmul.mubr.f32.gmra.mrb[0].mxu0 %v2749
    %v3098 = vpop.f32.mrb[0].mxu0
    %v3099 = vadd.f32 0.0, %v3098
    %v3100 = vpop.f32.mrb[0].mxu0
    %v3101 = vadd.f32 0.0, %v3100
    %3102 = vdwg.mxu0
    %3103 = vmatprep.subr.mxu0 %v2757
    %3104 = vmatpush1.msra.mxu0 %v2756
    %3105 = vmatprep.subr.mxu0 %v2765
    %3106 = vmatpush1.msra.mxu0 %v2764
    %3107 = vmatprep.subr.mxu0 %v2773
    %3108 = vmatpush1.msra.mxu0 %v2772
    %3109 = vmatprep.subr.mxu0 %v2781
    %3110 = vmatpush1.msra.mxu0 %v2780
    %3111 = vmatprep.subr.mxu0 %v2789
    %3112 = vmatpush1.msra.mxu0 %v2788
    %3113 = vmatprep.subr.mxu0 %v2797
    %3114 = vmatpush1.msra.mxu0 %v2796
    %3115 = vmatprep.subr.mxu0 %v2805
    %3116 = vmatpush1.msra.mxu0 %v2804
    %3117 = vmatprep.subr.mxu0 %v2813
    %3118 = vmatpush1.msra.mxu0 %v2812
    %3119 = vmatprep.subr.mxu0 %v2821
    %3120 = vmatpush1.msra.mxu0 %v2820
    %3121 = vmatprep.subr.mxu0 %v2829
    %3122 = vmatpush1.msra.mxu0 %v2828
    %3123 = vmatprep.subr.mxu0 %v2837
    %3124 = vmatpush1.msra.mxu0 %v2836
    %3125 = vmatprep.subr.mxu0 %v2845
    %3126 = vmatpush1.msra.mxu0 %v2844
    %3127 = vmatprep.subr.mxu0 %v2853
    %3128 = vmatpush1.msra.mxu0 %v2852
    %3129 = vmatprep.subr.mxu0 %v2861
    %3130 = vmatpush1.msra.mxu0 %v2860
    %3131 = vmatprep.subr.mxu0 %v2869
    %3132 = vmatpush1.msra.mxu0 %v2868
    %3133 = vmatprep.subr.mxu0 %v2877
    %3134 = vmatpush1.msra.mxu0 %v2876
    %3135 = vmatprep.subr.mxu0 0.0
    %3136 = vmatpush1.msra.mxu0 0.0
    %3137 = vmatprep.subr.mxu0 0.0
    %3138 = vmatpush1.msra.mxu0 0.0
    %3139 = vmatprep.subr.mxu0 0.0
    %3140 = vmatpush1.msra.mxu0 0.0
    %3141 = vmatprep.subr.mxu0 0.0
    %3142 = vmatpush1.msra.mxu0 0.0
    %3143 = vmatprep.subr.mxu0 0.0
    %3144 = vmatpush1.msra.mxu0 0.0
    %3145 = vmatprep.subr.mxu0 0.0
    %3146 = vmatpush1.msra.mxu0 0.0
    %3147 = vmatprep.subr.mxu0 0.0
    %3148 = vmatpush1.msra.mxu0 0.0
    %3149 = vmatprep.subr.mxu0 0.0
    %3150 = vmatpush1.msra.mxu0 0.0
    %3151 = vmatprep.subr.mxu0 0.0
    %3152 = vmatpush1.msra.mxu0 0.0
    %3153 = vmatprep.subr.mxu0 0.0
    %3154 = vmatpush1.msra.mxu0 0.0
    %3155 = vmatprep.subr.mxu0 0.0
    %3156 = vmatpush1.msra.mxu0 0.0
    %3157 = vmatprep.subr.mxu0 0.0
    %3158 = vmatpush1.msra.mxu0 0.0
    %3159 = vmatprep.subr.mxu0 0.0
    %3160 = vmatpush1.msra.mxu0 0.0
    %3161 = vmatprep.subr.mxu0 0.0
    %3162 = vmatpush1.msra.mxu0 0.0
    %3163 = vmatprep.subr.mxu0 0.0
    %3164 = vmatpush1.msra.mxu0 0.0
    %3165 = vmatprep.subr.mxu0 0.0
    %3166 = vmatpush1.msra.mxu0 0.0
    %3167 = vmatprep.mubr.f32.mxu0 0.0
    %3168 = vmatmul.mubr.f32.gmra.mrb[0].mxu0 %v2748
    %v3169 = vpop.f32.mrb[0].mxu0
    %v3170 = vpop.f32.mrb[0].mxu0
    %3171 = vmatprep.mubr.f32.mxu0 0.0
    %3172 = vmatmul.mubr.f32.gmra.mrb[0].mxu0 %v2749
    %v3173 = vpop.f32.mrb[0].mxu0
    %v3174 = vadd.f32 0.0, %v3173
    %v3175 = vpop.f32.mrb[0].mxu0
    %v3176 = vadd.f32 0.0, %v3175
    %3177 = vdwg.mxu0
    %v3178 = vld [vmem:[%s2677] sm:$0xff]
    %v3179 = vld [vmem:[%s2677 + $0x8] sm:$0xff]
    %v3180 = vld [vmem:[%s2677 + $0x10] sm:$0xff]
    %v3181 = vld [vmem:[%s2677 + $0x18] sm:$0xff]
    %v3182 = vadd.f32 %v3178, %v2945
    %v3183 = vadd.f32 %v3179, %v2947
    %v3184 = vadd.f32 %v3180, %v3020
    %v3185 = vadd.f32 %v3181, %v3022
    %v3186 = vld [vmem:[%s2666 + $0x20] sm:$0xff]
    %v3187 = vld [vmem:[%s2666 + $0x28] sm:$0xff]
    %v3188 = vld [vmem:[%s2666 + $0x30] sm:$0xff]
    %v3189 = vld [vmem:[%s2666 + $0x38] sm:$0xff]
    %v3190 = vadd.f32 %v3186, %v3099
    %v3191 = vadd.f32 %v3187, %v3101
    %v3192 = vadd.f32 %v3188, %v3174
    %v3193 = vadd.f32 %v3189, %v3176
    %v3194 = vld [vmem:[#allocation5] sm:$0xff]
    %v3195 = vxor.u32 %v3182, 2147483648
    %v3196 = vmul.f32 %v3195, 1.442695
    %v3197 = vpow.pop %v3196
    %v3198 = vadd.f32 %v3197, 1.0
    %v3199 = vrcp.pop %v3198
    %v3200 = vmul.f32 1.0, %v3199
    %v3201 = vxor.u32 %v3183, 2147483648
    %v3202 = vmul.f32 %v3201, 1.442695
    %v3203 = vpow.pop %v3202
    %v3204 = vadd.f32 %v3203, 1.0
    %v3205 = vrcp.pop %v3204
    %v3206 = vmul.f32 1.0, %v3205
    %v3207 = vtanh.pop %v3184
    %v3208 = vxor.u32 %v3185, 2147483648
    %v3209 = vmul.f32 %v3208, 1.442695
    %v3210 = vpow.pop %v3209
    %v3211 = vadd.f32 %v3210, 1.0
    %v3212 = vrcp.pop %v3211
    %v3213 = vmul.f32 1.0, %v3212
    %v3214 = vmul.f32 %v3206, %v3194
    %v3215 = vmul.f32 %v3200, %v3207
    %v3216 = vadd.f32 %v3214, %v3215
    %v3217 = vtanh.pop %v3216
    %v3218 = vmul.f32 %v3213, %v3217
    %v3219 = vld [vmem:[#allocation5 + $0x8] sm:$0xff]
    %v3220 = vxor.u32 %v3190, 2147483648
    %v3221 = vmul.f32 %v3220, 1.442695
    %v3222 = vpow.pop %v3221
    %v3223 = vadd.f32 %v3222, 1.0
    %v3224 = vrcp.pop %v3223
    %v3225 = vmul.f32 1.0, %v3224
    %v3226 = vxor.u32 %v3191, 2147483648
    %v3227 = vmul.f32 %v3226, 1.442695
    %v3228 = vpow.pop %v3227
    %v3229 = vadd.f32 %v3228, 1.0
    %v3230 = vrcp.pop %v3229
    %v3231 = vmul.f32 1.0, %v3230
    %v3232 = vtanh.pop %v3192
    %v3233 = vxor.u32 %v3193, 2147483648
    %v3234 = vmul.f32 %v3233, 1.442695
    %v3235 = vpow.pop %v3234
    %v3236 = vadd.f32 %v3235, 1.0
    %v3237 = vrcp.pop %v3236
    %v3238 = vmul.f32 1.0, %v3237
    %v3239 = vmul.f32 %v3231, %v3219
    %v3240 = vmul.f32 %v3225, %v3232
    %v3241 = vadd.f32 %v3239, %v3240
    %v3242 = vtanh.pop %v3241
    %v3243 = vmul.f32 %v3238, %v3242
    %3244 = vst [vmem:[#allocation4] sm:$0xff] %v3218
    %3245 = vst [vmem:[#allocation4 + $0x8] sm:$0xff] %v3243
    %3246 = vst [vmem:[#allocation5] sm:$0xff] %v3216
    %3247 = vst [vmem:[#allocation5 + $0x8] sm:$0xff] %v3241
    %3248 = vst [vmem:[%s2746] sm:$0xff] %v3218
    %3249 = vst [vmem:[%s2742 + $0x8] sm:$0xff] %v3243
    %v3250 = vld [vmem:[#allocation4] sm:$0xff]
    %v3251 = vld [vmem:[#allocation4 + $0x8] sm:$0xff]
    %v3252 = vld [vmem:[#allocation8] sm:$0xff]
    %v3253 = vld [vmem:[#allocation8 + $0x8] sm:$0xff]
    %v3254 = vld [vmem:[#allocation8 + $0x10] sm:$0xff]
    %v3255 = vld [vmem:[#allocation8 + $0x18] sm:$0xff]
    %v3256 = vld [vmem:[#allocation8 + $0x20] sm:$0xff]
    %v3257 = vld [vmem:[#allocation8 + $0x28] sm:$0xff]
    %v3258 = vld [vmem:[#allocation8 + $0x30] sm:$0xff]
    %v3259 = vld [vmem:[#allocation8 + $0x38] sm:$0xff]
    %v3260 = vld [vmem:[#allocation8 + $0x40] sm:$0xff]
    %v3261 = vld [vmem:[#allocation8 + $0x48] sm:$0xff]
    %v3262 = vld [vmem:[#allocation8 + $0x50] sm:$0xff]
    %v3263 = vld [vmem:[#allocation8 + $0x58] sm:$0xff]
    %v3264 = vld [vmem:[#allocation8 + $0x60] sm:$0xff]
    %v3265 = vld [vmem:[#allocation8 + $0x68] sm:$0xff]
    %v3266 = vld [vmem:[#allocation8 + $0x70] sm:$0xff]
    %v3267 = vld [vmem:[#allocation8 + $0x78] sm:$0xff]
    %v3268 = vld [vmem:[#allocation8 + $0x80] sm:$0xff]
    %v3269 = vld [vmem:[#allocation8 + $0x88] sm:$0xff]
    %v3270 = vld [vmem:[#allocation8 + $0x90] sm:$0xff]
    %v3271 = vld [vmem:[#allocation8 + $0x98] sm:$0xff]
    %v3272 = vld [vmem:[#allocation8 + $0xa0] sm:$0xff]
    %v3273 = vld [vmem:[#allocation8 + $0xa8] sm:$0xff]
    %v3274 = vld [vmem:[#allocation8 + $0xb0] sm:$0xff]
    %v3275 = vld [vmem:[#allocation8 + $0xb8] sm:$0xff]
    %v3276 = vld [vmem:[#allocation8 + $0xc0] sm:$0xff]
    %v3277 = vld [vmem:[#allocation8 + $0xc8] sm:$0xff]
    %v3278 = vld [vmem:[#allocation8 + $0xd0] sm:$0xff]
    %v3279 = vld [vmem:[#allocation8 + $0xd8] sm:$0xff]
    %v3280 = vld [vmem:[#allocation8 + $0xe0] sm:$0xff]
    %v3281 = vld [vmem:[#allocation8 + $0xe8] sm:$0xff]
    %v3282 = vld [vmem:[#allocation8 + $0xf0] sm:$0xff]
    %v3283 = vld [vmem:[#allocation8 + $0xf8] sm:$0xff]
    %v3284 = vld [vmem:[#allocation8 + $0x100] sm:$0xff]
    %v3285 = vld [vmem:[#allocation8 + $0x108] sm:$0xff]
    %v3286 = vld [vmem:[#allocation8 + $0x110] sm:$0xff]
    %v3287 = vld [vmem:[#allocation8 + $0x118] sm:$0xff]
    %v3288 = vld [vmem:[#allocation8 + $0x120] sm:$0xff]
    %v3289 = vld [vmem:[#allocation8 + $0x128] sm:$0xff]
    %v3290 = vld [vmem:[#allocation8 + $0x130] sm:$0xff]
    %v3291 = vld [vmem:[#allocation8 + $0x138] sm:$0xff]
    %v3292 = vld [vmem:[#allocation8 + $0x140] sm:$0xff]
    %v3293 = vld [vmem:[#allocation8 + $0x148] sm:$0xff]
    %v3294 = vld [vmem:[#allocation8 + $0x150] sm:$0xff]
    %v3295 = vld [vmem:[#allocation8 + $0x158] sm:$0xff]
    %v3296 = vld [vmem:[#allocation8 + $0x160] sm:$0xff]
    %v3297 = vld [vmem:[#allocation8 + $0x168] sm:$0xff]
    %v3298 = vld [vmem:[#allocation8 + $0x170] sm:$0xff]
    %v3299 = vld [vmem:[#allocation8 + $0x178] sm:$0xff]
    %v3300 = vld [vmem:[#allocation8 + $0x180] sm:$0xff]
    %v3301 = vld [vmem:[#allocation8 + $0x188] sm:$0xff]
    %v3302 = vld [vmem:[#allocation8 + $0x190] sm:$0xff]
    %v3303 = vld [vmem:[#allocation8 + $0x198] sm:$0xff]
    %v3304 = vld [vmem:[#allocation8 + $0x1a0] sm:$0xff]
    %v3305 = vld [vmem:[#allocation8 + $0x1a8] sm:$0xff]
    %v3306 = vld [vmem:[#allocation8 + $0x1b0] sm:$0xff]
    %v3307 = vld [vmem:[#allocation8 + $0x1b8] sm:$0xff]
    %v3308 = vld [vmem:[#allocation8 + $0x1c0] sm:$0xff]
    %v3309 = vld [vmem:[#allocation8 + $0x1c8] sm:$0xff]
    %v3310 = vld [vmem:[#allocation8 + $0x1d0] sm:$0xff]
    %v3311 = vld [vmem:[#allocation8 + $0x1d8] sm:$0xff]
    %v3312 = vld [vmem:[#allocation8 + $0x1e0] sm:$0xff]
    %v3313 = vld [vmem:[#allocation8 + $0x1e8] sm:$0xff]
    %v3314 = vld [vmem:[#allocation8 + $0x1f0] sm:$0xff]
    %v3315 = vld [vmem:[#allocation8 + $0x1f8] sm:$0xff]
    %v3316 = vld [vmem:[#allocation8 + $0x200] sm:$0xff]
    %v3317 = vld [vmem:[#allocation8 + $0x208] sm:$0xff]
    %v3318 = vld [vmem:[#allocation8 + $0x210] sm:$0xff]
    %v3319 = vld [vmem:[#allocation8 + $0x218] sm:$0xff]
    %v3320 = vld [vmem:[#allocation8 + $0x220] sm:$0xff]
    %v3321 = vld [vmem:[#allocation8 + $0x228] sm:$0xff]
    %v3322 = vld [vmem:[#allocation8 + $0x230] sm:$0xff]
    %v3323 = vld [vmem:[#allocation8 + $0x238] sm:$0xff]
    %v3324 = vld [vmem:[#allocation8 + $0x240] sm:$0xff]
    %v3325 = vld [vmem:[#allocation8 + $0x248] sm:$0xff]
    %v3326 = vld [vmem:[#allocation8 + $0x250] sm:$0xff]
    %v3327 = vld [vmem:[#allocation8 + $0x258] sm:$0xff]
    %v3328 = vld [vmem:[#allocation8 + $0x260] sm:$0xff]
    %v3329 = vld [vmem:[#allocation8 + $0x268] sm:$0xff]
    %v3330 = vld [vmem:[#allocation8 + $0x270] sm:$0xff]
    %v3331 = vld [vmem:[#allocation8 + $0x278] sm:$0xff]
    %v3332 = vld [vmem:[#allocation8 + $0x280] sm:$0xff]
    %v3333 = vld [vmem:[#allocation8 + $0x288] sm:$0xff]
    %v3334 = vld [vmem:[#allocation8 + $0x290] sm:$0xff]
    %v3335 = vld [vmem:[#allocation8 + $0x298] sm:$0xff]
    %v3336 = vld [vmem:[#allocation8 + $0x2a0] sm:$0xff]
    %v3337 = vld [vmem:[#allocation8 + $0x2a8] sm:$0xff]
    %v3338 = vld [vmem:[#allocation8 + $0x2b0] sm:$0xff]
    %v3339 = vld [vmem:[#allocation8 + $0x2b8] sm:$0xff]
    %v3340 = vld [vmem:[#allocation8 + $0x2c0] sm:$0xff]
    %v3341 = vld [vmem:[#allocation8 + $0x2c8] sm:$0xff]
    %v3342 = vld [vmem:[#allocation8 + $0x2d0] sm:$0xff]
    %v3343 = vld [vmem:[#allocation8 + $0x2d8] sm:$0xff]
    %v3344 = vld [vmem:[#allocation8 + $0x2e0] sm:$0xff]
    %v3345 = vld [vmem:[#allocation8 + $0x2e8] sm:$0xff]
    %v3346 = vld [vmem:[#allocation8 + $0x2f0] sm:$0xff]
    %v3347 = vld [vmem:[#allocation8 + $0x2f8] sm:$0xff]
    %v3348 = vld [vmem:[#allocation8 + $0x300] sm:$0xff]
    %v3349 = vld [vmem:[#allocation8 + $0x308] sm:$0xff]
    %v3350 = vld [vmem:[#allocation8 + $0x310] sm:$0xff]
    %v3351 = vld [vmem:[#allocation8 + $0x318] sm:$0xff]
    %v3352 = vld [vmem:[#allocation8 + $0x320] sm:$0xff]
    %v3353 = vld [vmem:[#allocation8 + $0x328] sm:$0xff]
    %v3354 = vld [vmem:[#allocation8 + $0x330] sm:$0xff]
    %v3355 = vld [vmem:[#allocation8 + $0x338] sm:$0xff]
    %v3356 = vld [vmem:[#allocation8 + $0x340] sm:$0xff]
    %v3357 = vld [vmem:[#allocation8 + $0x348] sm:$0xff]
    %v3358 = vld [vmem:[#allocation8 + $0x350] sm:$0xff]
    %v3359 = vld [vmem:[#allocation8 + $0x358] sm:$0xff]
    %v3360 = vld [vmem:[#allocation8 + $0x360] sm:$0xff]
    %v3361 = vld [vmem:[#allocation8 + $0x368] sm:$0xff]
    %v3362 = vld [vmem:[#allocation8 + $0x370] sm:$0xff]
    %v3363 = vld [vmem:[#allocation8 + $0x378] sm:$0xff]
    %v3364 = vld [vmem:[#allocation8 + $0x380] sm:$0xff]
    %v3365 = vld [vmem:[#allocation8 + $0x388] sm:$0xff]
    %v3366 = vld [vmem:[#allocation8 + $0x390] sm:$0xff]
    %v3367 = vld [vmem:[#allocation8 + $0x398] sm:$0xff]
    %v3368 = vld [vmem:[#allocation8 + $0x3a0] sm:$0xff]
    %v3369 = vld [vmem:[#allocation8 + $0x3a8] sm:$0xff]
    %v3370 = vld [vmem:[#allocation8 + $0x3b0] sm:$0xff]
    %v3371 = vld [vmem:[#allocation8 + $0x3b8] sm:$0xff]
    %v3372 = vld [vmem:[#allocation8 + $0x3c0] sm:$0xff]
    %v3373 = vld [vmem:[#allocation8 + $0x3c8] sm:$0xff]
    %v3374 = vld [vmem:[#allocation8 + $0x3d0] sm:$0xff]
    %v3375 = vld [vmem:[#allocation8 + $0x3d8] sm:$0xff]
    %v3376 = vld [vmem:[#allocation8 + $0x3e0] sm:$0xff]
    %v3377 = vld [vmem:[#allocation8 + $0x3e8] sm:$0xff]
    %v3378 = vld [vmem:[#allocation8 + $0x3f0] sm:$0xff]
    %v3379 = vld [vmem:[#allocation8 + $0x3f8] sm:$0xff]
    %3380 = vmatprep.subr.mxu0 %v3253
    %3381 = vmatpush1.msra.mxu0 %v3252
    %3382 = vmatprep.subr.mxu0 %v3261
    %3383 = vmatpush1.msra.mxu0 %v3260
    %3384 = vmatprep.subr.mxu0 %v3269
    %3385 = vmatpush1.msra.mxu0 %v3268
    %3386 = vmatprep.subr.mxu0 %v3277
    %3387 = vmatpush1.msra.mxu0 %v3276
    %3388 = vmatprep.subr.mxu0 %v3285
    %3389 = vmatpush1.msra.mxu0 %v3284
    %3390 = vmatprep.subr.mxu0 %v3293
    %3391 = vmatpush1.msra.mxu0 %v3292
    %3392 = vmatprep.subr.mxu0 %v3301
    %3393 = vmatpush1.msra.mxu0 %v3300
    %3394 = vmatprep.subr.mxu0 %v3309
    %3395 = vmatpush1.msra.mxu0 %v3308
    %3396 = vmatprep.subr.mxu0 %v3317
    %3397 = vmatpush1.msra.mxu0 %v3316
    %3398 = vmatprep.subr.mxu0 %v3325
    %3399 = vmatpush1.msra.mxu0 %v3324
    %3400 = vmatprep.subr.mxu0 %v3333
    %3401 = vmatpush1.msra.mxu0 %v3332
    %3402 = vmatprep.subr.mxu0 %v3341
    %3403 = vmatpush1.msra.mxu0 %v3340
    %3404 = vmatprep.subr.mxu0 %v3349
    %3405 = vmatpush1.msra.mxu0 %v3348
    %3406 = vmatprep.subr.mxu0 %v3357
    %3407 = vmatpush1.msra.mxu0 %v3356
    %3408 = vmatprep.subr.mxu0 %v3365
    %3409 = vmatpush1.msra.mxu0 %v3364
    %3410 = vmatprep.subr.mxu0 %v3373
    %3411 = vmatpush1.msra.mxu0 %v3372
    %3412 = vmatprep.subr.mxu0 0.0
    %3413 = vmatpush1.msra.mxu0 0.0
    %3414 = vmatprep.subr.mxu0 0.0
    %3415 = vmatpush1.msra.mxu0 0.0
    %3416 = vmatprep.subr.mxu0 0.0
    %3417 = vmatpush1.msra.mxu0 0.0
    %3418 = vmatprep.subr.mxu0 0.0
    %3419 = vmatpush1.msra.mxu0 0.0
    %3420 = vmatprep.subr.mxu0 0.0
    %3421 = vmatpush1.msra.mxu0 0.0
    %3422 = vmatprep.subr.mxu0 0.0
    %3423 = vmatpush1.msra.mxu0 0.0
    %3424 = vmatprep.subr.mxu0 0.0
    %3425 = vmatpush1.msra.mxu0 0.0
    %3426 = vmatprep.subr.mxu0 0.0
    %3427 = vmatpush1.msra.mxu0 0.0
    %3428 = vmatprep.subr.mxu0 0.0
    %3429 = vmatpush1.msra.mxu0 0.0
    %3430 = vmatprep.subr.mxu0 0.0
    %3431 = vmatpush1.msra.mxu0 0.0
    %3432 = vmatprep.subr.mxu0 0.0
    %3433 = vmatpush1.msra.mxu0 0.0
    %3434 = vmatprep.subr.mxu0 0.0
    %3435 = vmatpush1.msra.mxu0 0.0
    %3436 = vmatprep.subr.mxu0 0.0
    %3437 = vmatpush1.msra.mxu0 0.0
    %3438 = vmatprep.subr.mxu0 0.0
    %3439 = vmatpush1.msra.mxu0 0.0
    %3440 = vmatprep.subr.mxu0 0.0
    %3441 = vmatpush1.msra.mxu0 0.0
    %3442 = vmatprep.subr.mxu0 0.0
    %3443 = vmatpush1.msra.mxu0 0.0
    %3444 = vmatprep.mubr.f32.mxu0 0.0
    %3445 = vmatmul.mubr.f32.gmra.mrb[0].mxu0 %v3250
    %v3446 = vpop.f32.mrb[0].mxu0
    %v3447 = vadd.f32 0.0, %v3446
    %v3448 = vpop.f32.mrb[0].mxu0
    %v3449 = vadd.f32 0.0, %v3448
    %3450 = vmatprep.mubr.f32.mxu0 0.0
    %3451 = vmatmul.mubr.f32.gmra.mrb[0].mxu0 %v3251
    %v3452 = vpop.f32.mrb[0].mxu0
    %v3453 = vpop.f32.mrb[0].mxu0
    %3454 = vdwg.mxu0
    %3455 = vmatprep.subr.mxu0 %v3255
    %3456 = vmatpush1.msra.mxu0 %v3254
    %3457 = vmatprep.subr.mxu0 %v3263
    %3458 = vmatpush1.msra.mxu0 %v3262
    %3459 = vmatprep.subr.mxu0 %v3271
    %3460 = vmatpush1.msra.mxu0 %v3270
    %3461 = vmatprep.subr.mxu0 %v3279
    %3462 = vmatpush1.msra.mxu0 %v3278
    %3463 = vmatprep.subr.mxu0 %v3287
    %3464 = vmatpush1.msra.mxu0 %v3286
    %3465 = vmatprep.subr.mxu0 %v3295
    %3466 = vmatpush1.msra.mxu0 %v3294
    %3467 = vmatprep.subr.mxu0 %v3303
    %3468 = vmatpush1.msra.mxu0 %v3302
    %3469 = vmatprep.subr.mxu0 %v3311
    %3470 = vmatpush1.msra.mxu0 %v3310
    %3471 = vmatprep.subr.mxu0 %v3319
    %3472 = vmatpush1.msra.mxu0 %v3318
    %3473 = vmatprep.subr.mxu0 %v3327
    %3474 = vmatpush1.msra.mxu0 %v3326
    %3475 = vmatprep.subr.mxu0 %v3335
    %3476 = vmatpush1.msra.mxu0 %v3334
    %3477 = vmatprep.subr.mxu0 %v3343
    %3478 = vmatpush1.msra.mxu0 %v3342
    %3479 = vmatprep.subr.mxu0 %v3351
    %3480 = vmatpush1.msra.mxu0 %v3350
    %3481 = vmatprep.subr.mxu0 %v3359
    %3482 = vmatpush1.msra.mxu0 %v3358
    %3483 = vmatprep.subr.mxu0 %v3367
    %3484 = vmatpush1.msra.mxu0 %v3366
    %3485 = vmatprep.subr.mxu0 %v3375
    %3486 = vmatpush1.msra.mxu0 %v3374
    %3487 = vmatprep.subr.mxu0 0.0
    %3488 = vmatpush1.msra.mxu0 0.0
    %3489 = vmatprep.subr.mxu0 0.0
    %3490 = vmatpush1.msra.mxu0 0.0
    %3491 = vmatprep.subr.mxu0 0.0
    %3492 = vmatpush1.msra.mxu0 0.0
    %3493 = vmatprep.subr.mxu0 0.0
    %3494 = vmatpush1.msra.mxu0 0.0
    %3495 = vmatprep.subr.mxu0 0.0
    %3496 = vmatpush1.msra.mxu0 0.0
    %3497 = vmatprep.subr.mxu0 0.0
    %3498 = vmatpush1.msra.mxu0 0.0
    %3499 = vmatprep.subr.mxu0 0.0
    %3500 = vmatpush1.msra.mxu0 0.0
    %3501 = vmatprep.subr.mxu0 0.0
    %3502 = vmatpush1.msra.mxu0 0.0
    %3503 = vmatprep.subr.mxu0 0.0
    %3504 = vmatpush1.msra.mxu0 0.0
    %3505 = vmatprep.subr.mxu0 0.0
    %3506 = vmatpush1.msra.mxu0 0.0
    %3507 = vmatprep.subr.mxu0 0.0
    %3508 = vmatpush1.msra.mxu0 0.0
    %3509 = vmatprep.subr.mxu0 0.0
    %3510 = vmatpush1.msra.mxu0 0.0
    %3511 = vmatprep.subr.mxu0 0.0
    %3512 = vmatpush1.msra.mxu0 0.0
    %3513 = vmatprep.subr.mxu0 0.0
    %3514 = vmatpush1.msra.mxu0 0.0
    %3515 = vmatprep.subr.mxu0 0.0
    %3516 = vmatpush1.msra.mxu0 0.0
    %3517 = vmatprep.subr.mxu0 0.0
    %3518 = vmatpush1.msra.mxu0 0.0
    %3519 = vmatprep.mubr.f32.mxu0 0.0
    %3520 = vmatmul.mubr.f32.gmra.mrb[0].mxu0 %v3250
    %v3521 = vpop.f32.mrb[0].mxu0
    %v3522 = vadd.f32 0.0, %v3521
    %v3523 = vpop.f32.mrb[0].mxu0
    %v3524 = vadd.f32 0.0, %v3523
    %3525 = vmatprep.mubr.f32.mxu0 0.0
    %3526 = vmatmul.mubr.f32.gmra.mrb[0].mxu0 %v3251
    %v3527 = vpop.f32.mrb[0].mxu0
    %v3528 = vpop.f32.mrb[0].mxu0
    %3529 = vdwg.mxu0
    %3530 = vmatprep.subr.mxu0 %v3257
    %3531 = vmatpush1.msra.mxu0 %v3256
    %3532 = vmatprep.subr.mxu0 %v3265
    %3533 = vmatpush1.msra.mxu0 %v3264
    %3534 = vmatprep.subr.mxu0 %v3273
    %3535 = vmatpush1.msra.mxu0 %v3272
    %3536 = vmatprep.subr.mxu0 %v3281
    %3537 = vmatpush1.msra.mxu0 %v3280
    %3538 = vmatprep.subr.mxu0 %v3289
    %3539 = vmatpush1.msra.mxu0 %v3288
    %3540 = vmatprep.subr.mxu0 %v3297
    %3541 = vmatpush1.msra.mxu0 %v3296
    %3542 = vmatprep.subr.mxu0 %v3305
    %3543 = vmatpush1.msra.mxu0 %v3304
    %3544 = vmatprep.subr.mxu0 %v3313
    %3545 = vmatpush1.msra.mxu0 %v3312
    %3546 = vmatprep.subr.mxu0 %v3321
    %3547 = vmatpush1.msra.mxu0 %v3320
    %3548 = vmatprep.subr.mxu0 %v3329
    %3549 = vmatpush1.msra.mxu0 %v3328
    %3550 = vmatprep.subr.mxu0 %v3337
    %3551 = vmatpush1.msra.mxu0 %v3336
    %3552 = vmatprep.subr.mxu0 %v3345
    %3553 = vmatpush1.msra.mxu0 %v3344
    %3554 = vmatprep.subr.mxu0 %v3353
    %3555 = vmatpush1.msra.mxu0 %v3352
    %3556 = vmatprep.subr.mxu0 %v3361
    %3557 = vmatpush1.msra.mxu0 %v3360
    %3558 = vmatprep.subr.mxu0 %v3369
    %3559 = vmatpush1.msra.mxu0 %v3368
    %3560 = vmatprep.subr.mxu0 %v3377
    %3561 = vmatpush1.msra.mxu0 %v3376
    %3562 = vmatprep.subr.mxu0 0.0
    %3563 = vmatpush1.msra.mxu0 0.0
    %3564 = vmatprep.subr.mxu0 0.0
    %3565 = vmatpush1.msra.mxu0 0.0
    %3566 = vmatprep.subr.mxu0 0.0
    %3567 = vmatpush1.msra.mxu0 0.0
    %3568 = vmatprep.subr.mxu0 0.0
    %3569 = vmatpush1.msra.mxu0 0.0
    %3570 = vmatprep.subr.mxu0 0.0
    %3571 = vmatpush1.msra.mxu0 0.0
    %3572 = vmatprep.subr.mxu0 0.0
    %3573 = vmatpush1.msra.mxu0 0.0
    %3574 = vmatprep.subr.mxu0 0.0
    %3575 = vmatpush1.msra.mxu0 0.0
    %3576 = vmatprep.subr.mxu0 0.0
    %3577 = vmatpush1.msra.mxu0 0.0
    %3578 = vmatprep.subr.mxu0 0.0
    %3579 = vmatpush1.msra.mxu0 0.0
    %3580 = vmatprep.subr.mxu0 0.0
    %3581 = vmatpush1.msra.mxu0 0.0
    %3582 = vmatprep.subr.mxu0 0.0
    %3583 = vmatpush1.msra.mxu0 0.0
    %3584 = vmatprep.subr.mxu0 0.0
    %3585 = vmatpush1.msra.mxu0 0.0
    %3586 = vmatprep.subr.mxu0 0.0
    %3587 = vmatpush1.msra.mxu0 0.0
    %3588 = vmatprep.subr.mxu0 0.0
    %3589 = vmatpush1.msra.mxu0 0.0
    %3590 = vmatprep.subr.mxu0 0.0
    %3591 = vmatpush1.msra.mxu0 0.0
    %3592 = vmatprep.subr.mxu0 0.0
    %3593 = vmatpush1.msra.mxu0 0.0
    %3594 = vmatprep.mubr.f32.mxu0 0.0
    %3595 = vmatmul.mubr.f32.gmra.mrb[0].mxu0 %v3250
    %v3596 = vpop.f32.mrb[0].mxu0
    %v3597 = vpop.f32.mrb[0].mxu0
    %3598 = vmatprep.mubr.f32.mxu0 0.0
    %3599 = vmatmul.mubr.f32.gmra.mrb[0].mxu0 %v3251
    %v3600 = vpop.f32.mrb[0].mxu0
    %v3601 = vadd.f32 0.0, %v3600
    %v3602 = vpop.f32.mrb[0].mxu0
    %v3603 = vadd.f32 0.0, %v3602
    %3604 = vdwg.mxu0
    %3605 = vmatprep.subr.mxu0 %v3259
    %3606 = vmatpush1.msra.mxu0 %v3258
    %3607 = vmatprep.subr.mxu0 %v3267
    %3608 = vmatpush1.msra.mxu0 %v3266
    %3609 = vmatprep.subr.mxu0 %v3275
    %3610 = vmatpush1.msra.mxu0 %v3274
    %3611 = vmatprep.subr.mxu0 %v3283
    %3612 = vmatpush1.msra.mxu0 %v3282
    %3613 = vmatprep.subr.mxu0 %v3291
    %3614 = vmatpush1.msra.mxu0 %v3290
    %3615 = vmatprep.subr.mxu0 %v3299
    %3616 = vmatpush1.msra.mxu0 %v3298
    %3617 = vmatprep.subr.mxu0 %v3307
    %3618 = vmatpush1.msra.mxu0 %v3306
    %3619 = vmatprep.subr.mxu0 %v3315
    %3620 = vmatpush1.msra.mxu0 %v3314
    %3621 = vmatprep.subr.mxu0 %v3323
    %3622 = vmatpush1.msra.mxu0 %v3322
    %3623 = vmatprep.subr.mxu0 %v3331
    %3624 = vmatpush1.msra.mxu0 %v3330
    %3625 = vmatprep.subr.mxu0 %v3339
    %3626 = vmatpush1.msra.mxu0 %v3338
    %3627 = vmatprep.subr.mxu0 %v3347
    %3628 = vmatpush1.msra.mxu0 %v3346
    %3629 = vmatprep.subr.mxu0 %v3355
    %3630 = vmatpush1.msra.mxu0 %v3354
    %3631 = vmatprep.subr.mxu0 %v3363
    %3632 = vmatpush1.msra.mxu0 %v3362
    %3633 = vmatprep.subr.mxu0 %v3371
    %3634 = vmatpush1.msra.mxu0 %v3370
    %3635 = vmatprep.subr.mxu0 %v3379
    %3636 = vmatpush1.msra.mxu0 %v3378
    %3637 = vmatprep.subr.mxu0 0.0
    %3638 = vmatpush1.msra.mxu0 0.0
    %3639 = vmatprep.subr.mxu0 0.0
    %3640 = vmatpush1.msra.mxu0 0.0
    %3641 = vmatprep.subr.mxu0 0.0
    %3642 = vmatpush1.msra.mxu0 0.0
    %3643 = vmatprep.subr.mxu0 0.0
    %3644 = vmatpush1.msra.mxu0 0.0
    %3645 = vmatprep.subr.mxu0 0.0
    %3646 = vmatpush1.msra.mxu0 0.0
    %3647 = vmatprep.subr.mxu0 0.0
    %3648 = vmatpush1.msra.mxu0 0.0
    %3649 = vmatprep.subr.mxu0 0.0
    %3650 = vmatpush1.msra.mxu0 0.0
    %3651 = vmatprep.subr.mxu0 0.0
    %3652 = vmatpush1.msra.mxu0 0.0
    %3653 = vmatprep.subr.mxu0 0.0
    %3654 = vmatpush1.msra.mxu0 0.0
    %3655 = vmatprep.subr.mxu0 0.0
    %3656 = vmatpush1.msra.mxu0 0.0
    %3657 = vmatprep.subr.mxu0 0.0
    %3658 = vmatpush1.msra.mxu0 0.0
    %3659 = vmatprep.subr.mxu0 0.0
    %3660 = vmatpush1.msra.mxu0 0.0
    %3661 = vmatprep.subr.mxu0 0.0
    %3662 = vmatpush1.msra.mxu0 0.0
    %3663 = vmatprep.subr.mxu0 0.0
    %3664 = vmatpush1.msra.mxu0 0.0
    %3665 = vmatprep.subr.mxu0 0.0
    %3666 = vmatpush1.msra.mxu0 0.0
    %3667 = vmatprep.subr.mxu0 0.0
    %3668 = vmatpush1.msra.mxu0 0.0
    %3669 = vmatprep.mubr.f32.mxu0 0.0
    %3670 = vmatmul.mubr.f32.gmra.mrb[0].mxu0 %v3250
    %v3671 = vpop.f32.mrb[0].mxu0
    %v3672 = vpop.f32.mrb[0].mxu0
    %3673 = vmatprep.mubr.f32.mxu0 0.0
    %3674 = vmatmul.mubr.f32.gmra.mrb[0].mxu0 %v3251
    %v3675 = vpop.f32.mrb[0].mxu0
    %v3676 = vadd.f32 0.0, %v3675
    %v3677 = vpop.f32.mrb[0].mxu0
    %v3678 = vadd.f32 0.0, %v3677
    %3679 = vdwg.mxu0
    %v3680 = vld [vmem:[%s2163] sm:$0xff]
    %v3681 = vld [vmem:[%s2163 + $0x8] sm:$0xff]
    %v3682 = vld [vmem:[%s2163 + $0x10] sm:$0xff]
    %v3683 = vld [vmem:[%s2163 + $0x18] sm:$0xff]
    %v3684 = vadd.f32 %v3680, %v3447
    %v3685 = vadd.f32 %v3681, %v3449
    %v3686 = vadd.f32 %v3682, %v3522
    %v3687 = vadd.f32 %v3683, %v3524
    %v3688 = vld [vmem:[%s2152 + $0x20] sm:$0xff]
    %v3689 = vld [vmem:[%s2152 + $0x28] sm:$0xff]
    %v3690 = vld [vmem:[%s2152 + $0x30] sm:$0xff]
    %v3691 = vld [vmem:[%s2152 + $0x38] sm:$0xff]
    %v3692 = vadd.f32 %v3688, %v3601
    %v3693 = vadd.f32 %v3689, %v3603
    %v3694 = vadd.f32 %v3690, %v3676
    %v3695 = vadd.f32 %v3691, %v3678
    %v3696 = vld [vmem:[#allocation5] sm:$0xff]
    %v3697 = vxor.u32 %v3684, 2147483648
    %v3698 = vmul.f32 %v3697, 1.442695
    %v3699 = vpow.pop %v3698
    %v3700 = vadd.f32 %v3699, 1.0
    %v3701 = vrcp.pop %v3700
    %v3702 = vmul.f32 1.0, %v3701
    %v3703 = vxor.u32 %v3685, 2147483648
    %v3704 = vmul.f32 %v3703, 1.442695
    %v3705 = vpow.pop %v3704
    %v3706 = vadd.f32 %v3705, 1.0
    %v3707 = vrcp.pop %v3706
    %v3708 = vmul.f32 1.0, %v3707
    %v3709 = vtanh.pop %v3686
    %v3710 = vxor.u32 %v3687, 2147483648
    %v3711 = vmul.f32 %v3710, 1.442695
    %v3712 = vpow.pop %v3711
    %v3713 = vadd.f32 %v3712, 1.0
    %v3714 = vrcp.pop %v3713
    %v3715 = vmul.f32 1.0, %v3714
    %v3716 = vmul.f32 %v3708, %v3696
    %v3717 = vmul.f32 %v3702, %v3709
    %v3718 = vadd.f32 %v3716, %v3717
    %v3719 = vtanh.pop %v3718
    %v3720 = vmul.f32 %v3715, %v3719
    %v3721 = vld [vmem:[#allocation5 + $0x8] sm:$0xff]
    %v3722 = vxor.u32 %v3692, 2147483648
    %v3723 = vmul.f32 %v3722, 1.442695
    %v3724 = vpow.pop %v3723
    %v3725 = vadd.f32 %v3724, 1.0
    %v3726 = vrcp.pop %v3725
    %v3727 = vmul.f32 1.0, %v3726
    %v3728 = vxor.u32 %v3693, 2147483648
    %v3729 = vmul.f32 %v3728, 1.442695
    %v3730 = vpow.pop %v3729
    %v3731 = vadd.f32 %v3730, 1.0
    %v3732 = vrcp.pop %v3731
    %v3733 = vmul.f32 1.0, %v3732
    %v3734 = vtanh.pop %v3694
    %v3735 = vxor.u32 %v3695, 2147483648
    %v3736 = vmul.f32 %v3735, 1.442695
    %v3737 = vpow.pop %v3736
    %v3738 = vadd.f32 %v3737, 1.0
    %v3739 = vrcp.pop %v3738
    %v3740 = vmul.f32 1.0, %v3739
    %v3741 = vmul.f32 %v3733, %v3721
    %v3742 = vmul.f32 %v3727, %v3734
    %v3743 = vadd.f32 %v3741, %v3742
    %v3744 = vtanh.pop %v3743
    %v3745 = vmul.f32 %v3740, %v3744
    %3746 = vst [vmem:[#allocation4] sm:$0xff] %v3720
    %3747 = vst [vmem:[#allocation4 + $0x8] sm:$0xff] %v3745
    %3748 = vst [vmem:[#allocation5] sm:$0xff] %v3718
    %3749 = vst [vmem:[#allocation5 + $0x8] sm:$0xff] %v3743
    %3750 = vst [vmem:[%s2232] sm:$0xff] %v3720
    %3751 = vst [vmem:[%s2228 + $0x8] sm:$0xff] %v3745
    %v3752 = vld [vmem:[#allocation4] sm:$0xff]
    %v3753 = vld [vmem:[#allocation4 + $0x8] sm:$0xff]
    %v3754 = vld [vmem:[#allocation8] sm:$0xff]
    %v3755 = vld [vmem:[#allocation8 + $0x8] sm:$0xff]
    %v3756 = vld [vmem:[#allocation8 + $0x10] sm:$0xff]
    %v3757 = vld [vmem:[#allocation8 + $0x18] sm:$0xff]
    %v3758 = vld [vmem:[#allocation8 + $0x20] sm:$0xff]
    %v3759 = vld [vmem:[#allocation8 + $0x28] sm:$0xff]
    %v3760 = vld [vmem:[#allocation8 + $0x30] sm:$0xff]
    %v3761 = vld [vmem:[#allocation8 + $0x38] sm:$0xff]
    %v3762 = vld [vmem:[#allocation8 + $0x40] sm:$0xff]
    %v3763 = vld [vmem:[#allocation8 + $0x48] sm:$0xff]
    %v3764 = vld [vmem:[#allocation8 + $0x50] sm:$0xff]
    %v3765 = vld [vmem:[#allocation8 + $0x58] sm:$0xff]
    %v3766 = vld [vmem:[#allocation8 + $0x60] sm:$0xff]
    %v3767 = vld [vmem:[#allocation8 + $0x68] sm:$0xff]
    %v3768 = vld [vmem:[#allocation8 + $0x70] sm:$0xff]
    %v3769 = vld [vmem:[#allocation8 + $0x78] sm:$0xff]
    %v3770 = vld [vmem:[#allocation8 + $0x80] sm:$0xff]
    %v3771 = vld [vmem:[#allocation8 + $0x88] sm:$0xff]
    %v3772 = vld [vmem:[#allocation8 + $0x90] sm:$0xff]
    %v3773 = vld [vmem:[#allocation8 + $0x98] sm:$0xff]
    %v3774 = vld [vmem:[#allocation8 + $0xa0] sm:$0xff]
    %v3775 = vld [vmem:[#allocation8 + $0xa8] sm:$0xff]
    %v3776 = vld [vmem:[#allocation8 + $0xb0] sm:$0xff]
    %v3777 = vld [vmem:[#allocation8 + $0xb8] sm:$0xff]
    %v3778 = vld [vmem:[#allocation8 + $0xc0] sm:$0xff]
    %v3779 = vld [vmem:[#allocation8 + $0xc8] sm:$0xff]
    %v3780 = vld [vmem:[#allocation8 + $0xd0] sm:$0xff]
    %v3781 = vld [vmem:[#allocation8 + $0xd8] sm:$0xff]
    %v3782 = vld [vmem:[#allocation8 + $0xe0] sm:$0xff]
    %v3783 = vld [vmem:[#allocation8 + $0xe8] sm:$0xff]
    %v3784 = vld [vmem:[#allocation8 + $0xf0] sm:$0xff]
    %v3785 = vld [vmem:[#allocation8 + $0xf8] sm:$0xff]
    %v3786 = vld [vmem:[#allocation8 + $0x100] sm:$0xff]
    %v3787 = vld [vmem:[#allocation8 + $0x108] sm:$0xff]
    %v3788 = vld [vmem:[#allocation8 + $0x110] sm:$0xff]
    %v3789 = vld [vmem:[#allocation8 + $0x118] sm:$0xff]
    %v3790 = vld [vmem:[#allocation8 + $0x120] sm:$0xff]
    %v3791 = vld [vmem:[#allocation8 + $0x128] sm:$0xff]
    %v3792 = vld [vmem:[#allocation8 + $0x130] sm:$0xff]
    %v3793 = vld [vmem:[#allocation8 + $0x138] sm:$0xff]
    %v3794 = vld [vmem:[#allocation8 + $0x140] sm:$0xff]
    %v3795 = vld [vmem:[#allocation8 + $0x148] sm:$0xff]
    %v3796 = vld [vmem:[#allocation8 + $0x150] sm:$0xff]
    %v3797 = vld [vmem:[#allocation8 + $0x158] sm:$0xff]
    %v3798 = vld [vmem:[#allocation8 + $0x160] sm:$0xff]
    %v3799 = vld [vmem:[#allocation8 + $0x168] sm:$0xff]
    %v3800 = vld [vmem:[#allocation8 + $0x170] sm:$0xff]
    %v3801 = vld [vmem:[#allocation8 + $0x178] sm:$0xff]
    %v3802 = vld [vmem:[#allocation8 + $0x180] sm:$0xff]
    %v3803 = vld [vmem:[#allocation8 + $0x188] sm:$0xff]
    %v3804 = vld [vmem:[#allocation8 + $0x190] sm:$0xff]
    %v3805 = vld [vmem:[#allocation8 + $0x198] sm:$0xff]
    %v3806 = vld [vmem:[#allocation8 + $0x1a0] sm:$0xff]
    %v3807 = vld [vmem:[#allocation8 + $0x1a8] sm:$0xff]
    %v3808 = vld [vmem:[#allocation8 + $0x1b0] sm:$0xff]
    %v3809 = vld [vmem:[#allocation8 + $0x1b8] sm:$0xff]
    %v3810 = vld [vmem:[#allocation8 + $0x1c0] sm:$0xff]
    %v3811 = vld [vmem:[#allocation8 + $0x1c8] sm:$0xff]
    %v3812 = vld [vmem:[#allocation8 + $0x1d0] sm:$0xff]
    %v3813 = vld [vmem:[#allocation8 + $0x1d8] sm:$0xff]
    %v3814 = vld [vmem:[#allocation8 + $0x1e0] sm:$0xff]
    %v3815 = vld [vmem:[#allocation8 + $0x1e8] sm:$0xff]
    %v3816 = vld [vmem:[#allocation8 + $0x1f0] sm:$0xff]
    %v3817 = vld [vmem:[#allocation8 + $0x1f8] sm:$0xff]
    %v3818 = vld [vmem:[#allocation8 + $0x200] sm:$0xff]
    %v3819 = vld [vmem:[#allocation8 + $0x208] sm:$0xff]
    %v3820 = vld [vmem:[#allocation8 + $0x210] sm:$0xff]
    %v3821 = vld [vmem:[#allocation8 + $0x218] sm:$0xff]
    %v3822 = vld [vmem:[#allocation8 + $0x220] sm:$0xff]
    %v3823 = vld [vmem:[#allocation8 + $0x228] sm:$0xff]
    %v3824 = vld [vmem:[#allocation8 + $0x230] sm:$0xff]
    %v3825 = vld [vmem:[#allocation8 + $0x238] sm:$0xff]
    %v3826 = vld [vmem:[#allocation8 + $0x240] sm:$0xff]
    %v3827 = vld [vmem:[#allocation8 + $0x248] sm:$0xff]
    %v3828 = vld [vmem:[#allocation8 + $0x250] sm:$0xff]
    %v3829 = vld [vmem:[#allocation8 + $0x258] sm:$0xff]
    %v3830 = vld [vmem:[#allocation8 + $0x260] sm:$0xff]
    %v3831 = vld [vmem:[#allocation8 + $0x268] sm:$0xff]
    %v3832 = vld [vmem:[#allocation8 + $0x270] sm:$0xff]
    %v3833 = vld [vmem:[#allocation8 + $0x278] sm:$0xff]
    %v3834 = vld [vmem:[#allocation8 + $0x280] sm:$0xff]
    %v3835 = vld [vmem:[#allocation8 + $0x288] sm:$0xff]
    %v3836 = vld [vmem:[#allocation8 + $0x290] sm:$0xff]
    %v3837 = vld [vmem:[#allocation8 + $0x298] sm:$0xff]
    %v3838 = vld [vmem:[#allocation8 + $0x2a0] sm:$0xff]
    %v3839 = vld [vmem:[#allocation8 + $0x2a8] sm:$0xff]
    %v3840 = vld [vmem:[#allocation8 + $0x2b0] sm:$0xff]
    %v3841 = vld [vmem:[#allocation8 + $0x2b8] sm:$0xff]
    %v3842 = vld [vmem:[#allocation8 + $0x2c0] sm:$0xff]
    %v3843 = vld [vmem:[#allocation8 + $0x2c8] sm:$0xff]
    %v3844 = vld [vmem:[#allocation8 + $0x2d0] sm:$0xff]
    %v3845 = vld [vmem:[#allocation8 + $0x2d8] sm:$0xff]
    %v3846 = vld [vmem:[#allocation8 + $0x2e0] sm:$0xff]
    %v3847 = vld [vmem:[#allocation8 + $0x2e8] sm:$0xff]
    %v3848 = vld [vmem:[#allocation8 + $0x2f0] sm:$0xff]
    %v3849 = vld [vmem:[#allocation8 + $0x2f8] sm:$0xff]
    %v3850 = vld [vmem:[#allocation8 + $0x300] sm:$0xff]
    %v3851 = vld [vmem:[#allocation8 + $0x308] sm:$0xff]
    %v3852 = vld [vmem:[#allocation8 + $0x310] sm:$0xff]
    %v3853 = vld [vmem:[#allocation8 + $0x318] sm:$0xff]
    %v3854 = vld [vmem:[#allocation8 + $0x320] sm:$0xff]
    %v3855 = vld [vmem:[#allocation8 + $0x328] sm:$0xff]
    %v3856 = vld [vmem:[#allocation8 + $0x330] sm:$0xff]
    %v3857 = vld [vmem:[#allocation8 + $0x338] sm:$0xff]
    %v3858 = vld [vmem:[#allocation8 + $0x340] sm:$0xff]
    %v3859 = vld [vmem:[#allocation8 + $0x348] sm:$0xff]
    %v3860 = vld [vmem:[#allocation8 + $0x350] sm:$0xff]
    %v3861 = vld [vmem:[#allocation8 + $0x358] sm:$0xff]
    %v3862 = vld [vmem:[#allocation8 + $0x360] sm:$0xff]
    %v3863 = vld [vmem:[#allocation8 + $0x368] sm:$0xff]
    %v3864 = vld [vmem:[#allocation8 + $0x370] sm:$0xff]
    %v3865 = vld [vmem:[#allocation8 + $0x378] sm:$0xff]
    %v3866 = vld [vmem:[#allocation8 + $0x380] sm:$0xff]
    %v3867 = vld [vmem:[#allocation8 + $0x388] sm:$0xff]
    %v3868 = vld [vmem:[#allocation8 + $0x390] sm:$0xff]
    %v3869 = vld [vmem:[#allocation8 + $0x398] sm:$0xff]
    %v3870 = vld [vmem:[#allocation8 + $0x3a0] sm:$0xff]
    %v3871 = vld [vmem:[#allocation8 + $0x3a8] sm:$0xff]
    %v3872 = vld [vmem:[#allocation8 + $0x3b0] sm:$0xff]
    %v3873 = vld [vmem:[#allocation8 + $0x3b8] sm:$0xff]
    %v3874 = vld [vmem:[#allocation8 + $0x3c0] sm:$0xff]
    %v3875 = vld [vmem:[#allocation8 + $0x3c8] sm:$0xff]
    %v3876 = vld [vmem:[#allocation8 + $0x3d0] sm:$0xff]
    %v3877 = vld [vmem:[#allocation8 + $0x3d8] sm:$0xff]
    %v3878 = vld [vmem:[#allocation8 + $0x3e0] sm:$0xff]
    %v3879 = vld [vmem:[#allocation8 + $0x3e8] sm:$0xff]
    %v3880 = vld [vmem:[#allocation8 + $0x3f0] sm:$0xff]
    %v3881 = vld [vmem:[#allocation8 + $0x3f8] sm:$0xff]
    %3882 = vmatprep.subr.mxu0 %v3755
    %3883 = vmatpush1.msra.mxu0 %v3754
    %3884 = vmatprep.subr.mxu0 %v3763
    %3885 = vmatpush1.msra.mxu0 %v3762
    %3886 = vmatprep.subr.mxu0 %v3771
    %3887 = vmatpush1.msra.mxu0 %v3770
    %3888 = vmatprep.subr.mxu0 %v3779
    %3889 = vmatpush1.msra.mxu0 %v3778
    %3890 = vmatprep.subr.mxu0 %v3787
    %3891 = vmatpush1.msra.mxu0 %v3786
    %3892 = vmatprep.subr.mxu0 %v3795
    %3893 = vmatpush1.msra.mxu0 %v3794
    %3894 = vmatprep.subr.mxu0 %v3803
    %3895 = vmatpush1.msra.mxu0 %v3802
    %3896 = vmatprep.subr.mxu0 %v3811
    %3897 = vmatpush1.msra.mxu0 %v3810
    %3898 = vmatprep.subr.mxu0 %v3819
    %3899 = vmatpush1.msra.mxu0 %v3818
    %3900 = vmatprep.subr.mxu0 %v3827
    %3901 = vmatpush1.msra.mxu0 %v3826
    %3902 = vmatprep.subr.mxu0 %v3835
    %3903 = vmatpush1.msra.mxu0 %v3834
    %3904 = vmatprep.subr.mxu0 %v3843
    %3905 = vmatpush1.msra.mxu0 %v3842
    %3906 = vmatprep.subr.mxu0 %v3851
    %3907 = vmatpush1.msra.mxu0 %v3850
    %3908 = vmatprep.subr.mxu0 %v3859
    %3909 = vmatpush1.msra.mxu0 %v3858
    %3910 = vmatprep.subr.mxu0 %v3867
    %3911 = vmatpush1.msra.mxu0 %v3866
    %3912 = vmatprep.subr.mxu0 %v3875
    %3913 = vmatpush1.msra.mxu0 %v3874
    %3914 = vmatprep.subr.mxu0 0.0
    %3915 = vmatpush1.msra.mxu0 0.0
    %3916 = vmatprep.subr.mxu0 0.0
    %3917 = vmatpush1.msra.mxu0 0.0
    %3918 = vmatprep.subr.mxu0 0.0
    %3919 = vmatpush1.msra.mxu0 0.0
    %3920 = vmatprep.subr.mxu0 0.0
    %3921 = vmatpush1.msra.mxu0 0.0
    %3922 = vmatprep.subr.mxu0 0.0
    %3923 = vmatpush1.msra.mxu0 0.0
    %3924 = vmatprep.subr.mxu0 0.0
    %3925 = vmatpush1.msra.mxu0 0.0
    %3926 = vmatprep.subr.mxu0 0.0
    %3927 = vmatpush1.msra.mxu0 0.0
    %3928 = vmatprep.subr.mxu0 0.0
    %3929 = vmatpush1.msra.mxu0 0.0
    %3930 = vmatprep.subr.mxu0 0.0
    %3931 = vmatpush1.msra.mxu0 0.0
    %3932 = vmatprep.subr.mxu0 0.0
    %3933 = vmatpush1.msra.mxu0 0.0
    %3934 = vmatprep.subr.mxu0 0.0
    %3935 = vmatpush1.msra.mxu0 0.0
    %3936 = vmatprep.subr.mxu0 0.0
    %3937 = vmatpush1.msra.mxu0 0.0
    %3938 = vmatprep.subr.mxu0 0.0
    %3939 = vmatpush1.msra.mxu0 0.0
    %3940 = vmatprep.subr.mxu0 0.0
    %3941 = vmatpush1.msra.mxu0 0.0
    %3942 = vmatprep.subr.mxu0 0.0
    %3943 = vmatpush1.msra.mxu0 0.0
    %3944 = vmatprep.subr.mxu0 0.0
    %3945 = vmatpush1.msra.mxu0 0.0
    %3946 = vmatprep.mubr.f32.mxu0 0.0
    %3947 = vmatmul.mubr.f32.gmra.mrb[0].mxu0 %v3752
    %v3948 = vpop.f32.mrb[0].mxu0
    %v3949 = vadd.f32 0.0, %v3948
    %v3950 = vpop.f32.mrb[0].mxu0
    %v3951 = vadd.f32 0.0, %v3950
    %3952 = vmatprep.mubr.f32.mxu0 0.0
    %3953 = vmatmul.mubr.f32.gmra.mrb[0].mxu0 %v3753
    %v3954 = vpop.f32.mrb[0].mxu0
    %v3955 = vpop.f32.mrb[0].mxu0
    %3956 = vdwg.mxu0
    %3957 = vmatprep.subr.mxu0 %v3757
    %3958 = vmatpush1.msra.mxu0 %v3756
    %3959 = vmatprep.subr.mxu0 %v3765
    %3960 = vmatpush1.msra.mxu0 %v3764
    %3961 = vmatprep.subr.mxu0 %v3773
    %3962 = vmatpush1.msra.mxu0 %v3772
    %3963 = vmatprep.subr.mxu0 %v3781
    %3964 = vmatpush1.msra.mxu0 %v3780
    %3965 = vmatprep.subr.mxu0 %v3789
    %3966 = vmatpush1.msra.mxu0 %v3788
    %3967 = vmatprep.subr.mxu0 %v3797
    %3968 = vmatpush1.msra.mxu0 %v3796
    %3969 = vmatprep.subr.mxu0 %v3805
    %3970 = vmatpush1.msra.mxu0 %v3804
    %3971 = vmatprep.subr.mxu0 %v3813
    %3972 = vmatpush1.msra.mxu0 %v3812
    %3973 = vmatprep.subr.mxu0 %v3821
    %3974 = vmatpush1.msra.mxu0 %v3820
    %3975 = vmatprep.subr.mxu0 %v3829
    %3976 = vmatpush1.msra.mxu0 %v3828
    %3977 = vmatprep.subr.mxu0 %v3837
    %3978 = vmatpush1.msra.mxu0 %v3836
    %3979 = vmatprep.subr.mxu0 %v3845
    %3980 = vmatpush1.msra.mxu0 %v3844
    %3981 = vmatprep.subr.mxu0 %v3853
    %3982 = vmatpush1.msra.mxu0 %v3852
    %3983 = vmatprep.subr.mxu0 %v3861
    %3984 = vmatpush1.msra.mxu0 %v3860
    %3985 = vmatprep.subr.mxu0 %v3869
    %3986 = vmatpush1.msra.mxu0 %v3868
    %3987 = vmatprep.subr.mxu0 %v3877
    %3988 = vmatpush1.msra.mxu0 %v3876
    %3989 = vmatprep.subr.mxu0 0.0
    %3990 = vmatpush1.msra.mxu0 0.0
    %3991 = vmatprep.subr.mxu0 0.0
    %3992 = vmatpush1.msra.mxu0 0.0
    %3993 = vmatprep.subr.mxu0 0.0
    %3994 = vmatpush1.msra.mxu0 0.0
    %3995 = vmatprep.subr.mxu0 0.0
    %3996 = vmatpush1.msra.mxu0 0.0
    %3997 = vmatprep.subr.mxu0 0.0
    %3998 = vmatpush1.msra.mxu0 0.0
    %3999 = vmatprep.subr.mxu0 0.0
    %4000 = vmatpush1.msra.mxu0 0.0
    %4001 = vmatprep.subr.mxu0 0.0
    %4002 = vmatpush1.msra.mxu0 0.0
    %4003 = vmatprep.subr.mxu0 0.0
    %4004 = vmatpush1.msra.mxu0 0.0
    %4005 = vmatprep.subr.mxu0 0.0
    %4006 = vmatpush1.msra.mxu0 0.0
    %4007 = vmatprep.subr.mxu0 0.0
    %4008 = vmatpush1.msra.mxu0 0.0
    %4009 = vmatprep.subr.mxu0 0.0
    %4010 = vmatpush1.msra.mxu0 0.0
    %4011 = vmatprep.subr.mxu0 0.0
    %4012 = vmatpush1.msra.mxu0 0.0
    %4013 = vmatprep.subr.mxu0 0.0
    %4014 = vmatpush1.msra.mxu0 0.0
    %4015 = vmatprep.subr.mxu0 0.0
    %4016 = vmatpush1.msra.mxu0 0.0
    %4017 = vmatprep.subr.mxu0 0.0
    %4018 = vmatpush1.msra.mxu0 0.0
    %4019 = vmatprep.subr.mxu0 0.0
    %4020 = vmatpush1.msra.mxu0 0.0
    %4021 = vmatprep.mubr.f32.mxu0 0.0
    %4022 = vmatmul.mubr.f32.gmra.mrb[0].mxu0 %v3752
    %v4023 = vpop.f32.mrb[0].mxu0
    %v4024 = vadd.f32 0.0, %v4023
    %v4025 = vpop.f32.mrb[0].mxu0
    %v4026 = vadd.f32 0.0, %v4025
    %4027 = vmatprep.mubr.f32.mxu0 0.0
    %4028 = vmatmul.mubr.f32.gmra.mrb[0].mxu0 %v3753
    %v4029 = vpop.f32.mrb[0].mxu0
    %v4030 = vpop.f32.mrb[0].mxu0
    %4031 = vdwg.mxu0
    %4032 = vmatprep.subr.mxu0 %v3759
    %4033 = vmatpush1.msra.mxu0 %v3758
    %4034 = vmatprep.subr.mxu0 %v3767
    %4035 = vmatpush1.msra.mxu0 %v3766
    %4036 = vmatprep.subr.mxu0 %v3775
    %4037 = vmatpush1.msra.mxu0 %v3774
    %4038 = vmatprep.subr.mxu0 %v3783
    %4039 = vmatpush1.msra.mxu0 %v3782
    %4040 = vmatprep.subr.mxu0 %v3791
    %4041 = vmatpush1.msra.mxu0 %v3790
    %4042 = vmatprep.subr.mxu0 %v3799
    %4043 = vmatpush1.msra.mxu0 %v3798
    %4044 = vmatprep.subr.mxu0 %v3807
    %4045 = vmatpush1.msra.mxu0 %v3806
    %4046 = vmatprep.subr.mxu0 %v3815
    %4047 = vmatpush1.msra.mxu0 %v3814
    %4048 = vmatprep.subr.mxu0 %v3823
    %4049 = vmatpush1.msra.mxu0 %v3822
    %4050 = vmatprep.subr.mxu0 %v3831
    %4051 = vmatpush1.msra.mxu0 %v3830
    %4052 = vmatprep.subr.mxu0 %v3839
    %4053 = vmatpush1.msra.mxu0 %v3838
    %4054 = vmatprep.subr.mxu0 %v3847
    %4055 = vmatpush1.msra.mxu0 %v3846
    %4056 = vmatprep.subr.mxu0 %v3855
    %4057 = vmatpush1.msra.mxu0 %v3854
    %4058 = vmatprep.subr.mxu0 %v3863
    %4059 = vmatpush1.msra.mxu0 %v3862
    %4060 = vmatprep.subr.mxu0 %v3871
    %4061 = vmatpush1.msra.mxu0 %v3870
    %4062 = vmatprep.subr.mxu0 %v3879
    %4063 = vmatpush1.msra.mxu0 %v3878
    %4064 = vmatprep.subr.mxu0 0.0
    %4065 = vmatpush1.msra.mxu0 0.0
    %4066 = vmatprep.subr.mxu0 0.0
    %4067 = vmatpush1.msra.mxu0 0.0
    %4068 = vmatprep.subr.mxu0 0.0
    %4069 = vmatpush1.msra.mxu0 0.0
    %4070 = vmatprep.subr.mxu0 0.0
    %4071 = vmatpush1.msra.mxu0 0.0
    %4072 = vmatprep.subr.mxu0 0.0
    %4073 = vmatpush1.msra.mxu0 0.0
    %4074 = vmatprep.subr.mxu0 0.0
    %4075 = vmatpush1.msra.mxu0 0.0
    %4076 = vmatprep.subr.mxu0 0.0
    %4077 = vmatpush1.msra.mxu0 0.0
    %4078 = vmatprep.subr.mxu0 0.0
    %4079 = vmatpush1.msra.mxu0 0.0
    %4080 = vmatprep.subr.mxu0 0.0
    %4081 = vmatpush1.msra.mxu0 0.0
    %4082 = vmatprep.subr.mxu0 0.0
    %4083 = vmatpush1.msra.mxu0 0.0
    %4084 = vmatprep.subr.mxu0 0.0
    %4085 = vmatpush1.msra.mxu0 0.0
    %4086 = vmatprep.subr.mxu0 0.0
    %4087 = vmatpush1.msra.mxu0 0.0
    %4088 = vmatprep.subr.mxu0 0.0
    %4089 = vmatpush1.msra.mxu0 0.0
    %4090 = vmatprep.subr.mxu0 0.0
    %4091 = vmatpush1.msra.mxu0 0.0
    %4092 = vmatprep.subr.mxu0 0.0
    %4093 = vmatpush1.msra.mxu0 0.0
    %4094 = vmatprep.subr.mxu0 0.0
    %4095 = vmatpush1.msra.mxu0 0.0
    %4096 = vmatprep.mubr.f32.mxu0 0.0
    %4097 = vmatmul.mubr.f32.gmra.mrb[0].mxu0 %v3752
    %v4098 = vpop.f32.mrb[0].mxu0
    %v4099 = vpop.f32.mrb[0].mxu0
    %4100 = vmatprep.mubr.f32.mxu0 0.0
    %4101 = vmatmul.mubr.f32.gmra.mrb[0].mxu0 %v3753
    %v4102 = vpop.f32.mrb[0].mxu0
    %v4103 = vadd.f32 0.0, %v4102
    %v4104 = vpop.f32.mrb[0].mxu0
    %v4105 = vadd.f32 0.0, %v4104
    %4106 = vdwg.mxu0
    %4107 = vmatprep.subr.mxu0 %v3761
    %4108 = vmatpush1.msra.mxu0 %v3760
    %4109 = vmatprep.subr.mxu0 %v3769
    %4110 = vmatpush1.msra.mxu0 %v3768
    %4111 = vmatprep.subr.mxu0 %v3777
    %4112 = vmatpush1.msra.mxu0 %v3776
    %4113 = vmatprep.subr.mxu0 %v3785
    %4114 = vmatpush1.msra.mxu0 %v3784
    %4115 = vmatprep.subr.mxu0 %v3793
    %4116 = vmatpush1.msra.mxu0 %v3792
    %4117 = vmatprep.subr.mxu0 %v3801
    %4118 = vmatpush1.msra.mxu0 %v3800
    %4119 = vmatprep.subr.mxu0 %v3809
    %4120 = vmatpush1.msra.mxu0 %v3808
    %4121 = vmatprep.subr.mxu0 %v3817
    %4122 = vmatpush1.msra.mxu0 %v3816
    %4123 = vmatprep.subr.mxu0 %v3825
    %4124 = vmatpush1.msra.mxu0 %v3824
    %4125 = vmatprep.subr.mxu0 %v3833
    %4126 = vmatpush1.msra.mxu0 %v3832
    %4127 = vmatprep.subr.mxu0 %v3841
    %4128 = vmatpush1.msra.mxu0 %v3840
    %4129 = vmatprep.subr.mxu0 %v3849
    %4130 = vmatpush1.msra.mxu0 %v3848
    %4131 = vmatprep.subr.mxu0 %v3857
    %4132 = vmatpush1.msra.mxu0 %v3856
    %4133 = vmatprep.subr.mxu0 %v3865
    %4134 = vmatpush1.msra.mxu0 %v3864
    %4135 = vmatprep.subr.mxu0 %v3873
    %4136 = vmatpush1.msra.mxu0 %v3872
    %4137 = vmatprep.subr.mxu0 %v3881
    %4138 = vmatpush1.msra.mxu0 %v3880
    %4139 = vmatprep.subr.mxu0 0.0
    %4140 = vmatpush1.msra.mxu0 0.0
    %4141 = vmatprep.subr.mxu0 0.0
    %4142 = vmatpush1.msra.mxu0 0.0
    %4143 = vmatprep.subr.mxu0 0.0
    %4144 = vmatpush1.msra.mxu0 0.0
    %4145 = vmatprep.subr.mxu0 0.0
    %4146 = vmatpush1.msra.mxu0 0.0
    %4147 = vmatprep.subr.mxu0 0.0
    %4148 = vmatpush1.msra.mxu0 0.0
    %4149 = vmatprep.subr.mxu0 0.0
    %4150 = vmatpush1.msra.mxu0 0.0
    %4151 = vmatprep.subr.mxu0 0.0
    %4152 = vmatpush1.msra.mxu0 0.0
    %4153 = vmatprep.subr.mxu0 0.0
    %4154 = vmatpush1.msra.mxu0 0.0
    %4155 = vmatprep.subr.mxu0 0.0
    %4156 = vmatpush1.msra.mxu0 0.0
    %4157 = vmatprep.subr.mxu0 0.0
    %4158 = vmatpush1.msra.mxu0 0.0
    %4159 = vmatprep.subr.mxu0 0.0
    %4160 = vmatpush1.msra.mxu0 0.0
    %4161 = vmatprep.subr.mxu0 0.0
    %4162 = vmatpush1.msra.mxu0 0.0
    %4163 = vmatprep.subr.mxu0 0.0
    %4164 = vmatpush1.msra.mxu0 0.0
    %4165 = vmatprep.subr.mxu0 0.0
    %4166 = vmatpush1.msra.mxu0 0.0
    %4167 = vmatprep.subr.mxu0 0.0
    %4168 = vmatpush1.msra.mxu0 0.0
    %4169 = vmatprep.subr.mxu0 0.0
    %4170 = vmatpush1.msra.mxu0 0.0
    %4171 = vmatprep.mubr.f32.mxu0 0.0
    %4172 = vmatmul.mubr.f32.gmra.mrb[0].mxu0 %v3752
    %v4173 = vpop.f32.mrb[0].mxu0
    %v4174 = vpop.f32.mrb[0].mxu0
    %4175 = vmatprep.mubr.f32.mxu0 0.0
    %4176 = vmatmul.mubr.f32.gmra.mrb[0].mxu0 %v3753
    %v4177 = vpop.f32.mrb[0].mxu0
    %v4178 = vadd.f32 0.0, %v4177
    %v4179 = vpop.f32.mrb[0].mxu0
    %v4180 = vadd.f32 0.0, %v4179
    %4181 = vdwg.mxu0
    %v4182 = vld [vmem:[%s1649] sm:$0xff]
    %v4183 = vld [vmem:[%s1649 + $0x8] sm:$0xff]
    %v4184 = vld [vmem:[%s1649 + $0x10] sm:$0xff]
    %v4185 = vld [vmem:[%s1649 + $0x18] sm:$0xff]
    %v4186 = vadd.f32 %v4182, %v3949
    %v4187 = vadd.f32 %v4183, %v3951
    %v4188 = vadd.f32 %v4184, %v4024
    %v4189 = vadd.f32 %v4185, %v4026
    %v4190 = vld [vmem:[%s1638 + $0x20] sm:$0xff]
    %v4191 = vld [vmem:[%s1638 + $0x28] sm:$0xff]
    %v4192 = vld [vmem:[%s1638 + $0x30] sm:$0xff]
    %v4193 = vld [vmem:[%s1638 + $0x38] sm:$0xff]
    %v4194 = vadd.f32 %v4190, %v4103
    %v4195 = vadd.f32 %v4191, %v4105
    %v4196 = vadd.f32 %v4192, %v4178
    %v4197 = vadd.f32 %v4193, %v4180
    %v4198 = vld [vmem:[#allocation5] sm:$0xff]
    %v4199 = vxor.u32 %v4186, 2147483648
    %v4200 = vmul.f32 %v4199, 1.442695
    %v4201 = vpow.pop %v4200
    %v4202 = vadd.f32 %v4201, 1.0
    %v4203 = vrcp.pop %v4202
    %v4204 = vmul.f32 1.0, %v4203
    %v4205 = vxor.u32 %v4187, 2147483648
    %v4206 = vmul.f32 %v4205, 1.442695
    %v4207 = vpow.pop %v4206
    %v4208 = vadd.f32 %v4207, 1.0
    %v4209 = vrcp.pop %v4208
    %v4210 = vmul.f32 1.0, %v4209
    %v4211 = vtanh.pop %v4188
    %v4212 = vxor.u32 %v4189, 2147483648
    %v4213 = vmul.f32 %v4212, 1.442695
    %v4214 = vpow.pop %v4213
    %v4215 = vadd.f32 %v4214, 1.0
    %v4216 = vrcp.pop %v4215
    %v4217 = vmul.f32 1.0, %v4216
    %v4218 = vmul.f32 %v4210, %v4198
    %v4219 = vmul.f32 %v4204, %v4211
    %v4220 = vadd.f32 %v4218, %v4219
    %v4221 = vtanh.pop %v4220
    %v4222 = vmul.f32 %v4217, %v4221
    %v4223 = vld [vmem:[#allocation5 + $0x8] sm:$0xff]
    %v4224 = vxor.u32 %v4194, 2147483648
    %v4225 = vmul.f32 %v4224, 1.442695
    %v4226 = vpow.pop %v4225
    %v4227 = vadd.f32 %v4226, 1.0
    %v4228 = vrcp.pop %v4227
    %v4229 = vmul.f32 1.0, %v4228
    %v4230 = vxor.u32 %v4195, 2147483648
    %v4231 = vmul.f32 %v4230, 1.442695
    %v4232 = vpow.pop %v4231
    %v4233 = vadd.f32 %v4232, 1.0
    %v4234 = vrcp.pop %v4233
    %v4235 = vmul.f32 1.0, %v4234
    %v4236 = vtanh.pop %v4196
    %v4237 = vxor.u32 %v4197, 2147483648
    %v4238 = vmul.f32 %v4237, 1.442695
    %v4239 = vpow.pop %v4238
    %v4240 = vadd.f32 %v4239, 1.0
    %v4241 = vrcp.pop %v4240
    %v4242 = vmul.f32 1.0, %v4241
    %v4243 = vmul.f32 %v4235, %v4223
    %v4244 = vmul.f32 %v4229, %v4236
    %v4245 = vadd.f32 %v4243, %v4244
    %v4246 = vtanh.pop %v4245
    %v4247 = vmul.f32 %v4242, %v4246
    %4248 = vst [vmem:[#allocation4] sm:$0xff] %v4222
    %4249 = vst [vmem:[#allocation4 + $0x8] sm:$0xff] %v4247
    %4250 = vst [vmem:[#allocation5] sm:$0xff] %v4220
    %4251 = vst [vmem:[#allocation5 + $0x8] sm:$0xff] %v4245
    %4252 = vst [vmem:[%s1718] sm:$0xff] %v4222
    %4253 = vst [vmem:[%s1714 + $0x8] sm:$0xff] %v4247
    %v4254 = vld [vmem:[#allocation4] sm:$0xff]
    %v4255 = vld [vmem:[#allocation4 + $0x8] sm:$0xff]
    %v4256 = vld [vmem:[#allocation8] sm:$0xff]
    %v4257 = vld [vmem:[#allocation8 + $0x8] sm:$0xff]
    %v4258 = vld [vmem:[#allocation8 + $0x10] sm:$0xff]
    %v4259 = vld [vmem:[#allocation8 + $0x18] sm:$0xff]
    %v4260 = vld [vmem:[#allocation8 + $0x20] sm:$0xff]
    %v4261 = vld [vmem:[#allocation8 + $0x28] sm:$0xff]
    %v4262 = vld [vmem:[#allocation8 + $0x30] sm:$0xff]
    %v4263 = vld [vmem:[#allocation8 + $0x38] sm:$0xff]
    %v4264 = vld [vmem:[#allocation8 + $0x40] sm:$0xff]
    %v4265 = vld [vmem:[#allocation8 + $0x48] sm:$0xff]
    %v4266 = vld [vmem:[#allocation8 + $0x50] sm:$0xff]
    %v4267 = vld [vmem:[#allocation8 + $0x58] sm:$0xff]
    %v4268 = vld [vmem:[#allocation8 + $0x60] sm:$0xff]
    %v4269 = vld [vmem:[#allocation8 + $0x68] sm:$0xff]
    %v4270 = vld [vmem:[#allocation8 + $0x70] sm:$0xff]
    %v4271 = vld [vmem:[#allocation8 + $0x78] sm:$0xff]
    %v4272 = vld [vmem:[#allocation8 + $0x80] sm:$0xff]
    %v4273 = vld [vmem:[#allocation8 + $0x88] sm:$0xff]
    %v4274 = vld [vmem:[#allocation8 + $0x90] sm:$0xff]
    %v4275 = vld [vmem:[#allocation8 + $0x98] sm:$0xff]
    %v4276 = vld [vmem:[#allocation8 + $0xa0] sm:$0xff]
    %v4277 = vld [vmem:[#allocation8 + $0xa8] sm:$0xff]
    %v4278 = vld [vmem:[#allocation8 + $0xb0] sm:$0xff]
    %v4279 = vld [vmem:[#allocation8 + $0xb8] sm:$0xff]
    %v4280 = vld [vmem:[#allocation8 + $0xc0] sm:$0xff]
    %v4281 = vld [vmem:[#allocation8 + $0xc8] sm:$0xff]
    %v4282 = vld [vmem:[#allocation8 + $0xd0] sm:$0xff]
    %v4283 = vld [vmem:[#allocation8 + $0xd8] sm:$0xff]
    %v4284 = vld [vmem:[#allocation8 + $0xe0] sm:$0xff]
    %v4285 = vld [vmem:[#allocation8 + $0xe8] sm:$0xff]
    %v4286 = vld [vmem:[#allocation8 + $0xf0] sm:$0xff]
    %v4287 = vld [vmem:[#allocation8 + $0xf8] sm:$0xff]
    %v4288 = vld [vmem:[#allocation8 + $0x100] sm:$0xff]
    %v4289 = vld [vmem:[#allocation8 + $0x108] sm:$0xff]
    %v4290 = vld [vmem:[#allocation8 + $0x110] sm:$0xff]
    %v4291 = vld [vmem:[#allocation8 + $0x118] sm:$0xff]
    %v4292 = vld [vmem:[#allocation8 + $0x120] sm:$0xff]
    %v4293 = vld [vmem:[#allocation8 + $0x128] sm:$0xff]
    %v4294 = vld [vmem:[#allocation8 + $0x130] sm:$0xff]
    %v4295 = vld [vmem:[#allocation8 + $0x138] sm:$0xff]
    %v4296 = vld [vmem:[#allocation8 + $0x140] sm:$0xff]
    %v4297 = vld [vmem:[#allocation8 + $0x148] sm:$0xff]
    %v4298 = vld [vmem:[#allocation8 + $0x150] sm:$0xff]
    %v4299 = vld [vmem:[#allocation8 + $0x158] sm:$0xff]
    %v4300 = vld [vmem:[#allocation8 + $0x160] sm:$0xff]
    %v4301 = vld [vmem:[#allocation8 + $0x168] sm:$0xff]
    %v4302 = vld [vmem:[#allocation8 + $0x170] sm:$0xff]
    %v4303 = vld [vmem:[#allocation8 + $0x178] sm:$0xff]
    %v4304 = vld [vmem:[#allocation8 + $0x180] sm:$0xff]
    %v4305 = vld [vmem:[#allocation8 + $0x188] sm:$0xff]
    %v4306 = vld [vmem:[#allocation8 + $0x190] sm:$0xff]
    %v4307 = vld [vmem:[#allocation8 + $0x198] sm:$0xff]
    %v4308 = vld [vmem:[#allocation8 + $0x1a0] sm:$0xff]
    %v4309 = vld [vmem:[#allocation8 + $0x1a8] sm:$0xff]
    %v4310 = vld [vmem:[#allocation8 + $0x1b0] sm:$0xff]
    %v4311 = vld [vmem:[#allocation8 + $0x1b8] sm:$0xff]
    %v4312 = vld [vmem:[#allocation8 + $0x1c0] sm:$0xff]
    %v4313 = vld [vmem:[#allocation8 + $0x1c8] sm:$0xff]
    %v4314 = vld [vmem:[#allocation8 + $0x1d0] sm:$0xff]
    %v4315 = vld [vmem:[#allocation8 + $0x1d8] sm:$0xff]
    %v4316 = vld [vmem:[#allocation8 + $0x1e0] sm:$0xff]
    %v4317 = vld [vmem:[#allocation8 + $0x1e8] sm:$0xff]
    %v4318 = vld [vmem:[#allocation8 + $0x1f0] sm:$0xff]
    %v4319 = vld [vmem:[#allocation8 + $0x1f8] sm:$0xff]
    %v4320 = vld [vmem:[#allocation8 + $0x200] sm:$0xff]
    %v4321 = vld [vmem:[#allocation8 + $0x208] sm:$0xff]
    %v4322 = vld [vmem:[#allocation8 + $0x210] sm:$0xff]
    %v4323 = vld [vmem:[#allocation8 + $0x218] sm:$0xff]
    %v4324 = vld [vmem:[#allocation8 + $0x220] sm:$0xff]
    %v4325 = vld [vmem:[#allocation8 + $0x228] sm:$0xff]
    %v4326 = vld [vmem:[#allocation8 + $0x230] sm:$0xff]
    %v4327 = vld [vmem:[#allocation8 + $0x238] sm:$0xff]
    %v4328 = vld [vmem:[#allocation8 + $0x240] sm:$0xff]
    %v4329 = vld [vmem:[#allocation8 + $0x248] sm:$0xff]
    %v4330 = vld [vmem:[#allocation8 + $0x250] sm:$0xff]
    %v4331 = vld [vmem:[#allocation8 + $0x258] sm:$0xff]
    %v4332 = vld [vmem:[#allocation8 + $0x260] sm:$0xff]
    %v4333 = vld [vmem:[#allocation8 + $0x268] sm:$0xff]
    %v4334 = vld [vmem:[#allocation8 + $0x270] sm:$0xff]
    %v4335 = vld [vmem:[#allocation8 + $0x278] sm:$0xff]
    %v4336 = vld [vmem:[#allocation8 + $0x280] sm:$0xff]
    %v4337 = vld [vmem:[#allocation8 + $0x288] sm:$0xff]
    %v4338 = vld [vmem:[#allocation8 + $0x290] sm:$0xff]
    %v4339 = vld [vmem:[#allocation8 + $0x298] sm:$0xff]
    %v4340 = vld [vmem:[#allocation8 + $0x2a0] sm:$0xff]
    %v4341 = vld [vmem:[#allocation8 + $0x2a8] sm:$0xff]
    %v4342 = vld [vmem:[#allocation8 + $0x2b0] sm:$0xff]
    %v4343 = vld [vmem:[#allocation8 + $0x2b8] sm:$0xff]
    %v4344 = vld [vmem:[#allocation8 + $0x2c0] sm:$0xff]
    %v4345 = vld [vmem:[#allocation8 + $0x2c8] sm:$0xff]
    %v4346 = vld [vmem:[#allocation8 + $0x2d0] sm:$0xff]
    %v4347 = vld [vmem:[#allocation8 + $0x2d8] sm:$0xff]
    %v4348 = vld [vmem:[#allocation8 + $0x2e0] sm:$0xff]
    %v4349 = vld [vmem:[#allocation8 + $0x2e8] sm:$0xff]
    %v4350 = vld [vmem:[#allocation8 + $0x2f0] sm:$0xff]
    %v4351 = vld [vmem:[#allocation8 + $0x2f8] sm:$0xff]
    %v4352 = vld [vmem:[#allocation8 + $0x300] sm:$0xff]
    %v4353 = vld [vmem:[#allocation8 + $0x308] sm:$0xff]
    %v4354 = vld [vmem:[#allocation8 + $0x310] sm:$0xff]
    %v4355 = vld [vmem:[#allocation8 + $0x318] sm:$0xff]
    %v4356 = vld [vmem:[#allocation8 + $0x320] sm:$0xff]
    %v4357 = vld [vmem:[#allocation8 + $0x328] sm:$0xff]
    %v4358 = vld [vmem:[#allocation8 + $0x330] sm:$0xff]
    %v4359 = vld [vmem:[#allocation8 + $0x338] sm:$0xff]
    %v4360 = vld [vmem:[#allocation8 + $0x340] sm:$0xff]
    %v4361 = vld [vmem:[#allocation8 + $0x348] sm:$0xff]
    %v4362 = vld [vmem:[#allocation8 + $0x350] sm:$0xff]
    %v4363 = vld [vmem:[#allocation8 + $0x358] sm:$0xff]
    %v4364 = vld [vmem:[#allocation8 + $0x360] sm:$0xff]
    %v4365 = vld [vmem:[#allocation8 + $0x368] sm:$0xff]
    %v4366 = vld [vmem:[#allocation8 + $0x370] sm:$0xff]
    %v4367 = vld [vmem:[#allocation8 + $0x378] sm:$0xff]
    %v4368 = vld [vmem:[#allocation8 + $0x380] sm:$0xff]
    %v4369 = vld [vmem:[#allocation8 + $0x388] sm:$0xff]
    %v4370 = vld [vmem:[#allocation8 + $0x390] sm:$0xff]
    %v4371 = vld [vmem:[#allocation8 + $0x398] sm:$0xff]
    %v4372 = vld [vmem:[#allocation8 + $0x3a0] sm:$0xff]
    %v4373 = vld [vmem:[#allocation8 + $0x3a8] sm:$0xff]
    %v4374 = vld [vmem:[#allocation8 + $0x3b0] sm:$0xff]
    %v4375 = vld [vmem:[#allocation8 + $0x3b8] sm:$0xff]
    %v4376 = vld [vmem:[#allocation8 + $0x3c0] sm:$0xff]
    %v4377 = vld [vmem:[#allocation8 + $0x3c8] sm:$0xff]
    %v4378 = vld [vmem:[#allocation8 + $0x3d0] sm:$0xff]
    %v4379 = vld [vmem:[#allocation8 + $0x3d8] sm:$0xff]
    %v4380 = vld [vmem:[#allocation8 + $0x3e0] sm:$0xff]
    %v4381 = vld [vmem:[#allocation8 + $0x3e8] sm:$0xff]
    %v4382 = vld [vmem:[#allocation8 + $0x3f0] sm:$0xff]
    %v4383 = vld [vmem:[#allocation8 + $0x3f8] sm:$0xff]
    %4384 = vmatprep.subr.mxu0 %v4257
    %4385 = vmatpush1.msra.mxu0 %v4256
    %4386 = vmatprep.subr.mxu0 %v4265
    %4387 = vmatpush1.msra.mxu0 %v4264
    %4388 = vmatprep.subr.mxu0 %v4273
    %4389 = vmatpush1.msra.mxu0 %v4272
    %4390 = vmatprep.subr.mxu0 %v4281
    %4391 = vmatpush1.msra.mxu0 %v4280
    %4392 = vmatprep.subr.mxu0 %v4289
    %4393 = vmatpush1.msra.mxu0 %v4288
    %4394 = vmatprep.subr.mxu0 %v4297
    %4395 = vmatpush1.msra.mxu0 %v4296
    %4396 = vmatprep.subr.mxu0 %v4305
    %4397 = vmatpush1.msra.mxu0 %v4304
    %4398 = vmatprep.subr.mxu0 %v4313
    %4399 = vmatpush1.msra.mxu0 %v4312
    %4400 = vmatprep.subr.mxu0 %v4321
    %4401 = vmatpush1.msra.mxu0 %v4320
    %4402 = vmatprep.subr.mxu0 %v4329
    %4403 = vmatpush1.msra.mxu0 %v4328
    %4404 = vmatprep.subr.mxu0 %v4337
    %4405 = vmatpush1.msra.mxu0 %v4336
    %4406 = vmatprep.subr.mxu0 %v4345
    %4407 = vmatpush1.msra.mxu0 %v4344
    %4408 = vmatprep.subr.mxu0 %v4353
    %4409 = vmatpush1.msra.mxu0 %v4352
    %4410 = vmatprep.subr.mxu0 %v4361
    %4411 = vmatpush1.msra.mxu0 %v4360
    %4412 = vmatprep.subr.mxu0 %v4369
    %4413 = vmatpush1.msra.mxu0 %v4368
    %4414 = vmatprep.subr.mxu0 %v4377
    %4415 = vmatpush1.msra.mxu0 %v4376
    %4416 = vmatprep.subr.mxu0 0.0
    %4417 = vmatpush1.msra.mxu0 0.0
    %4418 = vmatprep.subr.mxu0 0.0
    %4419 = vmatpush1.msra.mxu0 0.0
    %4420 = vmatprep.subr.mxu0 0.0
    %4421 = vmatpush1.msra.mxu0 0.0
    %4422 = vmatprep.subr.mxu0 0.0
    %4423 = vmatpush1.msra.mxu0 0.0
    %4424 = vmatprep.subr.mxu0 0.0
    %4425 = vmatpush1.msra.mxu0 0.0
    %4426 = vmatprep.subr.mxu0 0.0
    %4427 = vmatpush1.msra.mxu0 0.0
    %4428 = vmatprep.subr.mxu0 0.0
    %4429 = vmatpush1.msra.mxu0 0.0
    %4430 = vmatprep.subr.mxu0 0.0
    %4431 = vmatpush1.msra.mxu0 0.0
    %4432 = vmatprep.subr.mxu0 0.0
    %4433 = vmatpush1.msra.mxu0 0.0
    %4434 = vmatprep.subr.mxu0 0.0
    %4435 = vmatpush1.msra.mxu0 0.0
    %4436 = vmatprep.subr.mxu0 0.0
    %4437 = vmatpush1.msra.mxu0 0.0
    %4438 = vmatprep.subr.mxu0 0.0
    %4439 = vmatpush1.msra.mxu0 0.0
    %4440 = vmatprep.subr.mxu0 0.0
    %4441 = vmatpush1.msra.mxu0 0.0
    %4442 = vmatprep.subr.mxu0 0.0
    %4443 = vmatpush1.msra.mxu0 0.0
    %4444 = vmatprep.subr.mxu0 0.0
    %4445 = vmatpush1.msra.mxu0 0.0
    %4446 = vmatprep.subr.mxu0 0.0
    %4447 = vmatpush1.msra.mxu0 0.0
    %4448 = vmatprep.mubr.f32.mxu0 0.0
    %4449 = vmatmul.mubr.f32.gmra.mrb[0].mxu0 %v4254
    %v4450 = vpop.f32.mrb[0].mxu0
    %v4451 = vadd.f32 0.0, %v4450
    %v4452 = vpop.f32.mrb[0].mxu0
    %v4453 = vadd.f32 0.0, %v4452
    %4454 = vmatprep.mubr.f32.mxu0 0.0
    %4455 = vmatmul.mubr.f32.gmra.mrb[0].mxu0 %v4255
    %v4456 = vpop.f32.mrb[0].mxu0
    %v4457 = vpop.f32.mrb[0].mxu0
    %4458 = vdwg.mxu0
    %4459 = vmatprep.subr.mxu0 %v4259
    %4460 = vmatpush1.msra.mxu0 %v4258
    %4461 = vmatprep.subr.mxu0 %v4267
    %4462 = vmatpush1.msra.mxu0 %v4266
    %4463 = vmatprep.subr.mxu0 %v4275
    %4464 = vmatpush1.msra.mxu0 %v4274
    %4465 = vmatprep.subr.mxu0 %v4283
    %4466 = vmatpush1.msra.mxu0 %v4282
    %4467 = vmatprep.subr.mxu0 %v4291
    %4468 = vmatpush1.msra.mxu0 %v4290
    %4469 = vmatprep.subr.mxu0 %v4299
    %4470 = vmatpush1.msra.mxu0 %v4298
    %4471 = vmatprep.subr.mxu0 %v4307
    %4472 = vmatpush1.msra.mxu0 %v4306
    %4473 = vmatprep.subr.mxu0 %v4315
    %4474 = vmatpush1.msra.mxu0 %v4314
    %4475 = vmatprep.subr.mxu0 %v4323
    %4476 = vmatpush1.msra.mxu0 %v4322
    %4477 = vmatprep.subr.mxu0 %v4331
    %4478 = vmatpush1.msra.mxu0 %v4330
    %4479 = vmatprep.subr.mxu0 %v4339
    %4480 = vmatpush1.msra.mxu0 %v4338
    %4481 = vmatprep.subr.mxu0 %v4347
    %4482 = vmatpush1.msra.mxu0 %v4346
    %4483 = vmatprep.subr.mxu0 %v4355
    %4484 = vmatpush1.msra.mxu0 %v4354
    %4485 = vmatprep.subr.mxu0 %v4363
    %4486 = vmatpush1.msra.mxu0 %v4362
    %4487 = vmatprep.subr.mxu0 %v4371
    %4488 = vmatpush1.msra.mxu0 %v4370
    %4489 = vmatprep.subr.mxu0 %v4379
    %4490 = vmatpush1.msra.mxu0 %v4378
    %4491 = vmatprep.subr.mxu0 0.0
    %4492 = vmatpush1.msra.mxu0 0.0
    %4493 = vmatprep.subr.mxu0 0.0
    %4494 = vmatpush1.msra.mxu0 0.0
    %4495 = vmatprep.subr.mxu0 0.0
    %4496 = vmatpush1.msra.mxu0 0.0
    %4497 = vmatprep.subr.mxu0 0.0
    %4498 = vmatpush1.msra.mxu0 0.0
    %4499 = vmatprep.subr.mxu0 0.0
    %4500 = vmatpush1.msra.mxu0 0.0
    %4501 = vmatprep.subr.mxu0 0.0
    %4502 = vmatpush1.msra.mxu0 0.0
    %4503 = vmatprep.subr.mxu0 0.0
    %4504 = vmatpush1.msra.mxu0 0.0
    %4505 = vmatprep.subr.mxu0 0.0
    %4506 = vmatpush1.msra.mxu0 0.0
    %4507 = vmatprep.subr.mxu0 0.0
    %4508 = vmatpush1.msra.mxu0 0.0
    %4509 = vmatprep.subr.mxu0 0.0
    %4510 = vmatpush1.msra.mxu0 0.0
    %4511 = vmatprep.subr.mxu0 0.0
    %4512 = vmatpush1.msra.mxu0 0.0
    %4513 = vmatprep.subr.mxu0 0.0
    %4514 = vmatpush1.msra.mxu0 0.0
    %4515 = vmatprep.subr.mxu0 0.0
    %4516 = vmatpush1.msra.mxu0 0.0
    %4517 = vmatprep.subr.mxu0 0.0
    %4518 = vmatpush1.msra.mxu0 0.0
    %4519 = vmatprep.subr.mxu0 0.0
    %4520 = vmatpush1.msra.mxu0 0.0
    %4521 = vmatprep.subr.mxu0 0.0
    %4522 = vmatpush1.msra.mxu0 0.0
    %4523 = vmatprep.mubr.f32.mxu0 0.0
    %4524 = vmatmul.mubr.f32.gmra.mrb[0].mxu0 %v4254
    %v4525 = vpop.f32.mrb[0].mxu0
    %v4526 = vadd.f32 0.0, %v4525
    %v4527 = vpop.f32.mrb[0].mxu0
    %v4528 = vadd.f32 0.0, %v4527
    %4529 = vmatprep.mubr.f32.mxu0 0.0
    %4530 = vmatmul.mubr.f32.gmra.mrb[0].mxu0 %v4255
    %v4531 = vpop.f32.mrb[0].mxu0
    %v4532 = vpop.f32.mrb[0].mxu0
    %4533 = vdwg.mxu0
    %4534 = vmatprep.subr.mxu0 %v4261
    %4535 = vmatpush1.msra.mxu0 %v4260
    %4536 = vmatprep.subr.mxu0 %v4269
    %4537 = vmatpush1.msra.mxu0 %v4268
    %4538 = vmatprep.subr.mxu0 %v4277
    %4539 = vmatpush1.msra.mxu0 %v4276
    %4540 = vmatprep.subr.mxu0 %v4285
    %4541 = vmatpush1.msra.mxu0 %v4284
    %4542 = vmatprep.subr.mxu0 %v4293
    %4543 = vmatpush1.msra.mxu0 %v4292
    %4544 = vmatprep.subr.mxu0 %v4301
    %4545 = vmatpush1.msra.mxu0 %v4300
    %4546 = vmatprep.subr.mxu0 %v4309
    %4547 = vmatpush1.msra.mxu0 %v4308
    %4548 = vmatprep.subr.mxu0 %v4317
    %4549 = vmatpush1.msra.mxu0 %v4316
    %4550 = vmatprep.subr.mxu0 %v4325
    %4551 = vmatpush1.msra.mxu0 %v4324
    %4552 = vmatprep.subr.mxu0 %v4333
    %4553 = vmatpush1.msra.mxu0 %v4332
    %4554 = vmatprep.subr.mxu0 %v4341
    %4555 = vmatpush1.msra.mxu0 %v4340
    %4556 = vmatprep.subr.mxu0 %v4349
    %4557 = vmatpush1.msra.mxu0 %v4348
    %4558 = vmatprep.subr.mxu0 %v4357
    %4559 = vmatpush1.msra.mxu0 %v4356
    %4560 = vmatprep.subr.mxu0 %v4365
    %4561 = vmatpush1.msra.mxu0 %v4364
    %4562 = vmatprep.subr.mxu0 %v4373
    %4563 = vmatpush1.msra.mxu0 %v4372
    %4564 = vmatprep.subr.mxu0 %v4381
    %4565 = vmatpush1.msra.mxu0 %v4380
    %4566 = vmatprep.subr.mxu0 0.0
    %4567 = vmatpush1.msra.mxu0 0.0
    %4568 = vmatprep.subr.mxu0 0.0
    %4569 = vmatpush1.msra.mxu0 0.0
    %4570 = vmatprep.subr.mxu0 0.0
    %4571 = vmatpush1.msra.mxu0 0.0
    %4572 = vmatprep.subr.mxu0 0.0
    %4573 = vmatpush1.msra.mxu0 0.0
    %4574 = vmatprep.subr.mxu0 0.0
    %4575 = vmatpush1.msra.mxu0 0.0
    %4576 = vmatprep.subr.mxu0 0.0
    %4577 = vmatpush1.msra.mxu0 0.0
    %4578 = vmatprep.subr.mxu0 0.0
    %4579 = vmatpush1.msra.mxu0 0.0
    %4580 = vmatprep.subr.mxu0 0.0
    %4581 = vmatpush1.msra.mxu0 0.0
    %4582 = vmatprep.subr.mxu0 0.0
    %4583 = vmatpush1.msra.mxu0 0.0
    %4584 = vmatprep.subr.mxu0 0.0
    %4585 = vmatpush1.msra.mxu0 0.0
    %4586 = vmatprep.subr.mxu0 0.0
    %4587 = vmatpush1.msra.mxu0 0.0
    %4588 = vmatprep.subr.mxu0 0.0
    %4589 = vmatpush1.msra.mxu0 0.0
    %4590 = vmatprep.subr.mxu0 0.0
    %4591 = vmatpush1.msra.mxu0 0.0
    %4592 = vmatprep.subr.mxu0 0.0
    %4593 = vmatpush1.msra.mxu0 0.0
    %4594 = vmatprep.subr.mxu0 0.0
    %4595 = vmatpush1.msra.mxu0 0.0
    %4596 = vmatprep.subr.mxu0 0.0
    %4597 = vmatpush1.msra.mxu0 0.0
    %4598 = vmatprep.mubr.f32.mxu0 0.0
    %4599 = vmatmul.mubr.f32.gmra.mrb[0].mxu0 %v4254
    %v4600 = vpop.f32.mrb[0].mxu0
    %v4601 = vpop.f32.mrb[0].mxu0
    %4602 = vmatprep.mubr.f32.mxu0 0.0
    %4603 = vmatmul.mubr.f32.gmra.mrb[0].mxu0 %v4255
    %v4604 = vpop.f32.mrb[0].mxu0
    %v4605 = vadd.f32 0.0, %v4604
    %v4606 = vpop.f32.mrb[0].mxu0
    %v4607 = vadd.f32 0.0, %v4606
    %4608 = vdwg.mxu0
    %4609 = vmatprep.subr.mxu0 %v4263
    %4610 = vmatpush1.msra.mxu0 %v4262
    %4611 = vmatprep.subr.mxu0 %v4271
    %4612 = vmatpush1.msra.mxu0 %v4270
    %4613 = vmatprep.subr.mxu0 %v4279
    %4614 = vmatpush1.msra.mxu0 %v4278
    %4615 = vmatprep.subr.mxu0 %v4287
    %4616 = vmatpush1.msra.mxu0 %v4286
    %4617 = vmatprep.subr.mxu0 %v4295
    %4618 = vmatpush1.msra.mxu0 %v4294
    %4619 = vmatprep.subr.mxu0 %v4303
    %4620 = vmatpush1.msra.mxu0 %v4302
    %4621 = vmatprep.subr.mxu0 %v4311
    %4622 = vmatpush1.msra.mxu0 %v4310
    %4623 = vmatprep.subr.mxu0 %v4319
    %4624 = vmatpush1.msra.mxu0 %v4318
    %4625 = vmatprep.subr.mxu0 %v4327
    %4626 = vmatpush1.msra.mxu0 %v4326
    %4627 = vmatprep.subr.mxu0 %v4335
    %4628 = vmatpush1.msra.mxu0 %v4334
    %4629 = vmatprep.subr.mxu0 %v4343
    %4630 = vmatpush1.msra.mxu0 %v4342
    %4631 = vmatprep.subr.mxu0 %v4351
    %4632 = vmatpush1.msra.mxu0 %v4350
    %4633 = vmatprep.subr.mxu0 %v4359
    %4634 = vmatpush1.msra.mxu0 %v4358
    %4635 = vmatprep.subr.mxu0 %v4367
    %4636 = vmatpush1.msra.mxu0 %v4366
    %4637 = vmatprep.subr.mxu0 %v4375
    %4638 = vmatpush1.msra.mxu0 %v4374
    %4639 = vmatprep.subr.mxu0 %v4383
    %4640 = vmatpush1.msra.mxu0 %v4382
    %4641 = vmatprep.subr.mxu0 0.0
    %4642 = vmatpush1.msra.mxu0 0.0
    %4643 = vmatprep.subr.mxu0 0.0
    %4644 = vmatpush1.msra.mxu0 0.0
    %4645 = vmatprep.subr.mxu0 0.0
    %4646 = vmatpush1.msra.mxu0 0.0
    %4647 = vmatprep.subr.mxu0 0.0
    %4648 = vmatpush1.msra.mxu0 0.0
    %4649 = vmatprep.subr.mxu0 0.0
    %4650 = vmatpush1.msra.mxu0 0.0
    %4651 = vmatprep.subr.mxu0 0.0
    %4652 = vmatpush1.msra.mxu0 0.0
    %4653 = vmatprep.subr.mxu0 0.0
    %4654 = vmatpush1.msra.mxu0 0.0
    %4655 = vmatprep.subr.mxu0 0.0
    %4656 = vmatpush1.msra.mxu0 0.0
    %4657 = vmatprep.subr.mxu0 0.0
    %4658 = vmatpush1.msra.mxu0 0.0
    %4659 = vmatprep.subr.mxu0 0.0
    %4660 = vmatpush1.msra.mxu0 0.0
    %4661 = vmatprep.subr.mxu0 0.0
    %4662 = vmatpush1.msra.mxu0 0.0
    %4663 = vmatprep.subr.mxu0 0.0
    %4664 = vmatpush1.msra.mxu0 0.0
    %4665 = vmatprep.subr.mxu0 0.0
    %4666 = vmatpush1.msra.mxu0 0.0
    %4667 = vmatprep.subr.mxu0 0.0
    %4668 = vmatpush1.msra.mxu0 0.0
    %4669 = vmatprep.subr.mxu0 0.0
    %4670 = vmatpush1.msra.mxu0 0.0
    %4671 = vmatprep.subr.mxu0 0.0
    %4672 = vmatpush1.msra.mxu0 0.0
    %4673 = vmatprep.mubr.f32.mxu0 0.0
    %4674 = vmatmul.mubr.f32.gmra.mrb[0].mxu0 %v4254
    %v4675 = vpop.f32.mrb[0].mxu0
    %v4676 = vpop.f32.mrb[0].mxu0
    %4677 = vmatprep.mubr.f32.mxu0 0.0
    %4678 = vmatmul.mubr.f32.gmra.mrb[0].mxu0 %v4255
    %v4679 = vpop.f32.mrb[0].mxu0
    %v4680 = vadd.f32 0.0, %v4679
    %v4681 = vpop.f32.mrb[0].mxu0
    %v4682 = vadd.f32 0.0, %v4681
    %4683 = vdwg.mxu0
    %v4684 = vld [vmem:[%s1135] sm:$0xff]
    %v4685 = vld [vmem:[%s1135 + $0x8] sm:$0xff]
    %v4686 = vld [vmem:[%s1135 + $0x10] sm:$0xff]
    %v4687 = vld [vmem:[%s1135 + $0x18] sm:$0xff]
    %v4688 = vadd.f32 %v4684, %v4451
    %v4689 = vadd.f32 %v4685, %v4453
    %v4690 = vadd.f32 %v4686, %v4526
    %v4691 = vadd.f32 %v4687, %v4528
    %v4692 = vld [vmem:[%s1124 + $0x20] sm:$0xff]
    %v4693 = vld [vmem:[%s1124 + $0x28] sm:$0xff]
    %v4694 = vld [vmem:[%s1124 + $0x30] sm:$0xff]
    %v4695 = vld [vmem:[%s1124 + $0x38] sm:$0xff]
    %v4696 = vadd.f32 %v4692, %v4605
    %v4697 = vadd.f32 %v4693, %v4607
    %v4698 = vadd.f32 %v4694, %v4680
    %v4699 = vadd.f32 %v4695, %v4682
    %v4700 = vld [vmem:[#allocation5] sm:$0xff]
    %v4701 = vxor.u32 %v4688, 2147483648
    %v4702 = vmul.f32 %v4701, 1.442695
    %v4703 = vpow.pop %v4702
    %v4704 = vadd.f32 %v4703, 1.0
    %v4705 = vrcp.pop %v4704
    %v4706 = vmul.f32 1.0, %v4705
    %v4707 = vxor.u32 %v4689, 2147483648
    %v4708 = vmul.f32 %v4707, 1.442695
    %v4709 = vpow.pop %v4708
    %v4710 = vadd.f32 %v4709, 1.0
    %v4711 = vrcp.pop %v4710
    %v4712 = vmul.f32 1.0, %v4711
    %v4713 = vtanh.pop %v4690
    %v4714 = vxor.u32 %v4691, 2147483648
    %v4715 = vmul.f32 %v4714, 1.442695
    %v4716 = vpow.pop %v4715
    %v4717 = vadd.f32 %v4716, 1.0
    %v4718 = vrcp.pop %v4717
    %v4719 = vmul.f32 1.0, %v4718
    %v4720 = vmul.f32 %v4712, %v4700
    %v4721 = vmul.f32 %v4706, %v4713
    %v4722 = vadd.f32 %v4720, %v4721
    %v4723 = vtanh.pop %v4722
    %v4724 = vmul.f32 %v4719, %v4723
    %v4725 = vld [vmem:[#allocation5 + $0x8] sm:$0xff]
    %v4726 = vxor.u32 %v4696, 2147483648
    %v4727 = vmul.f32 %v4726, 1.442695
    %v4728 = vpow.pop %v4727
    %v4729 = vadd.f32 %v4728, 1.0
    %v4730 = vrcp.pop %v4729
    %v4731 = vmul.f32 1.0, %v4730
    %v4732 = vxor.u32 %v4697, 2147483648
    %v4733 = vmul.f32 %v4732, 1.442695
    %v4734 = vpow.pop %v4733
    %v4735 = vadd.f32 %v4734, 1.0
    %v4736 = vrcp.pop %v4735
    %v4737 = vmul.f32 1.0, %v4736
    %v4738 = vtanh.pop %v4698
    %v4739 = vxor.u32 %v4699, 2147483648
    %v4740 = vmul.f32 %v4739, 1.442695
    %v4741 = vpow.pop %v4740
    %v4742 = vadd.f32 %v4741, 1.0
    %v4743 = vrcp.pop %v4742
    %v4744 = vmul.f32 1.0, %v4743
    %v4745 = vmul.f32 %v4737, %v4725
    %v4746 = vmul.f32 %v4731, %v4738
    %v4747 = vadd.f32 %v4745, %v4746
    %v4748 = vtanh.pop %v4747
    %v4749 = vmul.f32 %v4744, %v4748
    %4750 = vst [vmem:[#allocation4] sm:$0xff] %v4724
    %4751 = vst [vmem:[#allocation4 + $0x8] sm:$0xff] %v4749
    %4752 = vst [vmem:[#allocation5] sm:$0xff] %v4722
    %4753 = vst [vmem:[#allocation5 + $0x8] sm:$0xff] %v4747
    %4754 = vst [vmem:[%s1204] sm:$0xff] %v4724
    %4755 = vst [vmem:[%s1200 + $0x8] sm:$0xff] %v4749
    %v4756 = vld [vmem:[#allocation3] sm:$0xff]
    %v4757 = vld [vmem:[#allocation3 + $0x8] sm:$0xff]
    %v4758 = vld [vmem:[#allocation3 + $0x10] sm:$0xff]
    %v4759 = vld [vmem:[#allocation3 + $0x18] sm:$0xff]
    %v4760 = vld [vmem:[#allocation3 + $0x20] sm:$0xff]
    %v4761 = vld [vmem:[#allocation3 + $0x28] sm:$0xff]
    %v4762 = vld [vmem:[#allocation3 + $0x30] sm:$0xff]
    %v4763 = vld [vmem:[#allocation3 + $0x38] sm:$0xff]
    %v4764 = vld [vmem:[#allocation3 + $0x40] sm:$0xff]
    %v4765 = vld [vmem:[#allocation3 + $0x48] sm:$0xff]
    %v4766 = vld [vmem:[#allocation3 + $0x50] sm:$0xff]
    %v4767 = vld [vmem:[#allocation3 + $0x58] sm:$0xff]
    %v4768 = vld [vmem:[#allocation3 + $0x60] sm:$0xff]
    %v4769 = vld [vmem:[#allocation3 + $0x68] sm:$0xff]
    %v4770 = vld [vmem:[#allocation3 + $0x70] sm:$0xff]
    %v4771 = vld [vmem:[#allocation3 + $0x78] sm:$0xff]
    %v4772 = vld [vmem:[#allocation10] sm:$0xff]
    %v4773 = vld [vmem:[#allocation10 + $0x8] sm:$0xff]
    %v4774 = vld [vmem:[#allocation10 + $0x10] sm:$0xff]
    %v4775 = vld [vmem:[#allocation10 + $0x18] sm:$0xff]
    %v4776 = vld [vmem:[#allocation10 + $0x20] sm:$0xff]
    %v4777 = vld [vmem:[#allocation10 + $0x28] sm:$0xff]
    %v4778 = vld [vmem:[#allocation10 + $0x30] sm:$0xff]
    %v4779 = vld [vmem:[#allocation10 + $0x38] sm:$0xff]
    %v4780 = vld [vmem:[#allocation10 + $0x40] sm:$0xff]
    %v4781 = vld [vmem:[#allocation10 + $0x48] sm:$0xff]
    %v4782 = vld [vmem:[#allocation10 + $0x50] sm:$0xff]
    %v4783 = vld [vmem:[#allocation10 + $0x58] sm:$0xff]
    %v4784 = vld [vmem:[#allocation10 + $0x60] sm:$0xff]
    %v4785 = vld [vmem:[#allocation10 + $0x68] sm:$0xff]
    %v4786 = vld [vmem:[#allocation10 + $0x70] sm:$0xff]
    %v4787 = vld [vmem:[#allocation10 + $0x78] sm:$0xff]
    %v4788 = vld [vmem:[#allocation10 + $0x80] sm:$0xff]
    %v4789 = vld [vmem:[#allocation10 + $0x88] sm:$0xff]
    %v4790 = vld [vmem:[#allocation10 + $0x90] sm:$0xff]
    %v4791 = vld [vmem:[#allocation10 + $0x98] sm:$0xff]
    %v4792 = vld [vmem:[#allocation10 + $0xa0] sm:$0xff]
    %v4793 = vld [vmem:[#allocation10 + $0xa8] sm:$0xff]
    %v4794 = vld [vmem:[#allocation10 + $0xb0] sm:$0xff]
    %v4795 = vld [vmem:[#allocation10 + $0xb8] sm:$0xff]
    %v4796 = vld [vmem:[#allocation10 + $0xc0] sm:$0xff]
    %v4797 = vld [vmem:[#allocation10 + $0xc8] sm:$0xff]
    %v4798 = vld [vmem:[#allocation10 + $0xd0] sm:$0xff]
    %v4799 = vld [vmem:[#allocation10 + $0xd8] sm:$0xff]
    %v4800 = vld [vmem:[#allocation10 + $0xe0] sm:$0xff]
    %v4801 = vld [vmem:[#allocation10 + $0xe8] sm:$0xff]
    %v4802 = vld [vmem:[#allocation10 + $0xf0] sm:$0xff]
    %v4803 = vld [vmem:[#allocation10 + $0xf8] sm:$0xff]
    %v4804 = vld [vmem:[#allocation10 + $0x100] sm:$0xff]
    %v4805 = vld [vmem:[#allocation10 + $0x108] sm:$0xff]
    %v4806 = vld [vmem:[#allocation10 + $0x110] sm:$0xff]
    %v4807 = vld [vmem:[#allocation10 + $0x118] sm:$0xff]
    %v4808 = vld [vmem:[#allocation10 + $0x120] sm:$0xff]
    %v4809 = vld [vmem:[#allocation10 + $0x128] sm:$0xff]
    %v4810 = vld [vmem:[#allocation10 + $0x130] sm:$0xff]
    %v4811 = vld [vmem:[#allocation10 + $0x138] sm:$0xff]
    %v4812 = vld [vmem:[#allocation10 + $0x140] sm:$0xff]
    %v4813 = vld [vmem:[#allocation10 + $0x148] sm:$0xff]
    %v4814 = vld [vmem:[#allocation10 + $0x150] sm:$0xff]
    %v4815 = vld [vmem:[#allocation10 + $0x158] sm:$0xff]
    %v4816 = vld [vmem:[#allocation10 + $0x160] sm:$0xff]
    %v4817 = vld [vmem:[#allocation10 + $0x168] sm:$0xff]
    %v4818 = vld [vmem:[#allocation10 + $0x170] sm:$0xff]
    %v4819 = vld [vmem:[#allocation10 + $0x178] sm:$0xff]
    %v4820 = vld [vmem:[#allocation10 + $0x180] sm:$0xff]
    %v4821 = vld [vmem:[#allocation10 + $0x188] sm:$0xff]
    %v4822 = vld [vmem:[#allocation10 + $0x190] sm:$0xff]
    %v4823 = vld [vmem:[#allocation10 + $0x198] sm:$0xff]
    %v4824 = vld [vmem:[#allocation10 + $0x1a0] sm:$0xff]
    %v4825 = vld [vmem:[#allocation10 + $0x1a8] sm:$0xff]
    %v4826 = vld [vmem:[#allocation10 + $0x1b0] sm:$0xff]
    %v4827 = vld [vmem:[#allocation10 + $0x1b8] sm:$0xff]
    %v4828 = vld [vmem:[#allocation10 + $0x1c0] sm:$0xff]
    %v4829 = vld [vmem:[#allocation10 + $0x1c8] sm:$0xff]
    %v4830 = vld [vmem:[#allocation10 + $0x1d0] sm:$0xff]
    %v4831 = vld [vmem:[#allocation10 + $0x1d8] sm:$0xff]
    %v4832 = vld [vmem:[#allocation10 + $0x1e0] sm:$0xff]
    %v4833 = vld [vmem:[#allocation10 + $0x1e8] sm:$0xff]
    %v4834 = vld [vmem:[#allocation10 + $0x1f0] sm:$0xff]
    %v4835 = vld [vmem:[#allocation10 + $0x1f8] sm:$0xff]
    %v4836 = vld [vmem:[#allocation10 + $0x200] sm:$0xff]
    %v4837 = vld [vmem:[#allocation10 + $0x208] sm:$0xff]
    %v4838 = vld [vmem:[#allocation10 + $0x210] sm:$0xff]
    %v4839 = vld [vmem:[#allocation10 + $0x218] sm:$0xff]
    %v4840 = vld [vmem:[#allocation10 + $0x220] sm:$0xff]
    %v4841 = vld [vmem:[#allocation10 + $0x228] sm:$0xff]
    %v4842 = vld [vmem:[#allocation10 + $0x230] sm:$0xff]
    %v4843 = vld [vmem:[#allocation10 + $0x238] sm:$0xff]
    %v4844 = vld [vmem:[#allocation10 + $0x240] sm:$0xff]
    %v4845 = vld [vmem:[#allocation10 + $0x248] sm:$0xff]
    %v4846 = vld [vmem:[#allocation10 + $0x250] sm:$0xff]
    %v4847 = vld [vmem:[#allocation10 + $0x258] sm:$0xff]
    %v4848 = vld [vmem:[#allocation10 + $0x260] sm:$0xff]
    %v4849 = vld [vmem:[#allocation10 + $0x268] sm:$0xff]
    %v4850 = vld [vmem:[#allocation10 + $0x270] sm:$0xff]
    %v4851 = vld [vmem:[#allocation10 + $0x278] sm:$0xff]
    %v4852 = vld [vmem:[#allocation10 + $0x280] sm:$0xff]
    %v4853 = vld [vmem:[#allocation10 + $0x288] sm:$0xff]
    %v4854 = vld [vmem:[#allocation10 + $0x290] sm:$0xff]
    %v4855 = vld [vmem:[#allocation10 + $0x298] sm:$0xff]
    %v4856 = vld [vmem:[#allocation10 + $0x2a0] sm:$0xff]
    %v4857 = vld [vmem:[#allocation10 + $0x2a8] sm:$0xff]
    %v4858 = vld [vmem:[#allocation10 + $0x2b0] sm:$0xff]
    %v4859 = vld [vmem:[#allocation10 + $0x2b8] sm:$0xff]
    %v4860 = vld [vmem:[#allocation10 + $0x2c0] sm:$0xff]
    %v4861 = vld [vmem:[#allocation10 + $0x2c8] sm:$0xff]
    %v4862 = vld [vmem:[#allocation10 + $0x2d0] sm:$0xff]
    %v4863 = vld [vmem:[#allocation10 + $0x2d8] sm:$0xff]
    %v4864 = vld [vmem:[#allocation10 + $0x2e0] sm:$0xff]
    %v4865 = vld [vmem:[#allocation10 + $0x2e8] sm:$0xff]
    %v4866 = vld [vmem:[#allocation10 + $0x2f0] sm:$0xff]
    %v4867 = vld [vmem:[#allocation10 + $0x2f8] sm:$0xff]
    %v4868 = vld [vmem:[#allocation10 + $0x300] sm:$0xff]
    %v4869 = vld [vmem:[#allocation10 + $0x308] sm:$0xff]
    %v4870 = vld [vmem:[#allocation10 + $0x310] sm:$0xff]
    %v4871 = vld [vmem:[#allocation10 + $0x318] sm:$0xff]
    %v4872 = vld [vmem:[#allocation10 + $0x320] sm:$0xff]
    %v4873 = vld [vmem:[#allocation10 + $0x328] sm:$0xff]
    %v4874 = vld [vmem:[#allocation10 + $0x330] sm:$0xff]
    %v4875 = vld [vmem:[#allocation10 + $0x338] sm:$0xff]
    %v4876 = vld [vmem:[#allocation10 + $0x340] sm:$0xff]
    %v4877 = vld [vmem:[#allocation10 + $0x348] sm:$0xff]
    %v4878 = vld [vmem:[#allocation10 + $0x350] sm:$0xff]
    %v4879 = vld [vmem:[#allocation10 + $0x358] sm:$0xff]
    %v4880 = vld [vmem:[#allocation10 + $0x360] sm:$0xff]
    %v4881 = vld [vmem:[#allocation10 + $0x368] sm:$0xff]
    %v4882 = vld [vmem:[#allocation10 + $0x370] sm:$0xff]
    %v4883 = vld [vmem:[#allocation10 + $0x378] sm:$0xff]
    %v4884 = vld [vmem:[#allocation10 + $0x380] sm:$0xff]
    %v4885 = vld [vmem:[#allocation10 + $0x388] sm:$0xff]
    %v4886 = vld [vmem:[#allocation10 + $0x390] sm:$0xff]
    %v4887 = vld [vmem:[#allocation10 + $0x398] sm:$0xff]
    %v4888 = vld [vmem:[#allocation10 + $0x3a0] sm:$0xff]
    %v4889 = vld [vmem:[#allocation10 + $0x3a8] sm:$0xff]
    %v4890 = vld [vmem:[#allocation10 + $0x3b0] sm:$0xff]
    %v4891 = vld [vmem:[#allocation10 + $0x3b8] sm:$0xff]
    %v4892 = vld [vmem:[#allocation10 + $0x3c0] sm:$0xff]
    %v4893 = vld [vmem:[#allocation10 + $0x3c8] sm:$0xff]
    %v4894 = vld [vmem:[#allocation10 + $0x3d0] sm:$0xff]
    %v4895 = vld [vmem:[#allocation10 + $0x3d8] sm:$0xff]
    %v4896 = vld [vmem:[#allocation10 + $0x3e0] sm:$0xff]
    %v4897 = vld [vmem:[#allocation10 + $0x3e8] sm:$0xff]
    %v4898 = vld [vmem:[#allocation10 + $0x3f0] sm:$0xff]
    %v4899 = vld [vmem:[#allocation10 + $0x3f8] sm:$0xff]
    %v4900 = vld [vmem:[%s6] sm:$0xf]
    %v4902 = vlaneseq
    %v4903 = vshrl.u32 %v4902, 7
    %v4904 = vsub.s32 0, %v4903
    %v4905 = vrot.slane %v4900, %v4904
    %v4906 = vlaneseq
    %v4907 = vshrl.u32 %v4906, 7
    %v4908 = vsub.s32 1, %v4907
    %v4909 = vrot.slane %v4900, %v4908
    %v4910 = vlaneseq
    %v4911 = vshrl.u32 %v4910, 7
    %v4912 = vsub.s32 2, %v4911
    %v4913 = vrot.slane %v4900, %v4912
    %v4914 = vlaneseq
    %v4915 = vshrl.u32 %v4914, 7
    %v4916 = vsub.s32 3, %v4915
    %v4917 = vrot.slane %v4900, %v4916
    %4922 = vmatprep.subr.mxu0 %v4773
    %4923 = vmatpush1.msra.mxu0 %v4772
    %4924 = vmatprep.subr.mxu0 %v4777
    %4925 = vmatpush1.msra.mxu0 %v4776
    %4926 = vmatprep.subr.mxu0 %v4781
    %4927 = vmatpush1.msra.mxu0 %v4780
    %4928 = vmatprep.subr.mxu0 %v4785
    %4929 = vmatpush1.msra.mxu0 %v4784
    %4930 = vmatprep.subr.mxu0 %v4789
    %4931 = vmatpush1.msra.mxu0 %v4788
    %4932 = vmatprep.subr.mxu0 %v4793
    %4933 = vmatpush1.msra.mxu0 %v4792
    %4934 = vmatprep.subr.mxu0 %v4797
    %4935 = vmatpush1.msra.mxu0 %v4796
    %4936 = vmatprep.subr.mxu0 %v4801
    %4937 = vmatpush1.msra.mxu0 %v4800
    %4938 = vmatprep.subr.mxu0 %v4805
    %4939 = vmatpush1.msra.mxu0 %v4804
    %4940 = vmatprep.subr.mxu0 %v4809
    %4941 = vmatpush1.msra.mxu0 %v4808
    %4942 = vmatprep.subr.mxu0 %v4813
    %4943 = vmatpush1.msra.mxu0 %v4812
    %4944 = vmatprep.subr.mxu0 %v4817
    %4945 = vmatpush1.msra.mxu0 %v4816
    %4946 = vmatprep.subr.mxu0 %v4821
    %4947 = vmatpush1.msra.mxu0 %v4820
    %4948 = vmatprep.subr.mxu0 %v4825
    %4949 = vmatpush1.msra.mxu0 %v4824
    %4950 = vmatprep.subr.mxu0 %v4829
    %4951 = vmatpush1.msra.mxu0 %v4828
    %4952 = vmatprep.subr.mxu0 %v4833
    %4953 = vmatpush1.msra.mxu0 %v4832
    %4954 = vmatprep.subr.mxu0 %v4837
    %4955 = vmatpush1.msra.mxu0 %v4836
    %4956 = vmatprep.subr.mxu0 %v4841
    %4957 = vmatpush1.msra.mxu0 %v4840
    %4958 = vmatprep.subr.mxu0 %v4845
    %4959 = vmatpush1.msra.mxu0 %v4844
    %4960 = vmatprep.subr.mxu0 %v4849
    %4961 = vmatpush1.msra.mxu0 %v4848
    %4962 = vmatprep.subr.mxu0 %v4853
    %4963 = vmatpush1.msra.mxu0 %v4852
    %4964 = vmatprep.subr.mxu0 %v4857
    %4965 = vmatpush1.msra.mxu0 %v4856
    %4966 = vmatprep.subr.mxu0 %v4861
    %4967 = vmatpush1.msra.mxu0 %v4860
    %4968 = vmatprep.subr.mxu0 %v4865
    %4969 = vmatpush1.msra.mxu0 %v4864
    %4970 = vmatprep.subr.mxu0 %v4869
    %4971 = vmatpush1.msra.mxu0 %v4868
    %4972 = vmatprep.subr.mxu0 %v4873
    %4973 = vmatpush1.msra.mxu0 %v4872
    %4974 = vmatprep.subr.mxu0 %v4877
    %4975 = vmatpush1.msra.mxu0 %v4876
    %4976 = vmatprep.subr.mxu0 %v4881
    %4977 = vmatpush1.msra.mxu0 %v4880
    %4978 = vmatprep.subr.mxu0 %v4885
    %4979 = vmatpush1.msra.mxu0 %v4884
    %4980 = vmatprep.subr.mxu0 %v4889
    %4981 = vmatpush1.msra.mxu0 %v4888
    %4982 = vmatprep.subr.mxu0 %v4893
    %4983 = vmatpush1.msra.mxu0 %v4892
    %4984 = vmatprep.subr.mxu0 %v4897
    %4985 = vmatpush1.msra.mxu0 %v4896
    %4986 = vmatprep.mubr.f32.mxu0 %v4757
    %4987 = vmatmul.mubr.f32.gmra.mrb[0].mxu0 %v4756
    %v4988 = vpop.f32.mrb[0].mxu0
    %v4989 = vadd.f32 %v4905, %v4988
    %v4990 = vpop.f32.mrb[0].mxu0
    %v4991 = vadd.f32 %v4909, %v4990
    %4992 = vmatprep.mubr.f32.mxu0 %v4759
    %4993 = vmatmul.mubr.f32.gmra.mrb[0].mxu0 %v4758
    %v4994 = vpop.f32.mrb[0].mxu0
    %v4995 = vadd.f32 %v4905, %v4994
    %v4996 = vpop.f32.mrb[0].mxu0
    %v4997 = vadd.f32 %v4909, %v4996
    %4998 = vmatprep.mubr.f32.mxu0 %v4761
    %4999 = vmatmul.mubr.f32.gmra.mrb[0].mxu0 %v4760
    %v5000 = vpop.f32.mrb[0].mxu0
    %v5001 = vadd.f32 %v4905, %v5000
    %v5002 = vpop.f32.mrb[0].mxu0
    %v5003 = vadd.f32 %v4909, %v5002
    %5004 = vmatprep.mubr.f32.mxu0 %v4763
    %5005 = vmatmul.mubr.f32.gmra.mrb[0].mxu0 %v4762
    %v5006 = vpop.f32.mrb[0].mxu0
    %v5007 = vadd.f32 %v4905, %v5006
    %v5008 = vpop.f32.mrb[0].mxu0
    %v5009 = vadd.f32 %v4909, %v5008
    %5010 = vmatprep.mubr.f32.mxu0 %v4765
    %5011 = vmatmul.mubr.f32.gmra.mrb[0].mxu0 %v4764
    %v5012 = vpop.f32.mrb[0].mxu0
    %v5013 = vadd.f32 %v4905, %v5012
    %v5014 = vpop.f32.mrb[0].mxu0
    %v5015 = vadd.f32 %v4909, %v5014
    %5016 = vmatprep.mubr.f32.mxu0 %v4767
    %5017 = vmatmul.mubr.f32.gmra.mrb[0].mxu0 %v4766
    %v5018 = vpop.f32.mrb[0].mxu0
    %v5019 = vadd.f32 %v4905, %v5018
    %v5020 = vpop.f32.mrb[0].mxu0
    %v5021 = vadd.f32 %v4909, %v5020
    %5022 = vmatprep.mubr.f32.mxu0 %v4769
    %5023 = vmatmul.mubr.f32.gmra.mrb[0].mxu0 %v4768
    %v5024 = vpop.f32.mrb[0].mxu0
    %v5025 = vadd.f32 %v4905, %v5024
    %v5026 = vpop.f32.mrb[0].mxu0
    %v5027 = vadd.f32 %v4909, %v5026
    %5028 = vmatprep.mubr.f32.mxu0 %v4771
    %5029 = vmatmul.mubr.f32.gmra.mrb[0].mxu0 %v4770
    %v5030 = vpop.f32.mrb[0].mxu0
    %v5031 = vadd.f32 %v4905, %v5030
    %v5032 = vpop.f32.mrb[0].mxu0
    %v5033 = vadd.f32 %v4909, %v5032
    %5034 = vdwg.mxu0
    %5035 = vmatprep.subr.mxu0 %v4775
    %5036 = vmatpush1.msra.mxu0 %v4774
    %5037 = vmatprep.subr.mxu0 %v4779
    %5038 = vmatpush1.msra.mxu0 %v4778
    %5039 = vmatprep.subr.mxu0 %v4783
    %5040 = vmatpush1.msra.mxu0 %v4782
    %5041 = vmatprep.subr.mxu0 %v4787
    %5042 = vmatpush1.msra.mxu0 %v4786
    %5043 = vmatprep.subr.mxu0 %v4791
    %5044 = vmatpush1.msra.mxu0 %v4790
    %5045 = vmatprep.subr.mxu0 %v4795
    %5046 = vmatpush1.msra.mxu0 %v4794
    %5047 = vmatprep.subr.mxu0 %v4799
    %5048 = vmatpush1.msra.mxu0 %v4798
    %5049 = vmatprep.subr.mxu0 %v4803
    %5050 = vmatpush1.msra.mxu0 %v4802
    %5051 = vmatprep.subr.mxu0 %v4807
    %5052 = vmatpush1.msra.mxu0 %v4806
    %5053 = vmatprep.subr.mxu0 %v4811
    %5054 = vmatpush1.msra.mxu0 %v4810
    %5055 = vmatprep.subr.mxu0 %v4815
    %5056 = vmatpush1.msra.mxu0 %v4814
    %5057 = vmatprep.subr.mxu0 %v4819
    %5058 = vmatpush1.msra.mxu0 %v4818
    %5059 = vmatprep.subr.mxu0 %v4823
    %5060 = vmatpush1.msra.mxu0 %v4822
    %5061 = vmatprep.subr.mxu0 %v4827
    %5062 = vmatpush1.msra.mxu0 %v4826
    %5063 = vmatprep.subr.mxu0 %v4831
    %5064 = vmatpush1.msra.mxu0 %v4830
    %5065 = vmatprep.subr.mxu0 %v4835
    %5066 = vmatpush1.msra.mxu0 %v4834
    %5067 = vmatprep.subr.mxu0 %v4839
    %5068 = vmatpush1.msra.mxu0 %v4838
    %5069 = vmatprep.subr.mxu0 %v4843
    %5070 = vmatpush1.msra.mxu0 %v4842
    %5071 = vmatprep.subr.mxu0 %v4847
    %5072 = vmatpush1.msra.mxu0 %v4846
    %5073 = vmatprep.subr.mxu0 %v4851
    %5074 = vmatpush1.msra.mxu0 %v4850
    %5075 = vmatprep.subr.mxu0 %v4855
    %5076 = vmatpush1.msra.mxu0 %v4854
    %5077 = vmatprep.subr.mxu0 %v4859
    %5078 = vmatpush1.msra.mxu0 %v4858
    %5079 = vmatprep.subr.mxu0 %v4863
    %5080 = vmatpush1.msra.mxu0 %v4862
    %5081 = vmatprep.subr.mxu0 %v4867
    %5082 = vmatpush1.msra.mxu0 %v4866
    %5083 = vmatprep.subr.mxu0 %v4871
    %5084 = vmatpush1.msra.mxu0 %v4870
    %5085 = vmatprep.subr.mxu0 %v4875
    %5086 = vmatpush1.msra.mxu0 %v4874
    %5087 = vmatprep.subr.mxu0 %v4879
    %5088 = vmatpush1.msra.mxu0 %v4878
    %5089 = vmatprep.subr.mxu0 %v4883
    %5090 = vmatpush1.msra.mxu0 %v4882
    %5091 = vmatprep.subr.mxu0 %v4887
    %5092 = vmatpush1.msra.mxu0 %v4886
    %5093 = vmatprep.subr.mxu0 %v4891
    %5094 = vmatpush1.msra.mxu0 %v4890
    %5095 = vmatprep.subr.mxu0 %v4895
    %5096 = vmatpush1.msra.mxu0 %v4894
    %5097 = vmatprep.subr.mxu0 %v4899
    %5098 = vmatpush1.msra.mxu0 %v4898
    %5099 = vmatprep.mubr.f32.mxu0 %v4757
    %5100 = vmatmul.mubr.f32.gmra.mrb[0].mxu0 %v4756
    %v5101 = vpop.f32.mrb[0].mxu0
    %v5102 = vadd.f32 %v4913, %v5101
    %v5103 = vpop.f32.mrb[0].mxu0
    %v5104 = vadd.f32 %v4917, %v5103
    %5105 = vmatprep.mubr.f32.mxu0 %v4759
    %5106 = vmatmul.mubr.f32.gmra.mrb[0].mxu0 %v4758
    %v5107 = vpop.f32.mrb[0].mxu0
    %v5108 = vadd.f32 %v4913, %v5107
    %v5109 = vpop.f32.mrb[0].mxu0
    %v5110 = vadd.f32 %v4917, %v5109
    %5111 = vmatprep.mubr.f32.mxu0 %v4761
    %5112 = vmatmul.mubr.f32.gmra.mrb[0].mxu0 %v4760
    %v5113 = vpop.f32.mrb[0].mxu0
    %v5114 = vadd.f32 %v4913, %v5113
    %v5115 = vpop.f32.mrb[0].mxu0
    %v5116 = vadd.f32 %v4917, %v5115
    %5117 = vmatprep.mubr.f32.mxu0 %v4763
    %5118 = vmatmul.mubr.f32.gmra.mrb[0].mxu0 %v4762
    %v5119 = vpop.f32.mrb[0].mxu0
    %v5120 = vadd.f32 %v4913, %v5119
    %v5121 = vpop.f32.mrb[0].mxu0
    %v5122 = vadd.f32 %v4917, %v5121
    %5123 = vmatprep.mubr.f32.mxu0 %v4765
    %5124 = vmatmul.mubr.f32.gmra.mrb[0].mxu0 %v4764
    %v5125 = vpop.f32.mrb[0].mxu0
    %v5126 = vadd.f32 %v4913, %v5125
    %v5127 = vpop.f32.mrb[0].mxu0
    %v5128 = vadd.f32 %v4917, %v5127
    %5129 = vmatprep.mubr.f32.mxu0 %v4767
    %5130 = vmatmul.mubr.f32.gmra.mrb[0].mxu0 %v4766
    %v5131 = vpop.f32.mrb[0].mxu0
    %v5132 = vadd.f32 %v4913, %v5131
    %v5133 = vpop.f32.mrb[0].mxu0
    %v5134 = vadd.f32 %v4917, %v5133
    %5135 = vmatprep.mubr.f32.mxu0 %v4769
    %5136 = vmatmul.mubr.f32.gmra.mrb[0].mxu0 %v4768
    %v5137 = vpop.f32.mrb[0].mxu0
    %v5138 = vadd.f32 %v4913, %v5137
    %v5139 = vpop.f32.mrb[0].mxu0
    %v5140 = vadd.f32 %v4917, %v5139
    %5141 = vmatprep.mubr.f32.mxu0 %v4771
    %5142 = vmatmul.mubr.f32.gmra.mrb[0].mxu0 %v4770
    %v5143 = vpop.f32.mrb[0].mxu0
    %v5144 = vadd.f32 %v4913, %v5143
    %v5145 = vpop.f32.mrb[0].mxu0
    %v5146 = vadd.f32 %v4917, %v5145
    %5147 = vdwg.mxu0
    %5148 = vst [vmem:[#allocation2] sm:$0xff] %v4989
    %5149 = vst [vmem:[#allocation2 + $0x8] sm:$0xff] %v4991
    %5150 = vst [vmem:[#allocation2 + $0x10] sm:$0xff] %v5102
    %5151 = vst [vmem:[#allocation2 + $0x18] sm:$0xff] %v5104
    %5152 = vst [vmem:[#allocation2 + $0x40] sm:$0xff] %v4995
    %5153 = vst [vmem:[#allocation2 + $0x48] sm:$0xff] %v4997
    %5154 = vst [vmem:[#allocation2 + $0x50] sm:$0xff] %v5108
    %5155 = vst [vmem:[#allocation2 + $0x58] sm:$0xff] %v5110
    %5156 = vst [vmem:[#allocation2 + $0x80] sm:$0xff] %v5001
    %5157 = vst [vmem:[#allocation2 + $0x88] sm:$0xff] %v5003
    %5158 = vst [vmem:[#allocation2 + $0x90] sm:$0xff] %v5114
    %5159 = vst [vmem:[#allocation2 + $0x98] sm:$0xff] %v5116
    %5160 = vst [vmem:[#allocation2 + $0xc0] sm:$0xff] %v5007
    %5161 = vst [vmem:[#allocation2 + $0xc8] sm:$0xff] %v5009
    %5162 = vst [vmem:[#allocation2 + $0xd0] sm:$0xff] %v5120
    %5163 = vst [vmem:[#allocation2 + $0xd8] sm:$0xff] %v5122
    %5164 = vst [vmem:[#allocation2 + $0x100] sm:$0xff] %v5013
    %5165 = vst [vmem:[#allocation2 + $0x108] sm:$0xff] %v5015
    %5166 = vst [vmem:[#allocation2 + $0x110] sm:$0xff] %v5126
    %5167 = vst [vmem:[#allocation2 + $0x118] sm:$0xff] %v5128
    %5168 = vst [vmem:[#allocation2 + $0x140] sm:$0xff] %v5019
    %5169 = vst [vmem:[#allocation2 + $0x148] sm:$0xff] %v5021
    %5170 = vst [vmem:[#allocation2 + $0x150] sm:$0xff] %v5132
    %5171 = vst [vmem:[#allocation2 + $0x158] sm:$0xff] %v5134
    %5172 = vst [vmem:[#allocation2 + $0x180] sm:$0xff] %v5025
    %5173 = vst [vmem:[#allocation2 + $0x188] sm:$0xff] %v5027
    %5174 = vst [vmem:[#allocation2 + $0x190] sm:$0xff] %v5138
    %5175 = vst [vmem:[#allocation2 + $0x198] sm:$0xff] %v5140
    %5176 = vst [vmem:[#allocation2 + $0x1c0] sm:$0xff] %v5031
    %5177 = vst [vmem:[#allocation2 + $0x1c8] sm:$0xff] %v5033
    %5178 = vst [vmem:[#allocation2 + $0x1d0] sm:$0xff] %v5144
    %5179 = vst [vmem:[#allocation2 + $0x1d8] sm:$0xff] %v5146
    %5180 = vst [vmem:[#allocation4] sm:$0xff] 0.0
    %5181 = vst [vmem:[#allocation4 + $0x8] sm:$0xff] 0.0
    %5182 = vst [vmem:[#allocation5] sm:$0xff] 0.0
    %5183 = vst [vmem:[#allocation5 + $0x8] sm:$0xff] 0.0
    %v5184 = vld [vmem:[%s1124] sm:$0xff]
    %v5185 = vld [vmem:[%s1124 + $0x8] sm:$0xff]
    %v5186 = vld [vmem:[%s1124 + $0x10] sm:$0xff]
    %v5187 = vld [vmem:[%s1124 + $0x18] sm:$0xff]
    %v5188 = vld [vmem:[#allocation4] sm:$0xff]
    %v5189 = vld [vmem:[#allocation11] sm:$0xff]
    %v5190 = vld [vmem:[#allocation11 + $0x8] sm:$0xff]
    %v5191 = vld [vmem:[#allocation11 + $0x10] sm:$0xff]
    %v5192 = vld [vmem:[#allocation11 + $0x18] sm:$0xff]
    %v5193 = vld [vmem:[#allocation11 + $0x20] sm:$0xff]
    %v5194 = vld [vmem:[#allocation11 + $0x28] sm:$0xff]
    %v5195 = vld [vmem:[#allocation11 + $0x30] sm:$0xff]
    %v5196 = vld [vmem:[#allocation11 + $0x38] sm:$0xff]
    %v5197 = vld [vmem:[#allocation11 + $0x40] sm:$0xff]
    %v5198 = vld [vmem:[#allocation11 + $0x48] sm:$0xff]
    %v5199 = vld [vmem:[#allocation11 + $0x50] sm:$0xff]
    %v5200 = vld [vmem:[#allocation11 + $0x58] sm:$0xff]
    %v5201 = vld [vmem:[#allocation11 + $0x60] sm:$0xff]
    %v5202 = vld [vmem:[#allocation11 + $0x68] sm:$0xff]
    %v5203 = vld [vmem:[#allocation11 + $0x70] sm:$0xff]
    %v5204 = vld [vmem:[#allocation11 + $0x78] sm:$0xff]
    %v5205 = vld [vmem:[#allocation11 + $0x80] sm:$0xff]
    %v5206 = vld [vmem:[#allocation11 + $0x88] sm:$0xff]
    %v5207 = vld [vmem:[#allocation11 + $0x90] sm:$0xff]
    %v5208 = vld [vmem:[#allocation11 + $0x98] sm:$0xff]
    %v5209 = vld [vmem:[#allocation11 + $0xa0] sm:$0xff]
    %v5210 = vld [vmem:[#allocation11 + $0xa8] sm:$0xff]
    %v5211 = vld [vmem:[#allocation11 + $0xb0] sm:$0xff]
    %v5212 = vld [vmem:[#allocation11 + $0xb8] sm:$0xff]
    %v5213 = vld [vmem:[#allocation11 + $0xc0] sm:$0xff]
    %v5214 = vld [vmem:[#allocation11 + $0xc8] sm:$0xff]
    %v5215 = vld [vmem:[#allocation11 + $0xd0] sm:$0xff]
    %v5216 = vld [vmem:[#allocation11 + $0xd8] sm:$0xff]
    %v5217 = vld [vmem:[#allocation11 + $0xe0] sm:$0xff]
    %v5218 = vld [vmem:[#allocation11 + $0xe8] sm:$0xff]
    %v5219 = vld [vmem:[#allocation11 + $0xf0] sm:$0xff]
    %v5220 = vld [vmem:[#allocation11 + $0xf8] sm:$0xff]
    %v5221 = vld [vmem:[#allocation11 + $0x100] sm:$0xff]
    %v5222 = vld [vmem:[#allocation11 + $0x108] sm:$0xff]
    %v5223 = vld [vmem:[#allocation11 + $0x110] sm:$0xff]
    %v5224 = vld [vmem:[#allocation11 + $0x118] sm:$0xff]
    %v5225 = vld [vmem:[#allocation11 + $0x120] sm:$0xff]
    %v5226 = vld [vmem:[#allocation11 + $0x128] sm:$0xff]
    %v5227 = vld [vmem:[#allocation11 + $0x130] sm:$0xff]
    %v5228 = vld [vmem:[#allocation11 + $0x138] sm:$0xff]
    %v5229 = vld [vmem:[#allocation11 + $0x140] sm:$0xff]
    %v5230 = vld [vmem:[#allocation11 + $0x148] sm:$0xff]
    %v5231 = vld [vmem:[#allocation11 + $0x150] sm:$0xff]
    %v5232 = vld [vmem:[#allocation11 + $0x158] sm:$0xff]
    %v5233 = vld [vmem:[#allocation11 + $0x160] sm:$0xff]
    %v5234 = vld [vmem:[#allocation11 + $0x168] sm:$0xff]
    %v5235 = vld [vmem:[#allocation11 + $0x170] sm:$0xff]
    %v5236 = vld [vmem:[#allocation11 + $0x178] sm:$0xff]
    %v5237 = vld [vmem:[#allocation11 + $0x180] sm:$0xff]
    %v5238 = vld [vmem:[#allocation11 + $0x188] sm:$0xff]
    %v5239 = vld [vmem:[#allocation11 + $0x190] sm:$0xff]
    %v5240 = vld [vmem:[#allocation11 + $0x198] sm:$0xff]
    %v5241 = vld [vmem:[#allocation11 + $0x1a0] sm:$0xff]
    %v5242 = vld [vmem:[#allocation11 + $0x1a8] sm:$0xff]
    %v5243 = vld [vmem:[#allocation11 + $0x1b0] sm:$0xff]
    %v5244 = vld [vmem:[#allocation11 + $0x1b8] sm:$0xff]
    %v5245 = vld [vmem:[#allocation11 + $0x1c0] sm:$0xff]
    %v5246 = vld [vmem:[#allocation11 + $0x1c8] sm:$0xff]
    %v5247 = vld [vmem:[#allocation11 + $0x1d0] sm:$0xff]
    %v5248 = vld [vmem:[#allocation11 + $0x1d8] sm:$0xff]
    %v5249 = vld [vmem:[#allocation11 + $0x1e0] sm:$0xff]
    %v5250 = vld [vmem:[#allocation11 + $0x1e8] sm:$0xff]
    %v5251 = vld [vmem:[#allocation11 + $0x1f0] sm:$0xff]
    %v5252 = vld [vmem:[#allocation11 + $0x1f8] sm:$0xff]
    %5253 = vmatprep.subr.mxu0 %v5190
    %5254 = vmatpush1.msra.mxu0 %v5189
    %5255 = vmatprep.subr.mxu0 %v5194
    %5256 = vmatpush1.msra.mxu0 %v5193
    %5257 = vmatprep.subr.mxu0 %v5198
    %5258 = vmatpush1.msra.mxu0 %v5197
    %5259 = vmatprep.subr.mxu0 %v5202
    %5260 = vmatpush1.msra.mxu0 %v5201
    %5261 = vmatprep.subr.mxu0 %v5206
    %5262 = vmatpush1.msra.mxu0 %v5205
    %5263 = vmatprep.subr.mxu0 %v5210
    %5264 = vmatpush1.msra.mxu0 %v5209
    %5265 = vmatprep.subr.mxu0 %v5214
    %5266 = vmatpush1.msra.mxu0 %v5213
    %5267 = vmatprep.subr.mxu0 %v5218
    %5268 = vmatpush1.msra.mxu0 %v5217
    %5269 = vmatprep.subr.mxu0 %v5222
    %5270 = vmatpush1.msra.mxu0 %v5221
    %5271 = vmatprep.subr.mxu0 %v5226
    %5272 = vmatpush1.msra.mxu0 %v5225
    %5273 = vmatprep.subr.mxu0 %v5230
    %5274 = vmatpush1.msra.mxu0 %v5229
    %5275 = vmatprep.subr.mxu0 %v5234
    %5276 = vmatpush1.msra.mxu0 %v5233
    %5277 = vmatprep.subr.mxu0 %v5238
    %5278 = vmatpush1.msra.mxu0 %v5237
    %5279 = vmatprep.subr.mxu0 %v5242
    %5280 = vmatpush1.msra.mxu0 %v5241
    %5281 = vmatprep.subr.mxu0 %v5246
    %5282 = vmatpush1.msra.mxu0 %v5245
    %5283 = vmatprep.subr.mxu0 %v5250
    %5284 = vmatpush1.msra.mxu0 %v5249
    %5285 = vmatprep.subr.mxu0 0.0
    %5286 = vmatpush1.msra.mxu0 0.0
    %5287 = vmatprep.subr.mxu0 0.0
    %5288 = vmatpush1.msra.mxu0 0.0
    %5289 = vmatprep.subr.mxu0 0.0
    %5290 = vmatpush1.msra.mxu0 0.0
    %5291 = vmatprep.subr.mxu0 0.0
    %5292 = vmatpush1.msra.mxu0 0.0
    %5293 = vmatprep.subr.mxu0 0.0
    %5294 = vmatpush1.msra.mxu0 0.0
    %5295 = vmatprep.subr.mxu0 0.0
    %5296 = vmatpush1.msra.mxu0 0.0
    %5297 = vmatprep.subr.mxu0 0.0
    %5298 = vmatpush1.msra.mxu0 0.0
    %5299 = vmatprep.subr.mxu0 0.0
    %5300 = vmatpush1.msra.mxu0 0.0
    %5301 = vmatprep.subr.mxu0 0.0
    %5302 = vmatpush1.msra.mxu0 0.0
    %5303 = vmatprep.subr.mxu0 0.0
    %5304 = vmatpush1.msra.mxu0 0.0
    %5305 = vmatprep.subr.mxu0 0.0
    %5306 = vmatpush1.msra.mxu0 0.0
    %5307 = vmatprep.subr.mxu0 0.0
    %5308 = vmatpush1.msra.mxu0 0.0
    %5309 = vmatprep.subr.mxu0 0.0
    %5310 = vmatpush1.msra.mxu0 0.0
    %5311 = vmatprep.subr.mxu0 0.0
    %5312 = vmatpush1.msra.mxu0 0.0
    %5313 = vmatprep.subr.mxu0 0.0
    %5314 = vmatpush1.msra.mxu0 0.0
    %5315 = vmatprep.subr.mxu0 0.0
    %5316 = vmatpush1.msra.mxu0 0.0
    %5317 = vmatprep.mubr.f32.mxu0 0.0
    %5318 = vmatmul.mubr.f32.gmra.mrb[0].mxu0 %v5188
    %v5319 = vpop.f32.mrb[0].mxu0
    %v5320 = vadd.f32 0.0, %v5319
    %v5321 = vpop.f32.mrb[0].mxu0
    %v5322 = vadd.f32 0.0, %v5321
    %5323 = vdwg.mxu0
    %5324 = vmatprep.subr.mxu0 %v5192
    %5325 = vmatpush1.msra.mxu0 %v5191
    %5326 = vmatprep.subr.mxu0 %v5196
    %5327 = vmatpush1.msra.mxu0 %v5195
    %5328 = vmatprep.subr.mxu0 %v5200
    %5329 = vmatpush1.msra.mxu0 %v5199
    %5330 = vmatprep.subr.mxu0 %v5204
    %5331 = vmatpush1.msra.mxu0 %v5203
    %5332 = vmatprep.subr.mxu0 %v5208
    %5333 = vmatpush1.msra.mxu0 %v5207
    %5334 = vmatprep.subr.mxu0 %v5212
    %5335 = vmatpush1.msra.mxu0 %v5211
    %5336 = vmatprep.subr.mxu0 %v5216
    %5337 = vmatpush1.msra.mxu0 %v5215
    %5338 = vmatprep.subr.mxu0 %v5220
    %5339 = vmatpush1.msra.mxu0 %v5219
    %5340 = vmatprep.subr.mxu0 %v5224
    %5341 = vmatpush1.msra.mxu0 %v5223
    %5342 = vmatprep.subr.mxu0 %v5228
    %5343 = vmatpush1.msra.mxu0 %v5227
    %5344 = vmatprep.subr.mxu0 %v5232
    %5345 = vmatpush1.msra.mxu0 %v5231
    %5346 = vmatprep.subr.mxu0 %v5236
    %5347 = vmatpush1.msra.mxu0 %v5235
    %5348 = vmatprep.subr.mxu0 %v5240
    %5349 = vmatpush1.msra.mxu0 %v5239
    %5350 = vmatprep.subr.mxu0 %v5244
    %5351 = vmatpush1.msra.mxu0 %v5243
    %5352 = vmatprep.subr.mxu0 %v5248
    %5353 = vmatpush1.msra.mxu0 %v5247
    %5354 = vmatprep.subr.mxu0 %v5252
    %5355 = vmatpush1.msra.mxu0 %v5251
    %5356 = vmatprep.subr.mxu0 0.0
    %5357 = vmatpush1.msra.mxu0 0.0
    %5358 = vmatprep.subr.mxu0 0.0
    %5359 = vmatpush1.msra.mxu0 0.0
    %5360 = vmatprep.subr.mxu0 0.0
    %5361 = vmatpush1.msra.mxu0 0.0
    %5362 = vmatprep.subr.mxu0 0.0
    %5363 = vmatpush1.msra.mxu0 0.0
    %5364 = vmatprep.subr.mxu0 0.0
    %5365 = vmatpush1.msra.mxu0 0.0
    %5366 = vmatprep.subr.mxu0 0.0
    %5367 = vmatpush1.msra.mxu0 0.0
    %5368 = vmatprep.subr.mxu0 0.0
    %5369 = vmatpush1.msra.mxu0 0.0
    %5370 = vmatprep.subr.mxu0 0.0
    %5371 = vmatpush1.msra.mxu0 0.0
    %5372 = vmatprep.subr.mxu0 0.0
    %5373 = vmatpush1.msra.mxu0 0.0
    %5374 = vmatprep.subr.mxu0 0.0
    %5375 = vmatpush1.msra.mxu0 0.0
    %5376 = vmatprep.subr.mxu0 0.0
    %5377 = vmatpush1.msra.mxu0 0.0
    %5378 = vmatprep.subr.mxu0 0.0
    %5379 = vmatpush1.msra.mxu0 0.0
    %5380 = vmatprep.subr.mxu0 0.0
    %5381 = vmatpush1.msra.mxu0 0.0
    %5382 = vmatprep.subr.mxu0 0.0
    %5383 = vmatpush1.msra.mxu0 0.0
    %5384 = vmatprep.subr.mxu0 0.0
    %5385 = vmatpush1.msra.mxu0 0.0
    %5386 = vmatprep.subr.mxu0 0.0
    %5387 = vmatpush1.msra.mxu0 0.0
    %5388 = vmatprep.mubr.f32.mxu0 0.0
    %5389 = vmatmul.mubr.f32.gmra.mrb[0].mxu0 %v5188
    %v5390 = vpop.f32.mrb[0].mxu0
    %v5391 = vadd.f32 0.0, %v5390
    %v5392 = vpop.f32.mrb[0].mxu0
    %v5393 = vadd.f32 0.0, %v5392
    %5394 = vdwg.mxu0
    %v5395 = vadd.f32 %v5184, %v5320
    %v5396 = vadd.f32 %v5185, %v5322
    %v5397 = vadd.f32 %v5186, %v5391
    %v5398 = vadd.f32 %v5187, %v5393
    %v5399 = vld [vmem:[#allocation5] sm:$0xff]
    %v5400 = vxor.u32 %v5395, 2147483648
    %v5401 = vmul.f32 %v5400, 1.442695
    %v5402 = vpow.pop %v5401
    %v5403 = vadd.f32 %v5402, 1.0
    %v5404 = vrcp.pop %v5403
    %v5405 = vmul.f32 1.0, %v5404
    %v5406 = vxor.u32 %v5396, 2147483648
    %v5407 = vmul.f32 %v5406, 1.442695
    %v5408 = vpow.pop %v5407
    %v5409 = vadd.f32 %v5408, 1.0
    %v5410 = vrcp.pop %v5409
    %v5411 = vmul.f32 1.0, %v5410
    %v5412 = vtanh.pop %v5397
    %v5413 = vxor.u32 %v5398, 2147483648
    %v5414 = vmul.f32 %v5413, 1.442695
    %v5415 = vpow.pop %v5414
    %v5416 = vadd.f32 %v5415, 1.0
    %v5417 = vrcp.pop %v5416
    %v5418 = vmul.f32 1.0, %v5417
    %v5419 = vmul.f32 %v5411, %v5399
    %v5420 = vmul.f32 %v5405, %v5412
    %v5421 = vadd.f32 %v5419, %v5420
    %v5422 = vtanh.pop %v5421
    %v5423 = vmul.f32 %v5418, %v5422
    %5424 = vst [vmem:[#allocation4] sm:$0xff] %v5423
    %5425 = vst [vmem:[#allocation5] sm:$0xff] %v5421
    %v5426 = vld [vmem:[%s1638] sm:$0xff]
    %v5427 = vld [vmem:[%s1638 + $0x8] sm:$0xff]
    %v5428 = vld [vmem:[%s1638 + $0x10] sm:$0xff]
    %v5429 = vld [vmem:[%s1638 + $0x18] sm:$0xff]
    %v5430 = vld [vmem:[#allocation4] sm:$0xff]
    %v5431 = vld [vmem:[#allocation11] sm:$0xff]
    %v5432 = vld [vmem:[#allocation11 + $0x8] sm:$0xff]
    %v5433 = vld [vmem:[#allocation11 + $0x10] sm:$0xff]
    %v5434 = vld [vmem:[#allocation11 + $0x18] sm:$0xff]
    %v5435 = vld [vmem:[#allocation11 + $0x20] sm:$0xff]
    %v5436 = vld [vmem:[#allocation11 + $0x28] sm:$0xff]
    %v5437 = vld [vmem:[#allocation11 + $0x30] sm:$0xff]
    %v5438 = vld [vmem:[#allocation11 + $0x38] sm:$0xff]
    %v5439 = vld [vmem:[#allocation11 + $0x40] sm:$0xff]
    %v5440 = vld [vmem:[#allocation11 + $0x48] sm:$0xff]
    %v5441 = vld [vmem:[#allocation11 + $0x50] sm:$0xff]
    %v5442 = vld [vmem:[#allocation11 + $0x58] sm:$0xff]
    %v5443 = vld [vmem:[#allocation11 + $0x60] sm:$0xff]
    %v5444 = vld [vmem:[#allocation11 + $0x68] sm:$0xff]
    %v5445 = vld [vmem:[#allocation11 + $0x70] sm:$0xff]
    %v5446 = vld [vmem:[#allocation11 + $0x78] sm:$0xff]
    %v5447 = vld [vmem:[#allocation11 + $0x80] sm:$0xff]
    %v5448 = vld [vmem:[#allocation11 + $0x88] sm:$0xff]
    %v5449 = vld [vmem:[#allocation11 + $0x90] sm:$0xff]
    %v5450 = vld [vmem:[#allocation11 + $0x98] sm:$0xff]
    %v5451 = vld [vmem:[#allocation11 + $0xa0] sm:$0xff]
    %v5452 = vld [vmem:[#allocation11 + $0xa8] sm:$0xff]
    %v5453 = vld [vmem:[#allocation11 + $0xb0] sm:$0xff]
    %v5454 = vld [vmem:[#allocation11 + $0xb8] sm:$0xff]
    %v5455 = vld [vmem:[#allocation11 + $0xc0] sm:$0xff]
    %v5456 = vld [vmem:[#allocation11 + $0xc8] sm:$0xff]
    %v5457 = vld [vmem:[#allocation11 + $0xd0] sm:$0xff]
    %v5458 = vld [vmem:[#allocation11 + $0xd8] sm:$0xff]
    %v5459 = vld [vmem:[#allocation11 + $0xe0] sm:$0xff]
    %v5460 = vld [vmem:[#allocation11 + $0xe8] sm:$0xff]
    %v5461 = vld [vmem:[#allocation11 + $0xf0] sm:$0xff]
    %v5462 = vld [vmem:[#allocation11 + $0xf8] sm:$0xff]
    %v5463 = vld [vmem:[#allocation11 + $0x100] sm:$0xff]
    %v5464 = vld [vmem:[#allocation11 + $0x108] sm:$0xff]
    %v5465 = vld [vmem:[#allocation11 + $0x110] sm:$0xff]
    %v5466 = vld [vmem:[#allocation11 + $0x118] sm:$0xff]
    %v5467 = vld [vmem:[#allocation11 + $0x120] sm:$0xff]
    %v5468 = vld [vmem:[#allocation11 + $0x128] sm:$0xff]
    %v5469 = vld [vmem:[#allocation11 + $0x130] sm:$0xff]
    %v5470 = vld [vmem:[#allocation11 + $0x138] sm:$0xff]
    %v5471 = vld [vmem:[#allocation11 + $0x140] sm:$0xff]
    %v5472 = vld [vmem:[#allocation11 + $0x148] sm:$0xff]
    %v5473 = vld [vmem:[#allocation11 + $0x150] sm:$0xff]
    %v5474 = vld [vmem:[#allocation11 + $0x158] sm:$0xff]
    %v5475 = vld [vmem:[#allocation11 + $0x160] sm:$0xff]
    %v5476 = vld [vmem:[#allocation11 + $0x168] sm:$0xff]
    %v5477 = vld [vmem:[#allocation11 + $0x170] sm:$0xff]
    %v5478 = vld [vmem:[#allocation11 + $0x178] sm:$0xff]
    %v5479 = vld [vmem:[#allocation11 + $0x180] sm:$0xff]
    %v5480 = vld [vmem:[#allocation11 + $0x188] sm:$0xff]
    %v5481 = vld [vmem:[#allocation11 + $0x190] sm:$0xff]
    %v5482 = vld [vmem:[#allocation11 + $0x198] sm:$0xff]
    %v5483 = vld [vmem:[#allocation11 + $0x1a0] sm:$0xff]
    %v5484 = vld [vmem:[#allocation11 + $0x1a8] sm:$0xff]
    %v5485 = vld [vmem:[#allocation11 + $0x1b0] sm:$0xff]
    %v5486 = vld [vmem:[#allocation11 + $0x1b8] sm:$0xff]
    %v5487 = vld [vmem:[#allocation11 + $0x1c0] sm:$0xff]
    %v5488 = vld [vmem:[#allocation11 + $0x1c8] sm:$0xff]
    %v5489 = vld [vmem:[#allocation11 + $0x1d0] sm:$0xff]
    %v5490 = vld [vmem:[#allocation11 + $0x1d8] sm:$0xff]
    %v5491 = vld [vmem:[#allocation11 + $0x1e0] sm:$0xff]
    %v5492 = vld [vmem:[#allocation11 + $0x1e8] sm:$0xff]
    %v5493 = vld [vmem:[#allocation11 + $0x1f0] sm:$0xff]
    %v5494 = vld [vmem:[#allocation11 + $0x1f8] sm:$0xff]
    %5495 = vmatprep.subr.mxu0 %v5432
    %5496 = vmatpush1.msra.mxu0 %v5431
    %5497 = vmatprep.subr.mxu0 %v5436
    %5498 = vmatpush1.msra.mxu0 %v5435
    %5499 = vmatprep.subr.mxu0 %v5440
    %5500 = vmatpush1.msra.mxu0 %v5439
    %5501 = vmatprep.subr.mxu0 %v5444
    %5502 = vmatpush1.msra.mxu0 %v5443
    %5503 = vmatprep.subr.mxu0 %v5448
    %5504 = vmatpush1.msra.mxu0 %v5447
    %5505 = vmatprep.subr.mxu0 %v5452
    %5506 = vmatpush1.msra.mxu0 %v5451
    %5507 = vmatprep.subr.mxu0 %v5456
    %5508 = vmatpush1.msra.mxu0 %v5455
    %5509 = vmatprep.subr.mxu0 %v5460
    %5510 = vmatpush1.msra.mxu0 %v5459
    %5511 = vmatprep.subr.mxu0 %v5464
    %5512 = vmatpush1.msra.mxu0 %v5463
    %5513 = vmatprep.subr.mxu0 %v5468
    %5514 = vmatpush1.msra.mxu0 %v5467
    %5515 = vmatprep.subr.mxu0 %v5472
    %5516 = vmatpush1.msra.mxu0 %v5471
    %5517 = vmatprep.subr.mxu0 %v5476
    %5518 = vmatpush1.msra.mxu0 %v5475
    %5519 = vmatprep.subr.mxu0 %v5480
    %5520 = vmatpush1.msra.mxu0 %v5479
    %5521 = vmatprep.subr.mxu0 %v5484
    %5522 = vmatpush1.msra.mxu0 %v5483
    %5523 = vmatprep.subr.mxu0 %v5488
    %5524 = vmatpush1.msra.mxu0 %v5487
    %5525 = vmatprep.subr.mxu0 %v5492
    %5526 = vmatpush1.msra.mxu0 %v5491
    %5527 = vmatprep.subr.mxu0 0.0
    %5528 = vmatpush1.msra.mxu0 0.0
    %5529 = vmatprep.subr.mxu0 0.0
    %5530 = vmatpush1.msra.mxu0 0.0
    %5531 = vmatprep.subr.mxu0 0.0
    %5532 = vmatpush1.msra.mxu0 0.0
    %5533 = vmatprep.subr.mxu0 0.0
    %5534 = vmatpush1.msra.mxu0 0.0
    %5535 = vmatprep.subr.mxu0 0.0
    %5536 = vmatpush1.msra.mxu0 0.0
    %5537 = vmatprep.subr.mxu0 0.0
    %5538 = vmatpush1.msra.mxu0 0.0
    %5539 = vmatprep.subr.mxu0 0.0
    %5540 = vmatpush1.msra.mxu0 0.0
    %5541 = vmatprep.subr.mxu0 0.0
    %5542 = vmatpush1.msra.mxu0 0.0
    %5543 = vmatprep.subr.mxu0 0.0
    %5544 = vmatpush1.msra.mxu0 0.0
    %5545 = vmatprep.subr.mxu0 0.0
    %5546 = vmatpush1.msra.mxu0 0.0
    %5547 = vmatprep.subr.mxu0 0.0
    %5548 = vmatpush1.msra.mxu0 0.0
    %5549 = vmatprep.subr.mxu0 0.0
    %5550 = vmatpush1.msra.mxu0 0.0
    %5551 = vmatprep.subr.mxu0 0.0
    %5552 = vmatpush1.msra.mxu0 0.0
    %5553 = vmatprep.subr.mxu0 0.0
    %5554 = vmatpush1.msra.mxu0 0.0
    %5555 = vmatprep.subr.mxu0 0.0
    %5556 = vmatpush1.msra.mxu0 0.0
    %5557 = vmatprep.subr.mxu0 0.0
    %5558 = vmatpush1.msra.mxu0 0.0
    %5559 = vmatprep.mubr.f32.mxu0 0.0
    %5560 = vmatmul.mubr.f32.gmra.mrb[0].mxu0 %v5430
    %v5561 = vpop.f32.mrb[0].mxu0
    %v5562 = vadd.f32 0.0, %v5561
    %v5563 = vpop.f32.mrb[0].mxu0
    %v5564 = vadd.f32 0.0, %v5563
    %5565 = vdwg.mxu0
    %5566 = vmatprep.subr.mxu0 %v5434
    %5567 = vmatpush1.msra.mxu0 %v5433
    %5568 = vmatprep.subr.mxu0 %v5438
    %5569 = vmatpush1.msra.mxu0 %v5437
    %5570 = vmatprep.subr.mxu0 %v5442
    %5571 = vmatpush1.msra.mxu0 %v5441
    %5572 = vmatprep.subr.mxu0 %v5446
    %5573 = vmatpush1.msra.mxu0 %v5445
    %5574 = vmatprep.subr.mxu0 %v5450
    %5575 = vmatpush1.msra.mxu0 %v5449
    %5576 = vmatprep.subr.mxu0 %v5454
    %5577 = vmatpush1.msra.mxu0 %v5453
    %5578 = vmatprep.subr.mxu0 %v5458
    %5579 = vmatpush1.msra.mxu0 %v5457
    %5580 = vmatprep.subr.mxu0 %v5462
    %5581 = vmatpush1.msra.mxu0 %v5461
    %5582 = vmatprep.subr.mxu0 %v5466
    %5583 = vmatpush1.msra.mxu0 %v5465
    %5584 = vmatprep.subr.mxu0 %v5470
    %5585 = vmatpush1.msra.mxu0 %v5469
    %5586 = vmatprep.subr.mxu0 %v5474
    %5587 = vmatpush1.msra.mxu0 %v5473
    %5588 = vmatprep.subr.mxu0 %v5478
    %5589 = vmatpush1.msra.mxu0 %v5477
    %5590 = vmatprep.subr.mxu0 %v5482
    %5591 = vmatpush1.msra.mxu0 %v5481
    %5592 = vmatprep.subr.mxu0 %v5486
    %5593 = vmatpush1.msra.mxu0 %v5485
    %5594 = vmatprep.subr.mxu0 %v5490
    %5595 = vmatpush1.msra.mxu0 %v5489
    %5596 = vmatprep.subr.mxu0 %v5494
    %5597 = vmatpush1.msra.mxu0 %v5493
    %5598 = vmatprep.subr.mxu0 0.0
    %5599 = vmatpush1.msra.mxu0 0.0
    %5600 = vmatprep.subr.mxu0 0.0
    %5601 = vmatpush1.msra.mxu0 0.0
    %5602 = vmatprep.subr.mxu0 0.0
    %5603 = vmatpush1.msra.mxu0 0.0
    %5604 = vmatprep.subr.mxu0 0.0
    %5605 = vmatpush1.msra.mxu0 0.0
    %5606 = vmatprep.subr.mxu0 0.0
    %5607 = vmatpush1.msra.mxu0 0.0
    %5608 = vmatprep.subr.mxu0 0.0
    %5609 = vmatpush1.msra.mxu0 0.0
    %5610 = vmatprep.subr.mxu0 0.0
    %5611 = vmatpush1.msra.mxu0 0.0
    %5612 = vmatprep.subr.mxu0 0.0
    %5613 = vmatpush1.msra.mxu0 0.0
    %5614 = vmatprep.subr.mxu0 0.0
    %5615 = vmatpush1.msra.mxu0 0.0
    %5616 = vmatprep.subr.mxu0 0.0
    %5617 = vmatpush1.msra.mxu0 0.0
    %5618 = vmatprep.subr.mxu0 0.0
    %5619 = vmatpush1.msra.mxu0 0.0
    %5620 = vmatprep.subr.mxu0 0.0
    %5621 = vmatpush1.msra.mxu0 0.0
    %5622 = vmatprep.subr.mxu0 0.0
    %5623 = vmatpush1.msra.mxu0 0.0
    %5624 = vmatprep.subr.mxu0 0.0
    %5625 = vmatpush1.msra.mxu0 0.0
    %5626 = vmatprep.subr.mxu0 0.0
    %5627 = vmatpush1.msra.mxu0 0.0
    %5628 = vmatprep.subr.mxu0 0.0
    %5629 = vmatpush1.msra.mxu0 0.0
    %5630 = vmatprep.mubr.f32.mxu0 0.0
    %5631 = vmatmul.mubr.f32.gmra.mrb[0].mxu0 %v5430
    %v5632 = vpop.f32.mrb[0].mxu0
    %v5633 = vadd.f32 0.0, %v5632
    %v5634 = vpop.f32.mrb[0].mxu0
    %v5635 = vadd.f32 0.0, %v5634
    %5636 = vdwg.mxu0
    %v5637 = vadd.f32 %v5426, %v5562
    %v5638 = vadd.f32 %v5427, %v5564
    %v5639 = vadd.f32 %v5428, %v5633
    %v5640 = vadd.f32 %v5429, %v5635
    %v5641 = vld [vmem:[#allocation5] sm:$0xff]
    %v5642 = vxor.u32 %v5637, 2147483648
    %v5643 = vmul.f32 %v5642, 1.442695
    %v5644 = vpow.pop %v5643
    %v5645 = vadd.f32 %v5644, 1.0
    %v5646 = vrcp.pop %v5645
    %v5647 = vmul.f32 1.0, %v5646
    %v5648 = vxor.u32 %v5638, 2147483648
    %v5649 = vmul.f32 %v5648, 1.442695
    %v5650 = vpow.pop %v5649
    %v5651 = vadd.f32 %v5650, 1.0
    %v5652 = vrcp.pop %v5651
    %v5653 = vmul.f32 1.0, %v5652
    %v5654 = vtanh.pop %v5639
    %v5655 = vxor.u32 %v5640, 2147483648
    %v5656 = vmul.f32 %v5655, 1.442695
    %v5657 = vpow.pop %v5656
    %v5658 = vadd.f32 %v5657, 1.0
    %v5659 = vrcp.pop %v5658
    %v5660 = vmul.f32 1.0, %v5659
    %v5661 = vmul.f32 %v5653, %v5641
    %v5662 = vmul.f32 %v5647, %v5654
    %v5663 = vadd.f32 %v5661, %v5662
    %v5664 = vtanh.pop %v5663
    %v5665 = vmul.f32 %v5660, %v5664
    %5666 = vst [vmem:[#allocation4] sm:$0xff] %v5665
    %5667 = vst [vmem:[#allocation5] sm:$0xff] %v5663
    %v5668 = vld [vmem:[%s2152] sm:$0xff]
    %v5669 = vld [vmem:[%s2152 + $0x8] sm:$0xff]
    %v5670 = vld [vmem:[%s2152 + $0x10] sm:$0xff]
    %v5671 = vld [vmem:[%s2152 + $0x18] sm:$0xff]
    %v5672 = vld [vmem:[#allocation4] sm:$0xff]
    %v5673 = vld [vmem:[#allocation11] sm:$0xff]
    %v5674 = vld [vmem:[#allocation11 + $0x8] sm:$0xff]
    %v5675 = vld [vmem:[#allocation11 + $0x10] sm:$0xff]
    %v5676 = vld [vmem:[#allocation11 + $0x18] sm:$0xff]
    %v5677 = vld [vmem:[#allocation11 + $0x20] sm:$0xff]
    %v5678 = vld [vmem:[#allocation11 + $0x28] sm:$0xff]
    %v5679 = vld [vmem:[#allocation11 + $0x30] sm:$0xff]
    %v5680 = vld [vmem:[#allocation11 + $0x38] sm:$0xff]
    %v5681 = vld [vmem:[#allocation11 + $0x40] sm:$0xff]
    %v5682 = vld [vmem:[#allocation11 + $0x48] sm:$0xff]
    %v5683 = vld [vmem:[#allocation11 + $0x50] sm:$0xff]
    %v5684 = vld [vmem:[#allocation11 + $0x58] sm:$0xff]
    %v5685 = vld [vmem:[#allocation11 + $0x60] sm:$0xff]
    %v5686 = vld [vmem:[#allocation11 + $0x68] sm:$0xff]
    %v5687 = vld [vmem:[#allocation11 + $0x70] sm:$0xff]
    %v5688 = vld [vmem:[#allocation11 + $0x78] sm:$0xff]
    %v5689 = vld [vmem:[#allocation11 + $0x80] sm:$0xff]
    %v5690 = vld [vmem:[#allocation11 + $0x88] sm:$0xff]
    %v5691 = vld [vmem:[#allocation11 + $0x90] sm:$0xff]
    %v5692 = vld [vmem:[#allocation11 + $0x98] sm:$0xff]
    %v5693 = vld [vmem:[#allocation11 + $0xa0] sm:$0xff]
    %v5694 = vld [vmem:[#allocation11 + $0xa8] sm:$0xff]
    %v5695 = vld [vmem:[#allocation11 + $0xb0] sm:$0xff]
    %v5696 = vld [vmem:[#allocation11 + $0xb8] sm:$0xff]
    %v5697 = vld [vmem:[#allocation11 + $0xc0] sm:$0xff]
    %v5698 = vld [vmem:[#allocation11 + $0xc8] sm:$0xff]
    %v5699 = vld [vmem:[#allocation11 + $0xd0] sm:$0xff]
    %v5700 = vld [vmem:[#allocation11 + $0xd8] sm:$0xff]
    %v5701 = vld [vmem:[#allocation11 + $0xe0] sm:$0xff]
    %v5702 = vld [vmem:[#allocation11 + $0xe8] sm:$0xff]
    %v5703 = vld [vmem:[#allocation11 + $0xf0] sm:$0xff]
    %v5704 = vld [vmem:[#allocation11 + $0xf8] sm:$0xff]
    %v5705 = vld [vmem:[#allocation11 + $0x100] sm:$0xff]
    %v5706 = vld [vmem:[#allocation11 + $0x108] sm:$0xff]
    %v5707 = vld [vmem:[#allocation11 + $0x110] sm:$0xff]
    %v5708 = vld [vmem:[#allocation11 + $0x118] sm:$0xff]
    %v5709 = vld [vmem:[#allocation11 + $0x120] sm:$0xff]
    %v5710 = vld [vmem:[#allocation11 + $0x128] sm:$0xff]
    %v5711 = vld [vmem:[#allocation11 + $0x130] sm:$0xff]
    %v5712 = vld [vmem:[#allocation11 + $0x138] sm:$0xff]
    %v5713 = vld [vmem:[#allocation11 + $0x140] sm:$0xff]
    %v5714 = vld [vmem:[#allocation11 + $0x148] sm:$0xff]
    %v5715 = vld [vmem:[#allocation11 + $0x150] sm:$0xff]
    %v5716 = vld [vmem:[#allocation11 + $0x158] sm:$0xff]
    %v5717 = vld [vmem:[#allocation11 + $0x160] sm:$0xff]
    %v5718 = vld [vmem:[#allocation11 + $0x168] sm:$0xff]
    %v5719 = vld [vmem:[#allocation11 + $0x170] sm:$0xff]
    %v5720 = vld [vmem:[#allocation11 + $0x178] sm:$0xff]
    %v5721 = vld [vmem:[#allocation11 + $0x180] sm:$0xff]
    %v5722 = vld [vmem:[#allocation11 + $0x188] sm:$0xff]
    %v5723 = vld [vmem:[#allocation11 + $0x190] sm:$0xff]
    %v5724 = vld [vmem:[#allocation11 + $0x198] sm:$0xff]
    %v5725 = vld [vmem:[#allocation11 + $0x1a0] sm:$0xff]
    %v5726 = vld [vmem:[#allocation11 + $0x1a8] sm:$0xff]
    %v5727 = vld [vmem:[#allocation11 + $0x1b0] sm:$0xff]
    %v5728 = vld [vmem:[#allocation11 + $0x1b8] sm:$0xff]
    %v5729 = vld [vmem:[#allocation11 + $0x1c0] sm:$0xff]
    %v5730 = vld [vmem:[#allocation11 + $0x1c8] sm:$0xff]
    %v5731 = vld [vmem:[#allocation11 + $0x1d0] sm:$0xff]
    %v5732 = vld [vmem:[#allocation11 + $0x1d8] sm:$0xff]
    %v5733 = vld [vmem:[#allocation11 + $0x1e0] sm:$0xff]
    %v5734 = vld [vmem:[#allocation11 + $0x1e8] sm:$0xff]
    %v5735 = vld [vmem:[#allocation11 + $0x1f0] sm:$0xff]
    %v5736 = vld [vmem:[#allocation11 + $0x1f8] sm:$0xff]
    %5737 = vmatprep.subr.mxu0 %v5674
    %5738 = vmatpush1.msra.mxu0 %v5673
    %5739 = vmatprep.subr.mxu0 %v5678
    %5740 = vmatpush1.msra.mxu0 %v5677
    %5741 = vmatprep.subr.mxu0 %v5682
    %5742 = vmatpush1.msra.mxu0 %v5681
    %5743 = vmatprep.subr.mxu0 %v5686
    %5744 = vmatpush1.msra.mxu0 %v5685
    %5745 = vmatprep.subr.mxu0 %v5690
    %5746 = vmatpush1.msra.mxu0 %v5689
    %5747 = vmatprep.subr.mxu0 %v5694
    %5748 = vmatpush1.msra.mxu0 %v5693
    %5749 = vmatprep.subr.mxu0 %v5698
    %5750 = vmatpush1.msra.mxu0 %v5697
    %5751 = vmatprep.subr.mxu0 %v5702
    %5752 = vmatpush1.msra.mxu0 %v5701
    %5753 = vmatprep.subr.mxu0 %v5706
    %5754 = vmatpush1.msra.mxu0 %v5705
    %5755 = vmatprep.subr.mxu0 %v5710
    %5756 = vmatpush1.msra.mxu0 %v5709
    %5757 = vmatprep.subr.mxu0 %v5714
    %5758 = vmatpush1.msra.mxu0 %v5713
    %5759 = vmatprep.subr.mxu0 %v5718
    %5760 = vmatpush1.msra.mxu0 %v5717
    %5761 = vmatprep.subr.mxu0 %v5722
    %5762 = vmatpush1.msra.mxu0 %v5721
    %5763 = vmatprep.subr.mxu0 %v5726
    %5764 = vmatpush1.msra.mxu0 %v5725
    %5765 = vmatprep.subr.mxu0 %v5730
    %5766 = vmatpush1.msra.mxu0 %v5729
    %5767 = vmatprep.subr.mxu0 %v5734
    %5768 = vmatpush1.msra.mxu0 %v5733
    %5769 = vmatprep.subr.mxu0 0.0
    %5770 = vmatpush1.msra.mxu0 0.0
    %5771 = vmatprep.subr.mxu0 0.0
    %5772 = vmatpush1.msra.mxu0 0.0
    %5773 = vmatprep.subr.mxu0 0.0
    %5774 = vmatpush1.msra.mxu0 0.0
    %5775 = vmatprep.subr.mxu0 0.0
    %5776 = vmatpush1.msra.mxu0 0.0
    %5777 = vmatprep.subr.mxu0 0.0
    %5778 = vmatpush1.msra.mxu0 0.0
    %5779 = vmatprep.subr.mxu0 0.0
    %5780 = vmatpush1.msra.mxu0 0.0
    %5781 = vmatprep.subr.mxu0 0.0
    %5782 = vmatpush1.msra.mxu0 0.0
    %5783 = vmatprep.subr.mxu0 0.0
    %5784 = vmatpush1.msra.mxu0 0.0
    %5785 = vmatprep.subr.mxu0 0.0
    %5786 = vmatpush1.msra.mxu0 0.0
    %5787 = vmatprep.subr.mxu0 0.0
    %5788 = vmatpush1.msra.mxu0 0.0
    %5789 = vmatprep.subr.mxu0 0.0
    %5790 = vmatpush1.msra.mxu0 0.0
    %5791 = vmatprep.subr.mxu0 0.0
    %5792 = vmatpush1.msra.mxu0 0.0
    %5793 = vmatprep.subr.mxu0 0.0
    %5794 = vmatpush1.msra.mxu0 0.0
    %5795 = vmatprep.subr.mxu0 0.0
    %5796 = vmatpush1.msra.mxu0 0.0
    %5797 = vmatprep.subr.mxu0 0.0
    %5798 = vmatpush1.msra.mxu0 0.0
    %5799 = vmatprep.subr.mxu0 0.0
    %5800 = vmatpush1.msra.mxu0 0.0
    %5801 = vmatprep.mubr.f32.mxu0 0.0
    %5802 = vmatmul.mubr.f32.gmra.mrb[0].mxu0 %v5672
    %v5803 = vpop.f32.mrb[0].mxu0
    %v5804 = vadd.f32 0.0, %v5803
    %v5805 = vpop.f32.mrb[0].mxu0
    %v5806 = vadd.f32 0.0, %v5805
    %5807 = vdwg.mxu0
    %5808 = vmatprep.subr.mxu0 %v5676
    %5809 = vmatpush1.msra.mxu0 %v5675
    %5810 = vmatprep.subr.mxu0 %v5680
    %5811 = vmatpush1.msra.mxu0 %v5679
    %5812 = vmatprep.subr.mxu0 %v5684
    %5813 = vmatpush1.msra.mxu0 %v5683
    %5814 = vmatprep.subr.mxu0 %v5688
    %5815 = vmatpush1.msra.mxu0 %v5687
    %5816 = vmatprep.subr.mxu0 %v5692
    %5817 = vmatpush1.msra.mxu0 %v5691
    %5818 = vmatprep.subr.mxu0 %v5696
    %5819 = vmatpush1.msra.mxu0 %v5695
    %5820 = vmatprep.subr.mxu0 %v5700
    %5821 = vmatpush1.msra.mxu0 %v5699
    %5822 = vmatprep.subr.mxu0 %v5704
    %5823 = vmatpush1.msra.mxu0 %v5703
    %5824 = vmatprep.subr.mxu0 %v5708
    %5825 = vmatpush1.msra.mxu0 %v5707
    %5826 = vmatprep.subr.mxu0 %v5712
    %5827 = vmatpush1.msra.mxu0 %v5711
    %5828 = vmatprep.subr.mxu0 %v5716
    %5829 = vmatpush1.msra.mxu0 %v5715
    %5830 = vmatprep.subr.mxu0 %v5720
    %5831 = vmatpush1.msra.mxu0 %v5719
    %5832 = vmatprep.subr.mxu0 %v5724
    %5833 = vmatpush1.msra.mxu0 %v5723
    %5834 = vmatprep.subr.mxu0 %v5728
    %5835 = vmatpush1.msra.mxu0 %v5727
    %5836 = vmatprep.subr.mxu0 %v5732
    %5837 = vmatpush1.msra.mxu0 %v5731
    %5838 = vmatprep.subr.mxu0 %v5736
    %5839 = vmatpush1.msra.mxu0 %v5735
    %5840 = vmatprep.subr.mxu0 0.0
    %5841 = vmatpush1.msra.mxu0 0.0
    %5842 = vmatprep.subr.mxu0 0.0
    %5843 = vmatpush1.msra.mxu0 0.0
    %5844 = vmatprep.subr.mxu0 0.0
    %5845 = vmatpush1.msra.mxu0 0.0
    %5846 = vmatprep.subr.mxu0 0.0
    %5847 = vmatpush1.msra.mxu0 0.0
    %5848 = vmatprep.subr.mxu0 0.0
    %5849 = vmatpush1.msra.mxu0 0.0
    %5850 = vmatprep.subr.mxu0 0.0
    %5851 = vmatpush1.msra.mxu0 0.0
    %5852 = vmatprep.subr.mxu0 0.0
    %5853 = vmatpush1.msra.mxu0 0.0
    %5854 = vmatprep.subr.mxu0 0.0
    %5855 = vmatpush1.msra.mxu0 0.0
    %5856 = vmatprep.subr.mxu0 0.0
    %5857 = vmatpush1.msra.mxu0 0.0
    %5858 = vmatprep.subr.mxu0 0.0
    %5859 = vmatpush1.msra.mxu0 0.0
    %5860 = vmatprep.subr.mxu0 0.0
    %5861 = vmatpush1.msra.mxu0 0.0
    %5862 = vmatprep.subr.mxu0 0.0
    %5863 = vmatpush1.msra.mxu0 0.0
    %5864 = vmatprep.subr.mxu0 0.0
    %5865 = vmatpush1.msra.mxu0 0.0
    %5866 = vmatprep.subr.mxu0 0.0
    %5867 = vmatpush1.msra.mxu0 0.0
    %5868 = vmatprep.subr.mxu0 0.0
    %5869 = vmatpush1.msra.mxu0 0.0
    %5870 = vmatprep.subr.mxu0 0.0
    %5871 = vmatpush1.msra.mxu0 0.0
    %5872 = vmatprep.mubr.f32.mxu0 0.0
    %5873 = vmatmul.mubr.f32.gmra.mrb[0].mxu0 %v5672
    %v5874 = vpop.f32.mrb[0].mxu0
    %v5875 = vadd.f32 0.0, %v5874
    %v5876 = vpop.f32.mrb[0].mxu0
    %v5877 = vadd.f32 0.0, %v5876
    %5878 = vdwg.mxu0
    %v5879 = vadd.f32 %v5668, %v5804
    %v5880 = vadd.f32 %v5669, %v5806
    %v5881 = vadd.f32 %v5670, %v5875
    %v5882 = vadd.f32 %v5671, %v5877
    %v5883 = vld [vmem:[#allocation5] sm:$0xff]
    %v5884 = vxor.u32 %v5879, 2147483648
    %v5885 = vmul.f32 %v5884, 1.442695
    %v5886 = vpow.pop %v5885
    %v5887 = vadd.f32 %v5886, 1.0
    %v5888 = vrcp.pop %v5887
    %v5889 = vmul.f32 1.0, %v5888
    %v5890 = vxor.u32 %v5880, 2147483648
    %v5891 = vmul.f32 %v5890, 1.442695
    %v5892 = vpow.pop %v5891
    %v5893 = vadd.f32 %v5892, 1.0
    %v5894 = vrcp.pop %v5893
    %v5895 = vmul.f32 1.0, %v5894
    %v5896 = vtanh.pop %v5881
    %v5897 = vxor.u32 %v5882, 2147483648
    %v5898 = vmul.f32 %v5897, 1.442695
    %v5899 = vpow.pop %v5898
    %v5900 = vadd.f32 %v5899, 1.0
    %v5901 = vrcp.pop %v5900
    %v5902 = vmul.f32 1.0, %v5901
    %v5903 = vmul.f32 %v5895, %v5883
    %v5904 = vmul.f32 %v5889, %v5896
    %v5905 = vadd.f32 %v5903, %v5904
    %v5906 = vtanh.pop %v5905
    %v5907 = vmul.f32 %v5902, %v5906
    %5908 = vst [vmem:[#allocation4] sm:$0xff] %v5907
    %5909 = vst [vmem:[#allocation5] sm:$0xff] %v5905
    %v5910 = vld [vmem:[%s2666] sm:$0xff]
    %v5911 = vld [vmem:[%s2666 + $0x8] sm:$0xff]
    %v5912 = vld [vmem:[%s2666 + $0x10] sm:$0xff]
    %v5913 = vld [vmem:[%s2666 + $0x18] sm:$0xff]
    %v5914 = vld [vmem:[#allocation4] sm:$0xff]
    %v5915 = vld [vmem:[#allocation11] sm:$0xff]
    %v5916 = vld [vmem:[#allocation11 + $0x8] sm:$0xff]
    %v5917 = vld [vmem:[#allocation11 + $0x10] sm:$0xff]
    %v5918 = vld [vmem:[#allocation11 + $0x18] sm:$0xff]
    %v5919 = vld [vmem:[#allocation11 + $0x20] sm:$0xff]
    %v5920 = vld [vmem:[#allocation11 + $0x28] sm:$0xff]
    %v5921 = vld [vmem:[#allocation11 + $0x30] sm:$0xff]
    %v5922 = vld [vmem:[#allocation11 + $0x38] sm:$0xff]
    %v5923 = vld [vmem:[#allocation11 + $0x40] sm:$0xff]
    %v5924 = vld [vmem:[#allocation11 + $0x48] sm:$0xff]
    %v5925 = vld [vmem:[#allocation11 + $0x50] sm:$0xff]
    %v5926 = vld [vmem:[#allocation11 + $0x58] sm:$0xff]
    %v5927 = vld [vmem:[#allocation11 + $0x60] sm:$0xff]
    %v5928 = vld [vmem:[#allocation11 + $0x68] sm:$0xff]
    %v5929 = vld [vmem:[#allocation11 + $0x70] sm:$0xff]
    %v5930 = vld [vmem:[#allocation11 + $0x78] sm:$0xff]
    %v5931 = vld [vmem:[#allocation11 + $0x80] sm:$0xff]
    %v5932 = vld [vmem:[#allocation11 + $0x88] sm:$0xff]
    %v5933 = vld [vmem:[#allocation11 + $0x90] sm:$0xff]
    %v5934 = vld [vmem:[#allocation11 + $0x98] sm:$0xff]
    %v5935 = vld [vmem:[#allocation11 + $0xa0] sm:$0xff]
    %v5936 = vld [vmem:[#allocation11 + $0xa8] sm:$0xff]
    %v5937 = vld [vmem:[#allocation11 + $0xb0] sm:$0xff]
    %v5938 = vld [vmem:[#allocation11 + $0xb8] sm:$0xff]
    %v5939 = vld [vmem:[#allocation11 + $0xc0] sm:$0xff]
    %v5940 = vld [vmem:[#allocation11 + $0xc8] sm:$0xff]
    %v5941 = vld [vmem:[#allocation11 + $0xd0] sm:$0xff]
    %v5942 = vld [vmem:[#allocation11 + $0xd8] sm:$0xff]
    %v5943 = vld [vmem:[#allocation11 + $0xe0] sm:$0xff]
    %v5944 = vld [vmem:[#allocation11 + $0xe8] sm:$0xff]
    %v5945 = vld [vmem:[#allocation11 + $0xf0] sm:$0xff]
    %v5946 = vld [vmem:[#allocation11 + $0xf8] sm:$0xff]
    %v5947 = vld [vmem:[#allocation11 + $0x100] sm:$0xff]
    %v5948 = vld [vmem:[#allocation11 + $0x108] sm:$0xff]
    %v5949 = vld [vmem:[#allocation11 + $0x110] sm:$0xff]
    %v5950 = vld [vmem:[#allocation11 + $0x118] sm:$0xff]
    %v5951 = vld [vmem:[#allocation11 + $0x120] sm:$0xff]
    %v5952 = vld [vmem:[#allocation11 + $0x128] sm:$0xff]
    %v5953 = vld [vmem:[#allocation11 + $0x130] sm:$0xff]
    %v5954 = vld [vmem:[#allocation11 + $0x138] sm:$0xff]
    %v5955 = vld [vmem:[#allocation11 + $0x140] sm:$0xff]
    %v5956 = vld [vmem:[#allocation11 + $0x148] sm:$0xff]
    %v5957 = vld [vmem:[#allocation11 + $0x150] sm:$0xff]
    %v5958 = vld [vmem:[#allocation11 + $0x158] sm:$0xff]
    %v5959 = vld [vmem:[#allocation11 + $0x160] sm:$0xff]
    %v5960 = vld [vmem:[#allocation11 + $0x168] sm:$0xff]
    %v5961 = vld [vmem:[#allocation11 + $0x170] sm:$0xff]
    %v5962 = vld [vmem:[#allocation11 + $0x178] sm:$0xff]
    %v5963 = vld [vmem:[#allocation11 + $0x180] sm:$0xff]
    %v5964 = vld [vmem:[#allocation11 + $0x188] sm:$0xff]
    %v5965 = vld [vmem:[#allocation11 + $0x190] sm:$0xff]
    %v5966 = vld [vmem:[#allocation11 + $0x198] sm:$0xff]
    %v5967 = vld [vmem:[#allocation11 + $0x1a0] sm:$0xff]
    %v5968 = vld [vmem:[#allocation11 + $0x1a8] sm:$0xff]
    %v5969 = vld [vmem:[#allocation11 + $0x1b0] sm:$0xff]
    %v5970 = vld [vmem:[#allocation11 + $0x1b8] sm:$0xff]
    %v5971 = vld [vmem:[#allocation11 + $0x1c0] sm:$0xff]
    %v5972 = vld [vmem:[#allocation11 + $0x1c8] sm:$0xff]
    %v5973 = vld [vmem:[#allocation11 + $0x1d0] sm:$0xff]
    %v5974 = vld [vmem:[#allocation11 + $0x1d8] sm:$0xff]
    %v5975 = vld [vmem:[#allocation11 + $0x1e0] sm:$0xff]
    %v5976 = vld [vmem:[#allocation11 + $0x1e8] sm:$0xff]
    %v5977 = vld [vmem:[#allocation11 + $0x1f0] sm:$0xff]
    %v5978 = vld [vmem:[#allocation11 + $0x1f8] sm:$0xff]
    %5979 = vmatprep.subr.mxu0 %v5916
    %5980 = vmatpush1.msra.mxu0 %v5915
    %5981 = vmatprep.subr.mxu0 %v5920
    %5982 = vmatpush1.msra.mxu0 %v5919
    %5983 = vmatprep.subr.mxu0 %v5924
    %5984 = vmatpush1.msra.mxu0 %v5923
    %5985 = vmatprep.subr.mxu0 %v5928
    %5986 = vmatpush1.msra.mxu0 %v5927
    %5987 = vmatprep.subr.mxu0 %v5932
    %5988 = vmatpush1.msra.mxu0 %v5931
    %5989 = vmatprep.subr.mxu0 %v5936
    %5990 = vmatpush1.msra.mxu0 %v5935
    %5991 = vmatprep.subr.mxu0 %v5940
    %5992 = vmatpush1.msra.mxu0 %v5939
    %5993 = vmatprep.subr.mxu0 %v5944
    %5994 = vmatpush1.msra.mxu0 %v5943
    %5995 = vmatprep.subr.mxu0 %v5948
    %5996 = vmatpush1.msra.mxu0 %v5947
    %5997 = vmatprep.subr.mxu0 %v5952
    %5998 = vmatpush1.msra.mxu0 %v5951
    %5999 = vmatprep.subr.mxu0 %v5956
    %6000 = vmatpush1.msra.mxu0 %v5955
    %6001 = vmatprep.subr.mxu0 %v5960
    %6002 = vmatpush1.msra.mxu0 %v5959
    %6003 = vmatprep.subr.mxu0 %v5964
    %6004 = vmatpush1.msra.mxu0 %v5963
    %6005 = vmatprep.subr.mxu0 %v5968
    %6006 = vmatpush1.msra.mxu0 %v5967
    %6007 = vmatprep.subr.mxu0 %v5972
    %6008 = vmatpush1.msra.mxu0 %v5971
    %6009 = vmatprep.subr.mxu0 %v5976
    %6010 = vmatpush1.msra.mxu0 %v5975
    %6011 = vmatprep.subr.mxu0 0.0
    %6012 = vmatpush1.msra.mxu0 0.0
    %6013 = vmatprep.subr.mxu0 0.0
    %6014 = vmatpush1.msra.mxu0 0.0
    %6015 = vmatprep.subr.mxu0 0.0
    %6016 = vmatpush1.msra.mxu0 0.0
    %6017 = vmatprep.subr.mxu0 0.0
    %6018 = vmatpush1.msra.mxu0 0.0
    %6019 = vmatprep.subr.mxu0 0.0
    %6020 = vmatpush1.msra.mxu0 0.0
    %6021 = vmatprep.subr.mxu0 0.0
    %6022 = vmatpush1.msra.mxu0 0.0
    %6023 = vmatprep.subr.mxu0 0.0
    %6024 = vmatpush1.msra.mxu0 0.0
    %6025 = vmatprep.subr.mxu0 0.0
    %6026 = vmatpush1.msra.mxu0 0.0
    %6027 = vmatprep.subr.mxu0 0.0
    %6028 = vmatpush1.msra.mxu0 0.0
    %6029 = vmatprep.subr.mxu0 0.0
    %6030 = vmatpush1.msra.mxu0 0.0
    %6031 = vmatprep.subr.mxu0 0.0
    %6032 = vmatpush1.msra.mxu0 0.0
    %6033 = vmatprep.subr.mxu0 0.0
    %6034 = vmatpush1.msra.mxu0 0.0
    %6035 = vmatprep.subr.mxu0 0.0
    %6036 = vmatpush1.msra.mxu0 0.0
    %6037 = vmatprep.subr.mxu0 0.0
    %6038 = vmatpush1.msra.mxu0 0.0
    %6039 = vmatprep.subr.mxu0 0.0
    %6040 = vmatpush1.msra.mxu0 0.0
    %6041 = vmatprep.subr.mxu0 0.0
    %6042 = vmatpush1.msra.mxu0 0.0
    %6043 = vmatprep.mubr.f32.mxu0 0.0
    %6044 = vmatmul.mubr.f32.gmra.mrb[0].mxu0 %v5914
    %v6045 = vpop.f32.mrb[0].mxu0
    %v6046 = vadd.f32 0.0, %v6045
    %v6047 = vpop.f32.mrb[0].mxu0
    %v6048 = vadd.f32 0.0, %v6047
    %6049 = vdwg.mxu0
    %6050 = vmatprep.subr.mxu0 %v5918
    %6051 = vmatpush1.msra.mxu0 %v5917
    %6052 = vmatprep.subr.mxu0 %v5922
    %6053 = vmatpush1.msra.mxu0 %v5921
    %6054 = vmatprep.subr.mxu0 %v5926
    %6055 = vmatpush1.msra.mxu0 %v5925
    %6056 = vmatprep.subr.mxu0 %v5930
    %6057 = vmatpush1.msra.mxu0 %v5929
    %6058 = vmatprep.subr.mxu0 %v5934
    %6059 = vmatpush1.msra.mxu0 %v5933
    %6060 = vmatprep.subr.mxu0 %v5938
    %6061 = vmatpush1.msra.mxu0 %v5937
    %6062 = vmatprep.subr.mxu0 %v5942
    %6063 = vmatpush1.msra.mxu0 %v5941
    %6064 = vmatprep.subr.mxu0 %v5946
    %6065 = vmatpush1.msra.mxu0 %v5945
    %6066 = vmatprep.subr.mxu0 %v5950
    %6067 = vmatpush1.msra.mxu0 %v5949
    %6068 = vmatprep.subr.mxu0 %v5954
    %6069 = vmatpush1.msra.mxu0 %v5953
    %6070 = vmatprep.subr.mxu0 %v5958
    %6071 = vmatpush1.msra.mxu0 %v5957
    %6072 = vmatprep.subr.mxu0 %v5962
    %6073 = vmatpush1.msra.mxu0 %v5961
    %6074 = vmatprep.subr.mxu0 %v5966
    %6075 = vmatpush1.msra.mxu0 %v5965
    %6076 = vmatprep.subr.mxu0 %v5970
    %6077 = vmatpush1.msra.mxu0 %v5969
    %6078 = vmatprep.subr.mxu0 %v5974
    %6079 = vmatpush1.msra.mxu0 %v5973
    %6080 = vmatprep.subr.mxu0 %v5978
    %6081 = vmatpush1.msra.mxu0 %v5977
    %6082 = vmatprep.subr.mxu0 0.0
    %6083 = vmatpush1.msra.mxu0 0.0
    %6084 = vmatprep.subr.mxu0 0.0
    %6085 = vmatpush1.msra.mxu0 0.0
    %6086 = vmatprep.subr.mxu0 0.0
    %6087 = vmatpush1.msra.mxu0 0.0
    %6088 = vmatprep.subr.mxu0 0.0
    %6089 = vmatpush1.msra.mxu0 0.0
    %6090 = vmatprep.subr.mxu0 0.0
    %6091 = vmatpush1.msra.mxu0 0.0
    %6092 = vmatprep.subr.mxu0 0.0
    %6093 = vmatpush1.msra.mxu0 0.0
    %6094 = vmatprep.subr.mxu0 0.0
    %6095 = vmatpush1.msra.mxu0 0.0
    %6096 = vmatprep.subr.mxu0 0.0
    %6097 = vmatpush1.msra.mxu0 0.0
    %6098 = vmatprep.subr.mxu0 0.0
    %6099 = vmatpush1.msra.mxu0 0.0
    %6100 = vmatprep.subr.mxu0 0.0
    %6101 = vmatpush1.msra.mxu0 0.0
    %6102 = vmatprep.subr.mxu0 0.0
    %6103 = vmatpush1.msra.mxu0 0.0
    %6104 = vmatprep.subr.mxu0 0.0
    %6105 = vmatpush1.msra.mxu0 0.0
    %6106 = vmatprep.subr.mxu0 0.0
    %6107 = vmatpush1.msra.mxu0 0.0
    %6108 = vmatprep.subr.mxu0 0.0
    %6109 = vmatpush1.msra.mxu0 0.0
    %6110 = vmatprep.subr.mxu0 0.0
    %6111 = vmatpush1.msra.mxu0 0.0
    %6112 = vmatprep.subr.mxu0 0.0
    %6113 = vmatpush1.msra.mxu0 0.0
    %6114 = vmatprep.mubr.f32.mxu0 0.0
    %6115 = vmatmul.mubr.f32.gmra.mrb[0].mxu0 %v5914
    %v6116 = vpop.f32.mrb[0].mxu0
    %v6117 = vadd.f32 0.0, %v6116
    %v6118 = vpop.f32.mrb[0].mxu0
    %v6119 = vadd.f32 0.0, %v6118
    %6120 = vdwg.mxu0
    %v6121 = vadd.f32 %v5910, %v6046
    %v6122 = vadd.f32 %v5911, %v6048
    %v6123 = vadd.f32 %v5912, %v6117
    %v6124 = vadd.f32 %v5913, %v6119
    %v6125 = vld [vmem:[#allocation5] sm:$0xff]
    %v6126 = vxor.u32 %v6121, 2147483648
    %v6127 = vmul.f32 %v6126, 1.442695
    %v6128 = vpow.pop %v6127
    %v6129 = vadd.f32 %v6128, 1.0
    %v6130 = vrcp.pop %v6129
    %v6131 = vmul.f32 1.0, %v6130
    %v6132 = vxor.u32 %v6122, 2147483648
    %v6133 = vmul.f32 %v6132, 1.442695
    %v6134 = vpow.pop %v6133
    %v6135 = vadd.f32 %v6134, 1.0
    %v6136 = vrcp.pop %v6135
    %v6137 = vmul.f32 1.0, %v6136
    %v6138 = vtanh.pop %v6123
    %v6139 = vxor.u32 %v6124, 2147483648
    %v6140 = vmul.f32 %v6139, 1.442695
    %v6141 = vpow.pop %v6140
    %v6142 = vadd.f32 %v6141, 1.0
    %v6143 = vrcp.pop %v6142
    %v6144 = vmul.f32 1.0, %v6143
    %v6145 = vmul.f32 %v6137, %v6125
    %v6146 = vmul.f32 %v6131, %v6138
    %v6147 = vadd.f32 %v6145, %v6146
    %v6148 = vtanh.pop %v6147
    %v6149 = vmul.f32 %v6144, %v6148
    %6150 = vst [vmem:[#allocation4] sm:$0xff] %v6149
    %6151 = vst [vmem:[#allocation5] sm:$0xff] %v6147
    %v6152 = vld [vmem:[%s2677] sm:$0xff]
    %v6153 = vld [vmem:[%s2677 + $0x8] sm:$0xff]
    %v6154 = vld [vmem:[%s2677 + $0x10] sm:$0xff]
    %v6155 = vld [vmem:[%s2677 + $0x18] sm:$0xff]
    %v6156 = vld [vmem:[#allocation4] sm:$0xff]
    %v6157 = vld [vmem:[#allocation11] sm:$0xff]
    %v6158 = vld [vmem:[#allocation11 + $0x8] sm:$0xff]
    %v6159 = vld [vmem:[#allocation11 + $0x10] sm:$0xff]
    %v6160 = vld [vmem:[#allocation11 + $0x18] sm:$0xff]
    %v6161 = vld [vmem:[#allocation11 + $0x20] sm:$0xff]
    %v6162 = vld [vmem:[#allocation11 + $0x28] sm:$0xff]
    %v6163 = vld [vmem:[#allocation11 + $0x30] sm:$0xff]
    %v6164 = vld [vmem:[#allocation11 + $0x38] sm:$0xff]
    %v6165 = vld [vmem:[#allocation11 + $0x40] sm:$0xff]
    %v6166 = vld [vmem:[#allocation11 + $0x48] sm:$0xff]
    %v6167 = vld [vmem:[#allocation11 + $0x50] sm:$0xff]
    %v6168 = vld [vmem:[#allocation11 + $0x58] sm:$0xff]
    %v6169 = vld [vmem:[#allocation11 + $0x60] sm:$0xff]
    %v6170 = vld [vmem:[#allocation11 + $0x68] sm:$0xff]
    %v6171 = vld [vmem:[#allocation11 + $0x70] sm:$0xff]
    %v6172 = vld [vmem:[#allocation11 + $0x78] sm:$0xff]
    %v6173 = vld [vmem:[#allocation11 + $0x80] sm:$0xff]
    %v6174 = vld [vmem:[#allocation11 + $0x88] sm:$0xff]
    %v6175 = vld [vmem:[#allocation11 + $0x90] sm:$0xff]
    %v6176 = vld [vmem:[#allocation11 + $0x98] sm:$0xff]
    %v6177 = vld [vmem:[#allocation11 + $0xa0] sm:$0xff]
    %v6178 = vld [vmem:[#allocation11 + $0xa8] sm:$0xff]
    %v6179 = vld [vmem:[#allocation11 + $0xb0] sm:$0xff]
    %v6180 = vld [vmem:[#allocation11 + $0xb8] sm:$0xff]
    %v6181 = vld [vmem:[#allocation11 + $0xc0] sm:$0xff]
    %v6182 = vld [vmem:[#allocation11 + $0xc8] sm:$0xff]
    %v6183 = vld [vmem:[#allocation11 + $0xd0] sm:$0xff]
    %v6184 = vld [vmem:[#allocation11 + $0xd8] sm:$0xff]
    %v6185 = vld [vmem:[#allocation11 + $0xe0] sm:$0xff]
    %v6186 = vld [vmem:[#allocation11 + $0xe8] sm:$0xff]
    %v6187 = vld [vmem:[#allocation11 + $0xf0] sm:$0xff]
    %v6188 = vld [vmem:[#allocation11 + $0xf8] sm:$0xff]
    %v6189 = vld [vmem:[#allocation11 + $0x100] sm:$0xff]
    %v6190 = vld [vmem:[#allocation11 + $0x108] sm:$0xff]
    %v6191 = vld [vmem:[#allocation11 + $0x110] sm:$0xff]
    %v6192 = vld [vmem:[#allocation11 + $0x118] sm:$0xff]
    %v6193 = vld [vmem:[#allocation11 + $0x120] sm:$0xff]
    %v6194 = vld [vmem:[#allocation11 + $0x128] sm:$0xff]
    %v6195 = vld [vmem:[#allocation11 + $0x130] sm:$0xff]
    %v6196 = vld [vmem:[#allocation11 + $0x138] sm:$0xff]
    %v6197 = vld [vmem:[#allocation11 + $0x140] sm:$0xff]
    %v6198 = vld [vmem:[#allocation11 + $0x148] sm:$0xff]
    %v6199 = vld [vmem:[#allocation11 + $0x150] sm:$0xff]
    %v6200 = vld [vmem:[#allocation11 + $0x158] sm:$0xff]
    %v6201 = vld [vmem:[#allocation11 + $0x160] sm:$0xff]
    %v6202 = vld [vmem:[#allocation11 + $0x168] sm:$0xff]
    %v6203 = vld [vmem:[#allocation11 + $0x170] sm:$0xff]
    %v6204 = vld [vmem:[#allocation11 + $0x178] sm:$0xff]
    %v6205 = vld [vmem:[#allocation11 + $0x180] sm:$0xff]
    %v6206 = vld [vmem:[#allocation11 + $0x188] sm:$0xff]
    %v6207 = vld [vmem:[#allocation11 + $0x190] sm:$0xff]
    %v6208 = vld [vmem:[#allocation11 + $0x198] sm:$0xff]
    %v6209 = vld [vmem:[#allocation11 + $0x1a0] sm:$0xff]
    %v6210 = vld [vmem:[#allocation11 + $0x1a8] sm:$0xff]
    %v6211 = vld [vmem:[#allocation11 + $0x1b0] sm:$0xff]
    %v6212 = vld [vmem:[#allocation11 + $0x1b8] sm:$0xff]
    %v6213 = vld [vmem:[#allocation11 + $0x1c0] sm:$0xff]
    %v6214 = vld [vmem:[#allocation11 + $0x1c8] sm:$0xff]
    %v6215 = vld [vmem:[#allocation11 + $0x1d0] sm:$0xff]
    %v6216 = vld [vmem:[#allocation11 + $0x1d8] sm:$0xff]
    %v6217 = vld [vmem:[#allocation11 + $0x1e0] sm:$0xff]
    %v6218 = vld [vmem:[#allocation11 + $0x1e8] sm:$0xff]
    %v6219 = vld [vmem:[#allocation11 + $0x1f0] sm:$0xff]
    %v6220 = vld [vmem:[#allocation11 + $0x1f8] sm:$0xff]
    %6221 = vmatprep.subr.mxu0 %v6158
    %6222 = vmatpush1.msra.mxu0 %v6157
    %6223 = vmatprep.subr.mxu0 %v6162
    %6224 = vmatpush1.msra.mxu0 %v6161
    %6225 = vmatprep.subr.mxu0 %v6166
    %6226 = vmatpush1.msra.mxu0 %v6165
    %6227 = vmatprep.subr.mxu0 %v6170
    %6228 = vmatpush1.msra.mxu0 %v6169
    %6229 = vmatprep.subr.mxu0 %v6174
    %6230 = vmatpush1.msra.mxu0 %v6173
    %6231 = vmatprep.subr.mxu0 %v6178
    %6232 = vmatpush1.msra.mxu0 %v6177
    %6233 = vmatprep.subr.mxu0 %v6182
    %6234 = vmatpush1.msra.mxu0 %v6181
    %6235 = vmatprep.subr.mxu0 %v6186
    %6236 = vmatpush1.msra.mxu0 %v6185
    %6237 = vmatprep.subr.mxu0 %v6190
    %6238 = vmatpush1.msra.mxu0 %v6189
    %6239 = vmatprep.subr.mxu0 %v6194
    %6240 = vmatpush1.msra.mxu0 %v6193
    %6241 = vmatprep.subr.mxu0 %v6198
    %6242 = vmatpush1.msra.mxu0 %v6197
    %6243 = vmatprep.subr.mxu0 %v6202
    %6244 = vmatpush1.msra.mxu0 %v6201
    %6245 = vmatprep.subr.mxu0 %v6206
    %6246 = vmatpush1.msra.mxu0 %v6205
    %6247 = vmatprep.subr.mxu0 %v6210
    %6248 = vmatpush1.msra.mxu0 %v6209
    %6249 = vmatprep.subr.mxu0 %v6214
    %6250 = vmatpush1.msra.mxu0 %v6213
    %6251 = vmatprep.subr.mxu0 %v6218
    %6252 = vmatpush1.msra.mxu0 %v6217
    %6253 = vmatprep.subr.mxu0 0.0
    %6254 = vmatpush1.msra.mxu0 0.0
    %6255 = vmatprep.subr.mxu0 0.0
    %6256 = vmatpush1.msra.mxu0 0.0
    %6257 = vmatprep.subr.mxu0 0.0
    %6258 = vmatpush1.msra.mxu0 0.0
    %6259 = vmatprep.subr.mxu0 0.0
    %6260 = vmatpush1.msra.mxu0 0.0
    %6261 = vmatprep.subr.mxu0 0.0
    %6262 = vmatpush1.msra.mxu0 0.0
    %6263 = vmatprep.subr.mxu0 0.0
    %6264 = vmatpush1.msra.mxu0 0.0
    %6265 = vmatprep.subr.mxu0 0.0
    %6266 = vmatpush1.msra.mxu0 0.0
    %6267 = vmatprep.subr.mxu0 0.0
    %6268 = vmatpush1.msra.mxu0 0.0
    %6269 = vmatprep.subr.mxu0 0.0
    %6270 = vmatpush1.msra.mxu0 0.0
    %6271 = vmatprep.subr.mxu0 0.0
    %6272 = vmatpush1.msra.mxu0 0.0
    %6273 = vmatprep.subr.mxu0 0.0
    %6274 = vmatpush1.msra.mxu0 0.0
    %6275 = vmatprep.subr.mxu0 0.0
    %6276 = vmatpush1.msra.mxu0 0.0
    %6277 = vmatprep.subr.mxu0 0.0
    %6278 = vmatpush1.msra.mxu0 0.0
    %6279 = vmatprep.subr.mxu0 0.0
    %6280 = vmatpush1.msra.mxu0 0.0
    %6281 = vmatprep.subr.mxu0 0.0
    %6282 = vmatpush1.msra.mxu0 0.0
    %6283 = vmatprep.subr.mxu0 0.0
    %6284 = vmatpush1.msra.mxu0 0.0
    %6285 = vmatprep.mubr.f32.mxu0 0.0
    %6286 = vmatmul.mubr.f32.gmra.mrb[0].mxu0 %v6156
    %v6287 = vpop.f32.mrb[0].mxu0
    %v6288 = vadd.f32 0.0, %v6287
    %v6289 = vpop.f32.mrb[0].mxu0
    %v6290 = vadd.f32 0.0, %v6289
    %6291 = vdwg.mxu0
    %6292 = vmatprep.subr.mxu0 %v6160
    %6293 = vmatpush1.msra.mxu0 %v6159
    %6294 = vmatprep.subr.mxu0 %v6164
    %6295 = vmatpush1.msra.mxu0 %v6163
    %6296 = vmatprep.subr.mxu0 %v6168
    %6297 = vmatpush1.msra.mxu0 %v6167
    %6298 = vmatprep.subr.mxu0 %v6172
    %6299 = vmatpush1.msra.mxu0 %v6171
    %6300 = vmatprep.subr.mxu0 %v6176
    %6301 = vmatpush1.msra.mxu0 %v6175
    %6302 = vmatprep.subr.mxu0 %v6180
    %6303 = vmatpush1.msra.mxu0 %v6179
    %6304 = vmatprep.subr.mxu0 %v6184
    %6305 = vmatpush1.msra.mxu0 %v6183
    %6306 = vmatprep.subr.mxu0 %v6188
    %6307 = vmatpush1.msra.mxu0 %v6187
    %6308 = vmatprep.subr.mxu0 %v6192
    %6309 = vmatpush1.msra.mxu0 %v6191
    %6310 = vmatprep.subr.mxu0 %v6196
    %6311 = vmatpush1.msra.mxu0 %v6195
    %6312 = vmatprep.subr.mxu0 %v6200
    %6313 = vmatpush1.msra.mxu0 %v6199
    %6314 = vmatprep.subr.mxu0 %v6204
    %6315 = vmatpush1.msra.mxu0 %v6203
    %6316 = vmatprep.subr.mxu0 %v6208
    %6317 = vmatpush1.msra.mxu0 %v6207
    %6318 = vmatprep.subr.mxu0 %v6212
    %6319 = vmatpush1.msra.mxu0 %v6211
    %6320 = vmatprep.subr.mxu0 %v6216
    %6321 = vmatpush1.msra.mxu0 %v6215
    %6322 = vmatprep.subr.mxu0 %v6220
    %6323 = vmatpush1.msra.mxu0 %v6219
    %6324 = vmatprep.subr.mxu0 0.0
    %6325 = vmatpush1.msra.mxu0 0.0
    %6326 = vmatprep.subr.mxu0 0.0
    %6327 = vmatpush1.msra.mxu0 0.0
    %6328 = vmatprep.subr.mxu0 0.0
    %6329 = vmatpush1.msra.mxu0 0.0
    %6330 = vmatprep.subr.mxu0 0.0
    %6331 = vmatpush1.msra.mxu0 0.0
    %6332 = vmatprep.subr.mxu0 0.0
    %6333 = vmatpush1.msra.mxu0 0.0
    %6334 = vmatprep.subr.mxu0 0.0
    %6335 = vmatpush1.msra.mxu0 0.0
    %6336 = vmatprep.subr.mxu0 0.0
    %6337 = vmatpush1.msra.mxu0 0.0
    %6338 = vmatprep.subr.mxu0 0.0
    %6339 = vmatpush1.msra.mxu0 0.0
    %6340 = vmatprep.subr.mxu0 0.0
    %6341 = vmatpush1.msra.mxu0 0.0
    %6342 = vmatprep.subr.mxu0 0.0
    %6343 = vmatpush1.msra.mxu0 0.0
    %6344 = vmatprep.subr.mxu0 0.0
    %6345 = vmatpush1.msra.mxu0 0.0
    %6346 = vmatprep.subr.mxu0 0.0
    %6347 = vmatpush1.msra.mxu0 0.0
    %6348 = vmatprep.subr.mxu0 0.0
    %6349 = vmatpush1.msra.mxu0 0.0
    %6350 = vmatprep.subr.mxu0 0.0
    %6351 = vmatpush1.msra.mxu0 0.0
    %6352 = vmatprep.subr.mxu0 0.0
    %6353 = vmatpush1.msra.mxu0 0.0
    %6354 = vmatprep.subr.mxu0 0.0
    %6355 = vmatpush1.msra.mxu0 0.0
    %6356 = vmatprep.mubr.f32.mxu0 0.0
    %6357 = vmatmul.mubr.f32.gmra.mrb[0].mxu0 %v6156
    %v6358 = vpop.f32.mrb[0].mxu0
    %v6359 = vadd.f32 0.0, %v6358
    %v6360 = vpop.f32.mrb[0].mxu0
    %v6361 = vadd.f32 0.0, %v6360
    %6362 = vdwg.mxu0
    %v6363 = vadd.f32 %v6152, %v6288
    %v6364 = vadd.f32 %v6153, %v6290
    %v6365 = vadd.f32 %v6154, %v6359
    %v6366 = vadd.f32 %v6155, %v6361
    %v6367 = vld [vmem:[#allocation5] sm:$0xff]
    %v6368 = vxor.u32 %v6363, 2147483648
    %v6369 = vmul.f32 %v6368, 1.442695
    %v6370 = vpow.pop %v6369
    %v6371 = vadd.f32 %v6370, 1.0
    %v6372 = vrcp.pop %v6371
    %v6373 = vmul.f32 1.0, %v6372
    %v6374 = vxor.u32 %v6364, 2147483648
    %v6375 = vmul.f32 %v6374, 1.442695
    %v6376 = vpow.pop %v6375
    %v6377 = vadd.f32 %v6376, 1.0
    %v6378 = vrcp.pop %v6377
    %v6379 = vmul.f32 1.0, %v6378
    %v6380 = vtanh.pop %v6365
    %v6381 = vxor.u32 %v6366, 2147483648
    %v6382 = vmul.f32 %v6381, 1.442695
    %v6383 = vpow.pop %v6382
    %v6384 = vadd.f32 %v6383, 1.0
    %v6385 = vrcp.pop %v6384
    %v6386 = vmul.f32 1.0, %v6385
    %v6387 = vmul.f32 %v6379, %v6367
    %v6388 = vmul.f32 %v6373, %v6380
    %v6389 = vadd.f32 %v6387, %v6388
    %v6390 = vtanh.pop %v6389
    %v6391 = vmul.f32 %v6386, %v6390
    %6392 = vst [vmem:[#allocation4] sm:$0xff] %v6391
    %6393 = vst [vmem:[#allocation5] sm:$0xff] %v6389
    %v6394 = vld [vmem:[%s2163] sm:$0xff]
    %v6395 = vld [vmem:[%s2163 + $0x8] sm:$0xff]
    %v6396 = vld [vmem:[%s2163 + $0x10] sm:$0xff]
    %v6397 = vld [vmem:[%s2163 + $0x18] sm:$0xff]
    %v6398 = vld [vmem:[#allocation4] sm:$0xff]
    %v6399 = vld [vmem:[#allocation11] sm:$0xff]
    %v6400 = vld [vmem:[#allocation11 + $0x8] sm:$0xff]
    %v6401 = vld [vmem:[#allocation11 + $0x10] sm:$0xff]
    %v6402 = vld [vmem:[#allocation11 + $0x18] sm:$0xff]
    %v6403 = vld [vmem:[#allocation11 + $0x20] sm:$0xff]
    %v6404 = vld [vmem:[#allocation11 + $0x28] sm:$0xff]
    %v6405 = vld [vmem:[#allocation11 + $0x30] sm:$0xff]
    %v6406 = vld [vmem:[#allocation11 + $0x38] sm:$0xff]
    %v6407 = vld [vmem:[#allocation11 + $0x40] sm:$0xff]
    %v6408 = vld [vmem:[#allocation11 + $0x48] sm:$0xff]
    %v6409 = vld [vmem:[#allocation11 + $0x50] sm:$0xff]
    %v6410 = vld [vmem:[#allocation11 + $0x58] sm:$0xff]
    %v6411 = vld [vmem:[#allocation11 + $0x60] sm:$0xff]
    %v6412 = vld [vmem:[#allocation11 + $0x68] sm:$0xff]
    %v6413 = vld [vmem:[#allocation11 + $0x70] sm:$0xff]
    %v6414 = vld [vmem:[#allocation11 + $0x78] sm:$0xff]
    %v6415 = vld [vmem:[#allocation11 + $0x80] sm:$0xff]
    %v6416 = vld [vmem:[#allocation11 + $0x88] sm:$0xff]
    %v6417 = vld [vmem:[#allocation11 + $0x90] sm:$0xff]
    %v6418 = vld [vmem:[#allocation11 + $0x98] sm:$0xff]
    %v6419 = vld [vmem:[#allocation11 + $0xa0] sm:$0xff]
    %v6420 = vld [vmem:[#allocation11 + $0xa8] sm:$0xff]
    %v6421 = vld [vmem:[#allocation11 + $0xb0] sm:$0xff]
    %v6422 = vld [vmem:[#allocation11 + $0xb8] sm:$0xff]
    %v6423 = vld [vmem:[#allocation11 + $0xc0] sm:$0xff]
    %v6424 = vld [vmem:[#allocation11 + $0xc8] sm:$0xff]
    %v6425 = vld [vmem:[#allocation11 + $0xd0] sm:$0xff]
    %v6426 = vld [vmem:[#allocation11 + $0xd8] sm:$0xff]
    %v6427 = vld [vmem:[#allocation11 + $0xe0] sm:$0xff]
    %v6428 = vld [vmem:[#allocation11 + $0xe8] sm:$0xff]
    %v6429 = vld [vmem:[#allocation11 + $0xf0] sm:$0xff]
    %v6430 = vld [vmem:[#allocation11 + $0xf8] sm:$0xff]
    %v6431 = vld [vmem:[#allocation11 + $0x100] sm:$0xff]
    %v6432 = vld [vmem:[#allocation11 + $0x108] sm:$0xff]
    %v6433 = vld [vmem:[#allocation11 + $0x110] sm:$0xff]
    %v6434 = vld [vmem:[#allocation11 + $0x118] sm:$0xff]
    %v6435 = vld [vmem:[#allocation11 + $0x120] sm:$0xff]
    %v6436 = vld [vmem:[#allocation11 + $0x128] sm:$0xff]
    %v6437 = vld [vmem:[#allocation11 + $0x130] sm:$0xff]
    %v6438 = vld [vmem:[#allocation11 + $0x138] sm:$0xff]
    %v6439 = vld [vmem:[#allocation11 + $0x140] sm:$0xff]
    %v6440 = vld [vmem:[#allocation11 + $0x148] sm:$0xff]
    %v6441 = vld [vmem:[#allocation11 + $0x150] sm:$0xff]
    %v6442 = vld [vmem:[#allocation11 + $0x158] sm:$0xff]
    %v6443 = vld [vmem:[#allocation11 + $0x160] sm:$0xff]
    %v6444 = vld [vmem:[#allocation11 + $0x168] sm:$0xff]
    %v6445 = vld [vmem:[#allocation11 + $0x170] sm:$0xff]
    %v6446 = vld [vmem:[#allocation11 + $0x178] sm:$0xff]
    %v6447 = vld [vmem:[#allocation11 + $0x180] sm:$0xff]
    %v6448 = vld [vmem:[#allocation11 + $0x188] sm:$0xff]
    %v6449 = vld [vmem:[#allocation11 + $0x190] sm:$0xff]
    %v6450 = vld [vmem:[#allocation11 + $0x198] sm:$0xff]
    %v6451 = vld [vmem:[#allocation11 + $0x1a0] sm:$0xff]
    %v6452 = vld [vmem:[#allocation11 + $0x1a8] sm:$0xff]
    %v6453 = vld [vmem:[#allocation11 + $0x1b0] sm:$0xff]
    %v6454 = vld [vmem:[#allocation11 + $0x1b8] sm:$0xff]
    %v6455 = vld [vmem:[#allocation11 + $0x1c0] sm:$0xff]
    %v6456 = vld [vmem:[#allocation11 + $0x1c8] sm:$0xff]
    %v6457 = vld [vmem:[#allocation11 + $0x1d0] sm:$0xff]
    %v6458 = vld [vmem:[#allocation11 + $0x1d8] sm:$0xff]
    %v6459 = vld [vmem:[#allocation11 + $0x1e0] sm:$0xff]
    %v6460 = vld [vmem:[#allocation11 + $0x1e8] sm:$0xff]
    %v6461 = vld [vmem:[#allocation11 + $0x1f0] sm:$0xff]
    %v6462 = vld [vmem:[#allocation11 + $0x1f8] sm:$0xff]
    %6463 = vmatprep.subr.mxu0 %v6400
    %6464 = vmatpush1.msra.mxu0 %v6399
    %6465 = vmatprep.subr.mxu0 %v6404
    %6466 = vmatpush1.msra.mxu0 %v6403
    %6467 = vmatprep.subr.mxu0 %v6408
    %6468 = vmatpush1.msra.mxu0 %v6407
    %6469 = vmatprep.subr.mxu0 %v6412
    %6470 = vmatpush1.msra.mxu0 %v6411
    %6471 = vmatprep.subr.mxu0 %v6416
    %6472 = vmatpush1.msra.mxu0 %v6415
    %6473 = vmatprep.subr.mxu0 %v6420
    %6474 = vmatpush1.msra.mxu0 %v6419
    %6475 = vmatprep.subr.mxu0 %v6424
    %6476 = vmatpush1.msra.mxu0 %v6423
    %6477 = vmatprep.subr.mxu0 %v6428
    %6478 = vmatpush1.msra.mxu0 %v6427
    %6479 = vmatprep.subr.mxu0 %v6432
    %6480 = vmatpush1.msra.mxu0 %v6431
    %6481 = vmatprep.subr.mxu0 %v6436
    %6482 = vmatpush1.msra.mxu0 %v6435
    %6483 = vmatprep.subr.mxu0 %v6440
    %6484 = vmatpush1.msra.mxu0 %v6439
    %6485 = vmatprep.subr.mxu0 %v6444
    %6486 = vmatpush1.msra.mxu0 %v6443
    %6487 = vmatprep.subr.mxu0 %v6448
    %6488 = vmatpush1.msra.mxu0 %v6447
    %6489 = vmatprep.subr.mxu0 %v6452
    %6490 = vmatpush1.msra.mxu0 %v6451
    %6491 = vmatprep.subr.mxu0 %v6456
    %6492 = vmatpush1.msra.mxu0 %v6455
    %6493 = vmatprep.subr.mxu0 %v6460
    %6494 = vmatpush1.msra.mxu0 %v6459
    %6495 = vmatprep.subr.mxu0 0.0
    %6496 = vmatpush1.msra.mxu0 0.0
    %6497 = vmatprep.subr.mxu0 0.0
    %6498 = vmatpush1.msra.mxu0 0.0
    %6499 = vmatprep.subr.mxu0 0.0
    %6500 = vmatpush1.msra.mxu0 0.0
    %6501 = vmatprep.subr.mxu0 0.0
    %6502 = vmatpush1.msra.mxu0 0.0
    %6503 = vmatprep.subr.mxu0 0.0
    %6504 = vmatpush1.msra.mxu0 0.0
    %6505 = vmatprep.subr.mxu0 0.0
    %6506 = vmatpush1.msra.mxu0 0.0
    %6507 = vmatprep.subr.mxu0 0.0
    %6508 = vmatpush1.msra.mxu0 0.0
    %6509 = vmatprep.subr.mxu0 0.0
    %6510 = vmatpush1.msra.mxu0 0.0
    %6511 = vmatprep.subr.mxu0 0.0
    %6512 = vmatpush1.msra.mxu0 0.0
    %6513 = vmatprep.subr.mxu0 0.0
    %6514 = vmatpush1.msra.mxu0 0.0
    %6515 = vmatprep.subr.mxu0 0.0
    %6516 = vmatpush1.msra.mxu0 0.0
    %6517 = vmatprep.subr.mxu0 0.0
    %6518 = vmatpush1.msra.mxu0 0.0
    %6519 = vmatprep.subr.mxu0 0.0
    %6520 = vmatpush1.msra.mxu0 0.0
    %6521 = vmatprep.subr.mxu0 0.0
    %6522 = vmatpush1.msra.mxu0 0.0
    %6523 = vmatprep.subr.mxu0 0.0
    %6524 = vmatpush1.msra.mxu0 0.0
    %6525 = vmatprep.subr.mxu0 0.0
    %6526 = vmatpush1.msra.mxu0 0.0
    %6527 = vmatprep.mubr.f32.mxu0 0.0
    %6528 = vmatmul.mubr.f32.gmra.mrb[0].mxu0 %v6398
    %v6529 = vpop.f32.mrb[0].mxu0
    %v6530 = vadd.f32 0.0, %v6529
    %v6531 = vpop.f32.mrb[0].mxu0
    %v6532 = vadd.f32 0.0, %v6531
    %6533 = vdwg.mxu0
    %6534 = vmatprep.subr.mxu0 %v6402
    %6535 = vmatpush1.msra.mxu0 %v6401
    %6536 = vmatprep.subr.mxu0 %v6406
    %6537 = vmatpush1.msra.mxu0 %v6405
    %6538 = vmatprep.subr.mxu0 %v6410
    %6539 = vmatpush1.msra.mxu0 %v6409
    %6540 = vmatprep.subr.mxu0 %v6414
    %6541 = vmatpush1.msra.mxu0 %v6413
    %6542 = vmatprep.subr.mxu0 %v6418
    %6543 = vmatpush1.msra.mxu0 %v6417
    %6544 = vmatprep.subr.mxu0 %v6422
    %6545 = vmatpush1.msra.mxu0 %v6421
    %6546 = vmatprep.subr.mxu0 %v6426
    %6547 = vmatpush1.msra.mxu0 %v6425
    %6548 = vmatprep.subr.mxu0 %v6430
    %6549 = vmatpush1.msra.mxu0 %v6429
    %6550 = vmatprep.subr.mxu0 %v6434
    %6551 = vmatpush1.msra.mxu0 %v6433
    %6552 = vmatprep.subr.mxu0 %v6438
    %6553 = vmatpush1.msra.mxu0 %v6437
    %6554 = vmatprep.subr.mxu0 %v6442
    %6555 = vmatpush1.msra.mxu0 %v6441
    %6556 = vmatprep.subr.mxu0 %v6446
    %6557 = vmatpush1.msra.mxu0 %v6445
    %6558 = vmatprep.subr.mxu0 %v6450
    %6559 = vmatpush1.msra.mxu0 %v6449
    %6560 = vmatprep.subr.mxu0 %v6454
    %6561 = vmatpush1.msra.mxu0 %v6453
    %6562 = vmatprep.subr.mxu0 %v6458
    %6563 = vmatpush1.msra.mxu0 %v6457
    %6564 = vmatprep.subr.mxu0 %v6462
    %6565 = vmatpush1.msra.mxu0 %v6461
    %6566 = vmatprep.subr.mxu0 0.0
    %6567 = vmatpush1.msra.mxu0 0.0
    %6568 = vmatprep.subr.mxu0 0.0
    %6569 = vmatpush1.msra.mxu0 0.0
    %6570 = vmatprep.subr.mxu0 0.0
    %6571 = vmatpush1.msra.mxu0 0.0
    %6572 = vmatprep.subr.mxu0 0.0
    %6573 = vmatpush1.msra.mxu0 0.0
    %6574 = vmatprep.subr.mxu0 0.0
    %6575 = vmatpush1.msra.mxu0 0.0
    %6576 = vmatprep.subr.mxu0 0.0
    %6577 = vmatpush1.msra.mxu0 0.0
    %6578 = vmatprep.subr.mxu0 0.0
    %6579 = vmatpush1.msra.mxu0 0.0
    %6580 = vmatprep.subr.mxu0 0.0
    %6581 = vmatpush1.msra.mxu0 0.0
    %6582 = vmatprep.subr.mxu0 0.0
    %6583 = vmatpush1.msra.mxu0 0.0
    %6584 = vmatprep.subr.mxu0 0.0
    %6585 = vmatpush1.msra.mxu0 0.0
    %6586 = vmatprep.subr.mxu0 0.0
    %6587 = vmatpush1.msra.mxu0 0.0
    %6588 = vmatprep.subr.mxu0 0.0
    %6589 = vmatpush1.msra.mxu0 0.0
    %6590 = vmatprep.subr.mxu0 0.0
    %6591 = vmatpush1.msra.mxu0 0.0
    %6592 = vmatprep.subr.mxu0 0.0
    %6593 = vmatpush1.msra.mxu0 0.0
    %6594 = vmatprep.subr.mxu0 0.0
    %6595 = vmatpush1.msra.mxu0 0.0
    %6596 = vmatprep.subr.mxu0 0.0
    %6597 = vmatpush1.msra.mxu0 0.0
    %6598 = vmatprep.mubr.f32.mxu0 0.0
    %6599 = vmatmul.mubr.f32.gmra.mrb[0].mxu0 %v6398
    %v6600 = vpop.f32.mrb[0].mxu0
    %v6601 = vadd.f32 0.0, %v6600
    %v6602 = vpop.f32.mrb[0].mxu0
    %v6603 = vadd.f32 0.0, %v6602
    %6604 = vdwg.mxu0
    %v6605 = vadd.f32 %v6394, %v6530
    %v6606 = vadd.f32 %v6395, %v6532
    %v6607 = vadd.f32 %v6396, %v6601
    %v6608 = vadd.f32 %v6397, %v6603
    %v6609 = vld [vmem:[#allocation5] sm:$0xff]
    %v6610 = vxor.u32 %v6605, 2147483648
    %v6611 = vmul.f32 %v6610, 1.442695
    %v6612 = vpow.pop %v6611
    %v6613 = vadd.f32 %v6612, 1.0
    %v6614 = vrcp.pop %v6613
    %v6615 = vmul.f32 1.0, %v6614
    %v6616 = vxor.u32 %v6606, 2147483648
    %v6617 = vmul.f32 %v6616, 1.442695
    %v6618 = vpow.pop %v6617
    %v6619 = vadd.f32 %v6618, 1.0
    %v6620 = vrcp.pop %v6619
    %v6621 = vmul.f32 1.0, %v6620
    %v6622 = vtanh.pop %v6607
    %v6623 = vxor.u32 %v6608, 2147483648
    %v6624 = vmul.f32 %v6623, 1.442695
    %v6625 = vpow.pop %v6624
    %v6626 = vadd.f32 %v6625, 1.0
    %v6627 = vrcp.pop %v6626
    %v6628 = vmul.f32 1.0, %v6627
    %v6629 = vmul.f32 %v6621, %v6609
    %v6630 = vmul.f32 %v6615, %v6622
    %v6631 = vadd.f32 %v6629, %v6630
    %v6632 = vtanh.pop %v6631
    %v6633 = vmul.f32 %v6628, %v6632
    %6634 = vst [vmem:[#allocation4] sm:$0xff] %v6633
    %6635 = vst [vmem:[#allocation5] sm:$0xff] %v6631
    %v6636 = vld [vmem:[%s1649] sm:$0xff]
    %v6637 = vld [vmem:[%s1649 + $0x8] sm:$0xff]
    %v6638 = vld [vmem:[%s1649 + $0x10] sm:$0xff]
    %v6639 = vld [vmem:[%s1649 + $0x18] sm:$0xff]
    %v6640 = vld [vmem:[#allocation4] sm:$0xff]
    %v6641 = vld [vmem:[#allocation11] sm:$0xff]
    %v6642 = vld [vmem:[#allocation11 + $0x8] sm:$0xff]
    %v6643 = vld [vmem:[#allocation11 + $0x10] sm:$0xff]
    %v6644 = vld [vmem:[#allocation11 + $0x18] sm:$0xff]
    %v6645 = vld [vmem:[#allocation11 + $0x20] sm:$0xff]
    %v6646 = vld [vmem:[#allocation11 + $0x28] sm:$0xff]
    %v6647 = vld [vmem:[#allocation11 + $0x30] sm:$0xff]
    %v6648 = vld [vmem:[#allocation11 + $0x38] sm:$0xff]
    %v6649 = vld [vmem:[#allocation11 + $0x40] sm:$0xff]
    %v6650 = vld [vmem:[#allocation11 + $0x48] sm:$0xff]
    %v6651 = vld [vmem:[#allocation11 + $0x50] sm:$0xff]
    %v6652 = vld [vmem:[#allocation11 + $0x58] sm:$0xff]
    %v6653 = vld [vmem:[#allocation11 + $0x60] sm:$0xff]
    %v6654 = vld [vmem:[#allocation11 + $0x68] sm:$0xff]
    %v6655 = vld [vmem:[#allocation11 + $0x70] sm:$0xff]
    %v6656 = vld [vmem:[#allocation11 + $0x78] sm:$0xff]
    %v6657 = vld [vmem:[#allocation11 + $0x80] sm:$0xff]
    %v6658 = vld [vmem:[#allocation11 + $0x88] sm:$0xff]
    %v6659 = vld [vmem:[#allocation11 + $0x90] sm:$0xff]
    %v6660 = vld [vmem:[#allocation11 + $0x98] sm:$0xff]
    %v6661 = vld [vmem:[#allocation11 + $0xa0] sm:$0xff]
    %v6662 = vld [vmem:[#allocation11 + $0xa8] sm:$0xff]
    %v6663 = vld [vmem:[#allocation11 + $0xb0] sm:$0xff]
    %v6664 = vld [vmem:[#allocation11 + $0xb8] sm:$0xff]
    %v6665 = vld [vmem:[#allocation11 + $0xc0] sm:$0xff]
    %v6666 = vld [vmem:[#allocation11 + $0xc8] sm:$0xff]
    %v6667 = vld [vmem:[#allocation11 + $0xd0] sm:$0xff]
    %v6668 = vld [vmem:[#allocation11 + $0xd8] sm:$0xff]
    %v6669 = vld [vmem:[#allocation11 + $0xe0] sm:$0xff]
    %v6670 = vld [vmem:[#allocation11 + $0xe8] sm:$0xff]
    %v6671 = vld [vmem:[#allocation11 + $0xf0] sm:$0xff]
    %v6672 = vld [vmem:[#allocation11 + $0xf8] sm:$0xff]
    %v6673 = vld [vmem:[#allocation11 + $0x100] sm:$0xff]
    %v6674 = vld [vmem:[#allocation11 + $0x108] sm:$0xff]
    %v6675 = vld [vmem:[#allocation11 + $0x110] sm:$0xff]
    %v6676 = vld [vmem:[#allocation11 + $0x118] sm:$0xff]
    %v6677 = vld [vmem:[#allocation11 + $0x120] sm:$0xff]
    %v6678 = vld [vmem:[#allocation11 + $0x128] sm:$0xff]
    %v6679 = vld [vmem:[#allocation11 + $0x130] sm:$0xff]
    %v6680 = vld [vmem:[#allocation11 + $0x138] sm:$0xff]
    %v6681 = vld [vmem:[#allocation11 + $0x140] sm:$0xff]
    %v6682 = vld [vmem:[#allocation11 + $0x148] sm:$0xff]
    %v6683 = vld [vmem:[#allocation11 + $0x150] sm:$0xff]
    %v6684 = vld [vmem:[#allocation11 + $0x158] sm:$0xff]
    %v6685 = vld [vmem:[#allocation11 + $0x160] sm:$0xff]
    %v6686 = vld [vmem:[#allocation11 + $0x168] sm:$0xff]
    %v6687 = vld [vmem:[#allocation11 + $0x170] sm:$0xff]
    %v6688 = vld [vmem:[#allocation11 + $0x178] sm:$0xff]
    %v6689 = vld [vmem:[#allocation11 + $0x180] sm:$0xff]
    %v6690 = vld [vmem:[#allocation11 + $0x188] sm:$0xff]
    %v6691 = vld [vmem:[#allocation11 + $0x190] sm:$0xff]
    %v6692 = vld [vmem:[#allocation11 + $0x198] sm:$0xff]
    %v6693 = vld [vmem:[#allocation11 + $0x1a0] sm:$0xff]
    %v6694 = vld [vmem:[#allocation11 + $0x1a8] sm:$0xff]
    %v6695 = vld [vmem:[#allocation11 + $0x1b0] sm:$0xff]
    %v6696 = vld [vmem:[#allocation11 + $0x1b8] sm:$0xff]
    %v6697 = vld [vmem:[#allocation11 + $0x1c0] sm:$0xff]
    %v6698 = vld [vmem:[#allocation11 + $0x1c8] sm:$0xff]
    %v6699 = vld [vmem:[#allocation11 + $0x1d0] sm:$0xff]
    %v6700 = vld [vmem:[#allocation11 + $0x1d8] sm:$0xff]
    %v6701 = vld [vmem:[#allocation11 + $0x1e0] sm:$0xff]
    %v6702 = vld [vmem:[#allocation11 + $0x1e8] sm:$0xff]
    %v6703 = vld [vmem:[#allocation11 + $0x1f0] sm:$0xff]
    %v6704 = vld [vmem:[#allocation11 + $0x1f8] sm:$0xff]
    %6705 = vmatprep.subr.mxu0 %v6642
    %6706 = vmatpush1.msra.mxu0 %v6641
    %6707 = vmatprep.subr.mxu0 %v6646
    %6708 = vmatpush1.msra.mxu0 %v6645
    %6709 = vmatprep.subr.mxu0 %v6650
    %6710 = vmatpush1.msra.mxu0 %v6649
    %6711 = vmatprep.subr.mxu0 %v6654
    %6712 = vmatpush1.msra.mxu0 %v6653
    %6713 = vmatprep.subr.mxu0 %v6658
    %6714 = vmatpush1.msra.mxu0 %v6657
    %6715 = vmatprep.subr.mxu0 %v6662
    %6716 = vmatpush1.msra.mxu0 %v6661
    %6717 = vmatprep.subr.mxu0 %v6666
    %6718 = vmatpush1.msra.mxu0 %v6665
    %6719 = vmatprep.subr.mxu0 %v6670
    %6720 = vmatpush1.msra.mxu0 %v6669
    %6721 = vmatprep.subr.mxu0 %v6674
    %6722 = vmatpush1.msra.mxu0 %v6673
    %6723 = vmatprep.subr.mxu0 %v6678
    %6724 = vmatpush1.msra.mxu0 %v6677
    %6725 = vmatprep.subr.mxu0 %v6682
    %6726 = vmatpush1.msra.mxu0 %v6681
    %6727 = vmatprep.subr.mxu0 %v6686
    %6728 = vmatpush1.msra.mxu0 %v6685
    %6729 = vmatprep.subr.mxu0 %v6690
    %6730 = vmatpush1.msra.mxu0 %v6689
    %6731 = vmatprep.subr.mxu0 %v6694
    %6732 = vmatpush1.msra.mxu0 %v6693
    %6733 = vmatprep.subr.mxu0 %v6698
    %6734 = vmatpush1.msra.mxu0 %v6697
    %6735 = vmatprep.subr.mxu0 %v6702
    %6736 = vmatpush1.msra.mxu0 %v6701
    %6737 = vmatprep.subr.mxu0 0.0
    %6738 = vmatpush1.msra.mxu0 0.0
    %6739 = vmatprep.subr.mxu0 0.0
    %6740 = vmatpush1.msra.mxu0 0.0
    %6741 = vmatprep.subr.mxu0 0.0
    %6742 = vmatpush1.msra.mxu0 0.0
    %6743 = vmatprep.subr.mxu0 0.0
    %6744 = vmatpush1.msra.mxu0 0.0
    %6745 = vmatprep.subr.mxu0 0.0
    %6746 = vmatpush1.msra.mxu0 0.0
    %6747 = vmatprep.subr.mxu0 0.0
    %6748 = vmatpush1.msra.mxu0 0.0
    %6749 = vmatprep.subr.mxu0 0.0
    %6750 = vmatpush1.msra.mxu0 0.0
    %6751 = vmatprep.subr.mxu0 0.0
    %6752 = vmatpush1.msra.mxu0 0.0
    %6753 = vmatprep.subr.mxu0 0.0
    %6754 = vmatpush1.msra.mxu0 0.0
    %6755 = vmatprep.subr.mxu0 0.0
    %6756 = vmatpush1.msra.mxu0 0.0
    %6757 = vmatprep.subr.mxu0 0.0
    %6758 = vmatpush1.msra.mxu0 0.0
    %6759 = vmatprep.subr.mxu0 0.0
    %6760 = vmatpush1.msra.mxu0 0.0
    %6761 = vmatprep.subr.mxu0 0.0
    %6762 = vmatpush1.msra.mxu0 0.0
    %6763 = vmatprep.subr.mxu0 0.0
    %6764 = vmatpush1.msra.mxu0 0.0
    %6765 = vmatprep.subr.mxu0 0.0
    %6766 = vmatpush1.msra.mxu0 0.0
    %6767 = vmatprep.subr.mxu0 0.0
    %6768 = vmatpush1.msra.mxu0 0.0
    %6769 = vmatprep.mubr.f32.mxu0 0.0
    %6770 = vmatmul.mubr.f32.gmra.mrb[0].mxu0 %v6640
    %v6771 = vpop.f32.mrb[0].mxu0
    %v6772 = vadd.f32 0.0, %v6771
    %v6773 = vpop.f32.mrb[0].mxu0
    %v6774 = vadd.f32 0.0, %v6773
    %6775 = vdwg.mxu0
    %6776 = vmatprep.subr.mxu0 %v6644
    %6777 = vmatpush1.msra.mxu0 %v6643
    %6778 = vmatprep.subr.mxu0 %v6648
    %6779 = vmatpush1.msra.mxu0 %v6647
    %6780 = vmatprep.subr.mxu0 %v6652
    %6781 = vmatpush1.msra.mxu0 %v6651
    %6782 = vmatprep.subr.mxu0 %v6656
    %6783 = vmatpush1.msra.mxu0 %v6655
    %6784 = vmatprep.subr.mxu0 %v6660
    %6785 = vmatpush1.msra.mxu0 %v6659
    %6786 = vmatprep.subr.mxu0 %v6664
    %6787 = vmatpush1.msra.mxu0 %v6663
    %6788 = vmatprep.subr.mxu0 %v6668
    %6789 = vmatpush1.msra.mxu0 %v6667
    %6790 = vmatprep.subr.mxu0 %v6672
    %6791 = vmatpush1.msra.mxu0 %v6671
    %6792 = vmatprep.subr.mxu0 %v6676
    %6793 = vmatpush1.msra.mxu0 %v6675
    %6794 = vmatprep.subr.mxu0 %v6680
    %6795 = vmatpush1.msra.mxu0 %v6679
    %6796 = vmatprep.subr.mxu0 %v6684
    %6797 = vmatpush1.msra.mxu0 %v6683
    %6798 = vmatprep.subr.mxu0 %v6688
    %6799 = vmatpush1.msra.mxu0 %v6687
    %6800 = vmatprep.subr.mxu0 %v6692
    %6801 = vmatpush1.msra.mxu0 %v6691
    %6802 = vmatprep.subr.mxu0 %v6696
    %6803 = vmatpush1.msra.mxu0 %v6695
    %6804 = vmatprep.subr.mxu0 %v6700
    %6805 = vmatpush1.msra.mxu0 %v6699
    %6806 = vmatprep.subr.mxu0 %v6704
    %6807 = vmatpush1.msra.mxu0 %v6703
    %6808 = vmatprep.subr.mxu0 0.0
    %6809 = vmatpush1.msra.mxu0 0.0
    %6810 = vmatprep.subr.mxu0 0.0
    %6811 = vmatpush1.msra.mxu0 0.0
    %6812 = vmatprep.subr.mxu0 0.0
    %6813 = vmatpush1.msra.mxu0 0.0
    %6814 = vmatprep.subr.mxu0 0.0
    %6815 = vmatpush1.msra.mxu0 0.0
    %6816 = vmatprep.subr.mxu0 0.0
    %6817 = vmatpush1.msra.mxu0 0.0
    %6818 = vmatprep.subr.mxu0 0.0
    %6819 = vmatpush1.msra.mxu0 0.0
    %6820 = vmatprep.subr.mxu0 0.0
    %6821 = vmatpush1.msra.mxu0 0.0
    %6822 = vmatprep.subr.mxu0 0.0
    %6823 = vmatpush1.msra.mxu0 0.0
    %6824 = vmatprep.subr.mxu0 0.0
    %6825 = vmatpush1.msra.mxu0 0.0
    %6826 = vmatprep.subr.mxu0 0.0
    %6827 = vmatpush1.msra.mxu0 0.0
    %6828 = vmatprep.subr.mxu0 0.0
    %6829 = vmatpush1.msra.mxu0 0.0
    %6830 = vmatprep.subr.mxu0 0.0
    %6831 = vmatpush1.msra.mxu0 0.0
    %6832 = vmatprep.subr.mxu0 0.0
    %6833 = vmatpush1.msra.mxu0 0.0
    %6834 = vmatprep.subr.mxu0 0.0
    %6835 = vmatpush1.msra.mxu0 0.0
    %6836 = vmatprep.subr.mxu0 0.0
    %6837 = vmatpush1.msra.mxu0 0.0
    %6838 = vmatprep.subr.mxu0 0.0
    %6839 = vmatpush1.msra.mxu0 0.0
    %6840 = vmatprep.mubr.f32.mxu0 0.0
    %6841 = vmatmul.mubr.f32.gmra.mrb[0].mxu0 %v6640
    %v6842 = vpop.f32.mrb[0].mxu0
    %v6843 = vadd.f32 0.0, %v6842
    %v6844 = vpop.f32.mrb[0].mxu0
    %v6845 = vadd.f32 0.0, %v6844
    %6846 = vdwg.mxu0
    %v6847 = vadd.f32 %v6636, %v6772
    %v6848 = vadd.f32 %v6637, %v6774
    %v6849 = vadd.f32 %v6638, %v6843
    %v6850 = vadd.f32 %v6639, %v6845
    %v6851 = vld [vmem:[#allocation5] sm:$0xff]
    %v6852 = vxor.u32 %v6847, 2147483648
    %v6853 = vmul.f32 %v6852, 1.442695
    %v6854 = vpow.pop %v6853
    %v6855 = vadd.f32 %v6854, 1.0
    %v6856 = vrcp.pop %v6855
    %v6857 = vmul.f32 1.0, %v6856
    %v6858 = vxor.u32 %v6848, 2147483648
    %v6859 = vmul.f32 %v6858, 1.442695
    %v6860 = vpow.pop %v6859
    %v6861 = vadd.f32 %v6860, 1.0
    %v6862 = vrcp.pop %v6861
    %v6863 = vmul.f32 1.0, %v6862
    %v6864 = vtanh.pop %v6849
    %v6865 = vxor.u32 %v6850, 2147483648
    %v6866 = vmul.f32 %v6865, 1.442695
    %v6867 = vpow.pop %v6866
    %v6868 = vadd.f32 %v6867, 1.0
    %v6869 = vrcp.pop %v6868
    %v6870 = vmul.f32 1.0, %v6869
    %v6871 = vmul.f32 %v6863, %v6851
    %v6872 = vmul.f32 %v6857, %v6864
    %v6873 = vadd.f32 %v6871, %v6872
    %v6874 = vtanh.pop %v6873
    %v6875 = vmul.f32 %v6870, %v6874
    %6876 = vst [vmem:[#allocation4] sm:$0xff] %v6875
    %6877 = vst [vmem:[#allocation5] sm:$0xff] %v6873
    %v6878 = vld [vmem:[%s1135] sm:$0xff]
    %v6879 = vld [vmem:[%s1135 + $0x8] sm:$0xff]
    %v6880 = vld [vmem:[%s1135 + $0x10] sm:$0xff]
    %v6881 = vld [vmem:[%s1135 + $0x18] sm:$0xff]
    %v6882 = vld [vmem:[#allocation4] sm:$0xff]
    %v6883 = vld [vmem:[#allocation11] sm:$0xff]
    %v6884 = vld [vmem:[#allocation11 + $0x8] sm:$0xff]
    %v6885 = vld [vmem:[#allocation11 + $0x10] sm:$0xff]
    %v6886 = vld [vmem:[#allocation11 + $0x18] sm:$0xff]
    %v6887 = vld [vmem:[#allocation11 + $0x20] sm:$0xff]
    %v6888 = vld [vmem:[#allocation11 + $0x28] sm:$0xff]
    %v6889 = vld [vmem:[#allocation11 + $0x30] sm:$0xff]
    %v6890 = vld [vmem:[#allocation11 + $0x38] sm:$0xff]
    %v6891 = vld [vmem:[#allocation11 + $0x40] sm:$0xff]
    %v6892 = vld [vmem:[#allocation11 + $0x48] sm:$0xff]
    %v6893 = vld [vmem:[#allocation11 + $0x50] sm:$0xff]
    %v6894 = vld [vmem:[#allocation11 + $0x58] sm:$0xff]
    %v6895 = vld [vmem:[#allocation11 + $0x60] sm:$0xff]
    %v6896 = vld [vmem:[#allocation11 + $0x68] sm:$0xff]
    %v6897 = vld [vmem:[#allocation11 + $0x70] sm:$0xff]
    %v6898 = vld [vmem:[#allocation11 + $0x78] sm:$0xff]
    %v6899 = vld [vmem:[#allocation11 + $0x80] sm:$0xff]
    %v6900 = vld [vmem:[#allocation11 + $0x88] sm:$0xff]
    %v6901 = vld [vmem:[#allocation11 + $0x90] sm:$0xff]
    %v6902 = vld [vmem:[#allocation11 + $0x98] sm:$0xff]
    %v6903 = vld [vmem:[#allocation11 + $0xa0] sm:$0xff]
    %v6904 = vld [vmem:[#allocation11 + $0xa8] sm:$0xff]
    %v6905 = vld [vmem:[#allocation11 + $0xb0] sm:$0xff]
    %v6906 = vld [vmem:[#allocation11 + $0xb8] sm:$0xff]
    %v6907 = vld [vmem:[#allocation11 + $0xc0] sm:$0xff]
    %v6908 = vld [vmem:[#allocation11 + $0xc8] sm:$0xff]
    %v6909 = vld [vmem:[#allocation11 + $0xd0] sm:$0xff]
    %v6910 = vld [vmem:[#allocation11 + $0xd8] sm:$0xff]
    %v6911 = vld [vmem:[#allocation11 + $0xe0] sm:$0xff]
    %v6912 = vld [vmem:[#allocation11 + $0xe8] sm:$0xff]
    %v6913 = vld [vmem:[#allocation11 + $0xf0] sm:$0xff]
    %v6914 = vld [vmem:[#allocation11 + $0xf8] sm:$0xff]
    %v6915 = vld [vmem:[#allocation11 + $0x100] sm:$0xff]
    %v6916 = vld [vmem:[#allocation11 + $0x108] sm:$0xff]
    %v6917 = vld [vmem:[#allocation11 + $0x110] sm:$0xff]
    %v6918 = vld [vmem:[#allocation11 + $0x118] sm:$0xff]
    %v6919 = vld [vmem:[#allocation11 + $0x120] sm:$0xff]
    %v6920 = vld [vmem:[#allocation11 + $0x128] sm:$0xff]
    %v6921 = vld [vmem:[#allocation11 + $0x130] sm:$0xff]
    %v6922 = vld [vmem:[#allocation11 + $0x138] sm:$0xff]
    %v6923 = vld [vmem:[#allocation11 + $0x140] sm:$0xff]
    %v6924 = vld [vmem:[#allocation11 + $0x148] sm:$0xff]
    %v6925 = vld [vmem:[#allocation11 + $0x150] sm:$0xff]
    %v6926 = vld [vmem:[#allocation11 + $0x158] sm:$0xff]
    %v6927 = vld [vmem:[#allocation11 + $0x160] sm:$0xff]
    %v6928 = vld [vmem:[#allocation11 + $0x168] sm:$0xff]
    %v6929 = vld [vmem:[#allocation11 + $0x170] sm:$0xff]
    %v6930 = vld [vmem:[#allocation11 + $0x178] sm:$0xff]
    %v6931 = vld [vmem:[#allocation11 + $0x180] sm:$0xff]
    %v6932 = vld [vmem:[#allocation11 + $0x188] sm:$0xff]
    %v6933 = vld [vmem:[#allocation11 + $0x190] sm:$0xff]
    %v6934 = vld [vmem:[#allocation11 + $0x198] sm:$0xff]
    %v6935 = vld [vmem:[#allocation11 + $0x1a0] sm:$0xff]
    %v6936 = vld [vmem:[#allocation11 + $0x1a8] sm:$0xff]
    %v6937 = vld [vmem:[#allocation11 + $0x1b0] sm:$0xff]
    %v6938 = vld [vmem:[#allocation11 + $0x1b8] sm:$0xff]
    %v6939 = vld [vmem:[#allocation11 + $0x1c0] sm:$0xff]
    %v6940 = vld [vmem:[#allocation11 + $0x1c8] sm:$0xff]
    %v6941 = vld [vmem:[#allocation11 + $0x1d0] sm:$0xff]
    %v6942 = vld [vmem:[#allocation11 + $0x1d8] sm:$0xff]
    %v6943 = vld [vmem:[#allocation11 + $0x1e0] sm:$0xff]
    %v6944 = vld [vmem:[#allocation11 + $0x1e8] sm:$0xff]
    %v6945 = vld [vmem:[#allocation11 + $0x1f0] sm:$0xff]
    %v6946 = vld [vmem:[#allocation11 + $0x1f8] sm:$0xff]
    %6947 = vmatprep.subr.mxu0 %v6884
    %6948 = vmatpush1.msra.mxu0 %v6883
    %6949 = vmatprep.subr.mxu0 %v6888
    %6950 = vmatpush1.msra.mxu0 %v6887
    %6951 = vmatprep.subr.mxu0 %v6892
    %6952 = vmatpush1.msra.mxu0 %v6891
    %6953 = vmatprep.subr.mxu0 %v6896
    %6954 = vmatpush1.msra.mxu0 %v6895
    %6955 = vmatprep.subr.mxu0 %v6900
    %6956 = vmatpush1.msra.mxu0 %v6899
    %6957 = vmatprep.subr.mxu0 %v6904
    %6958 = vmatpush1.msra.mxu0 %v6903
    %6959 = vmatprep.subr.mxu0 %v6908
    %6960 = vmatpush1.msra.mxu0 %v6907
    %6961 = vmatprep.subr.mxu0 %v6912
    %6962 = vmatpush1.msra.mxu0 %v6911
    %6963 = vmatprep.subr.mxu0 %v6916
    %6964 = vmatpush1.msra.mxu0 %v6915
    %6965 = vmatprep.subr.mxu0 %v6920
    %6966 = vmatpush1.msra.mxu0 %v6919
    %6967 = vmatprep.subr.mxu0 %v6924
    %6968 = vmatpush1.msra.mxu0 %v6923
    %6969 = vmatprep.subr.mxu0 %v6928
    %6970 = vmatpush1.msra.mxu0 %v6927
    %6971 = vmatprep.subr.mxu0 %v6932
    %6972 = vmatpush1.msra.mxu0 %v6931
    %6973 = vmatprep.subr.mxu0 %v6936
    %6974 = vmatpush1.msra.mxu0 %v6935
    %6975 = vmatprep.subr.mxu0 %v6940
    %6976 = vmatpush1.msra.mxu0 %v6939
    %6977 = vmatprep.subr.mxu0 %v6944
    %6978 = vmatpush1.msra.mxu0 %v6943
    %6979 = vmatprep.subr.mxu0 0.0
    %6980 = vmatpush1.msra.mxu0 0.0
    %6981 = vmatprep.subr.mxu0 0.0
    %6982 = vmatpush1.msra.mxu0 0.0
    %6983 = vmatprep.subr.mxu0 0.0
    %6984 = vmatpush1.msra.mxu0 0.0
    %6985 = vmatprep.subr.mxu0 0.0
    %6986 = vmatpush1.msra.mxu0 0.0
    %6987 = vmatprep.subr.mxu0 0.0
    %6988 = vmatpush1.msra.mxu0 0.0
    %6989 = vmatprep.subr.mxu0 0.0
    %6990 = vmatpush1.msra.mxu0 0.0
    %6991 = vmatprep.subr.mxu0 0.0
    %6992 = vmatpush1.msra.mxu0 0.0
    %6993 = vmatprep.subr.mxu0 0.0
    %6994 = vmatpush1.msra.mxu0 0.0
    %6995 = vmatprep.subr.mxu0 0.0
    %6996 = vmatpush1.msra.mxu0 0.0
    %6997 = vmatprep.subr.mxu0 0.0
    %6998 = vmatpush1.msra.mxu0 0.0
    %6999 = vmatprep.subr.mxu0 0.0
    %7000 = vmatpush1.msra.mxu0 0.0
    %7001 = vmatprep.subr.mxu0 0.0
    %7002 = vmatpush1.msra.mxu0 0.0
    %7003 = vmatprep.subr.mxu0 0.0
    %7004 = vmatpush1.msra.mxu0 0.0
    %7005 = vmatprep.subr.mxu0 0.0
    %7006 = vmatpush1.msra.mxu0 0.0
    %7007 = vmatprep.subr.mxu0 0.0
    %7008 = vmatpush1.msra.mxu0 0.0
    %7009 = vmatprep.subr.mxu0 0.0
    %7010 = vmatpush1.msra.mxu0 0.0
    %7011 = vmatprep.mubr.f32.mxu0 0.0
    %7012 = vmatmul.mubr.f32.gmra.mrb[0].mxu0 %v6882
    %v7013 = vpop.f32.mrb[0].mxu0
    %v7014 = vadd.f32 0.0, %v7013
    %v7015 = vpop.f32.mrb[0].mxu0
    %v7016 = vadd.f32 0.0, %v7015
    %7017 = vdwg.mxu0
    %7018 = vmatprep.subr.mxu0 %v6886
    %7019 = vmatpush1.msra.mxu0 %v6885
    %7020 = vmatprep.subr.mxu0 %v6890
    %7021 = vmatpush1.msra.mxu0 %v6889
    %7022 = vmatprep.subr.mxu0 %v6894
    %7023 = vmatpush1.msra.mxu0 %v6893
    %7024 = vmatprep.subr.mxu0 %v6898
    %7025 = vmatpush1.msra.mxu0 %v6897
    %7026 = vmatprep.subr.mxu0 %v6902
    %7027 = vmatpush1.msra.mxu0 %v6901
    %7028 = vmatprep.subr.mxu0 %v6906
    %7029 = vmatpush1.msra.mxu0 %v6905
    %7030 = vmatprep.subr.mxu0 %v6910
    %7031 = vmatpush1.msra.mxu0 %v6909
    %7032 = vmatprep.subr.mxu0 %v6914
    %7033 = vmatpush1.msra.mxu0 %v6913
    %7034 = vmatprep.subr.mxu0 %v6918
    %7035 = vmatpush1.msra.mxu0 %v6917
    %7036 = vmatprep.subr.mxu0 %v6922
    %7037 = vmatpush1.msra.mxu0 %v6921
    %7038 = vmatprep.subr.mxu0 %v6926
    %7039 = vmatpush1.msra.mxu0 %v6925
    %7040 = vmatprep.subr.mxu0 %v6930
    %7041 = vmatpush1.msra.mxu0 %v6929
    %7042 = vmatprep.subr.mxu0 %v6934
    %7043 = vmatpush1.msra.mxu0 %v6933
    %7044 = vmatprep.subr.mxu0 %v6938
    %7045 = vmatpush1.msra.mxu0 %v6937
    %7046 = vmatprep.subr.mxu0 %v6942
    %7047 = vmatpush1.msra.mxu0 %v6941
    %7048 = vmatprep.subr.mxu0 %v6946
    %7049 = vmatpush1.msra.mxu0 %v6945
    %7050 = vmatprep.subr.mxu0 0.0
    %7051 = vmatpush1.msra.mxu0 0.0
    %7052 = vmatprep.subr.mxu0 0.0
    %7053 = vmatpush1.msra.mxu0 0.0
    %7054 = vmatprep.subr.mxu0 0.0
    %7055 = vmatpush1.msra.mxu0 0.0
    %7056 = vmatprep.subr.mxu0 0.0
    %7057 = vmatpush1.msra.mxu0 0.0
    %7058 = vmatprep.subr.mxu0 0.0
    %7059 = vmatpush1.msra.mxu0 0.0
    %7060 = vmatprep.subr.mxu0 0.0
    %7061 = vmatpush1.msra.mxu0 0.0
    %7062 = vmatprep.subr.mxu0 0.0
    %7063 = vmatpush1.msra.mxu0 0.0
    %7064 = vmatprep.subr.mxu0 0.0
    %7065 = vmatpush1.msra.mxu0 0.0
    %7066 = vmatprep.subr.mxu0 0.0
    %7067 = vmatpush1.msra.mxu0 0.0
    %7068 = vmatprep.subr.mxu0 0.0
    %7069 = vmatpush1.msra.mxu0 0.0
    %7070 = vmatprep.subr.mxu0 0.0
    %7071 = vmatpush1.msra.mxu0 0.0
    %7072 = vmatprep.subr.mxu0 0.0
    %7073 = vmatpush1.msra.mxu0 0.0
    %7074 = vmatprep.subr.mxu0 0.0
    %7075 = vmatpush1.msra.mxu0 0.0
    %7076 = vmatprep.subr.mxu0 0.0
    %7077 = vmatpush1.msra.mxu0 0.0
    %7078 = vmatprep.subr.mxu0 0.0
    %7079 = vmatpush1.msra.mxu0 0.0
    %7080 = vmatprep.subr.mxu0 0.0
    %7081 = vmatpush1.msra.mxu0 0.0
    %7082 = vmatprep.mubr.f32.mxu0 0.0
    %7083 = vmatmul.mubr.f32.gmra.mrb[0].mxu0 %v6882
    %v7084 = vpop.f32.mrb[0].mxu0
    %v7085 = vadd.f32 0.0, %v7084
    %v7086 = vpop.f32.mrb[0].mxu0
    %v7087 = vadd.f32 0.0, %v7086
    %7088 = vdwg.mxu0
    %v7089 = vadd.f32 %v6878, %v7014
    %v7090 = vadd.f32 %v6879, %v7016
    %v7091 = vadd.f32 %v6880, %v7085
    %v7092 = vadd.f32 %v6881, %v7087
    %v7093 = vld [vmem:[#allocation5] sm:$0xff]
    %v7094 = vxor.u32 %v7089, 2147483648
    %v7095 = vmul.f32 %v7094, 1.442695
    %v7096 = vpow.pop %v7095
    %v7097 = vadd.f32 %v7096, 1.0
    %v7098 = vrcp.pop %v7097
    %v7099 = vmul.f32 1.0, %v7098
    %v7100 = vxor.u32 %v7090, 2147483648
    %v7101 = vmul.f32 %v7100, 1.442695
    %v7102 = vpow.pop %v7101
    %v7103 = vadd.f32 %v7102, 1.0
    %v7104 = vrcp.pop %v7103
    %v7105 = vmul.f32 1.0, %v7104
    %v7106 = vtanh.pop %v7091
    %v7107 = vxor.u32 %v7092, 2147483648
    %v7108 = vmul.f32 %v7107, 1.442695
    %v7109 = vpow.pop %v7108
    %v7110 = vadd.f32 %v7109, 1.0
    %v7111 = vrcp.pop %v7110
    %v7112 = vmul.f32 1.0, %v7111
    %v7113 = vmul.f32 %v7105, %v7093
    %v7114 = vmul.f32 %v7099, %v7106
    %v7115 = vadd.f32 %v7113, %v7114
    %v7116 = vtanh.pop %v7115
    %v7117 = vmul.f32 %v7112, %v7116
    %7118 = vst [vmem:[#allocation4] sm:$0xff] %v7117
    %7119 = vst [vmem:[#allocation5] sm:$0xff] %v7115
    %v7120 = vld [vmem:[#allocation4] sm:$0xff]
    %7121 = vst [vmem:[%s7] sm:$0xff] %v7120
    // Predicated region
    $region46: #{music_encoder_forward.1} parent=1 // pred_check
      _
    $region47: #{music_encoder_forward.1} parent=1 // pred_check_branch
      %7123 = sbr.rel (0) target = $region49
    $region48: #{music_encoder_forward.1} parent=1 // pred_region
      _
    $region49: #{music_encoder_forward.1} parent=1 // pred_fallthru
      _
    // Predicated region
    $region50: #{music_encoder_forward.1} parent=1 // pred_check
      _
    $region51: #{music_encoder_forward.1} parent=1 // pred_check_branch
      %7125 = sbr.rel (0) target = $region53
    $region52: #{music_encoder_forward.1} parent=1 // pred_region
      _
    $region53: #{music_encoder_forward.1} parent=1 // pred_fallthru
      _
    %7126 = vsyncpa [#allocation7], 1
    %7127 = vsyncpa [#allocation9], 1
    %7128 = vsyncpa [#allocation12], 1

</llo_original>
